<compile_context>
chip_gen: v6e
topology: v6e:2x2x1
jax: 0.10.0
libtpu: 0.0.40
codegen_flags: <defaults>
</compile_context>

<pallas_src>
import functools

import jax
import jax.numpy as jnp
from jax.experimental import pallas as pl
from jax.experimental.pallas import tpu as pltpu

F32 = jnp.float32
BF16 = jnp.bfloat16


# ---------------------------------------------------------------------------
# In-kernel helpers (operate on VMEM refs / vregs only).
# ---------------------------------------------------------------------------
def _pad_write(pad_ref, x, P):
    """Zero-fill the (Hp, Wp, C) VMEM scratch and write x = (H, W, C) at offset P."""
    H, W = x.shape[0], x.shape[1]
    pad_ref[...] = jnp.zeros(pad_ref.shape, pad_ref.dtype)
    pad_ref[P:P + H, P:P + W, :] = x.astype(pad_ref.dtype)


def _conv3x3(pad_ref, w_ref, H, W, P, pad, dil):
    """3x3 'same' conv as ONE MXU matmul: im2col (H*W, 9*Cin) @ (9*Cin, Cout)."""
    cols = []
    for k in range(9):
        oi = P - pad + (k // 3) * dil
        oj = P - pad + (k % 3) * dil
        cols.append(pad_ref[oi:oi + H, oj:oj + W, :].reshape(H * W, -1))
    x = jnp.concatenate(cols, axis=-1).astype(BF16)              # (HW, 9*Cin) bf16
    return jnp.dot(x, w_ref[...], preferred_element_type=F32)    # (HW, Cout) f32


def _affine(y, bn_ref):
    """Folded eval-mode BatchNorm: y * scale + shift  (bn_ref = [[scale], [shift]])."""
    return y * bn_ref[0:1, :] + bn_ref[1:2, :]


def _relu(y):
    return jnp.maximum(y, 0.0)


def _value_chain(v1, pad_v_ref, wv23_ref, bnv23_ref, wv21_ref, H, W):
    """cv_conv / tv_conv tail: conv3x3(pad=1) + BN + relu -> conv1x1 (all in VMEM)."""
    _pad_write(pad_v_ref, v1.reshape(H, W, -1), 1)
    v2 = _relu(_affine(_conv3x3(pad_v_ref, wv23_ref, H, W, 1, 1, 1), bnv23_ref))
    return jnp.dot(v2.astype(BF16), wv21_ref[...], preferred_element_type=F32)


def _attn_skip_post(q, k, v, sk1, wsk1_ref, bnskp_ref,
                    wpo3_ref, bnpo3_ref, wpo1_ref, bnpp_ref, pad_o_ref, H, W):
    """S = Q K^T ; softmax over the query axis (torch dim=1) ; A = softmax(S) @ V ;
    out1 = tanh(BN(A + skip1x1)) ; out = tanh(BN(post_conv(out1) + out1))."""
    s = jnp.dot(q.astype(BF16), k.astype(BF16).T,
                preferred_element_type=F32)                       # (M, N) f32
    m = jnp.max(s, axis=0, keepdims=True)                         # softmax over queries
    p = jnp.exp(s - m)
    w = p / jnp.sum(p, axis=0, keepdims=True)                     # exact normalizer
    a = jnp.dot(w.astype(BF16), v.astype(BF16),
                preferred_element_type=F32)                       # (M, E)
    sk = jnp.dot(sk1.astype(BF16), wsk1_ref[...],
                 preferred_element_type=F32)                      # skip 1x1 conv
    out1 = jnp.tanh(_affine(a + sk, bnskp_ref))                   # skip_post
    # post_conv: conv3x3(pad=1) + BN + relu -> conv1x1 ; residual ; post_post BN + tanh
    _pad_write(pad_o_ref, out1.reshape(H, W, -1), 1)
    y = _relu(_affine(_conv3x3(pad_o_ref, wpo3_ref, H, W, 1, 1, 1), bnpo3_ref))
    y = jnp.dot(y.astype(BF16), wpo1_ref[...], preferred_element_type=F32)
    return jnp.tanh(_affine(y + out1, bnpp_ref))


# ---------------------------------------------------------------------------
# Kernel 1: the whole TAM stage for one batch image.
# ---------------------------------------------------------------------------
def _tam_kernel(c_ref, t_ref,
                wq_ref, bnq_ref, wkv_ref, bnkv_ref,
                wsk3_ref, bnsk3_ref, wv23_ref, bnv23_ref,
                wv21_ref, wsk1_ref, bnskp_ref,
                wpo3_ref, bnpo3_ref, wpo1_ref, bnpp_ref,
                out_ref,
                pad_c, pad_t, pad_v, pad_o, *, H, W, D):
    _pad_write(pad_c, c_ref[0], 2)
    _pad_write(pad_t, t_ref[0], 2)
    # query = tanh(BN(conv3x3 d2 (t_feat)))
    q = jnp.tanh(_affine(_conv3x3(pad_t, wq_ref, H, W, 2, 2, 2), bnq_ref))
    # c_conv (key) and cv_conv[0] share the padded c_feat and ONE matmul
    # (weights concatenated along Cout).
    kv = _affine(_conv3x3(pad_c, wkv_ref, H, W, 2, 2, 2), bnkv_ref)
    k = jnp.tanh(kv[:, :D])
    v1 = _relu(kv[:, D:])
    # skip_connect first conv (3x3, pad=1, dil=1) reads the same padded c_feat
    sk1 = _relu(_affine(_conv3x3(pad_c, wsk3_ref, H, W, 2, 1, 1), bnsk3_ref))
    # TODO(synk): F.interpolate(skip, (dh, dw), mode='bilinear') omitted; it is an exact
    # identity here because c_feat and t_feat share spatial dims in this instantiation.
    v = _value_chain(v1, pad_v, wv23_ref, bnv23_ref, wv21_ref, H, W)
    out_ref[0] = _attn_skip_post(q, k, v, sk1, wsk1_ref, bnskp_ref,
                                 wpo3_ref, bnpo3_ref, wpo1_ref, bnpp_ref, pad_o, H, W)


# ---------------------------------------------------------------------------
# Kernel 2: the whole TAMv2 self-attention stage (c_feat == t_feat == f).
# ---------------------------------------------------------------------------
def _tamv2_self_kernel(f_ref,
                       wqkv_ref, bnqkv_ref,
                       wsk3_ref, bnsk3_ref, wv23_ref, bnv23_ref,
                       wv21_ref, wsk1_ref, bnskp_ref,
                       wpo3_ref, bnpo3_ref, wpo1_ref, bnpp_ref,
                       out_ref,
                       pad_f, pad_v, pad_o, *, H, W, D):
    _pad_write(pad_f, f_ref[0], 2)
    # c_conv (query) | t_conv (key) | tv_conv[0] (value head) all read the same padded
    # input with identical geometry -> ONE matmul over Cout-concatenated weights.
    qkv = _affine(_conv3x3(pad_f, wqkv_ref, H, W, 2, 2, 2), bnqkv_ref)
    q = jnp.tanh(qkv[:, :D])
    k = jnp.tanh(qkv[:, D:2 * D])
    v1 = _relu(qkv[:, 2 * D:])
    sk1 = _relu(_affine(_conv3x3(pad_f, wsk3_ref, H, W, 2, 1, 1), bnsk3_ref))
    v = _value_chain(v1, pad_v, wv23_ref, bnv23_ref, wv21_ref, H, W)
    out_ref[0] = _attn_skip_post(q, k, v, sk1, wsk1_ref, bnskp_ref,
                                 wpo3_ref, bnpo3_ref, wpo1_ref, bnpp_ref, pad_o, H, W)


# ---------------------------------------------------------------------------
# Wrappers (one pallas_call per stage, grid over batch, "parallel" for v7x 2-TC).
# ---------------------------------------------------------------------------
def _rep_spec(shape):
    zeros = (0,) * len(shape)
    return pl.BlockSpec(shape, lambda b, _z=zeros: _z)


def tam_forward(p, c_feat, t_feat):
    """TAM(c_feat, t_feat). Inputs channels-last (B, H, W, C); returns (B, H*W, E) f32."""
    B, H, W, Cc = c_feat.shape
    Ct = t_feat.shape[-1]
    D = p["bnq"].shape[-1]
    E = p["bnpp"].shape[-1]

    weight_names = ["wq", "bnq", "wkv", "bnkv", "wsk3", "bnsk3", "wv23", "bnv23",
                    "wv21", "wsk1", "bnskp", "wpo3", "bnpo3", "wpo1", "bnpp"]
    weights = [p[n] for n in weight_names]

    return pl.pallas_call(
        functools.partial(_tam_kernel, H=H, W=W, D=D),
        grid=(B,),
        in_specs=[pl.BlockSpec((1, H, W, Cc), lambda b: (b, 0, 0, 0)),
                  pl.BlockSpec((1, H, W, Ct), lambda b: (b, 0, 0, 0))]
                 + [_rep_spec(w.shape) for w in weights],
        out_specs=pl.BlockSpec((1, H * W, E), lambda b: (b, 0, 0)),
        out_shape=jax.ShapeDtypeStruct((B, H * W, E), F32),
        scratch_shapes=[pltpu.VMEM((H + 4, W + 4, Cc), F32),   # padded c_feat
                        pltpu.VMEM((H + 4, W + 4, Ct), F32),   # padded t_feat
                        pltpu.VMEM((H + 2, W + 2, E), F32),    # padded value intermediate
                        pltpu.VMEM((H + 2, W + 2, E), F32)],   # padded post intermediate
        compiler_params=pltpu.CompilerParams(dimension_semantics=("parallel",)),
    )(c_feat, t_feat, *weights)


def tamv2_self_forward(p, f):
    """TAMv2(f, f) self-attention stage. f: (B, H, W, E); returns (B, H*W, E) f32."""
    B, H, W, E = f.shape
    D = (p["bnqkv"].shape[-1] - E) // 2

    weight_names = ["wqkv", "bnqkv", "wsk3", "bnsk3", "wv23", "bnv23",
                    "wv21", "wsk1", "bnskp", "wpo3", "bnpo3", "wpo1", "bnpp"]
    weights = [p[n] for n in weight_names]

    return pl.pallas_call(
        functools.partial(_tamv2_self_kernel, H=H, W=W, D=D),
        grid=(B,),
        in_specs=[pl.BlockSpec((1, H, W, E), lambda b: (b, 0, 0, 0))]
                 + [_rep_spec(w.shape) for w in weights],
        out_specs=pl.BlockSpec((1, H * W, E), lambda b: (b, 0, 0)),
        out_shape=jax.ShapeDtypeStruct((B, H * W, E), F32),
        scratch_shapes=[pltpu.VMEM((H + 4, W + 4, E), F32),
                        pltpu.VMEM((H + 2, W + 2, E), F32),
                        pltpu.VMEM((H + 2, W + 2, E), F32)],
        compiler_params=pltpu.CompilerParams(dimension_semantics=("parallel",)),
    )(f, *weights)


# ---------------------------------------------------------------------------
# Deterministic parameters, pre-packed for the kernels.
#   3x3 weights: (9*Cin, Cout) bf16 with rows ordered (kh, kw, cin) to match im2col.
#   1x1 weights: (Cin, Cout) bf16.  BatchNorm(eval) folded to (2, C) = [scale; shift].
# ---------------------------------------------------------------------------
class KeyGen:
    def __init__(self, key):
        self.key = key

    def __call__(self):
        self.key, sub = jax.random.split(self.key)
        return sub


def _conv3_w(key, cin, cout):
    w = jax.random.normal(key, (cout, cin, 3, 3), F32) / jnp.sqrt(float(cin * 9))
    return jnp.transpose(w, (2, 3, 1, 0)).reshape(9 * cin, cout).astype(BF16)


def _conv1_w(key, cin, cout):
    w = jax.random.normal(key, (cout, cin), F32) / jnp.sqrt(float(cin))
    return w.T.astype(BF16)


def _bn_pack(key, c, eps=1e-5):
    k1, k2, k3, k4 = jax.random.split(key, 4)
    gamma = 1.0 + 0.1 * jax.random.normal(k1, (c,), F32)
    beta = 0.1 * jax.random.normal(k2, (c,), F32)
    mean = 0.1 * jax.random.normal(k3, (c,), F32)
    var = 1.0 + 0.1 * jax.random.uniform(k4, (c,), F32)
    scale = gamma / jnp.sqrt(var + eps)
    shift = beta - mean * scale
    return jnp.stack([scale, shift], axis=0)                     # (2, C) f32


def build_tam_params(kg, inp_t, inp_c, D, E):
    p = {}
    p["wq"] = _conv3_w(kg(), inp_t, D); p["bnq"] = _bn_pack(kg(), D)         # t_conv
    wk = _conv3_w(kg(), inp_c, D); bnk = _bn_pack(kg(), D)                   # c_conv
    wv1 = _conv3_w(kg(), inp_c, E); bnv1 = _bn_pack(kg(), E)                 # cv_conv[0]
    p["wkv"] = jnp.concatenate([wk, wv1], axis=1)                            # shared matmul
    p["bnkv"] = jnp.concatenate([bnk, bnv1], axis=1)
    p["wv23"] = _conv3_w(kg(), E, E); p["bnv23"] = _bn_pack(kg(), E)         # cv_conv[3]
    p["wv21"] = _conv1_w(kg(), E, E)                                         # cv_conv[6]
    p["wsk3"] = _conv3_w(kg(), inp_c, E); p["bnsk3"] = _bn_pack(kg(), E)     # skip_connect
    p["wsk1"] = _conv1_w(kg(), E, E)
    p["bnskp"] = _bn_pack(kg(), E)                                           # skip_post
    p["wpo3"] = _conv3_w(kg(), E, E); p["bnpo3"] = _bn_pack(kg(), E)         # post_conv
    p["wpo1"] = _conv1_w(kg(), E, E)
    p["bnpp"] = _bn_pack(kg(), E)                                            # post_post
    return p


def build_tamv2_self_params(kg, D, E):
    p = {}
    wc = _conv3_w(kg(), E, D); bnc = _bn_pack(kg(), D)     # c_conv -> query
    wt = _conv3_w(kg(), E, D); bnt = _bn_pack(kg(), D)     # t_conv -> key
    wv1 = _conv3_w(kg(), E, E); bnv1 = _bn_pack(kg(), E)   # tv_conv[0]
    p["wqkv"] = jnp.concatenate([wc, wt, wv1], axis=1)     # shared matmul
    p["bnqkv"] = jnp.concatenate([bnc, bnt, bnv1], axis=1)
    p["wv23"] = _conv3_w(kg(), E, E); p["bnv23"] = _bn_pack(kg(), E)
    p["wv21"] = _conv1_w(kg(), E, E)
    p["wsk3"] = _conv3_w(kg(), E, E); p["bnsk3"] = _bn_pack(kg(), E)
    p["wsk1"] = _conv1_w(kg(), E, E)
    p["bnskp"] = _bn_pack(kg(), E)
    p["wpo3"] = _conv3_w(kg(), E, E); p["bnpo3"] = _bn_pack(kg(), E)
    p["wpo1"] = _conv1_w(kg(), E, E)
    p["bnpp"] = _bn_pack(kg(), E)
    return p


def build_attention_block(key, inp_tran_dim, inp_coords_dim, qk_dim, out_dim):
    kg = KeyGen(key)
    return {
        # type=0 -> TAM(inp_tran_dim, inp_coords_dim, qk_dim, out_dim)
        "tam": build_tam_params(kg, inp_tran_dim, inp_coords_dim, qk_dim, out_dim),
        # self_attn = TAMv2(out_dim, out_dim, qk_dim, out_dim), applied as (f, f)
        "self_attn": build_tamv2_self_params(kg, qk_dim, out_dim),
    }


# ---------------------------------------------------------------------------
# Module forward (NCHW in / NCHW out, channels-last only at the boundary).
# ---------------------------------------------------------------------------
def attention_block_forward(params, feat1, feat2):
    """AttentionBlock.forward: f = tam(feat1, feat2); f = self_attn(f, f)."""
    c_feat = jnp.transpose(feat1, (0, 2, 3, 1))   # NCHW -> NHWC (once)
    t_feat = jnp.transpose(feat2, (0, 2, 3, 1))
    B, H, W, _ = c_feat.shape
    f = tam_forward(params["tam"], c_feat, t_feat)                    # (B, HW, E)
    g = tamv2_self_forward(params["self_attn"], f.reshape(B, H, W, -1))
    E = g.shape[-1]
    return jnp.transpose(g.reshape(B, H, W, E), (0, 3, 1, 2))         # back to NCHW (once)


# ---------------------------------------------------------------------------
if __name__ == "__main__":
    B = 2
    inp_tran_dim = 4      # channels of feat2 (t_feat)
    inp_coords_dim = 4    # channels of feat1 (c_feat)
    qk_dim = 8
    out_dim = 8
    H = W = 8

    root = jax.random.PRNGKey(0)
    k_params, k_f1, k_f2 = jax.random.split(root, 3)

    params = build_attention_block(k_params, inp_tran_dim, inp_coords_dim, qk_dim, out_dim)
    feat1 = jax.random.normal(k_f1, (B, inp_coords_dim, H, W), jnp.float32)   # c_feat
    feat2 = jax.random.normal(k_f2, (B, inp_tran_dim, H, W), jnp.float32)     # t_feat

    fwd = jax.jit(attention_block_forward)
    out = jax.block_until_ready(fwd(params, feat1, feat2))

    assert out.shape == (B, out_dim, H, W), out.shape
    assert bool(jnp.all(jnp.isfinite(out)))
    print("KERNEL_OK")
</pallas_src>

<mosaic_0001>
module attributes {stable_mosaic.version = 11 : i64} {
  func.func @_tamv2_self_kernel(%arg0: i32, %arg1: memref<1x8x8x8xf32, #tpu.memory_space<vmem>>, %arg2: memref<72x24xbf16, #tpu.memory_space<vmem>>, %arg3: memref<2x24xf32, #tpu.memory_space<vmem>>, %arg4: memref<72x8xbf16, #tpu.memory_space<vmem>>, %arg5: memref<2x8xf32, #tpu.memory_space<vmem>>, %arg6: memref<72x8xbf16, #tpu.memory_space<vmem>>, %arg7: memref<2x8xf32, #tpu.memory_space<vmem>>, %arg8: memref<8x8xbf16, #tpu.memory_space<vmem>>, %arg9: memref<8x8xbf16, #tpu.memory_space<vmem>>, %arg10: memref<2x8xf32, #tpu.memory_space<vmem>>, %arg11: memref<72x8xbf16, #tpu.memory_space<vmem>>, %arg12: memref<2x8xf32, #tpu.memory_space<vmem>>, %arg13: memref<8x8xbf16, #tpu.memory_space<vmem>>, %arg14: memref<2x8xf32, #tpu.memory_space<vmem>>, %arg15: memref<1x64x8xf32, #tpu.memory_space<vmem>>, %arg16: memref<12x12x8xf32, #tpu.memory_space<vmem>>, %arg17: memref<10x10x8xf32, #tpu.memory_space<vmem>>, %arg18: memref<10x10x8xf32, #tpu.memory_space<vmem>>) attributes {dimension_semantics = [#tpu.dimension_semantics<parallel>], iteration_bounds = array<i64: 2>, scalar_prefetch = 0 : i64, scratch_operands = 3 : i64, tpu.core_type = #tpu.core_type<tc>, window_params = [{transform_indices = @transform_0, window_bounds = array<i64: 1, 8, 8, 8>}, {pipeline_mode = #tpu.pipeline_mode<synchronous>, transform_indices = @transform_1, window_bounds = array<i64: 72, 24>}, {pipeline_mode = #tpu.pipeline_mode<synchronous>, transform_indices = @transform_2, window_bounds = array<i64: 2, 24>}, {pipeline_mode = #tpu.pipeline_mode<synchronous>, transform_indices = @transform_3, window_bounds = array<i64: 72, 8>}, {pipeline_mode = #tpu.pipeline_mode<synchronous>, transform_indices = @transform_4, window_bounds = array<i64: 2, 8>}, {pipeline_mode = #tpu.pipeline_mode<synchronous>, transform_indices = @transform_5, window_bounds = array<i64: 72, 8>}, {pipeline_mode = #tpu.pipeline_mode<synchronous>, transform_indices = @transform_6, window_bounds = array<i64: 2, 8>}, {pipeline_mode = #tpu.pipeline_mode<synchronous>, transform_indices = @transform_7, window_bounds = array<i64: 8, 8>}, {pipeline_mode = #tpu.pipeline_mode<synchronous>, transform_indices = @transform_8, window_bounds = array<i64: 8, 8>}, {pipeline_mode = #tpu.pipeline_mode<synchronous>, transform_indices = @transform_9, window_bounds = array<i64: 2, 8>}, {pipeline_mode = #tpu.pipeline_mode<synchronous>, transform_indices = @transform_10, window_bounds = array<i64: 72, 8>}, {pipeline_mode = #tpu.pipeline_mode<synchronous>, transform_indices = @transform_11, window_bounds = array<i64: 2, 8>}, {pipeline_mode = #tpu.pipeline_mode<synchronous>, transform_indices = @transform_12, window_bounds = array<i64: 8, 8>}, {pipeline_mode = #tpu.pipeline_mode<synchronous>, transform_indices = @transform_13, window_bounds = array<i64: 2, 8>}, {transform_indices = @transform_14, window_bounds = array<i64: 1, 64, 8>}]} {
    %c0 = arith.constant 0 : index
    %c0_0 = arith.constant 0 : index
    %c0_1 = arith.constant 0 : index
    %c0_2 = arith.constant 0 : index
    %0 = vector.load %arg1[%c0, %c0_0, %c0_1, %c0_2] : memref<1x8x8x8xf32, #tpu.memory_space<vmem>>, vector<1x8x8x8xf32>
    %1 = vector.shape_cast %0 : vector<1x8x8x8xf32> to vector<8x8x8xf32>
    %cst = arith.constant 0.000000e+00 : f32
    %2 = vector.broadcast %cst : f32 to vector<12x12x8xf32>
    %c0_3 = arith.constant 0 : index
    %c0_4 = arith.constant 0 : index
    %c0_5 = arith.constant 0 : index
    %3 = vector.load %arg16[%c0_3, %c0_4, %c0_5] : memref<12x12x8xf32, #tpu.memory_space<vmem>>, vector<12x12x8xf32>
    tpu.vector_store %arg16[%c0_3, %c0_4, %c0_5], %2 {strides = array<i32>} : memref<12x12x8xf32, #tpu.memory_space<vmem>>, vector<12x12x8xf32>,
    %c2 = arith.constant 2 : index
    %c2_6 = arith.constant 2 : index
    %c0_7 = arith.constant 0 : index
    %4 = vector.load %arg16[%c2, %c2_6, %c0_7] : memref<12x12x8xf32, #tpu.memory_space<vmem>>, vector<8x8x8xf32>
    tpu.vector_store %arg16[%c2, %c2_6, %c0_7], %1 {strides = array<i32>} : memref<12x12x8xf32, #tpu.memory_space<vmem>>, vector<8x8x8xf32>,
    %c0_8 = arith.constant 0 : index
    %c0_9 = arith.constant 0 : index
    %c0_10 = arith.constant 0 : index
    %5 = vector.load %arg16[%c0_8, %c0_9, %c0_10] : memref<12x12x8xf32, #tpu.memory_space<vmem>>, vector<8x8x8xf32>
    %6 = vector.shape_cast %5 : vector<8x8x8xf32> to vector<64x8xf32>
    %c0_11 = arith.constant 0 : index
    %c2_12 = arith.constant 2 : index
    %c0_13 = arith.constant 0 : index
    %7 = vector.load %arg16[%c0_11, %c2_12, %c0_13] : memref<12x12x8xf32, #tpu.memory_space<vmem>>, vector<8x8x8xf32>
    %8 = vector.shape_cast %7 : vector<8x8x8xf32> to vector<64x8xf32>
    %c0_14 = arith.constant 0 : index
    %c4 = arith.constant 4 : index
    %c0_15 = arith.constant 0 : index
    %9 = vector.load %arg16[%c0_14, %c4, %c0_15] : memref<12x12x8xf32, #tpu.memory_space<vmem>>, vector<8x8x8xf32>
    %10 = vector.shape_cast %9 : vector<8x8x8xf32> to vector<64x8xf32>
    %c2_16 = arith.constant 2 : index
    %c0_17 = arith.constant 0 : index
    %c0_18 = arith.constant 0 : index
    %11 = vector.load %arg16[%c2_16, %c0_17, %c0_18] : memref<12x12x8xf32, #tpu.memory_space<vmem>>, vector<8x8x8xf32>
    %12 = vector.shape_cast %11 : vector<8x8x8xf32> to vector<64x8xf32>
    %c2_19 = arith.constant 2 : index
    %c2_20 = arith.constant 2 : index
    %c0_21 = arith.constant 0 : index
    %13 = vector.load %arg16[%c2_19, %c2_20, %c0_21] : memref<12x12x8xf32, #tpu.memory_space<vmem>>, vector<8x8x8xf32>
    %14 = vector.shape_cast %13 : vector<8x8x8xf32> to vector<64x8xf32>
    %c2_22 = arith.constant 2 : index
    %c4_23 = arith.constant 4 : index
    %c0_24 = arith.constant 0 : index
    %15 = vector.load %arg16[%c2_22, %c4_23, %c0_24] : memref<12x12x8xf32, #tpu.memory_space<vmem>>, vector<8x8x8xf32>
    %16 = vector.shape_cast %15 : vector<8x8x8xf32> to vector<64x8xf32>
    %c4_25 = arith.constant 4 : index
    %c0_26 = arith.constant 0 : index
    %c0_27 = arith.constant 0 : index
    %17 = vector.load %arg16[%c4_25, %c0_26, %c0_27] : memref<12x12x8xf32, #tpu.memory_space<vmem>>, vector<8x8x8xf32>
    %18 = vector.shape_cast %17 : vector<8x8x8xf32> to vector<64x8xf32>
    %c4_28 = arith.constant 4 : index
    %c2_29 = arith.constant 2 : index
    %c0_30 = arith.constant 0 : index
    %19 = vector.load %arg16[%c4_28, %c2_29, %c0_30] : memref<12x12x8xf32, #tpu.memory_space<vmem>>, vector<8x8x8xf32>
    %20 = vector.shape_cast %19 : vector<8x8x8xf32> to vector<64x8xf32>
    %c4_31 = arith.constant 4 : index
    %c4_32 = arith.constant 4 : index
    %c0_33 = arith.constant 0 : index
    %21 = vector.load %arg16[%c4_31, %c4_32, %c0_33] : memref<12x12x8xf32, #tpu.memory_space<vmem>>, vector<8x8x8xf32>
    %22 = vector.shape_cast %21 : vector<8x8x8xf32> to vector<64x8xf32>
    %23 = tpu.concatenate %6, %8, %10, %12, %14, %16, %18, %20, %22 in 1 : vector<64x8xf32>, vector<64x8xf32>, vector<64x8xf32>, vector<64x8xf32>, vector<64x8xf32>, vector<64x8xf32>, vector<64x8xf32>, vector<64x8xf32>, vector<64x8xf32> -> vector<64x72xf32>
    %24 = arith.truncf %23 : vector<64x72xf32> to vector<64x72xbf16>
    %c0_34 = arith.constant 0 : index
    %c0_35 = arith.constant 0 : index
    %25 = vector.load %arg2[%c0_34, %c0_35] : memref<72x24xbf16, #tpu.memory_space<vmem>>, vector<72x24xbf16>
    %cst_36 = arith.constant dense<0.000000e+00> : vector<64x24xf32>
    %26 = tpu.matmul %24, %25, %cst_36 {dimension_numbers = #tpu.dot_dimension_numbers<[1], [0], [0], [1], [0, 0, 1, 1], [], []>} : vector<64x72xbf16>, vector<72x24xbf16>, vector<64x24xf32> -> vector<64x24xf32>
    %c0_37 = arith.constant 0 : index
    %c0_38 = arith.constant 0 : index
    %27 = vector.load %arg3[%c0_37, %c0_38] : memref<2x24xf32, #tpu.memory_space<vmem>>, vector<1x24xf32>
    %28 = vector.broadcast %27 : vector<1x24xf32> to vector<64x24xf32>
    %29 = arith.mulf %26, %28 : vector<64x24xf32>
    %c1 = arith.constant 1 : index
    %c0_39 = arith.constant 0 : index
    %30 = vector.load %arg3[%c1, %c0_39] : memref<2x24xf32, #tpu.memory_space<vmem>>, vector<1x24xf32>
    %31 = vector.broadcast %30 : vector<1x24xf32> to vector<64x24xf32>
    %32 = arith.addf %29, %31 : vector<64x24xf32>
    %33 = vector.extract_strided_slice %32 {offsets = [0, 0], sizes = [64, 8], strides = [1, 1]} : vector<64x24xf32> to vector<64x8xf32>
    %34 = math.tanh %33 : vector<64x8xf32>
    %35 = vector.extract_strided_slice %32 {offsets = [0, 8], sizes = [64, 8], strides = [1, 1]} : vector<64x24xf32> to vector<64x8xf32>
    %36 = math.tanh %35 : vector<64x8xf32>
    %37 = vector.extract_strided_slice %32 {offsets = [0, 16], sizes = [64, 8], strides = [1, 1]} : vector<64x24xf32> to vector<64x8xf32>
    %cst_40 = arith.constant 0.000000e+00 : f32
    %38 = vector.broadcast %cst_40 : f32 to vector<64x8xf32>
    %39 = arith.maximumf %37, %38 : vector<64x8xf32>
    %c1_41 = arith.constant 1 : index
    %c1_42 = arith.constant 1 : index
    %c0_43 = arith.constant 0 : index
    %40 = vector.load %arg16[%c1_41, %c1_42, %c0_43] : memref<12x12x8xf32, #tpu.memory_space<vmem>>, vector<8x8x8xf32>
    %41 = vector.shape_cast %40 : vector<8x8x8xf32> to vector<64x8xf32>
    %c1_44 = arith.constant 1 : index
    %c2_45 = arith.constant 2 : index
    %c0_46 = arith.constant 0 : index
    %42 = vector.load %arg16[%c1_44, %c2_45, %c0_46] : memref<12x12x8xf32, #tpu.memory_space<vmem>>, vector<8x8x8xf32>
    %43 = vector.shape_cast %42 : vector<8x8x8xf32> to vector<64x8xf32>
    %c1_47 = arith.constant 1 : index
    %c3 = arith.constant 3 : index
    %c0_48 = arith.constant 0 : index
    %44 = vector.load %arg16[%c1_47, %c3, %c0_48] : memref<12x12x8xf32, #tpu.memory_space<vmem>>, vector<8x8x8xf32>
    %45 = vector.shape_cast %44 : vector<8x8x8xf32> to vector<64x8xf32>
    %c2_49 = arith.constant 2 : index
    %c1_50 = arith.constant 1 : index
    %c0_51 = arith.constant 0 : index
    %46 = vector.load %arg16[%c2_49, %c1_50, %c0_51] : memref<12x12x8xf32, #tpu.memory_space<vmem>>, vector<8x8x8xf32>
    %47 = vector.shape_cast %46 : vector<8x8x8xf32> to vector<64x8xf32>
    %c2_52 = arith.constant 2 : index
    %c2_53 = arith.constant 2 : index
    %c0_54 = arith.constant 0 : index
    %48 = vector.load %arg16[%c2_52, %c2_53, %c0_54] : memref<12x12x8xf32, #tpu.memory_space<vmem>>, vector<8x8x8xf32>
    %49 = vector.shape_cast %48 : vector<8x8x8xf32> to vector<64x8xf32>
    %c2_55 = arith.constant 2 : index
    %c3_56 = arith.constant 3 : index
    %c0_57 = arith.constant 0 : index
    %50 = vector.load %arg16[%c2_55, %c3_56, %c0_57] : memref<12x12x8xf32, #tpu.memory_space<vmem>>, vector<8x8x8xf32>
    %51 = vector.shape_cast %50 : vector<8x8x8xf32> to vector<64x8xf32>
    %c3_58 = arith.constant 3 : index
    %c1_59 = arith.constant 1 : index
    %c0_60 = arith.constant 0 : index
    %52 = vector.load %arg16[%c3_58, %c1_59, %c0_60] : memref<12x12x8xf32, #tpu.memory_space<vmem>>, vector<8x8x8xf32>
    %53 = vector.shape_cast %52 : vector<8x8x8xf32> to vector<64x8xf32>
    %c3_61 = arith.constant 3 : index
    %c2_62 = arith.constant 2 : index
    %c0_63 = arith.constant 0 : index
    %54 = vector.load %arg16[%c3_61, %c2_62, %c0_63] : memref<12x12x8xf32, #tpu.memory_space<vmem>>, vector<8x8x8xf32>
    %55 = vector.shape_cast %54 : vector<8x8x8xf32> to vector<64x8xf32>
    %c3_64 = arith.constant 3 : index
    %c3_65 = arith.constant 3 : index
    %c0_66 = arith.constant 0 : index
    %56 = vector.load %arg16[%c3_64, %c3_65, %c0_66] : memref<12x12x8xf32, #tpu.memory_space<vmem>>, vector<8x8x8xf32>
    %57 = vector.shape_cast %56 : vector<8x8x8xf32> to vector<64x8xf32>
    %58 = tpu.concatenate %41, %43, %45, %47, %49, %51, %53, %55, %57 in 1 : vector<64x8xf32>, vector<64x8xf32>, vector<64x8xf32>, vector<64x8xf32>, vector<64x8xf32>, vector<64x8xf32>, vector<64x8xf32>, vector<64x8xf32>, vector<64x8xf32> -> vector<64x72xf32>
    %59 = arith.truncf %58 : vector<64x72xf32> to vector<64x72xbf16>
    %c0_67 = arith.constant 0 : index
    %c0_68 = arith.constant 0 : index
    %60 = vector.load %arg4[%c0_67, %c0_68] : memref<72x8xbf16, #tpu.memory_space<vmem>>, vector<72x8xbf16>
    %cst_69 = arith.constant dense<0.000000e+00> : vector<64x8xf32>
    %61 = tpu.matmul %59, %60, %cst_69 {dimension_numbers = #tpu.dot_dimension_numbers<[1], [0], [0], [1], [0, 0, 1, 1], [], []>} : vector<64x72xbf16>, vector<72x8xbf16>, vector<64x8xf32> -> vector<64x8xf32>
    %c0_70 = arith.constant 0 : index
    %c0_71 = arith.constant 0 : index
    %62 = vector.load %arg5[%c0_70, %c0_71] : memref<2x8xf32, #tpu.memory_space<vmem>>, vector<1x8xf32>
    %63 = vector.broadcast %62 : vector<1x8xf32> to vector<64x8xf32>
    %64 = arith.mulf %61, %63 : vector<64x8xf32>
    %c1_72 = arith.constant 1 : index
    %c0_73 = arith.constant 0 : index
    %65 = vector.load %arg5[%c1_72, %c0_73] : memref<2x8xf32, #tpu.memory_space<vmem>>, vector<1x8xf32>
    %66 = vector.broadcast %65 : vector<1x8xf32> to vector<64x8xf32>
    %67 = arith.addf %64, %66 : vector<64x8xf32>
    %cst_74 = arith.constant 0.000000e+00 : f32
    %68 = vector.broadcast %cst_74 : f32 to vector<64x8xf32>
    %69 = arith.maximumf %67, %68 : vector<64x8xf32>
    %70 = vector.shape_cast %39 : vector<64x8xf32> to vector<8x8x8xf32>
    %cst_75 = arith.constant 0.000000e+00 : f32
    %71 = vector.broadcast %cst_75 : f32 to vector<10x10x8xf32>
    %c0_76 = arith.constant 0 : index
    %c0_77 = arith.constant 0 : index
    %c0_78 = arith.constant 0 : index
    %72 = vector.load %arg17[%c0_76, %c0_77, %c0_78] : memref<10x10x8xf32, #tpu.memory_space<vmem>>, vector<10x10x8xf32>
    tpu.vector_store %arg17[%c0_76, %c0_77, %c0_78], %71 {strides = array<i32>} : memref<10x10x8xf32, #tpu.memory_space<vmem>>, vector<10x10x8xf32>,
    %c1_79 = arith.constant 1 : index
    %c1_80 = arith.constant 1 : index
    %c0_81 = arith.constant 0 : index
    %73 = vector.load %arg17[%c1_79, %c1_80, %c0_81] : memref<10x10x8xf32, #tpu.memory_space<vmem>>, vector<8x8x8xf32>
    tpu.vector_store %arg17[%c1_79, %c1_80, %c0_81], %70 {strides = array<i32>} : memref<10x10x8xf32, #tpu.memory_space<vmem>>, vector<8x8x8xf32>,
    %c0_82 = arith.constant 0 : index
    %c0_83 = arith.constant 0 : index
    %c0_84 = arith.constant 0 : index
    %74 = vector.load %arg17[%c0_82, %c0_83, %c0_84] : memref<10x10x8xf32, #tpu.memory_space<vmem>>, vector<8x8x8xf32>
    %75 = vector.shape_cast %74 : vector<8x8x8xf32> to vector<64x8xf32>
    %c0_85 = arith.constant 0 : index
    %c1_86 = arith.constant 1 : index
    %c0_87 = arith.constant 0 : index
    %76 = vector.load %arg17[%c0_85, %c1_86, %c0_87] : memref<10x10x8xf32, #tpu.memory_space<vmem>>, vector<8x8x8xf32>
    %77 = vector.shape_cast %76 : vector<8x8x8xf32> to vector<64x8xf32>
    %c0_88 = arith.constant 0 : index
    %c2_89 = arith.constant 2 : index
    %c0_90 = arith.constant 0 : index
    %78 = vector.load %arg17[%c0_88, %c2_89, %c0_90] : memref<10x10x8xf32, #tpu.memory_space<vmem>>, vector<8x8x8xf32>
    %79 = vector.shape_cast %78 : vector<8x8x8xf32> to vector<64x8xf32>
    %c1_91 = arith.constant 1 : index
    %c0_92 = arith.constant 0 : index
    %c0_93 = arith.constant 0 : index
    %80 = vector.load %arg17[%c1_91, %c0_92, %c0_93] : memref<10x10x8xf32, #tpu.memory_space<vmem>>, vector<8x8x8xf32>
    %81 = vector.shape_cast %80 : vector<8x8x8xf32> to vector<64x8xf32>
    %c1_94 = arith.constant 1 : index
    %c1_95 = arith.constant 1 : index
    %c0_96 = arith.constant 0 : index
    %82 = vector.load %arg17[%c1_94, %c1_95, %c0_96] : memref<10x10x8xf32, #tpu.memory_space<vmem>>, vector<8x8x8xf32>
    %83 = vector.shape_cast %82 : vector<8x8x8xf32> to vector<64x8xf32>
    %c1_97 = arith.constant 1 : index
    %c2_98 = arith.constant 2 : index
    %c0_99 = arith.constant 0 : index
    %84 = vector.load %arg17[%c1_97, %c2_98, %c0_99] : memref<10x10x8xf32, #tpu.memory_space<vmem>>, vector<8x8x8xf32>
    %85 = vector.shape_cast %84 : vector<8x8x8xf32> to vector<64x8xf32>
    %c2_100 = arith.constant 2 : index
    %c0_101 = arith.constant 0 : index
    %c0_102 = arith.constant 0 : index
    %86 = vector.load %arg17[%c2_100, %c0_101, %c0_102] : memref<10x10x8xf32, #tpu.memory_space<vmem>>, vector<8x8x8xf32>
    %87 = vector.shape_cast %86 : vector<8x8x8xf32> to vector<64x8xf32>
    %c2_103 = arith.constant 2 : index
    %c1_104 = arith.constant 1 : index
    %c0_105 = arith.constant 0 : index
    %88 = vector.load %arg17[%c2_103, %c1_104, %c0_105] : memref<10x10x8xf32, #tpu.memory_space<vmem>>, vector<8x8x8xf32>
    %89 = vector.shape_cast %88 : vector<8x8x8xf32> to vector<64x8xf32>
    %c2_106 = arith.constant 2 : index
    %c2_107 = arith.constant 2 : index
    %c0_108 = arith.constant 0 : index
    %90 = vector.load %arg17[%c2_106, %c2_107, %c0_108] : memref<10x10x8xf32, #tpu.memory_space<vmem>>, vector<8x8x8xf32>
    %91 = vector.shape_cast %90 : vector<8x8x8xf32> to vector<64x8xf32>
    %92 = tpu.concatenate %75, %77, %79, %81, %83, %85, %87, %89, %91 in 1 : vector<64x8xf32>, vector<64x8xf32>, vector<64x8xf32>, vector<64x8xf32>, vector<64x8xf32>, vector<64x8xf32>, vector<64x8xf32>, vector<64x8xf32>, vector<64x8xf32> -> vector<64x72xf32>
    %93 = arith.truncf %92 : vector<64x72xf32> to vector<64x72xbf16>
    %c0_109 = arith.constant 0 : index
    %c0_110 = arith.constant 0 : index
    %94 = vector.load %arg6[%c0_109, %c0_110] : memref<72x8xbf16, #tpu.memory_space<vmem>>, vector<72x8xbf16>
    %cst_111 = arith.constant dense<0.000000e+00> : vector<64x8xf32>
    %95 = tpu.matmul %93, %94, %cst_111 {dimension_numbers = #tpu.dot_dimension_numbers<[1], [0], [0], [1], [0, 0, 1, 1], [], []>} : vector<64x72xbf16>, vector<72x8xbf16>, vector<64x8xf32> -> vector<64x8xf32>
    %c0_112 = arith.constant 0 : index
    %c0_113 = arith.constant 0 : index
    %96 = vector.load %arg7[%c0_112, %c0_113] : memref<2x8xf32, #tpu.memory_space<vmem>>, vector<1x8xf32>
    %97 = vector.broadcast %96 : vector<1x8xf32> to vector<64x8xf32>
    %98 = arith.mulf %95, %97 : vector<64x8xf32>
    %c1_114 = arith.constant 1 : index
    %c0_115 = arith.constant 0 : index
    %99 = vector.load %arg7[%c1_114, %c0_115] : memref<2x8xf32, #tpu.memory_space<vmem>>, vector<1x8xf32>
    %100 = vector.broadcast %99 : vector<1x8xf32> to vector<64x8xf32>
    %101 = arith.addf %98, %100 : vector<64x8xf32>
    %cst_116 = arith.constant 0.000000e+00 : f32
    %102 = vector.broadcast %cst_116 : f32 to vector<64x8xf32>
    %103 = arith.maximumf %101, %102 : vector<64x8xf32>
    %104 = arith.truncf %103 : vector<64x8xf32> to vector<64x8xbf16>
    %c0_117 = arith.constant 0 : index
    %c0_118 = arith.constant 0 : index
    %105 = vector.load %arg8[%c0_117, %c0_118] : memref<8x8xbf16, #tpu.memory_space<vmem>>, vector<8x8xbf16>
    %cst_119 = arith.constant dense<0.000000e+00> : vector<64x8xf32>
    %106 = tpu.matmul %104, %105, %cst_119 {dimension_numbers = #tpu.dot_dimension_numbers<[1], [0], [0], [1], [0, 0, 1, 1], [], []>} : vector<64x8xbf16>, vector<8x8xbf16>, vector<64x8xf32> -> vector<64x8xf32>
    %107 = arith.truncf %34 : vector<64x8xf32> to vector<64x8xbf16>
    %108 = arith.truncf %36 : vector<64x8xf32> to vector<64x8xbf16>
    %109 = tpu.transpose %108, [1, 0] : vector<64x8xbf16> -> vector<8x64xbf16>
    %cst_120 = arith.constant dense<0.000000e+00> : vector<64x64xf32>
    %110 = tpu.matmul %107, %109, %cst_120 {dimension_numbers = #tpu.dot_dimension_numbers<[1], [0], [0], [1], [0, 0, 1, 1], [], []>} : vector<64x8xbf16>, vector<8x64xbf16>, vector<64x64xf32> -> vector<64x64xf32>
    %cst_121 = arith.constant dense<0xFF800000> : vector<64xf32>
    %111 = vector.multi_reduction <maximumf>, %110, %cst_121 [0] : vector<64x64xf32> to vector<64xf32>
    %112 = vector.shape_cast %111 : vector<64xf32> to vector<1x64xf32>
    %113 = vector.broadcast %112 : vector<1x64xf32> to vector<64x64xf32>
    %114 = arith.subf %110, %113 : vector<64x64xf32>
    %115 = math.exp %114 : vector<64x64xf32>
    %cst_122 = arith.constant dense<0.000000e+00> : vector<64xf32>
    %116 = vector.multi_reduction <add>, %115, %cst_122 [0] : vector<64x64xf32> to vector<64xf32>
    %117 = vector.shape_cast %116 : vector<64xf32> to vector<1x64xf32>
    %118 = vector.broadcast %117 : vector<1x64xf32> to vector<64x64xf32>
    %119 = arith.divf %115, %118 : vector<64x64xf32>
    %120 = arith.truncf %119 : vector<64x64xf32> to vector<64x64xbf16>
    %121 = arith.truncf %106 : vector<64x8xf32> to vector<64x8xbf16>
    %cst_123 = arith.constant dense<0.000000e+00> : vector<64x8xf32>
    %122 = tpu.matmul %120, %121, %cst_123 {dimension_numbers = #tpu.dot_dimension_numbers<[1], [0], [0], [1], [0, 0, 1, 1], [], []>} : vector<64x64xbf16>, vector<64x8xbf16>, vector<64x8xf32> -> vector<64x8xf32>
    %123 = arith.truncf %69 : vector<64x8xf32> to vector<64x8xbf16>
    %c0_124 = arith.constant 0 : index
    %c0_125 = arith.constant 0 : index
    %124 = vector.load %arg9[%c0_124, %c0_125] : memref<8x8xbf16, #tpu.memory_space<vmem>>, vector<8x8xbf16>
    %cst_126 = arith.constant dense<0.000000e+00> : vector<64x8xf32>
    %125 = tpu.matmul %123, %124, %cst_126 {dimension_numbers = #tpu.dot_dimension_numbers<[1], [0], [0], [1], [0, 0, 1, 1], [], []>} : vector<64x8xbf16>, vector<8x8xbf16>, vector<64x8xf32> -> vector<64x8xf32>
    %126 = arith.addf %122, %125 : vector<64x8xf32>
    %c0_127 = arith.constant 0 : index
    %c0_128 = arith.constant 0 : index
    %127 = vector.load %arg10[%c0_127, %c0_128] : memref<2x8xf32, #tpu.memory_space<vmem>>, vector<1x8xf32>
    %128 = vector.broadcast %127 : vector<1x8xf32> to vector<64x8xf32>
    %129 = arith.mulf %126, %128 : vector<64x8xf32>
    %c1_129 = arith.constant 1 : index
    %c0_130 = arith.constant 0 : index
    %130 = vector.load %arg10[%c1_129, %c0_130] : memref<2x8xf32, #tpu.memory_space<vmem>>, vector<1x8xf32>
    %131 = vector.broadcast %130 : vector<1x8xf32> to vector<64x8xf32>
    %132 = arith.addf %129, %131 : vector<64x8xf32>
    %133 = math.tanh %132 : vector<64x8xf32>
    %134 = vector.shape_cast %133 : vector<64x8xf32> to vector<8x8x8xf32>
    %cst_131 = arith.constant 0.000000e+00 : f32
    %135 = vector.broadcast %cst_131 : f32 to vector<10x10x8xf32>
    %c0_132 = arith.constant 0 : index
    %c0_133 = arith.constant 0 : index
    %c0_134 = arith.constant 0 : index
    %136 = vector.load %arg18[%c0_132, %c0_133, %c0_134] : memref<10x10x8xf32, #tpu.memory_space<vmem>>, vector<10x10x8xf32>
    tpu.vector_store %arg18[%c0_132, %c0_133, %c0_134], %135 {strides = array<i32>} : memref<10x10x8xf32, #tpu.memory_space<vmem>>, vector<10x10x8xf32>,
    %c1_135 = arith.constant 1 : index
    %c1_136 = arith.constant 1 : index
    %c0_137 = arith.constant 0 : index
    %137 = vector.load %arg18[%c1_135, %c1_136, %c0_137] : memref<10x10x8xf32, #tpu.memory_space<vmem>>, vector<8x8x8xf32>
    tpu.vector_store %arg18[%c1_135, %c1_136, %c0_137], %134 {strides = array<i32>} : memref<10x10x8xf32, #tpu.memory_space<vmem>>, vector<8x8x8xf32>,
    %c0_138 = arith.constant 0 : index
    %c0_139 = arith.constant 0 : index
    %c0_140 = arith.constant 0 : index
    %138 = vector.load %arg18[%c0_138, %c0_139, %c0_140] : memref<10x10x8xf32, #tpu.memory_space<vmem>>, vector<8x8x8xf32>
    %139 = vector.shape_cast %138 : vector<8x8x8xf32> to vector<64x8xf32>
    %c0_141 = arith.constant 0 : index
    %c1_142 = arith.constant 1 : index
    %c0_143 = arith.constant 0 : index
    %140 = vector.load %arg18[%c0_141, %c1_142, %c0_143] : memref<10x10x8xf32, #tpu.memory_space<vmem>>, vector<8x8x8xf32>
    %141 = vector.shape_cast %140 : vector<8x8x8xf32> to vector<64x8xf32>
    %c0_144 = arith.constant 0 : index
    %c2_145 = arith.constant 2 : index
    %c0_146 = arith.constant 0 : index
    %142 = vector.load %arg18[%c0_144, %c2_145, %c0_146] : memref<10x10x8xf32, #tpu.memory_space<vmem>>, vector<8x8x8xf32>
    %143 = vector.shape_cast %142 : vector<8x8x8xf32> to vector<64x8xf32>
    %c1_147 = arith.constant 1 : index
    %c0_148 = arith.constant 0 : index
    %c0_149 = arith.constant 0 : index
    %144 = vector.load %arg18[%c1_147, %c0_148, %c0_149] : memref<10x10x8xf32, #tpu.memory_space<vmem>>, vector<8x8x8xf32>
    %145 = vector.shape_cast %144 : vector<8x8x8xf32> to vector<64x8xf32>
    %c1_150 = arith.constant 1 : index
    %c1_151 = arith.constant 1 : index
    %c0_152 = arith.constant 0 : index
    %146 = vector.load %arg18[%c1_150, %c1_151, %c0_152] : memref<10x10x8xf32, #tpu.memory_space<vmem>>, vector<8x8x8xf32>
    %147 = vector.shape_cast %146 : vector<8x8x8xf32> to vector<64x8xf32>
    %c1_153 = arith.constant 1 : index
    %c2_154 = arith.constant 2 : index
    %c0_155 = arith.constant 0 : index
    %148 = vector.load %arg18[%c1_153, %c2_154, %c0_155] : memref<10x10x8xf32, #tpu.memory_space<vmem>>, vector<8x8x8xf32>
    %149 = vector.shape_cast %148 : vector<8x8x8xf32> to vector<64x8xf32>
    %c2_156 = arith.constant 2 : index
    %c0_157 = arith.constant 0 : index
    %c0_158 = arith.constant 0 : index
    %150 = vector.load %arg18[%c2_156, %c0_157, %c0_158] : memref<10x10x8xf32, #tpu.memory_space<vmem>>, vector<8x8x8xf32>
    %151 = vector.shape_cast %150 : vector<8x8x8xf32> to vector<64x8xf32>
    %c2_159 = arith.constant 2 : index
    %c1_160 = arith.constant 1 : index
    %c0_161 = arith.constant 0 : index
    %152 = vector.load %arg18[%c2_159, %c1_160, %c0_161] : memref<10x10x8xf32, #tpu.memory_space<vmem>>, vector<8x8x8xf32>
    %153 = vector.shape_cast %152 : vector<8x8x8xf32> to vector<64x8xf32>
    %c2_162 = arith.constant 2 : index
    %c2_163 = arith.constant 2 : index
    %c0_164 = arith.constant 0 : index
    %154 = vector.load %arg18[%c2_162, %c2_163, %c0_164] : memref<10x10x8xf32, #tpu.memory_space<vmem>>, vector<8x8x8xf32>
    %155 = vector.shape_cast %154 : vector<8x8x8xf32> to vector<64x8xf32>
    %156 = tpu.concatenate %139, %141, %143, %145, %147, %149, %151, %153, %155 in 1 : vector<64x8xf32>, vector<64x8xf32>, vector<64x8xf32>, vector<64x8xf32>, vector<64x8xf32>, vector<64x8xf32>, vector<64x8xf32>, vector<64x8xf32>, vector<64x8xf32> -> vector<64x72xf32>
    %157 = arith.truncf %156 : vector<64x72xf32> to vector<64x72xbf16>
    %c0_165 = arith.constant 0 : index
    %c0_166 = arith.constant 0 : index
    %158 = vector.load %arg11[%c0_165, %c0_166] : memref<72x8xbf16, #tpu.memory_space<vmem>>, vector<72x8xbf16>
    %cst_167 = arith.constant dense<0.000000e+00> : vector<64x8xf32>
    %159 = tpu.matmul %157, %158, %cst_167 {dimension_numbers = #tpu.dot_dimension_numbers<[1], [0], [0], [1], [0, 0, 1, 1], [], []>} : vector<64x72xbf16>, vector<72x8xbf16>, vector<64x8xf32> -> vector<64x8xf32>
    %c0_168 = arith.constant 0 : index
    %c0_169 = arith.constant 0 : index
    %160 = vector.load %arg12[%c0_168, %c0_169] : memref<2x8xf32, #tpu.memory_space<vmem>>, vector<1x8xf32>
    %161 = vector.broadcast %160 : vector<1x8xf32> to vector<64x8xf32>
    %162 = arith.mulf %159, %161 : vector<64x8xf32>
    %c1_170 = arith.constant 1 : index
    %c0_171 = arith.constant 0 : index
    %163 = vector.load %arg12[%c1_170, %c0_171] : memref<2x8xf32, #tpu.memory_space<vmem>>, vector<1x8xf32>
    %164 = vector.broadcast %163 : vector<1x8xf32> to vector<64x8xf32>
    %165 = arith.addf %162, %164 : vector<64x8xf32>
    %cst_172 = arith.constant 0.000000e+00 : f32
    %166 = vector.broadcast %cst_172 : f32 to vector<64x8xf32>
    %167 = arith.maximumf %165, %166 : vector<64x8xf32>
    %168 = arith.truncf %167 : vector<64x8xf32> to vector<64x8xbf16>
    %c0_173 = arith.constant 0 : index
    %c0_174 = arith.constant 0 : index
    %169 = vector.load %arg13[%c0_173, %c0_174] : memref<8x8xbf16, #tpu.memory_space<vmem>>, vector<8x8xbf16>
    %cst_175 = arith.constant dense<0.000000e+00> : vector<64x8xf32>
    %170 = tpu.matmul %168, %169, %cst_175 {dimension_numbers = #tpu.dot_dimension_numbers<[1], [0], [0], [1], [0, 0, 1, 1], [], []>} : vector<64x8xbf16>, vector<8x8xbf16>, vector<64x8xf32> -> vector<64x8xf32>
    %171 = arith.addf %170, %133 : vector<64x8xf32>
    %c0_176 = arith.constant 0 : index
    %c0_177 = arith.constant 0 : index
    %172 = vector.load %arg14[%c0_176, %c0_177] : memref<2x8xf32, #tpu.memory_space<vmem>>, vector<1x8xf32>
    %173 = vector.broadcast %172 : vector<1x8xf32> to vector<64x8xf32>
    %174 = arith.mulf %171, %173 : vector<64x8xf32>
    %c1_178 = arith.constant 1 : index
    %c0_179 = arith.constant 0 : index
    %175 = vector.load %arg14[%c1_178, %c0_179] : memref<2x8xf32, #tpu.memory_space<vmem>>, vector<1x8xf32>
    %176 = vector.broadcast %175 : vector<1x8xf32> to vector<64x8xf32>
    %177 = arith.addf %174, %176 : vector<64x8xf32>
    %178 = math.tanh %177 : vector<64x8xf32>
    %c0_180 = arith.constant 0 : index
    %c0_181 = arith.constant 0 : index
    %c0_182 = arith.constant 0 : index
    %179 = vector.load %arg15[%c0_180, %c0_181, %c0_182] : memref<1x64x8xf32, #tpu.memory_space<vmem>>, vector<1x64x8xf32>
    %180 = vector.shape_cast %179 : vector<1x64x8xf32> to vector<64x8xf32>
    %181 = vector.shape_cast %178 : vector<64x8xf32> to vector<1x64x8xf32>
    tpu.vector_store %arg15[%c0_180, %c0_181, %c0_182], %181 {strides = array<i32>} : memref<1x64x8xf32, #tpu.memory_space<vmem>>, vector<1x64x8xf32>,
    return
  }
  func.func @transform_0(%arg0: i32) -> (i32, i32, i32, i32) {
    %c0_i32 = arith.constant 0 : i32
    %c0_i32_0 = arith.constant 0 : i32
    %c0_i32_1 = arith.constant 0 : i32
    %c0_i32_2 = arith.constant 0 : i32
    return %arg0, %c0_i32, %c0_i32_0, %c0_i32_1 : i32, i32, i32, i32
  }
  func.func @transform_1(%arg0: i32) -> (i32, i32) {
    %c0_i32 = arith.constant 0 : i32
    %c0_i32_0 = arith.constant 0 : i32
    %c0_i32_1 = arith.constant 0 : i32
    return %c0_i32, %c0_i32_0 : i32, i32
  }
  func.func @transform_2(%arg0: i32) -> (i32, i32) {
    %c0_i32 = arith.constant 0 : i32
    %c0_i32_0 = arith.constant 0 : i32
    %c0_i32_1 = arith.constant 0 : i32
    return %c0_i32, %c0_i32_0 : i32, i32
  }
  func.func @transform_3(%arg0: i32) -> (i32, i32) {
    %c0_i32 = arith.constant 0 : i32
    %c0_i32_0 = arith.constant 0 : i32
    %c0_i32_1 = arith.constant 0 : i32
    return %c0_i32, %c0_i32_0 : i32, i32
  }
  func.func @transform_4(%arg0: i32) -> (i32, i32) {
    %c0_i32 = arith.constant 0 : i32
    %c0_i32_0 = arith.constant 0 : i32
    %c0_i32_1 = arith.constant 0 : i32
    return %c0_i32, %c0_i32_0 : i32, i32
  }
  func.func @transform_5(%arg0: i32) -> (i32, i32) {
    %c0_i32 = arith.constant 0 : i32
    %c0_i32_0 = arith.constant 0 : i32
    %c0_i32_1 = arith.constant 0 : i32
    return %c0_i32, %c0_i32_0 : i32, i32
  }
  func.func @transform_6(%arg0: i32) -> (i32, i32) {
    %c0_i32 = arith.constant 0 : i32
    %c0_i32_0 = arith.constant 0 : i32
    %c0_i32_1 = arith.constant 0 : i32
    return %c0_i32, %c0_i32_0 : i32, i32
  }
  func.func @transform_7(%arg0: i32) -> (i32, i32) {
    %c0_i32 = arith.constant 0 : i32
    %c0_i32_0 = arith.constant 0 : i32
    %c0_i32_1 = arith.constant 0 : i32
    return %c0_i32, %c0_i32_0 : i32, i32
  }
  func.func @transform_8(%arg0: i32) -> (i32, i32) {
    %c0_i32 = arith.constant 0 : i32
    %c0_i32_0 = arith.constant 0 : i32
    %c0_i32_1 = arith.constant 0 : i32
    return %c0_i32, %c0_i32_0 : i32, i32
  }
  func.func @transform_9(%arg0: i32) -> (i32, i32) {
    %c0_i32 = arith.constant 0 : i32
    %c0_i32_0 = arith.constant 0 : i32
    %c0_i32_1 = arith.constant 0 : i32
    return %c0_i32, %c0_i32_0 : i32, i32
  }
  func.func @transform_10(%arg0: i32) -> (i32, i32) {
    %c0_i32 = arith.constant 0 : i32
    %c0_i32_0 = arith.constant 0 : i32
    %c0_i32_1 = arith.constant 0 : i32
    return %c0_i32, %c0_i32_0 : i32, i32
  }
  func.func @transform_11(%arg0: i32) -> (i32, i32) {
    %c0_i32 = arith.constant 0 : i32
    %c0_i32_0 = arith.constant 0 : i32
    %c0_i32_1 = arith.constant 0 : i32
    return %c0_i32, %c0_i32_0 : i32, i32
  }
  func.func @transform_12(%arg0: i32) -> (i32, i32) {
    %c0_i32 = arith.constant 0 : i32
    %c0_i32_0 = arith.constant 0 : i32
    %c0_i32_1 = arith.constant 0 : i32
    return %c0_i32, %c0_i32_0 : i32, i32
  }
  func.func @transform_13(%arg0: i32) -> (i32, i32) {
    %c0_i32 = arith.constant 0 : i32
    %c0_i32_0 = arith.constant 0 : i32
    %c0_i32_1 = arith.constant 0 : i32
    return %c0_i32, %c0_i32_0 : i32, i32
  }
  func.func @transform_14(%arg0: i32) -> (i32, i32, i32) {
    %c0_i32 = arith.constant 0 : i32
    %c0_i32_0 = arith.constant 0 : i32
    %c0_i32_1 = arith.constant 0 : i32
    return %arg0, %c0_i32, %c0_i32_0 : i32, i32, i32
  }
}

module attributes {stable_mosaic.version = 11 : i64} {
  func.func @_tam_kernel(%arg0: i32, %arg1: memref<1x8x8x4xf32, #tpu.memory_space<vmem>>, %arg2: memref<1x8x8x4xf32, #tpu.memory_space<vmem>>, %arg3: memref<36x8xbf16, #tpu.memory_space<vmem>>, %arg4: memref<2x8xf32, #tpu.memory_space<vmem>>, %arg5: memref<36x16xbf16, #tpu.memory_space<vmem>>, %arg6: memref<2x16xf32, #tpu.memory_space<vmem>>, %arg7: memref<36x8xbf16, #tpu.memory_space<vmem>>, %arg8: memref<2x8xf32, #tpu.memory_space<vmem>>, %arg9: memref<72x8xbf16, #tpu.memory_space<vmem>>, %arg10: memref<2x8xf32, #tpu.memory_space<vmem>>, %arg11: memref<8x8xbf16, #tpu.memory_space<vmem>>, %arg12: memref<8x8xbf16, #tpu.memory_space<vmem>>, %arg13: memref<2x8xf32, #tpu.memory_space<vmem>>, %arg14: memref<72x8xbf16, #tpu.memory_space<vmem>>, %arg15: memref<2x8xf32, #tpu.memory_space<vmem>>, %arg16: memref<8x8xbf16, #tpu.memory_space<vmem>>, %arg17: memref<2x8xf32, #tpu.memory_space<vmem>>, %arg18: memref<1x64x8xf32, #tpu.memory_space<vmem>>, %arg19: memref<12x12x4xf32, #tpu.memory_space<vmem>>, %arg20: memref<12x12x4xf32, #tpu.memory_space<vmem>>, %arg21: memref<10x10x8xf32, #tpu.memory_space<vmem>>, %arg22: memref<10x10x8xf32, #tpu.memory_space<vmem>>) attributes {dimension_semantics = [#tpu.dimension_semantics<parallel>], iteration_bounds = array<i64: 2>, scalar_prefetch = 0 : i64, scratch_operands = 4 : i64, tpu.core_type = #tpu.core_type<tc>, window_params = [{transform_indices = @transform_0, window_bounds = array<i64: 1, 8, 8, 4>}, {transform_indices = @transform_1, window_bounds = array<i64: 1, 8, 8, 4>}, {pipeline_mode = #tpu.pipeline_mode<synchronous>, transform_indices = @transform_2, window_bounds = array<i64: 36, 8>}, {pipeline_mode = #tpu.pipeline_mode<synchronous>, transform_indices = @transform_3, window_bounds = array<i64: 2, 8>}, {pipeline_mode = #tpu.pipeline_mode<synchronous>, transform_indices = @transform_4, window_bounds = array<i64: 36, 16>}, {pipeline_mode = #tpu.pipeline_mode<synchronous>, transform_indices = @transform_5, window_bounds = array<i64: 2, 16>}, {pipeline_mode = #tpu.pipeline_mode<synchronous>, transform_indices = @transform_6, window_bounds = array<i64: 36, 8>}, {pipeline_mode = #tpu.pipeline_mode<synchronous>, transform_indices = @transform_7, window_bounds = array<i64: 2, 8>}, {pipeline_mode = #tpu.pipeline_mode<synchronous>, transform_indices = @transform_8, window_bounds = array<i64: 72, 8>}, {pipeline_mode = #tpu.pipeline_mode<synchronous>, transform_indices = @transform_9, window_bounds = array<i64: 2, 8>}, {pipeline_mode = #tpu.pipeline_mode<synchronous>, transform_indices = @transform_10, window_bounds = array<i64: 8, 8>}, {pipeline_mode = #tpu.pipeline_mode<synchronous>, transform_indices = @transform_11, window_bounds = array<i64: 8, 8>}, {pipeline_mode = #tpu.pipeline_mode<synchronous>, transform_indices = @transform_12, window_bounds = array<i64: 2, 8>}, {pipeline_mode = #tpu.pipeline_mode<synchronous>, transform_indices = @transform_13, window_bounds = array<i64: 72, 8>}, {pipeline_mode = #tpu.pipeline_mode<synchronous>, transform_indices = @transform_14, window_bounds = array<i64: 2, 8>}, {pipeline_mode = #tpu.pipeline_mode<synchronous>, transform_indices = @transform_15, window_bounds = array<i64: 8, 8>}, {pipeline_mode = #tpu.pipeline_mode<synchronous>, transform_indices = @transform_16, window_bounds = array<i64: 2, 8>}, {transform_indices = @transform_17, window_bounds = array<i64: 1, 64, 8>}]} {
    %c0 = arith.constant 0 : index
    %c0_0 = arith.constant 0 : index
    %c0_1 = arith.constant 0 : index
    %c0_2 = arith.constant 0 : index
    %0 = vector.load %arg1[%c0, %c0_0, %c0_1, %c0_2] : memref<1x8x8x4xf32, #tpu.memory_space<vmem>>, vector<1x8x8x4xf32>
    %1 = vector.shape_cast %0 : vector<1x8x8x4xf32> to vector<8x8x4xf32>
    %cst = arith.constant 0.000000e+00 : f32
    %2 = vector.broadcast %cst : f32 to vector<12x12x4xf32>
    %c0_3 = arith.constant 0 : index
    %c0_4 = arith.constant 0 : index
    %c0_5 = arith.constant 0 : index
    %3 = vector.load %arg19[%c0_3, %c0_4, %c0_5] : memref<12x12x4xf32, #tpu.memory_space<vmem>>, vector<12x12x4xf32>
    tpu.vector_store %arg19[%c0_3, %c0_4, %c0_5], %2 {strides = array<i32>} : memref<12x12x4xf32, #tpu.memory_space<vmem>>, vector<12x12x4xf32>,
    %c2 = arith.constant 2 : index
    %c2_6 = arith.constant 2 : index
    %c0_7 = arith.constant 0 : index
    %4 = vector.load %arg19[%c2, %c2_6, %c0_7] : memref<12x12x4xf32, #tpu.memory_space<vmem>>, vector<8x8x4xf32>
    tpu.vector_store %arg19[%c2, %c2_6, %c0_7], %1 {strides = array<i32>} : memref<12x12x4xf32, #tpu.memory_space<vmem>>, vector<8x8x4xf32>,
    %c0_8 = arith.constant 0 : index
    %c0_9 = arith.constant 0 : index
    %c0_10 = arith.constant 0 : index
    %c0_11 = arith.constant 0 : index
    %5 = vector.load %arg2[%c0_8, %c0_9, %c0_10, %c0_11] : memref<1x8x8x4xf32, #tpu.memory_space<vmem>>, vector<1x8x8x4xf32>
    %6 = vector.shape_cast %5 : vector<1x8x8x4xf32> to vector<8x8x4xf32>
    %cst_12 = arith.constant 0.000000e+00 : f32
    %7 = vector.broadcast %cst_12 : f32 to vector<12x12x4xf32>
    %c0_13 = arith.constant 0 : index
    %c0_14 = arith.constant 0 : index
    %c0_15 = arith.constant 0 : index
    %8 = vector.load %arg20[%c0_13, %c0_14, %c0_15] : memref<12x12x4xf32, #tpu.memory_space<vmem>>, vector<12x12x4xf32>
    tpu.vector_store %arg20[%c0_13, %c0_14, %c0_15], %7 {strides = array<i32>} : memref<12x12x4xf32, #tpu.memory_space<vmem>>, vector<12x12x4xf32>,
    %c2_16 = arith.constant 2 : index
    %c2_17 = arith.constant 2 : index
    %c0_18 = arith.constant 0 : index
    %9 = vector.load %arg20[%c2_16, %c2_17, %c0_18] : memref<12x12x4xf32, #tpu.memory_space<vmem>>, vector<8x8x4xf32>
    tpu.vector_store %arg20[%c2_16, %c2_17, %c0_18], %6 {strides = array<i32>} : memref<12x12x4xf32, #tpu.memory_space<vmem>>, vector<8x8x4xf32>,
    %c0_19 = arith.constant 0 : index
    %c0_20 = arith.constant 0 : index
    %c0_21 = arith.constant 0 : index
    %10 = vector.load %arg20[%c0_19, %c0_20, %c0_21] : memref<12x12x4xf32, #tpu.memory_space<vmem>>, vector<8x8x4xf32>
    %11 = vector.shape_cast %10 : vector<8x8x4xf32> to vector<64x4xf32>
    %c0_22 = arith.constant 0 : index
    %c2_23 = arith.constant 2 : index
    %c0_24 = arith.constant 0 : index
    %12 = vector.load %arg20[%c0_22, %c2_23, %c0_24] : memref<12x12x4xf32, #tpu.memory_space<vmem>>, vector<8x8x4xf32>
    %13 = vector.shape_cast %12 : vector<8x8x4xf32> to vector<64x4xf32>
    %c0_25 = arith.constant 0 : index
    %c4 = arith.constant 4 : index
    %c0_26 = arith.constant 0 : index
    %14 = vector.load %arg20[%c0_25, %c4, %c0_26] : memref<12x12x4xf32, #tpu.memory_space<vmem>>, vector<8x8x4xf32>
    %15 = vector.shape_cast %14 : vector<8x8x4xf32> to vector<64x4xf32>
    %c2_27 = arith.constant 2 : index
    %c0_28 = arith.constant 0 : index
    %c0_29 = arith.constant 0 : index
    %16 = vector.load %arg20[%c2_27, %c0_28, %c0_29] : memref<12x12x4xf32, #tpu.memory_space<vmem>>, vector<8x8x4xf32>
    %17 = vector.shape_cast %16 : vector<8x8x4xf32> to vector<64x4xf32>
    %c2_30 = arith.constant 2 : index
    %c2_31 = arith.constant 2 : index
    %c0_32 = arith.constant 0 : index
    %18 = vector.load %arg20[%c2_30, %c2_31, %c0_32] : memref<12x12x4xf32, #tpu.memory_space<vmem>>, vector<8x8x4xf32>
    %19 = vector.shape_cast %18 : vector<8x8x4xf32> to vector<64x4xf32>
    %c2_33 = arith.constant 2 : index
    %c4_34 = arith.constant 4 : index
    %c0_35 = arith.constant 0 : index
    %20 = vector.load %arg20[%c2_33, %c4_34, %c0_35] : memref<12x12x4xf32, #tpu.memory_space<vmem>>, vector<8x8x4xf32>
    %21 = vector.shape_cast %20 : vector<8x8x4xf32> to vector<64x4xf32>
    %c4_36 = arith.constant 4 : index
    %c0_37 = arith.constant 0 : index
    %c0_38 = arith.constant 0 : index
    %22 = vector.load %arg20[%c4_36, %c0_37, %c0_38] : memref<12x12x4xf32, #tpu.memory_space<vmem>>, vector<8x8x4xf32>
    %23 = vector.shape_cast %22 : vector<8x8x4xf32> to vector<64x4xf32>
    %c4_39 = arith.constant 4 : index
    %c2_40 = arith.constant 2 : index
    %c0_41 = arith.constant 0 : index
    %24 = vector.load %arg20[%c4_39, %c2_40, %c0_41] : memref<12x12x4xf32, #tpu.memory_space<vmem>>, vector<8x8x4xf32>
    %25 = vector.shape_cast %24 : vector<8x8x4xf32> to vector<64x4xf32>
    %c4_42 = arith.constant 4 : index
    %c4_43 = arith.constant 4 : index
    %c0_44 = arith.constant 0 : index
    %26 = vector.load %arg20[%c4_42, %c4_43, %c0_44] : memref<12x12x4xf32, #tpu.memory_space<vmem>>, vector<8x8x4xf32>
    %27 = vector.shape_cast %26 : vector<8x8x4xf32> to vector<64x4xf32>
    %28 = tpu.concatenate %11, %13, %15, %17, %19, %21, %23, %25, %27 in 1 : vector<64x4xf32>, vector<64x4xf32>, vector<64x4xf32>, vector<64x4xf32>, vector<64x4xf32>, vector<64x4xf32>, vector<64x4xf32>, vector<64x4xf32>, vector<64x4xf32> -> vector<64x36xf32>
    %29 = arith.truncf %28 : vector<64x36xf32> to vector<64x36xbf16>
    %c0_45 = arith.constant 0 : index
    %c0_46 = arith.constant 0 : index
    %30 = vector.load %arg3[%c0_45, %c0_46] : memref<36x8xbf16, #tpu.memory_space<vmem>>, vector<36x8xbf16>
    %cst_47 = arith.constant dense<0.000000e+00> : vector<64x8xf32>
    %31 = tpu.matmul %29, %30, %cst_47 {dimension_numbers = #tpu.dot_dimension_numbers<[1], [0], [0], [1], [0, 0, 1, 1], [], []>} : vector<64x36xbf16>, vector<36x8xbf16>, vector<64x8xf32> -> vector<64x8xf32>
    %c0_48 = arith.constant 0 : index
    %c0_49 = arith.constant 0 : index
    %32 = vector.load %arg4[%c0_48, %c0_49] : memref<2x8xf32, #tpu.memory_space<vmem>>, vector<1x8xf32>
    %33 = vector.broadcast %32 : vector<1x8xf32> to vector<64x8xf32>
    %34 = arith.mulf %31, %33 : vector<64x8xf32>
    %c1 = arith.constant 1 : index
    %c0_50 = arith.constant 0 : index
    %35 = vector.load %arg4[%c1, %c0_50] : memref<2x8xf32, #tpu.memory_space<vmem>>, vector<1x8xf32>
    %36 = vector.broadcast %35 : vector<1x8xf32> to vector<64x8xf32>
    %37 = arith.addf %34, %36 : vector<64x8xf32>
    %38 = math.tanh %37 : vector<64x8xf32>
    %c0_51 = arith.constant 0 : index
    %c0_52 = arith.constant 0 : index
    %c0_53 = arith.constant 0 : index
    %39 = vector.load %arg19[%c0_51, %c0_52, %c0_53] : memref<12x12x4xf32, #tpu.memory_space<vmem>>, vector<8x8x4xf32>
    %40 = vector.shape_cast %39 : vector<8x8x4xf32> to vector<64x4xf32>
    %c0_54 = arith.constant 0 : index
    %c2_55 = arith.constant 2 : index
    %c0_56 = arith.constant 0 : index
    %41 = vector.load %arg19[%c0_54, %c2_55, %c0_56] : memref<12x12x4xf32, #tpu.memory_space<vmem>>, vector<8x8x4xf32>
    %42 = vector.shape_cast %41 : vector<8x8x4xf32> to vector<64x4xf32>
    %c0_57 = arith.constant 0 : index
    %c4_58 = arith.constant 4 : index
    %c0_59 = arith.constant 0 : index
    %43 = vector.load %arg19[%c0_57, %c4_58, %c0_59] : memref<12x12x4xf32, #tpu.memory_space<vmem>>, vector<8x8x4xf32>
    %44 = vector.shape_cast %43 : vector<8x8x4xf32> to vector<64x4xf32>
    %c2_60 = arith.constant 2 : index
    %c0_61 = arith.constant 0 : index
    %c0_62 = arith.constant 0 : index
    %45 = vector.load %arg19[%c2_60, %c0_61, %c0_62] : memref<12x12x4xf32, #tpu.memory_space<vmem>>, vector<8x8x4xf32>
    %46 = vector.shape_cast %45 : vector<8x8x4xf32> to vector<64x4xf32>
    %c2_63 = arith.constant 2 : index
    %c2_64 = arith.constant 2 : index
    %c0_65 = arith.constant 0 : index
    %47 = vector.load %arg19[%c2_63, %c2_64, %c0_65] : memref<12x12x4xf32, #tpu.memory_space<vmem>>, vector<8x8x4xf32>
    %48 = vector.shape_cast %47 : vector<8x8x4xf32> to vector<64x4xf32>
    %c2_66 = arith.constant 2 : index
    %c4_67 = arith.constant 4 : index
    %c0_68 = arith.constant 0 : index
    %49 = vector.load %arg19[%c2_66, %c4_67, %c0_68] : memref<12x12x4xf32, #tpu.memory_space<vmem>>, vector<8x8x4xf32>
    %50 = vector.shape_cast %49 : vector<8x8x4xf32> to vector<64x4xf32>
    %c4_69 = arith.constant 4 : index
    %c0_70 = arith.constant 0 : index
    %c0_71 = arith.constant 0 : index
    %51 = vector.load %arg19[%c4_69, %c0_70, %c0_71] : memref<12x12x4xf32, #tpu.memory_space<vmem>>, vector<8x8x4xf32>
    %52 = vector.shape_cast %51 : vector<8x8x4xf32> to vector<64x4xf32>
    %c4_72 = arith.constant 4 : index
    %c2_73 = arith.constant 2 : index
    %c0_74 = arith.constant 0 : index
    %53 = vector.load %arg19[%c4_72, %c2_73, %c0_74] : memref<12x12x4xf32, #tpu.memory_space<vmem>>, vector<8x8x4xf32>
    %54 = vector.shape_cast %53 : vector<8x8x4xf32> to vector<64x4xf32>
    %c4_75 = arith.constant 4 : index
    %c4_76 = arith.constant 4 : index
    %c0_77 = arith.constant 0 : index
    %55 = vector.load %arg19[%c4_75, %c4_76, %c0_77] : memref<12x12x4xf32, #tpu.memory_space<vmem>>, vector<8x8x4xf32>
    %56 = vector.shape_cast %55 : vector<8x8x4xf32> to vector<64x4xf32>
    %57 = tpu.concatenate %40, %42, %44, %46, %48, %50, %52, %54, %56 in 1 : vector<64x4xf32>, vector<64x4xf32>, vector<64x4xf32>, vector<64x4xf32>, vector<64x4xf32>, vector<64x4xf32>, vector<64x4xf32>, vector<64x4xf32>, vector<64x4xf32> -> vector<64x36xf32>
    %58 = arith.truncf %57 : vector<64x36xf32> to vector<64x36xbf16>
    %c0_78 = arith.constant 0 : index
    %c0_79 = arith.constant 0 : index
    %59 = vector.load %arg5[%c0_78, %c0_79] : memref<36x16xbf16, #tpu.memory_space<vmem>>, vector<36x16xbf16>
    %cst_80 = arith.constant dense<0.000000e+00> : vector<64x16xf32>
    %60 = tpu.matmul %58, %59, %cst_80 {dimension_numbers = #tpu.dot_dimension_numbers<[1], [0], [0], [1], [0, 0, 1, 1], [], []>} : vector<64x36xbf16>, vector<36x16xbf16>, vector<64x16xf32> -> vector<64x16xf32>
    %c0_81 = arith.constant 0 : index
    %c0_82 = arith.constant 0 : index
    %61 = vector.load %arg6[%c0_81, %c0_82] : memref<2x16xf32, #tpu.memory_space<vmem>>, vector<1x16xf32>
    %62 = vector.broadcast %61 : vector<1x16xf32> to vector<64x16xf32>
    %63 = arith.mulf %60, %62 : vector<64x16xf32>
    %c1_83 = arith.constant 1 : index
    %c0_84 = arith.constant 0 : index
    %64 = vector.load %arg6[%c1_83, %c0_84] : memref<2x16xf32, #tpu.memory_space<vmem>>, vector<1x16xf32>
    %65 = vector.broadcast %64 : vector<1x16xf32> to vector<64x16xf32>
    %66 = arith.addf %63, %65 : vector<64x16xf32>
    %67 = vector.extract_strided_slice %66 {offsets = [0, 0], sizes = [64, 8], strides = [1, 1]} : vector<64x16xf32> to vector<64x8xf32>
    %68 = math.tanh %67 : vector<64x8xf32>
    %69 = vector.extract_strided_slice %66 {offsets = [0, 8], sizes = [64, 8], strides = [1, 1]} : vector<64x16xf32> to vector<64x8xf32>
    %cst_85 = arith.constant 0.000000e+00 : f32
    %70 = vector.broadcast %cst_85 : f32 to vector<64x8xf32>
    %71 = arith.maximumf %69, %70 : vector<64x8xf32>
    %c1_86 = arith.constant 1 : index
    %c1_87 = arith.constant 1 : index
    %c0_88 = arith.constant 0 : index
    %72 = vector.load %arg19[%c1_86, %c1_87, %c0_88] : memref<12x12x4xf32, #tpu.memory_space<vmem>>, vector<8x8x4xf32>
    %73 = vector.shape_cast %72 : vector<8x8x4xf32> to vector<64x4xf32>
    %c1_89 = arith.constant 1 : index
    %c2_90 = arith.constant 2 : index
    %c0_91 = arith.constant 0 : index
    %74 = vector.load %arg19[%c1_89, %c2_90, %c0_91] : memref<12x12x4xf32, #tpu.memory_space<vmem>>, vector<8x8x4xf32>
    %75 = vector.shape_cast %74 : vector<8x8x4xf32> to vector<64x4xf32>
    %c1_92 = arith.constant 1 : index
    %c3 = arith.constant 3 : index
    %c0_93 = arith.constant 0 : index
    %76 = vector.load %arg19[%c1_92, %c3, %c0_93] : memref<12x12x4xf32, #tpu.memory_space<vmem>>, vector<8x8x4xf32>
    %77 = vector.shape_cast %76 : vector<8x8x4xf32> to vector<64x4xf32>
    %c2_94 = arith.constant 2 : index
    %c1_95 = arith.constant 1 : index
    %c0_96 = arith.constant 0 : index
    %78 = vector.load %arg19[%c2_94, %c1_95, %c0_96] : memref<12x12x4xf32, #tpu.memory_space<vmem>>, vector<8x8x4xf32>
    %79 = vector.shape_cast %78 : vector<8x8x4xf32> to vector<64x4xf32>
    %c2_97 = arith.constant 2 : index
    %c2_98 = arith.constant 2 : index
    %c0_99 = arith.constant 0 : index
    %80 = vector.load %arg19[%c2_97, %c2_98, %c0_99] : memref<12x12x4xf32, #tpu.memory_space<vmem>>, vector<8x8x4xf32>
    %81 = vector.shape_cast %80 : vector<8x8x4xf32> to vector<64x4xf32>
    %c2_100 = arith.constant 2 : index
    %c3_101 = arith.constant 3 : index
    %c0_102 = arith.constant 0 : index
    %82 = vector.load %arg19[%c2_100, %c3_101, %c0_102] : memref<12x12x4xf32, #tpu.memory_space<vmem>>, vector<8x8x4xf32>
    %83 = vector.shape_cast %82 : vector<8x8x4xf32> to vector<64x4xf32>
    %c3_103 = arith.constant 3 : index
    %c1_104 = arith.constant 1 : index
    %c0_105 = arith.constant 0 : index
    %84 = vector.load %arg19[%c3_103, %c1_104, %c0_105] : memref<12x12x4xf32, #tpu.memory_space<vmem>>, vector<8x8x4xf32>
    %85 = vector.shape_cast %84 : vector<8x8x4xf32> to vector<64x4xf32>
    %c3_106 = arith.constant 3 : index
    %c2_107 = arith.constant 2 : index
    %c0_108 = arith.constant 0 : index
    %86 = vector.load %arg19[%c3_106, %c2_107, %c0_108] : memref<12x12x4xf32, #tpu.memory_space<vmem>>, vector<8x8x4xf32>
    %87 = vector.shape_cast %86 : vector<8x8x4xf32> to vector<64x4xf32>
    %c3_109 = arith.constant 3 : index
    %c3_110 = arith.constant 3 : index
    %c0_111 = arith.constant 0 : index
    %88 = vector.load %arg19[%c3_109, %c3_110, %c0_111] : memref<12x12x4xf32, #tpu.memory_space<vmem>>, vector<8x8x4xf32>
    %89 = vector.shape_cast %88 : vector<8x8x4xf32> to vector<64x4xf32>
    %90 = tpu.concatenate %73, %75, %77, %79, %81, %83, %85, %87, %89 in 1 : vector<64x4xf32>, vector<64x4xf32>, vector<64x4xf32>, vector<64x4xf32>, vector<64x4xf32>, vector<64x4xf32>, vector<64x4xf32>, vector<64x4xf32>, vector<64x4xf32> -> vector<64x36xf32>
    %91 = arith.truncf %90 : vector<64x36xf32> to vector<64x36xbf16>
    %c0_112 = arith.constant 0 : index
    %c0_113 = arith.constant 0 : index
    %92 = vector.load %arg7[%c0_112, %c0_113] : memref<36x8xbf16, #tpu.memory_space<vmem>>, vector<36x8xbf16>
    %cst_114 = arith.constant dense<0.000000e+00> : vector<64x8xf32>
    %93 = tpu.matmul %91, %92, %cst_114 {dimension_numbers = #tpu.dot_dimension_numbers<[1], [0], [0], [1], [0, 0, 1, 1], [], []>} : vector<64x36xbf16>, vector<36x8xbf16>, vector<64x8xf32> -> vector<64x8xf32>
    %c0_115 = arith.constant 0 : index
    %c0_116 = arith.constant 0 : index
    %94 = vector.load %arg8[%c0_115, %c0_116] : memref<2x8xf32, #tpu.memory_space<vmem>>, vector<1x8xf32>
    %95 = vector.broadcast %94 : vector<1x8xf32> to vector<64x8xf32>
    %96 = arith.mulf %93, %95 : vector<64x8xf32>
    %c1_117 = arith.constant 1 : index
    %c0_118 = arith.constant 0 : index
    %97 = vector.load %arg8[%c1_117, %c0_118] : memref<2x8xf32, #tpu.memory_space<vmem>>, vector<1x8xf32>
    %98 = vector.broadcast %97 : vector<1x8xf32> to vector<64x8xf32>
    %99 = arith.addf %96, %98 : vector<64x8xf32>
    %cst_119 = arith.constant 0.000000e+00 : f32
    %100 = vector.broadcast %cst_119 : f32 to vector<64x8xf32>
    %101 = arith.maximumf %99, %100 : vector<64x8xf32>
    %102 = vector.shape_cast %71 : vector<64x8xf32> to vector<8x8x8xf32>
    %cst_120 = arith.constant 0.000000e+00 : f32
    %103 = vector.broadcast %cst_120 : f32 to vector<10x10x8xf32>
    %c0_121 = arith.constant 0 : index
    %c0_122 = arith.constant 0 : index
    %c0_123 = arith.constant 0 : index
    %104 = vector.load %arg21[%c0_121, %c0_122, %c0_123] : memref<10x10x8xf32, #tpu.memory_space<vmem>>, vector<10x10x8xf32>
    tpu.vector_store %arg21[%c0_121, %c0_122, %c0_123], %103 {strides = array<i32>} : memref<10x10x8xf32, #tpu.memory_space<vmem>>, vector<10x10x8xf32>,
    %c1_124 = arith.constant 1 : index
    %c1_125 = arith.constant 1 : index
    %c0_126 = arith.constant 0 : index
    %105 = vector.load %arg21[%c1_124, %c1_125, %c0_126] : memref<10x10x8xf32, #tpu.memory_space<vmem>>, vector<8x8x8xf32>
    tpu.vector_store %arg21[%c1_124, %c1_125, %c0_126], %102 {strides = array<i32>} : memref<10x10x8xf32, #tpu.memory_space<vmem>>, vector<8x8x8xf32>,
    %c0_127 = arith.constant 0 : index
    %c0_128 = arith.constant 0 : index
    %c0_129 = arith.constant 0 : index
    %106 = vector.load %arg21[%c0_127, %c0_128, %c0_129] : memref<10x10x8xf32, #tpu.memory_space<vmem>>, vector<8x8x8xf32>
    %107 = vector.shape_cast %106 : vector<8x8x8xf32> to vector<64x8xf32>
    %c0_130 = arith.constant 0 : index
    %c1_131 = arith.constant 1 : index
    %c0_132 = arith.constant 0 : index
    %108 = vector.load %arg21[%c0_130, %c1_131, %c0_132] : memref<10x10x8xf32, #tpu.memory_space<vmem>>, vector<8x8x8xf32>
    %109 = vector.shape_cast %108 : vector<8x8x8xf32> to vector<64x8xf32>
    %c0_133 = arith.constant 0 : index
    %c2_134 = arith.constant 2 : index
    %c0_135 = arith.constant 0 : index
    %110 = vector.load %arg21[%c0_133, %c2_134, %c0_135] : memref<10x10x8xf32, #tpu.memory_space<vmem>>, vector<8x8x8xf32>
    %111 = vector.shape_cast %110 : vector<8x8x8xf32> to vector<64x8xf32>
    %c1_136 = arith.constant 1 : index
    %c0_137 = arith.constant 0 : index
    %c0_138 = arith.constant 0 : index
    %112 = vector.load %arg21[%c1_136, %c0_137, %c0_138] : memref<10x10x8xf32, #tpu.memory_space<vmem>>, vector<8x8x8xf32>
    %113 = vector.shape_cast %112 : vector<8x8x8xf32> to vector<64x8xf32>
    %c1_139 = arith.constant 1 : index
    %c1_140 = arith.constant 1 : index
    %c0_141 = arith.constant 0 : index
    %114 = vector.load %arg21[%c1_139, %c1_140, %c0_141] : memref<10x10x8xf32, #tpu.memory_space<vmem>>, vector<8x8x8xf32>
    %115 = vector.shape_cast %114 : vector<8x8x8xf32> to vector<64x8xf32>
    %c1_142 = arith.constant 1 : index
    %c2_143 = arith.constant 2 : index
    %c0_144 = arith.constant 0 : index
    %116 = vector.load %arg21[%c1_142, %c2_143, %c0_144] : memref<10x10x8xf32, #tpu.memory_space<vmem>>, vector<8x8x8xf32>
    %117 = vector.shape_cast %116 : vector<8x8x8xf32> to vector<64x8xf32>
    %c2_145 = arith.constant 2 : index
    %c0_146 = arith.constant 0 : index
    %c0_147 = arith.constant 0 : index
    %118 = vector.load %arg21[%c2_145, %c0_146, %c0_147] : memref<10x10x8xf32, #tpu.memory_space<vmem>>, vector<8x8x8xf32>
    %119 = vector.shape_cast %118 : vector<8x8x8xf32> to vector<64x8xf32>
    %c2_148 = arith.constant 2 : index
    %c1_149 = arith.constant 1 : index
    %c0_150 = arith.constant 0 : index
    %120 = vector.load %arg21[%c2_148, %c1_149, %c0_150] : memref<10x10x8xf32, #tpu.memory_space<vmem>>, vector<8x8x8xf32>
    %121 = vector.shape_cast %120 : vector<8x8x8xf32> to vector<64x8xf32>
    %c2_151 = arith.constant 2 : index
    %c2_152 = arith.constant 2 : index
    %c0_153 = arith.constant 0 : index
    %122 = vector.load %arg21[%c2_151, %c2_152, %c0_153] : memref<10x10x8xf32, #tpu.memory_space<vmem>>, vector<8x8x8xf32>
    %123 = vector.shape_cast %122 : vector<8x8x8xf32> to vector<64x8xf32>
    %124 = tpu.concatenate %107, %109, %111, %113, %115, %117, %119, %121, %123 in 1 : vector<64x8xf32>, vector<64x8xf32>, vector<64x8xf32>, vector<64x8xf32>, vector<64x8xf32>, vector<64x8xf32>, vector<64x8xf32>, vector<64x8xf32>, vector<64x8xf32> -> vector<64x72xf32>
    %125 = arith.truncf %124 : vector<64x72xf32> to vector<64x72xbf16>
    %c0_154 = arith.constant 0 : index
    %c0_155 = arith.constant 0 : index
    %126 = vector.load %arg9[%c0_154, %c0_155] : memref<72x8xbf16, #tpu.memory_space<vmem>>, vector<72x8xbf16>
    %cst_156 = arith.constant dense<0.000000e+00> : vector<64x8xf32>
    %127 = tpu.matmul %125, %126, %cst_156 {dimension_numbers = #tpu.dot_dimension_numbers<[1], [0], [0], [1], [0, 0, 1, 1], [], []>} : vector<64x72xbf16>, vector<72x8xbf16>, vector<64x8xf32> -> vector<64x8xf32>
    %c0_157 = arith.constant 0 : index
    %c0_158 = arith.constant 0 : index
    %128 = vector.load %arg10[%c0_157, %c0_158] : memref<2x8xf32, #tpu.memory_space<vmem>>, vector<1x8xf32>
    %129 = vector.broadcast %128 : vector<1x8xf32> to vector<64x8xf32>
    %130 = arith.mulf %127, %129 : vector<64x8xf32>
    %c1_159 = arith.constant 1 : index
    %c0_160 = arith.constant 0 : index
    %131 = vector.load %arg10[%c1_159, %c0_160] : memref<2x8xf32, #tpu.memory_space<vmem>>, vector<1x8xf32>
    %132 = vector.broadcast %131 : vector<1x8xf32> to vector<64x8xf32>
    %133 = arith.addf %130, %132 : vector<64x8xf32>
    %cst_161 = arith.constant 0.000000e+00 : f32
    %134 = vector.broadcast %cst_161 : f32 to vector<64x8xf32>
    %135 = arith.maximumf %133, %134 : vector<64x8xf32>
    %136 = arith.truncf %135 : vector<64x8xf32> to vector<64x8xbf16>
    %c0_162 = arith.constant 0 : index
    %c0_163 = arith.constant 0 : index
    %137 = vector.load %arg11[%c0_162, %c0_163] : memref<8x8xbf16, #tpu.memory_space<vmem>>, vector<8x8xbf16>
    %cst_164 = arith.constant dense<0.000000e+00> : vector<64x8xf32>
    %138 = tpu.matmul %136, %137, %cst_164 {dimension_numbers = #tpu.dot_dimension_numbers<[1], [0], [0], [1], [0, 0, 1, 1], [], []>} : vector<64x8xbf16>, vector<8x8xbf16>, vector<64x8xf32> -> vector<64x8xf32>
    %139 = arith.truncf %38 : vector<64x8xf32> to vector<64x8xbf16>
    %140 = arith.truncf %68 : vector<64x8xf32> to vector<64x8xbf16>
    %141 = tpu.transpose %140, [1, 0] : vector<64x8xbf16> -> vector<8x64xbf16>
    %cst_165 = arith.constant dense<0.000000e+00> : vector<64x64xf32>
    %142 = tpu.matmul %139, %141, %cst_165 {dimension_numbers = #tpu.dot_dimension_numbers<[1], [0], [0], [1], [0, 0, 1, 1], [], []>} : vector<64x8xbf16>, vector<8x64xbf16>, vector<64x64xf32> -> vector<64x64xf32>
    %cst_166 = arith.constant dense<0xFF800000> : vector<64xf32>
    %143 = vector.multi_reduction <maximumf>, %142, %cst_166 [0] : vector<64x64xf32> to vector<64xf32>
    %144 = vector.shape_cast %143 : vector<64xf32> to vector<1x64xf32>
    %145 = vector.broadcast %144 : vector<1x64xf32> to vector<64x64xf32>
    %146 = arith.subf %142, %145 : vector<64x64xf32>
    %147 = math.exp %146 : vector<64x64xf32>
    %cst_167 = arith.constant dense<0.000000e+00> : vector<64xf32>
    %148 = vector.multi_reduction <add>, %147, %cst_167 [0] : vector<64x64xf32> to vector<64xf32>
    %149 = vector.shape_cast %148 : vector<64xf32> to vector<1x64xf32>
    %150 = vector.broadcast %149 : vector<1x64xf32> to vector<64x64xf32>
    %151 = arith.divf %147, %150 : vector<64x64xf32>
    %152 = arith.truncf %151 : vector<64x64xf32> to vector<64x64xbf16>
    %153 = arith.truncf %138 : vector<64x8xf32> to vector<64x8xbf16>
    %cst_168 = arith.constant dense<0.000000e+00> : vector<64x8xf32>
    %154 = tpu.matmul %152, %153, %cst_168 {dimension_numbers = #tpu.dot_dimension_numbers<[1], [0], [0], [1], [0, 0, 1, 1], [], []>} : vector<64x64xbf16>, vector<64x8xbf16>, vector<64x8xf32> -> vector<64x8xf32>
    %155 = arith.truncf %101 : vector<64x8xf32> to vector<64x8xbf16>
    %c0_169 = arith.constant 0 : index
    %c0_170 = arith.constant 0 : index
    %156 = vector.load %arg12[%c0_169, %c0_170] : memref<8x8xbf16, #tpu.memory_space<vmem>>, vector<8x8xbf16>
    %cst_171 = arith.constant dense<0.000000e+00> : vector<64x8xf32>
    %157 = tpu.matmul %155, %156, %cst_171 {dimension_numbers = #tpu.dot_dimension_numbers<[1], [0], [0], [1], [0, 0, 1, 1], [], []>} : vector<64x8xbf16>, vector<8x8xbf16>, vector<64x8xf32> -> vector<64x8xf32>
    %158 = arith.addf %154, %157 : vector<64x8xf32>
    %c0_172 = arith.constant 0 : index
    %c0_173 = arith.constant 0 : index
    %159 = vector.load %arg13[%c0_172, %c0_173] : memref<2x8xf32, #tpu.memory_space<vmem>>, vector<1x8xf32>
    %160 = vector.broadcast %159 : vector<1x8xf32> to vector<64x8xf32>
    %161 = arith.mulf %158, %160 : vector<64x8xf32>
    %c1_174 = arith.constant 1 : index
    %c0_175 = arith.constant 0 : index
    %162 = vector.load %arg13[%c1_174, %c0_175] : memref<2x8xf32, #tpu.memory_space<vmem>>, vector<1x8xf32>
    %163 = vector.broadcast %162 : vector<1x8xf32> to vector<64x8xf32>
    %164 = arith.addf %161, %163 : vector<64x8xf32>
    %165 = math.tanh %164 : vector<64x8xf32>
    %166 = vector.shape_cast %165 : vector<64x8xf32> to vector<8x8x8xf32>
    %cst_176 = arith.constant 0.000000e+00 : f32
    %167 = vector.broadcast %cst_176 : f32 to vector<10x10x8xf32>
    %c0_177 = arith.constant 0 : index
    %c0_178 = arith.constant 0 : index
    %c0_179 = arith.constant 0 : index
    %168 = vector.load %arg22[%c0_177, %c0_178, %c0_179] : memref<10x10x8xf32, #tpu.memory_space<vmem>>, vector<10x10x8xf32>
    tpu.vector_store %arg22[%c0_177, %c0_178, %c0_179], %167 {strides = array<i32>} : memref<10x10x8xf32, #tpu.memory_space<vmem>>, vector<10x10x8xf32>,
    %c1_180 = arith.constant 1 : index
    %c1_181 = arith.constant 1 : index
    %c0_182 = arith.constant 0 : index
    %169 = vector.load %arg22[%c1_180, %c1_181, %c0_182] : memref<10x10x8xf32, #tpu.memory_space<vmem>>, vector<8x8x8xf32>
    tpu.vector_store %arg22[%c1_180, %c1_181, %c0_182], %166 {strides = array<i32>} : memref<10x10x8xf32, #tpu.memory_space<vmem>>, vector<8x8x8xf32>,
    %c0_183 = arith.constant 0 : index
    %c0_184 = arith.constant 0 : index
    %c0_185 = arith.constant 0 : index
    %170 = vector.load %arg22[%c0_183, %c0_184, %c0_185] : memref<10x10x8xf32, #tpu.memory_space<vmem>>, vector<8x8x8xf32>
    %171 = vector.shape_cast %170 : vector<8x8x8xf32> to vector<64x8xf32>
    %c0_186 = arith.constant 0 : index
    %c1_187 = arith.constant 1 : index
    %c0_188 = arith.constant 0 : index
    %172 = vector.load %arg22[%c0_186, %c1_187, %c0_188] : memref<10x10x8xf32, #tpu.memory_space<vmem>>, vector<8x8x8xf32>
    %173 = vector.shape_cast %172 : vector<8x8x8xf32> to vector<64x8xf32>
    %c0_189 = arith.constant 0 : index
    %c2_190 = arith.constant 2 : index
    %c0_191 = arith.constant 0 : index
    %174 = vector.load %arg22[%c0_189, %c2_190, %c0_191] : memref<10x10x8xf32, #tpu.memory_space<vmem>>, vector<8x8x8xf32>
    %175 = vector.shape_cast %174 : vector<8x8x8xf32> to vector<64x8xf32>
    %c1_192 = arith.constant 1 : index
    %c0_193 = arith.constant 0 : index
    %c0_194 = arith.constant 0 : index
    %176 = vector.load %arg22[%c1_192, %c0_193, %c0_194] : memref<10x10x8xf32, #tpu.memory_space<vmem>>, vector<8x8x8xf32>
    %177 = vector.shape_cast %176 : vector<8x8x8xf32> to vector<64x8xf32>
    %c1_195 = arith.constant 1 : index
    %c1_196 = arith.constant 1 : index
    %c0_197 = arith.constant 0 : index
    %178 = vector.load %arg22[%c1_195, %c1_196, %c0_197] : memref<10x10x8xf32, #tpu.memory_space<vmem>>, vector<8x8x8xf32>
    %179 = vector.shape_cast %178 : vector<8x8x8xf32> to vector<64x8xf32>
    %c1_198 = arith.constant 1 : index
    %c2_199 = arith.constant 2 : index
    %c0_200 = arith.constant 0 : index
    %180 = vector.load %arg22[%c1_198, %c2_199, %c0_200] : memref<10x10x8xf32, #tpu.memory_space<vmem>>, vector<8x8x8xf32>
    %181 = vector.shape_cast %180 : vector<8x8x8xf32> to vector<64x8xf32>
    %c2_201 = arith.constant 2 : index
    %c0_202 = arith.constant 0 : index
    %c0_203 = arith.constant 0 : index
    %182 = vector.load %arg22[%c2_201, %c0_202, %c0_203] : memref<10x10x8xf32, #tpu.memory_space<vmem>>, vector<8x8x8xf32>
    %183 = vector.shape_cast %182 : vector<8x8x8xf32> to vector<64x8xf32>
    %c2_204 = arith.constant 2 : index
    %c1_205 = arith.constant 1 : index
    %c0_206 = arith.constant 0 : index
    %184 = vector.load %arg22[%c2_204, %c1_205, %c0_206] : memref<10x10x8xf32, #tpu.memory_space<vmem>>, vector<8x8x8xf32>
    %185 = vector.shape_cast %184 : vector<8x8x8xf32> to vector<64x8xf32>
    %c2_207 = arith.constant 2 : index
    %c2_208 = arith.constant 2 : index
    %c0_209 = arith.constant 0 : index
    %186 = vector.load %arg22[%c2_207, %c2_208, %c0_209] : memref<10x10x8xf32, #tpu.memory_space<vmem>>, vector<8x8x8xf32>
    %187 = vector.shape_cast %186 : vector<8x8x8xf32> to vector<64x8xf32>
    %188 = tpu.concatenate %171, %173, %175, %177, %179, %181, %183, %185, %187 in 1 : vector<64x8xf32>, vector<64x8xf32>, vector<64x8xf32>, vector<64x8xf32>, vector<64x8xf32>, vector<64x8xf32>, vector<64x8xf32>, vector<64x8xf32>, vector<64x8xf32> -> vector<64x72xf32>
    %189 = arith.truncf %188 : vector<64x72xf32> to vector<64x72xbf16>
    %c0_210 = arith.constant 0 : index
    %c0_211 = arith.constant 0 : index
    %190 = vector.load %arg14[%c0_210, %c0_211] : memref<72x8xbf16, #tpu.memory_space<vmem>>, vector<72x8xbf16>
    %cst_212 = arith.constant dense<0.000000e+00> : vector<64x8xf32>
    %191 = tpu.matmul %189, %190, %cst_212 {dimension_numbers = #tpu.dot_dimension_numbers<[1], [0], [0], [1], [0, 0, 1, 1], [], []>} : vector<64x72xbf16>, vector<72x8xbf16>, vector<64x8xf32> -> vector<64x8xf32>
    %c0_213 = arith.constant 0 : index
    %c0_214 = arith.constant 0 : index
    %192 = vector.load %arg15[%c0_213, %c0_214] : memref<2x8xf32, #tpu.memory_space<vmem>>, vector<1x8xf32>
    %193 = vector.broadcast %192 : vector<1x8xf32> to vector<64x8xf32>
    %194 = arith.mulf %191, %193 : vector<64x8xf32>
    %c1_215 = arith.constant 1 : index
    %c0_216 = arith.constant 0 : index
    %195 = vector.load %arg15[%c1_215, %c0_216] : memref<2x8xf32, #tpu.memory_space<vmem>>, vector<1x8xf32>
    %196 = vector.broadcast %195 : vector<1x8xf32> to vector<64x8xf32>
    %197 = arith.addf %194, %196 : vector<64x8xf32>
    %cst_217 = arith.constant 0.000000e+00 : f32
    %198 = vector.broadcast %cst_217 : f32 to vector<64x8xf32>
    %199 = arith.maximumf %197, %198 : vector<64x8xf32>
    %200 = arith.truncf %199 : vector<64x8xf32> to vector<64x8xbf16>
    %c0_218 = arith.constant 0 : index
    %c0_219 = arith.constant 0 : index
    %201 = vector.load %arg16[%c0_218, %c0_219] : memref<8x8xbf16, #tpu.memory_space<vmem>>, vector<8x8xbf16>
    %cst_220 = arith.constant dense<0.000000e+00> : vector<64x8xf32>
    %202 = tpu.matmul %200, %201, %cst_220 {dimension_numbers = #tpu.dot_dimension_numbers<[1], [0], [0], [1], [0, 0, 1, 1], [], []>} : vector<64x8xbf16>, vector<8x8xbf16>, vector<64x8xf32> -> vector<64x8xf32>
    %203 = arith.addf %202, %165 : vector<64x8xf32>
    %c0_221 = arith.constant 0 : index
    %c0_222 = arith.constant 0 : index
    %204 = vector.load %arg17[%c0_221, %c0_222] : memref<2x8xf32, #tpu.memory_space<vmem>>, vector<1x8xf32>
    %205 = vector.broadcast %204 : vector<1x8xf32> to vector<64x8xf32>
    %206 = arith.mulf %203, %205 : vector<64x8xf32>
    %c1_223 = arith.constant 1 : index
    %c0_224 = arith.constant 0 : index
    %207 = vector.load %arg17[%c1_223, %c0_224] : memref<2x8xf32, #tpu.memory_space<vmem>>, vector<1x8xf32>
    %208 = vector.broadcast %207 : vector<1x8xf32> to vector<64x8xf32>
    %209 = arith.addf %206, %208 : vector<64x8xf32>
    %210 = math.tanh %209 : vector<64x8xf32>
    %c0_225 = arith.constant 0 : index
    %c0_226 = arith.constant 0 : index
    %c0_227 = arith.constant 0 : index
    %211 = vector.load %arg18[%c0_225, %c0_226, %c0_227] : memref<1x64x8xf32, #tpu.memory_space<vmem>>, vector<1x64x8xf32>
    %212 = vector.shape_cast %211 : vector<1x64x8xf32> to vector<64x8xf32>
    %213 = vector.shape_cast %210 : vector<64x8xf32> to vector<1x64x8xf32>
    tpu.vector_store %arg18[%c0_225, %c0_226, %c0_227], %213 {strides = array<i32>} : memref<1x64x8xf32, #tpu.memory_space<vmem>>, vector<1x64x8xf32>,
    return
  }
  func.func @transform_0(%arg0: i32) -> (i32, i32, i32, i32) {
    %c0_i32 = arith.constant 0 : i32
    %c0_i32_0 = arith.constant 0 : i32
    %c0_i32_1 = arith.constant 0 : i32
    %c0_i32_2 = arith.constant 0 : i32
    return %arg0, %c0_i32, %c0_i32_0, %c0_i32_1 : i32, i32, i32, i32
  }
  func.func @transform_1(%arg0: i32) -> (i32, i32, i32, i32) {
    %c0_i32 = arith.constant 0 : i32
    %c0_i32_0 = arith.constant 0 : i32
    %c0_i32_1 = arith.constant 0 : i32
    %c0_i32_2 = arith.constant 0 : i32
    return %arg0, %c0_i32, %c0_i32_0, %c0_i32_1 : i32, i32, i32, i32
  }
  func.func @transform_2(%arg0: i32) -> (i32, i32) {
    %c0_i32 = arith.constant 0 : i32
    %c0_i32_0 = arith.constant 0 : i32
    %c0_i32_1 = arith.constant 0 : i32
    return %c0_i32, %c0_i32_0 : i32, i32
  }
  func.func @transform_3(%arg0: i32) -> (i32, i32) {
    %c0_i32 = arith.constant 0 : i32
    %c0_i32_0 = arith.constant 0 : i32
    %c0_i32_1 = arith.constant 0 : i32
    return %c0_i32, %c0_i32_0 : i32, i32
  }
  func.func @transform_4(%arg0: i32) -> (i32, i32) {
    %c0_i32 = arith.constant 0 : i32
    %c0_i32_0 = arith.constant 0 : i32
    %c0_i32_1 = arith.constant 0 : i32
    return %c0_i32, %c0_i32_0 : i32, i32
  }
  func.func @transform_5(%arg0: i32) -> (i32, i32) {
    %c0_i32 = arith.constant 0 : i32
    %c0_i32_0 = arith.constant 0 : i32
    %c0_i32_1 = arith.constant 0 : i32
    return %c0_i32, %c0_i32_0 : i32, i32
  }
  func.func @transform_6(%arg0: i32) -> (i32, i32) {
    %c0_i32 = arith.constant 0 : i32
    %c0_i32_0 = arith.constant 0 : i32
    %c0_i32_1 = arith.constant 0 : i32
    return %c0_i32, %c0_i32_0 : i32, i32
  }
  func.func @transform_7(%arg0: i32) -> (i32, i32) {
    %c0_i32 = arith.constant 0 : i32
    %c0_i32_0 = arith.constant 0 : i32
    %c0_i32_1 = arith.constant 0 : i32
    return %c0_i32, %c0_i32_0 : i32, i32
  }
  func.func @transform_8(%arg0: i32) -> (i32, i32) {
    %c0_i32 = arith.constant 0 : i32
    %c0_i32_0 = arith.constant 0 : i32
    %c0_i32_1 = arith.constant 0 : i32
    return %c0_i32, %c0_i32_0 : i32, i32
  }
  func.func @transform_9(%arg0: i32) -> (i32, i32) {
    %c0_i32 = arith.constant 0 : i32
    %c0_i32_0 = arith.constant 0 : i32
    %c0_i32_1 = arith.constant 0 : i32
    return %c0_i32, %c0_i32_0 : i32, i32
  }
  func.func @transform_10(%arg0: i32) -> (i32, i32) {
    %c0_i32 = arith.constant 0 : i32
    %c0_i32_0 = arith.constant 0 : i32
    %c0_i32_1 = arith.constant 0 : i32
    return %c0_i32, %c0_i32_0 : i32, i32
  }
  func.func @transform_11(%arg0: i32) -> (i32, i32) {
    %c0_i32 = arith.constant 0 : i32
    %c0_i32_0 = arith.constant 0 : i32
    %c0_i32_1 = arith.constant 0 : i32
    return %c0_i32, %c0_i32_0 : i32, i32
  }
  func.func @transform_12(%arg0: i32) -> (i32, i32) {
    %c0_i32 = arith.constant 0 : i32
    %c0_i32_0 = arith.constant 0 : i32
    %c0_i32_1 = arith.constant 0 : i32
    return %c0_i32, %c0_i32_0 : i32, i32
  }
  func.func @transform_13(%arg0: i32) -> (i32, i32) {
    %c0_i32 = arith.constant 0 : i32
    %c0_i32_0 = arith.constant 0 : i32
    %c0_i32_1 = arith.constant 0 : i32
    return %c0_i32, %c0_i32_0 : i32, i32
  }
  func.func @transform_14(%arg0: i32) -> (i32, i32) {
    %c0_i32 = arith.constant 0 : i32
    %c0_i32_0 = arith.constant 0 : i32
    %c0_i32_1 = arith.constant 0 : i32
    return %c0_i32, %c0_i32_0 : i32, i32
  }
  func.func @transform_15(%arg0: i32) -> (i32, i32) {
    %c0_i32 = arith.constant 0 : i32
    %c0_i32_0 = arith.constant 0 : i32
    %c0_i32_1 = arith.constant 0 : i32
    return %c0_i32, %c0_i32_0 : i32, i32
  }
  func.func @transform_16(%arg0: i32) -> (i32, i32) {
    %c0_i32 = arith.constant 0 : i32
    %c0_i32_0 = arith.constant 0 : i32
    %c0_i32_1 = arith.constant 0 : i32
    return %c0_i32, %c0_i32_0 : i32, i32
  }
  func.func @transform_17(%arg0: i32) -> (i32, i32, i32) {
    %c0_i32 = arith.constant 0 : i32
    %c0_i32_0 = arith.constant 0 : i32
    %c0_i32_1 = arith.constant 0 : i32
    return %arg0, %c0_i32, %c0_i32_0 : i32, i32, i32
  }
}

</mosaic_0001>

<llo_original>
// kernel: attention_block_forward.3
$region0: #{attention_block_forward.3}
  #allocation0 [shape = 'u32[]', space=smem, size = 0x4, offset = 0x4, fixed_abs, tag = 'smem constant byte address 0x4 - core index']
  #allocation1 [shape = 'u32[144,128]{1,0:T(1,128)}', space=vmem, size = 0x12000, scoped, tag = 'internal scratch']
  #allocation2 [shape = 'f32[12,12,8]{2,1,0:T(8,128)}', space=vmem, size = 0x18000, scoped, tag = 'scratch operand']
  #allocation3 [shape = 'f32[10,10,8]{2,1,0:T(8,128)}', space=vmem, size = 0x14000, scoped, tag = 'scratch operand']
  #allocation4 [shape = 'f32[10,10,8]{2,1,0:T(8,128)}', space=vmem, size = 0x14000, scoped, tag = 'scratch operand']
  %s0 = inlined_call_operand.vmem [shape: f32[2,8,8,8], index: 0, kind: input, shape index: {}]
  %s1 = inlined_call_operand.vmem [shape: bf16[72,24], index: 1, kind: input, shape index: {}]
  %s2 = inlined_call_operand.vmem [shape: f32[2,24], index: 2, kind: input, shape index: {}]
  %s3 = inlined_call_operand.vmem [shape: bf16[72,8], index: 3, kind: input, shape index: {}]
  %s4 = inlined_call_operand.vmem [shape: f32[2,8], index: 4, kind: input, shape index: {}]
  %s5 = inlined_call_operand.vmem [shape: bf16[72,8], index: 5, kind: input, shape index: {}]
  %s6 = inlined_call_operand.vmem [shape: f32[2,8], index: 6, kind: input, shape index: {}]
  %s7 = inlined_call_operand.vmem [shape: bf16[8,8], index: 7, kind: input, shape index: {}]
  %s8 = inlined_call_operand.vmem [shape: bf16[8,8], index: 8, kind: input, shape index: {}]
  %s9 = inlined_call_operand.vmem [shape: f32[2,8], index: 9, kind: input, shape index: {}]
  %s10 = inlined_call_operand.vmem [shape: bf16[72,8], index: 10, kind: input, shape index: {}]
  %s11 = inlined_call_operand.vmem [shape: f32[2,8], index: 11, kind: input, shape index: {}]
  %s12 = inlined_call_operand.vmem [shape: bf16[8,8], index: 12, kind: input, shape index: {}]
  %s13 = inlined_call_operand.vmem [shape: f32[2,8], index: 13, kind: input, shape index: {}]
  %s14 = inlined_call_operand.vmem [shape: f32[2,64,8], index: 14, kind: output, shape index: {}]
  %s15 = sld [smem:[#allocation0]]
  $region89: #{attention_block_forward.3} parent=0
    _
  %s17 = ssub.s32 1, %s15
  %s18 = scalar_select 0, %s17, %s15
  loop: start=0, step=1, limit=4
  $region2: #{attention_block_forward.3} parent=0 // loop_pre_header
    _
  $region3: #{attention_block_forward.3} parent=0 // loop_header
    %s20 = sphi 0, %s24
    %p21 = scmp.ge.s32.totalorder %s20, 4
    %s30 = sphi 0, %s32
    %s33 = sphi 0, %s30
    %s34 = sphi 0, %s33
    %s50 = sphi 0, %s34
    %s54 = sphi 0, %s54
    %s56 = sphi 0, %s54
    %s57 = sphi 0, %s56
    %s71 = sphi 0, %s57
    %s75 = sphi 0, %s75
    %s77 = sphi 0, %s75
    %s78 = sphi 0, %s77
    %s92 = sphi 0, %s78
    %s96 = sphi 0, %s96
    %s98 = sphi 0, %s96
    %s99 = sphi 0, %s98
    %s113 = sphi 0, %s99
    %s117 = sphi 0, %s117
    %s119 = sphi 0, %s117
    %s120 = sphi 0, %s119
    %s134 = sphi 0, %s120
    %s138 = sphi 0, %s138
    %s140 = sphi 0, %s138
    %s141 = sphi 0, %s140
    %s155 = sphi 0, %s141
    %s159 = sphi 0, %s159
    %s161 = sphi 0, %s159
    %s162 = sphi 0, %s161
    %s176 = sphi 0, %s162
    %s180 = sphi 0, %s180
    %s182 = sphi 0, %s180
    %s183 = sphi 0, %s182
    %s197 = sphi 0, %s183
    %s201 = sphi 0, %s201
    %s203 = sphi 0, %s201
    %s204 = sphi 0, %s203
    %s218 = sphi 0, %s204
    %s222 = sphi 0, %s222
    %s224 = sphi 0, %s222
    %s225 = sphi 0, %s224
    %s239 = sphi 0, %s225
    %s243 = sphi 0, %s243
    %s245 = sphi 0, %s243
    %s246 = sphi 0, %s245
    %s260 = sphi 0, %s246
    %s264 = sphi 0, %s264
    %s266 = sphi 0, %s264
    %s267 = sphi 0, %s266
    %s281 = sphi 0, %s267
    %s285 = sphi 0, %s285
    %s287 = sphi 0, %s285
    %s288 = sphi 0, %s287
    %s302 = sphi 0, %s288
    %s306 = sphi 0, %s306
    %s308 = sphi 0, %s306
    %s309 = sphi 0, %s308
    %s323 = sphi 0, %s309
    %s329 = sphi 0, %s331
    %s332 = sphi 0, %s329
    %s333 = sphi 0, %s332
    %s349 = sphi 0, %s333
  $region4: #{attention_block_forward.3} parent=0 // loop_header_branch
    %23 = sbr.rel (%p21) target = $region8
  $region5: #{attention_block_forward.3} parent=0 // loop_body
    %s25 = ssub.s32 %s20, 1
    %s26 = ssub.s32 %s20, 2
    %s27 = sadd.s32 %s20, 1
    %s28 = ssub.s32 %s20, %s27
    %p29 = scmp.eq.s32.totalorder %s28, 0
    %s31 = sadd.s32 %s30, 1
    %s32 = scalar_select %p29, %s30, %s31
    %p35 = pneg %p29
    %p36 = scmp.eq.s32.totalorder %s20, 1
    %p37 = por %p35, %p36
    %p38 = scmp.ne.s32.totalorder %s30, %s33
    %p39 = scmp.eq.s32.totalorder %s20, 0
    %p40 = por %p38, %p39
    %p41 = scmp.ne.s32.totalorder %s30, %s33
    %p42 = scmp.eq.s32.totalorder %s25, 1
    %p43 = por %p41, %p42
    %p44 = scmp.ne.s32.totalorder %s33, %s34
    %p45 = scmp.eq.s32.totalorder %s25, 0
    %p46 = por %p44, %p45
    %p47 = scmp.ne.s32.totalorder %s33, %s34
    %p48 = scmp.eq.s32.totalorder %s26, 1
    %p49 = por %p47, %p48
    %p51 = scmp.ne.s32.totalorder %s34, %s50
    %p52 = scmp.eq.s32.totalorder %s26, 0
    %p53 = por %p51, %p52
    %s55 = sadd.s32 %s54, 1
    %p58 = scmp.eq.s32.totalorder %s20, 1
    %p59 = scmp.ne.s32.totalorder %s54, %s56
    %p60 = scmp.eq.s32.totalorder %s20, 0
    %p61 = por %p59, %p60
    %p62 = scmp.ne.s32.totalorder %s54, %s56
    %p63 = scmp.eq.s32.totalorder %s25, 1
    %p64 = por %p62, %p63
    %p65 = scmp.ne.s32.totalorder %s56, %s57
    %p66 = scmp.eq.s32.totalorder %s25, 0
    %p67 = por %p65, %p66
    %p68 = scmp.ne.s32.totalorder %s56, %s57
    %p69 = scmp.eq.s32.totalorder %s26, 1
    %p70 = por %p68, %p69
    %p72 = scmp.ne.s32.totalorder %s57, %s71
    %p73 = scmp.eq.s32.totalorder %s26, 0
    %p74 = por %p72, %p73
    %s76 = sadd.s32 %s75, 1
    %p79 = scmp.eq.s32.totalorder %s20, 1
    %p80 = scmp.ne.s32.totalorder %s75, %s77
    %p81 = scmp.eq.s32.totalorder %s20, 0
    %p82 = por %p80, %p81
    %p83 = scmp.ne.s32.totalorder %s75, %s77
    %p84 = scmp.eq.s32.totalorder %s25, 1
    %p85 = por %p83, %p84
    %p86 = scmp.ne.s32.totalorder %s77, %s78
    %p87 = scmp.eq.s32.totalorder %s25, 0
    %p88 = por %p86, %p87
    %p89 = scmp.ne.s32.totalorder %s77, %s78
    %p90 = scmp.eq.s32.totalorder %s26, 1
    %p91 = por %p89, %p90
    %p93 = scmp.ne.s32.totalorder %s78, %s92
    %p94 = scmp.eq.s32.totalorder %s26, 0
    %p95 = por %p93, %p94
    %s97 = sadd.s32 %s96, 1
    %p100 = scmp.eq.s32.totalorder %s20, 1
    %p101 = scmp.ne.s32.totalorder %s96, %s98
    %p102 = scmp.eq.s32.totalorder %s20, 0
    %p103 = por %p101, %p102
    %p104 = scmp.ne.s32.totalorder %s96, %s98
    %p105 = scmp.eq.s32.totalorder %s25, 1
    %p106 = por %p104, %p105
    %p107 = scmp.ne.s32.totalorder %s98, %s99
    %p108 = scmp.eq.s32.totalorder %s25, 0
    %p109 = por %p107, %p108
    %p110 = scmp.ne.s32.totalorder %s98, %s99
    %p111 = scmp.eq.s32.totalorder %s26, 1
    %p112 = por %p110, %p111
    %p114 = scmp.ne.s32.totalorder %s99, %s113
    %p115 = scmp.eq.s32.totalorder %s26, 0
    %p116 = por %p114, %p115
    %s118 = sadd.s32 %s117, 1
    %p121 = scmp.eq.s32.totalorder %s20, 1
    %p122 = scmp.ne.s32.totalorder %s117, %s119
    %p123 = scmp.eq.s32.totalorder %s20, 0
    %p124 = por %p122, %p123
    %p125 = scmp.ne.s32.totalorder %s117, %s119
    %p126 = scmp.eq.s32.totalorder %s25, 1
    %p127 = por %p125, %p126
    %p128 = scmp.ne.s32.totalorder %s119, %s120
    %p129 = scmp.eq.s32.totalorder %s25, 0
    %p130 = por %p128, %p129
    %p131 = scmp.ne.s32.totalorder %s119, %s120
    %p132 = scmp.eq.s32.totalorder %s26, 1
    %p133 = por %p131, %p132
    %p135 = scmp.ne.s32.totalorder %s120, %s134
    %p136 = scmp.eq.s32.totalorder %s26, 0
    %p137 = por %p135, %p136
    %s139 = sadd.s32 %s138, 1
    %p142 = scmp.eq.s32.totalorder %s20, 1
    %p143 = scmp.ne.s32.totalorder %s138, %s140
    %p144 = scmp.eq.s32.totalorder %s20, 0
    %p145 = por %p143, %p144
    %p146 = scmp.ne.s32.totalorder %s138, %s140
    %p147 = scmp.eq.s32.totalorder %s25, 1
    %p148 = por %p146, %p147
    %p149 = scmp.ne.s32.totalorder %s140, %s141
    %p150 = scmp.eq.s32.totalorder %s25, 0
    %p151 = por %p149, %p150
    %p152 = scmp.ne.s32.totalorder %s140, %s141
    %p153 = scmp.eq.s32.totalorder %s26, 1
    %p154 = por %p152, %p153
    %p156 = scmp.ne.s32.totalorder %s141, %s155
    %p157 = scmp.eq.s32.totalorder %s26, 0
    %p158 = por %p156, %p157
    %s160 = sadd.s32 %s159, 1
    %p163 = scmp.eq.s32.totalorder %s20, 1
    %p164 = scmp.ne.s32.totalorder %s159, %s161
    %p165 = scmp.eq.s32.totalorder %s20, 0
    %p166 = por %p164, %p165
    %p167 = scmp.ne.s32.totalorder %s159, %s161
    %p168 = scmp.eq.s32.totalorder %s25, 1
    %p169 = por %p167, %p168
    %p170 = scmp.ne.s32.totalorder %s161, %s162
    %p171 = scmp.eq.s32.totalorder %s25, 0
    %p172 = por %p170, %p171
    %p173 = scmp.ne.s32.totalorder %s161, %s162
    %p174 = scmp.eq.s32.totalorder %s26, 1
    %p175 = por %p173, %p174
    %p177 = scmp.ne.s32.totalorder %s162, %s176
    %p178 = scmp.eq.s32.totalorder %s26, 0
    %p179 = por %p177, %p178
    %s181 = sadd.s32 %s180, 1
    %p184 = scmp.eq.s32.totalorder %s20, 1
    %p185 = scmp.ne.s32.totalorder %s180, %s182
    %p186 = scmp.eq.s32.totalorder %s20, 0
    %p187 = por %p185, %p186
    %p188 = scmp.ne.s32.totalorder %s180, %s182
    %p189 = scmp.eq.s32.totalorder %s25, 1
    %p190 = por %p188, %p189
    %p191 = scmp.ne.s32.totalorder %s182, %s183
    %p192 = scmp.eq.s32.totalorder %s25, 0
    %p193 = por %p191, %p192
    %p194 = scmp.ne.s32.totalorder %s182, %s183
    %p195 = scmp.eq.s32.totalorder %s26, 1
    %p196 = por %p194, %p195
    %p198 = scmp.ne.s32.totalorder %s183, %s197
    %p199 = scmp.eq.s32.totalorder %s26, 0
    %p200 = por %p198, %p199
    %s202 = sadd.s32 %s201, 1
    %p205 = scmp.eq.s32.totalorder %s20, 1
    %p206 = scmp.ne.s32.totalorder %s201, %s203
    %p207 = scmp.eq.s32.totalorder %s20, 0
    %p208 = por %p206, %p207
    %p209 = scmp.ne.s32.totalorder %s201, %s203
    %p210 = scmp.eq.s32.totalorder %s25, 1
    %p211 = por %p209, %p210
    %p212 = scmp.ne.s32.totalorder %s203, %s204
    %p213 = scmp.eq.s32.totalorder %s25, 0
    %p214 = por %p212, %p213
    %p215 = scmp.ne.s32.totalorder %s203, %s204
    %p216 = scmp.eq.s32.totalorder %s26, 1
    %p217 = por %p215, %p216
    %p219 = scmp.ne.s32.totalorder %s204, %s218
    %p220 = scmp.eq.s32.totalorder %s26, 0
    %p221 = por %p219, %p220
    %s223 = sadd.s32 %s222, 1
    %p226 = scmp.eq.s32.totalorder %s20, 1
    %p227 = scmp.ne.s32.totalorder %s222, %s224
    %p228 = scmp.eq.s32.totalorder %s20, 0
    %p229 = por %p227, %p228
    %p230 = scmp.ne.s32.totalorder %s222, %s224
    %p231 = scmp.eq.s32.totalorder %s25, 1
    %p232 = por %p230, %p231
    %p233 = scmp.ne.s32.totalorder %s224, %s225
    %p234 = scmp.eq.s32.totalorder %s25, 0
    %p235 = por %p233, %p234
    %p236 = scmp.ne.s32.totalorder %s224, %s225
    %p237 = scmp.eq.s32.totalorder %s26, 1
    %p238 = por %p236, %p237
    %p240 = scmp.ne.s32.totalorder %s225, %s239
    %p241 = scmp.eq.s32.totalorder %s26, 0
    %p242 = por %p240, %p241
    %s244 = sadd.s32 %s243, 1
    %p247 = scmp.eq.s32.totalorder %s20, 1
    %p248 = scmp.ne.s32.totalorder %s243, %s245
    %p249 = scmp.eq.s32.totalorder %s20, 0
    %p250 = por %p248, %p249
    %p251 = scmp.ne.s32.totalorder %s243, %s245
    %p252 = scmp.eq.s32.totalorder %s25, 1
    %p253 = por %p251, %p252
    %p254 = scmp.ne.s32.totalorder %s245, %s246
    %p255 = scmp.eq.s32.totalorder %s25, 0
    %p256 = por %p254, %p255
    %p257 = scmp.ne.s32.totalorder %s245, %s246
    %p258 = scmp.eq.s32.totalorder %s26, 1
    %p259 = por %p257, %p258
    %p261 = scmp.ne.s32.totalorder %s246, %s260
    %p262 = scmp.eq.s32.totalorder %s26, 0
    %p263 = por %p261, %p262
    %s265 = sadd.s32 %s264, 1
    %p268 = scmp.eq.s32.totalorder %s20, 1
    %p269 = scmp.ne.s32.totalorder %s264, %s266
    %p270 = scmp.eq.s32.totalorder %s20, 0
    %p271 = por %p269, %p270
    %p272 = scmp.ne.s32.totalorder %s264, %s266
    %p273 = scmp.eq.s32.totalorder %s25, 1
    %p274 = por %p272, %p273
    %p275 = scmp.ne.s32.totalorder %s266, %s267
    %p276 = scmp.eq.s32.totalorder %s25, 0
    %p277 = por %p275, %p276
    %p278 = scmp.ne.s32.totalorder %s266, %s267
    %p279 = scmp.eq.s32.totalorder %s26, 1
    %p280 = por %p278, %p279
    %p282 = scmp.ne.s32.totalorder %s267, %s281
    %p283 = scmp.eq.s32.totalorder %s26, 0
    %p284 = por %p282, %p283
    %s286 = sadd.s32 %s285, 1
    %p289 = scmp.eq.s32.totalorder %s20, 1
    %p290 = scmp.ne.s32.totalorder %s285, %s287
    %p291 = scmp.eq.s32.totalorder %s20, 0
    %p292 = por %p290, %p291
    %p293 = scmp.ne.s32.totalorder %s285, %s287
    %p294 = scmp.eq.s32.totalorder %s25, 1
    %p295 = por %p293, %p294
    %p296 = scmp.ne.s32.totalorder %s287, %s288
    %p297 = scmp.eq.s32.totalorder %s25, 0
    %p298 = por %p296, %p297
    %p299 = scmp.ne.s32.totalorder %s287, %s288
    %p300 = scmp.eq.s32.totalorder %s26, 1
    %p301 = por %p299, %p300
    %p303 = scmp.ne.s32.totalorder %s288, %s302
    %p304 = scmp.eq.s32.totalorder %s26, 0
    %p305 = por %p303, %p304
    %s307 = sadd.s32 %s306, 1
    %p310 = scmp.eq.s32.totalorder %s20, 1
    %p311 = scmp.ne.s32.totalorder %s306, %s308
    %p312 = scmp.eq.s32.totalorder %s20, 0
    %p313 = por %p311, %p312
    %p314 = scmp.ne.s32.totalorder %s306, %s308
    %p315 = scmp.eq.s32.totalorder %s25, 1
    %p316 = por %p314, %p315
    %p317 = scmp.ne.s32.totalorder %s308, %s309
    %p318 = scmp.eq.s32.totalorder %s25, 0
    %p319 = por %p317, %p318
    %p320 = scmp.ne.s32.totalorder %s308, %s309
    %p321 = scmp.eq.s32.totalorder %s26, 1
    %p322 = por %p320, %p321
    %p324 = scmp.ne.s32.totalorder %s309, %s323
    %p325 = scmp.eq.s32.totalorder %s26, 0
    %p326 = por %p324, %p325
    %s327 = ssub.s32 %s20, %s27
    %p328 = scmp.eq.s32.totalorder %s327, 0
    %s330 = sadd.s32 %s329, 1
    %s331 = scalar_select %p328, %s329, %s330
    %p334 = pneg %p328
    %p335 = scmp.eq.s32.totalorder %s20, 1
    %p336 = por %p334, %p335
    %p337 = scmp.ne.s32.totalorder %s329, %s332
    %p338 = scmp.eq.s32.totalorder %s20, 0
    %p339 = por %p337, %p338
    %p340 = scmp.ne.s32.totalorder %s329, %s332
    %p341 = scmp.eq.s32.totalorder %s25, 1
    %p342 = por %p340, %p341
    %p343 = scmp.ne.s32.totalorder %s332, %s333
    %p344 = scmp.eq.s32.totalorder %s25, 0
    %p345 = por %p343, %p344
    %p346 = scmp.ne.s32.totalorder %s332, %s333
    %p347 = scmp.eq.s32.totalorder %s26, 1
    %p348 = por %p346, %p347
    %p350 = scmp.ne.s32.totalorder %s333, %s349
    %p351 = scmp.eq.s32.totalorder %s26, 0
    %p352 = por %p350, %p351
    %p353 = scmp.le.s32.totalorder 1, %s20
    %p354 = scmp.lt.s32.totalorder %s20, 3
    %p355 = pnand %p353, %p354
    %p356 = pneg %p355
    // Predicated region
    $region9: #{attention_block_forward.3} parent=5 // pred_check
      _
    $region10: #{attention_block_forward.3} parent=5 // pred_check_branch
      %358 = sbr.rel (%p355) target = $region12
    $region11: #{attention_block_forward.3} parent=5 // pred_region
      %s359 = ssub.s32 %s20, 1
      // Predicated region
      $region13: #{attention_block_forward.3} parent=11 // pred_check
        %p360 = pneg %p67
      $region14: #{attention_block_forward.3} parent=11 // pred_check_branch
        %362 = sbr.rel (%p360) target = $region16
      $region15: #{attention_block_forward.3} parent=11 // pred_region
        _
      $region16: #{attention_block_forward.3} parent=11 // pred_fallthru
        _
      // Predicated region
      $region17: #{attention_block_forward.3} parent=11 // pred_check
        %p363 = pneg %p88
      $region18: #{attention_block_forward.3} parent=11 // pred_check_branch
        %365 = sbr.rel (%p363) target = $region20
      $region19: #{attention_block_forward.3} parent=11 // pred_region
        _
      $region20: #{attention_block_forward.3} parent=11 // pred_fallthru
        _
      // Predicated region
      $region21: #{attention_block_forward.3} parent=11 // pred_check
        %p366 = pneg %p109
      $region22: #{attention_block_forward.3} parent=11 // pred_check_branch
        %368 = sbr.rel (%p366) target = $region24
      $region23: #{attention_block_forward.3} parent=11 // pred_region
        _
      $region24: #{attention_block_forward.3} parent=11 // pred_fallthru
        _
      // Predicated region
      $region25: #{attention_block_forward.3} parent=11 // pred_check
        %p369 = pneg %p130
      $region26: #{attention_block_forward.3} parent=11 // pred_check_branch
        %371 = sbr.rel (%p369) target = $region28
      $region27: #{attention_block_forward.3} parent=11 // pred_region
        _
      $region28: #{attention_block_forward.3} parent=11 // pred_fallthru
        _
      // Predicated region
      $region29: #{attention_block_forward.3} parent=11 // pred_check
        %p372 = pneg %p151
      $region30: #{attention_block_forward.3} parent=11 // pred_check_branch
        %374 = sbr.rel (%p372) target = $region32
      $region31: #{attention_block_forward.3} parent=11 // pred_region
        _
      $region32: #{attention_block_forward.3} parent=11 // pred_fallthru
        _
      // Predicated region
      $region33: #{attention_block_forward.3} parent=11 // pred_check
        %p375 = pneg %p172
      $region34: #{attention_block_forward.3} parent=11 // pred_check_branch
        %377 = sbr.rel (%p375) target = $region36
      $region35: #{attention_block_forward.3} parent=11 // pred_region
        _
      $region36: #{attention_block_forward.3} parent=11 // pred_fallthru
        _
      // Predicated region
      $region37: #{attention_block_forward.3} parent=11 // pred_check
        %p378 = pneg %p193
      $region38: #{attention_block_forward.3} parent=11 // pred_check_branch
        %380 = sbr.rel (%p378) target = $region40
      $region39: #{attention_block_forward.3} parent=11 // pred_region
        _
      $region40: #{attention_block_forward.3} parent=11 // pred_fallthru
        _
      // Predicated region
      $region41: #{attention_block_forward.3} parent=11 // pred_check
        %p381 = pneg %p214
      $region42: #{attention_block_forward.3} parent=11 // pred_check_branch
        %383 = sbr.rel (%p381) target = $region44
      $region43: #{attention_block_forward.3} parent=11 // pred_region
        _
      $region44: #{attention_block_forward.3} parent=11 // pred_fallthru
        _
      // Predicated region
      $region45: #{attention_block_forward.3} parent=11 // pred_check
        %p384 = pneg %p235
      $region46: #{attention_block_forward.3} parent=11 // pred_check_branch
        %386 = sbr.rel (%p384) target = $region48
      $region47: #{attention_block_forward.3} parent=11 // pred_region
        _
      $region48: #{attention_block_forward.3} parent=11 // pred_fallthru
        _
      // Predicated region
      $region49: #{attention_block_forward.3} parent=11 // pred_check
        %p387 = pneg %p256
      $region50: #{attention_block_forward.3} parent=11 // pred_check_branch
        %389 = sbr.rel (%p387) target = $region52
      $region51: #{attention_block_forward.3} parent=11 // pred_region
        _
      $region52: #{attention_block_forward.3} parent=11 // pred_fallthru
        _
      // Predicated region
      $region53: #{attention_block_forward.3} parent=11 // pred_check
        %p390 = pneg %p277
      $region54: #{attention_block_forward.3} parent=11 // pred_check_branch
        %392 = sbr.rel (%p390) target = $region56
      $region55: #{attention_block_forward.3} parent=11 // pred_region
        _
      $region56: #{attention_block_forward.3} parent=11 // pred_fallthru
        _
      // Predicated region
      $region57: #{attention_block_forward.3} parent=11 // pred_check
        %p393 = pneg %p298
      $region58: #{attention_block_forward.3} parent=11 // pred_check_branch
        %395 = sbr.rel (%p393) target = $region60
      $region59: #{attention_block_forward.3} parent=11 // pred_region
        _
      $region60: #{attention_block_forward.3} parent=11 // pred_fallthru
        _
      // Predicated region
      $region61: #{attention_block_forward.3} parent=11 // pred_check
        %p396 = pneg %p319
      $region62: #{attention_block_forward.3} parent=11 // pred_check_branch
        %398 = sbr.rel (%p396) target = $region64
      $region63: #{attention_block_forward.3} parent=11 // pred_region
        _
      $region64: #{attention_block_forward.3} parent=11 // pred_fallthru
        _
    $region12: #{attention_block_forward.3} parent=5 // pred_fallthru
      _
    %p399 = scmp.lt.s32.totalorder %s20, 2
    // Predicated region
    $region65: #{attention_block_forward.3} parent=5 // pred_check
      %p400 = pneg %p399
    $region66: #{attention_block_forward.3} parent=5 // pred_check_branch
      %402 = sbr.rel (%p400) target = $region68
    $region67: #{attention_block_forward.3} parent=5 // pred_region
      // Predicated region
      $region69: #{attention_block_forward.3} parent=67 // pred_check
        %p403 = pneg %p40
      $region70: #{attention_block_forward.3} parent=67 // pred_check_branch
        %405 = sbr.rel (%p403) target = $region72
      $region71: #{attention_block_forward.3} parent=67 // pred_region
        %p406 = scmp.lt.s32.totalorder %s20, 1
        %s407 = scalar_select %p406, %s20, 1
        %s408 = smul.addr %s407, 8
        %s409 = smul.addr %s408, 8
        %s410 = scalar_lea.vmem %s0, %s409
      $region72: #{attention_block_forward.3} parent=67 // pred_fallthru
        _
    $region68: #{attention_block_forward.3} parent=5 // pred_fallthru
      _
    %p411 = scmp.le.s32.totalorder 1, %s20
    %p412 = scmp.lt.s32.totalorder %s20, 3
    %p413 = pnand %p411, %p412
    %p414 = pneg %p413
    // Predicated region
    $region73: #{attention_block_forward.3} parent=5 // pred_check
      _
    $region74: #{attention_block_forward.3} parent=5 // pred_check_branch
      %416 = sbr.rel (%p413) target = $region76
    $region75: #{attention_block_forward.3} parent=5 // pred_region
      %s417 = ssub.s32 %s20, 1
      %p418 = scmp.lt.s32.totalorder %s25, 1
      %s419 = scalar_select %p418, %s25, 1
      %s420 = smul.addr %s419, 8
      %s421 = smul.addr %s420, 8
      %s422 = scalar_lea.vmem %s0, %s421
      %p423 = pneg %p46
      %p424 = pneg %p43
      %p425 = pneg %p67
      %p426 = pneg %p64
      %p427 = pneg %p88
      %p428 = pneg %p85
      %p429 = pneg %p109
      %p430 = pneg %p106
      %p431 = pneg %p130
      %p432 = pneg %p127
      %p433 = pneg %p151
      %p434 = pneg %p148
      %p435 = pneg %p172
      %p436 = pneg %p169
      %p437 = pneg %p193
      %p438 = pneg %p190
      %p439 = pneg %p214
      %p440 = pneg %p211
      %p441 = pneg %p235
      %p442 = pneg %p232
      %p443 = pneg %p256
      %p444 = pneg %p253
      %p445 = pneg %p277
      %p446 = pneg %p274
      %p447 = pneg %p298
      %p448 = pneg %p295
      %p449 = pneg %p319
      %p450 = pneg %p316
      %p451 = pneg %p345
      %p452 = pneg %p342
      %p453 = scmp.lt.s32.totalorder %s25, 1
      %s454 = scalar_select %p453, %s25, 1
      %s455 = smul.addr %s454, 8
      %s456 = smul.addr %s455, 8
      %s457 = scalar_lea.vmem %s14, %s456
      %p458 = scmp.lt.s32.totalorder %s25, 1
      %s459 = scalar_select %p458, %s25, 1
      %s460 = smul.addr %s459, 8
      %s461 = smul.addr %s460, 8
      %s462 = scalar_lea.vmem %s0, %s461
      %p463 = scmp.lt.s32.totalorder %s25, 1
      %s464 = scalar_select %p463, %s25, 1
      %s465 = smul.addr %s464, 8
      %s466 = smul.addr %s465, 8
      %s467 = scalar_lea.vmem %s14, %s466
      %v469 = vld [vmem:[%s462] sm:$0xff]
      %v470 = vld [vmem:[%s462 + $0x8] sm:$0xff]
      %v471 = vld [vmem:[%s462 + $0x10] sm:$0xff]
      %v472 = vld [vmem:[%s462 + $0x18] sm:$0xff]
      %v473 = vld [vmem:[%s462 + $0x20] sm:$0xff]
      %v474 = vld [vmem:[%s462 + $0x28] sm:$0xff]
      %v475 = vld [vmem:[%s462 + $0x30] sm:$0xff]
      %v476 = vld [vmem:[%s462 + $0x38] sm:$0xff]
      %vm477 = vcmask 64512
      %478 = vst.msk [vmem:[#allocation2] sm:$0xff] %vm477, 0.0
      %vm479 = vcmask 60416
      %480 = vst.msk [vmem:[#allocation2 + $0x8] sm:$0xf] %vm479, 0.0
      %481 = vst.msk [vmem:[#allocation2 + $0x10] sm:$0xff] %vm477, 0.0
      %482 = vst.msk [vmem:[#allocation2 + $0x18] sm:$0xf] %vm479, 0.0
      %483 = vst.msk [vmem:[#allocation2 + $0x20] sm:$0xff] %vm477, 0.0
      %484 = vst.msk [vmem:[#allocation2 + $0x28] sm:$0xf] %vm479, 0.0
      %485 = vst.msk [vmem:[#allocation2 + $0x30] sm:$0xff] %vm477, 0.0
      %486 = vst.msk [vmem:[#allocation2 + $0x38] sm:$0xf] %vm479, 0.0
      %487 = vst.msk [vmem:[#allocation2 + $0x40] sm:$0xff] %vm477, 0.0
      %488 = vst.msk [vmem:[#allocation2 + $0x48] sm:$0xf] %vm479, 0.0
      %489 = vst.msk [vmem:[#allocation2 + $0x50] sm:$0xff] %vm477, 0.0
      %490 = vst.msk [vmem:[#allocation2 + $0x58] sm:$0xf] %vm479, 0.0
      %491 = vst.msk [vmem:[#allocation2 + $0x60] sm:$0xff] %vm477, 0.0
      %492 = vst.msk [vmem:[#allocation2 + $0x68] sm:$0xf] %vm479, 0.0
      %493 = vst.msk [vmem:[#allocation2 + $0x70] sm:$0xff] %vm477, 0.0
      %494 = vst.msk [vmem:[#allocation2 + $0x78] sm:$0xf] %vm479, 0.0
      %495 = vst.msk [vmem:[#allocation2 + $0x80] sm:$0xff] %vm477, 0.0
      %496 = vst.msk [vmem:[#allocation2 + $0x88] sm:$0xf] %vm479, 0.0
      %497 = vst.msk [vmem:[#allocation2 + $0x90] sm:$0xff] %vm477, 0.0
      %498 = vst.msk [vmem:[#allocation2 + $0x98] sm:$0xf] %vm479, 0.0
      %499 = vst.msk [vmem:[#allocation2 + $0xa0] sm:$0xff] %vm477, 0.0
      %500 = vst.msk [vmem:[#allocation2 + $0xa8] sm:$0xf] %vm479, 0.0
      %501 = vst.msk [vmem:[#allocation2 + $0xb0] sm:$0xff] %vm477, 0.0
      %502 = vst.msk [vmem:[#allocation2 + $0xb8] sm:$0xf] %vm479, 0.0
      %s503 = scalar_lea.vmem [#allocation2], 32
      %504 = vst.msk [vmem:[%s503 + $0x2] sm:$0xff] %vm477, %v469
      %505 = vst.msk [vmem:[%s503 + $0x12] sm:$0xff] %vm477, %v470
      %506 = vst.msk [vmem:[%s503 + $0x22] sm:$0xff] %vm477, %v471
      %507 = vst.msk [vmem:[%s503 + $0x32] sm:$0xff] %vm477, %v472
      %508 = vst.msk [vmem:[%s503 + $0x42] sm:$0xff] %vm477, %v473
      %509 = vst.msk [vmem:[%s503 + $0x52] sm:$0xff] %vm477, %v474
      %510 = vst.msk [vmem:[%s503 + $0x62] sm:$0xff] %vm477, %v475
      %511 = vst.msk [vmem:[%s503 + $0x72] sm:$0xff] %vm477, %v476
      %v512 = vld [vmem:[#allocation2] sm:$0xff]
      %v513 = vld [vmem:[#allocation2 + $0x10] sm:$0xff]
      %v514 = vld [vmem:[#allocation2 + $0x20] sm:$0xff]
      %v515 = vld [vmem:[#allocation2 + $0x30] sm:$0xff]
      %v516 = vld [vmem:[#allocation2 + $0x40] sm:$0xff]
      %v517 = vld [vmem:[#allocation2 + $0x50] sm:$0xff]
      %v518 = vld [vmem:[#allocation2 + $0x60] sm:$0xff]
      %v519 = vld [vmem:[#allocation2 + $0x70] sm:$0xff]
      %v520 = vld [vmem:[#allocation2 + $0x2] sm:$0xff]
      %v521 = vld [vmem:[#allocation2 + $0x12] sm:$0xff]
      %v522 = vld [vmem:[#allocation2 + $0x22] sm:$0xff]
      %v523 = vld [vmem:[#allocation2 + $0x32] sm:$0xff]
      %v524 = vld [vmem:[#allocation2 + $0x42] sm:$0xff]
      %v525 = vld [vmem:[#allocation2 + $0x52] sm:$0xff]
      %v526 = vld [vmem:[#allocation2 + $0x62] sm:$0xff]
      %v527 = vld [vmem:[#allocation2 + $0x72] sm:$0xff]
      %v528 = vld [vmem:[#allocation2 + $0x4] sm:$0xff]
      %v529 = vld [vmem:[#allocation2 + $0x14] sm:$0xff]
      %v530 = vld [vmem:[#allocation2 + $0x24] sm:$0xff]
      %v531 = vld [vmem:[#allocation2 + $0x34] sm:$0xff]
      %v532 = vld [vmem:[#allocation2 + $0x44] sm:$0xff]
      %v533 = vld [vmem:[#allocation2 + $0x54] sm:$0xff]
      %v534 = vld [vmem:[#allocation2 + $0x64] sm:$0xff]
      %v535 = vld [vmem:[#allocation2 + $0x74] sm:$0xff]
      %v536 = vld [vmem:[%s503] sm:$0xff]
      %v537 = vld [vmem:[%s503 + $0x10] sm:$0xff]
      %v538 = vld [vmem:[%s503 + $0x20] sm:$0xff]
      %v539 = vld [vmem:[%s503 + $0x30] sm:$0xff]
      %v540 = vld [vmem:[%s503 + $0x40] sm:$0xff]
      %v541 = vld [vmem:[%s503 + $0x50] sm:$0xff]
      %v542 = vld [vmem:[%s503 + $0x60] sm:$0xff]
      %v543 = vld [vmem:[%s503 + $0x70] sm:$0xff]
      %v544 = vld [vmem:[%s503 + $0x2] sm:$0xff]
      %v545 = vld [vmem:[%s503 + $0x12] sm:$0xff]
      %v546 = vld [vmem:[%s503 + $0x22] sm:$0xff]
      %v547 = vld [vmem:[%s503 + $0x32] sm:$0xff]
      %v548 = vld [vmem:[%s503 + $0x42] sm:$0xff]
      %v549 = vld [vmem:[%s503 + $0x52] sm:$0xff]
      %v550 = vld [vmem:[%s503 + $0x62] sm:$0xff]
      %v551 = vld [vmem:[%s503 + $0x72] sm:$0xff]
      %v552 = vld [vmem:[%s503 + $0x4] sm:$0xff]
      %v553 = vld [vmem:[%s503 + $0x14] sm:$0xff]
      %v554 = vld [vmem:[%s503 + $0x24] sm:$0xff]
      %v555 = vld [vmem:[%s503 + $0x34] sm:$0xff]
      %v556 = vld [vmem:[%s503 + $0x44] sm:$0xff]
      %v557 = vld [vmem:[%s503 + $0x54] sm:$0xff]
      %v558 = vld [vmem:[%s503 + $0x64] sm:$0xff]
      %v559 = vld [vmem:[%s503 + $0x74] sm:$0xff]
      %s560 = scalar_lea.vmem [#allocation2], 64
      %v561 = vld [vmem:[%s560] sm:$0xff]
      %v562 = vld [vmem:[%s560 + $0x10] sm:$0xff]
      %v563 = vld [vmem:[%s560 + $0x20] sm:$0xff]
      %v564 = vld [vmem:[%s560 + $0x30] sm:$0xff]
      %v565 = vld [vmem:[%s560 + $0x40] sm:$0xff]
      %v566 = vld [vmem:[%s560 + $0x50] sm:$0xff]
      %v567 = vld [vmem:[%s560 + $0x60] sm:$0xff]
      %v568 = vld [vmem:[%s560 + $0x70] sm:$0xff]
      %v569 = vld [vmem:[%s560 + $0x2] sm:$0xff]
      %v570 = vld [vmem:[%s560 + $0x12] sm:$0xff]
      %v571 = vld [vmem:[%s560 + $0x22] sm:$0xff]
      %v572 = vld [vmem:[%s560 + $0x32] sm:$0xff]
      %v573 = vld [vmem:[%s560 + $0x42] sm:$0xff]
      %v574 = vld [vmem:[%s560 + $0x52] sm:$0xff]
      %v575 = vld [vmem:[%s560 + $0x62] sm:$0xff]
      %v576 = vld [vmem:[%s560 + $0x72] sm:$0xff]
      %v577 = vld [vmem:[%s560 + $0x4] sm:$0xff]
      %v578 = vld [vmem:[%s560 + $0x14] sm:$0xff]
      %v579 = vld [vmem:[%s560 + $0x24] sm:$0xff]
      %v580 = vld [vmem:[%s560 + $0x34] sm:$0xff]
      %v581 = vld [vmem:[%s560 + $0x44] sm:$0xff]
      %v582 = vld [vmem:[%s560 + $0x54] sm:$0xff]
      %v583 = vld [vmem:[%s560 + $0x64] sm:$0xff]
      %v584 = vld [vmem:[%s560 + $0x74] sm:$0xff]
      %593 = vrot.lane.b32.xlu0 %v520, 8
      %v594 = vpop.permute.xlu0 %593
      %595 = vrot.lane.b32.xlu0 %v521, 8
      %v596 = vpop.permute.xlu0 %595
      %597 = vrot.lane.b32.xlu0 %v522, 8
      %v598 = vpop.permute.xlu0 %597
      %599 = vrot.lane.b32.xlu0 %v523, 8
      %v600 = vpop.permute.xlu0 %599
      %601 = vrot.lane.b32.xlu0 %v524, 8
      %v602 = vpop.permute.xlu0 %601
      %603 = vrot.lane.b32.xlu0 %v525, 8
      %v604 = vpop.permute.xlu0 %603
      %605 = vrot.lane.b32.xlu0 %v526, 8
      %v606 = vpop.permute.xlu0 %605
      %607 = vrot.lane.b32.xlu0 %v527, 8
      %v608 = vpop.permute.xlu0 %607
      %625 = vrot.lane.b32.xlu0 %v528, 16
      %v626 = vpop.permute.xlu0 %625
      %627 = vrot.lane.b32.xlu0 %v529, 16
      %v628 = vpop.permute.xlu0 %627
      %629 = vrot.lane.b32.xlu0 %v530, 16
      %v630 = vpop.permute.xlu0 %629
      %631 = vrot.lane.b32.xlu0 %v531, 16
      %v632 = vpop.permute.xlu0 %631
      %633 = vrot.lane.b32.xlu0 %v532, 16
      %v634 = vpop.permute.xlu0 %633
      %635 = vrot.lane.b32.xlu0 %v533, 16
      %v636 = vpop.permute.xlu0 %635
      %637 = vrot.lane.b32.xlu0 %v534, 16
      %v638 = vpop.permute.xlu0 %637
      %639 = vrot.lane.b32.xlu0 %v535, 16
      %v640 = vpop.permute.xlu0 %639
      %657 = vrot.lane.b32.xlu0 %v536, 24
      %v658 = vpop.permute.xlu0 %657
      %659 = vrot.lane.b32.xlu0 %v537, 24
      %v660 = vpop.permute.xlu0 %659
      %661 = vrot.lane.b32.xlu0 %v538, 24
      %v662 = vpop.permute.xlu0 %661
      %663 = vrot.lane.b32.xlu0 %v539, 24
      %v664 = vpop.permute.xlu0 %663
      %665 = vrot.lane.b32.xlu0 %v540, 24
      %v666 = vpop.permute.xlu0 %665
      %667 = vrot.lane.b32.xlu0 %v541, 24
      %v668 = vpop.permute.xlu0 %667
      %669 = vrot.lane.b32.xlu0 %v542, 24
      %v670 = vpop.permute.xlu0 %669
      %671 = vrot.lane.b32.xlu0 %v543, 24
      %v672 = vpop.permute.xlu0 %671
      %689 = vrot.lane.b32.xlu0 %v544, 32
      %v690 = vpop.permute.xlu0 %689
      %691 = vrot.lane.b32.xlu0 %v545, 32
      %v692 = vpop.permute.xlu0 %691
      %693 = vrot.lane.b32.xlu0 %v546, 32
      %v694 = vpop.permute.xlu0 %693
      %695 = vrot.lane.b32.xlu0 %v547, 32
      %v696 = vpop.permute.xlu0 %695
      %697 = vrot.lane.b32.xlu0 %v548, 32
      %v698 = vpop.permute.xlu0 %697
      %699 = vrot.lane.b32.xlu0 %v549, 32
      %v700 = vpop.permute.xlu0 %699
      %701 = vrot.lane.b32.xlu0 %v550, 32
      %v702 = vpop.permute.xlu0 %701
      %703 = vrot.lane.b32.xlu0 %v551, 32
      %v704 = vpop.permute.xlu0 %703
      %721 = vrot.lane.b32.xlu0 %v552, 40
      %v722 = vpop.permute.xlu0 %721
      %723 = vrot.lane.b32.xlu0 %v553, 40
      %v724 = vpop.permute.xlu0 %723
      %725 = vrot.lane.b32.xlu0 %v554, 40
      %v726 = vpop.permute.xlu0 %725
      %727 = vrot.lane.b32.xlu0 %v555, 40
      %v728 = vpop.permute.xlu0 %727
      %729 = vrot.lane.b32.xlu0 %v556, 40
      %v730 = vpop.permute.xlu0 %729
      %731 = vrot.lane.b32.xlu0 %v557, 40
      %v732 = vpop.permute.xlu0 %731
      %733 = vrot.lane.b32.xlu0 %v558, 40
      %v734 = vpop.permute.xlu0 %733
      %735 = vrot.lane.b32.xlu0 %v559, 40
      %v736 = vpop.permute.xlu0 %735
      %753 = vrot.lane.b32.xlu0 %v561, 48
      %v754 = vpop.permute.xlu0 %753
      %755 = vrot.lane.b32.xlu0 %v562, 48
      %v756 = vpop.permute.xlu0 %755
      %757 = vrot.lane.b32.xlu0 %v563, 48
      %v758 = vpop.permute.xlu0 %757
      %759 = vrot.lane.b32.xlu0 %v564, 48
      %v760 = vpop.permute.xlu0 %759
      %761 = vrot.lane.b32.xlu0 %v565, 48
      %v762 = vpop.permute.xlu0 %761
      %763 = vrot.lane.b32.xlu0 %v566, 48
      %v764 = vpop.permute.xlu0 %763
      %765 = vrot.lane.b32.xlu0 %v567, 48
      %v766 = vpop.permute.xlu0 %765
      %767 = vrot.lane.b32.xlu0 %v568, 48
      %v768 = vpop.permute.xlu0 %767
      %785 = vrot.lane.b32.xlu0 %v569, 56
      %v786 = vpop.permute.xlu0 %785
      %787 = vrot.lane.b32.xlu0 %v570, 56
      %v788 = vpop.permute.xlu0 %787
      %789 = vrot.lane.b32.xlu0 %v571, 56
      %v790 = vpop.permute.xlu0 %789
      %791 = vrot.lane.b32.xlu0 %v572, 56
      %v792 = vpop.permute.xlu0 %791
      %793 = vrot.lane.b32.xlu0 %v573, 56
      %v794 = vpop.permute.xlu0 %793
      %795 = vrot.lane.b32.xlu0 %v574, 56
      %v796 = vpop.permute.xlu0 %795
      %797 = vrot.lane.b32.xlu0 %v575, 56
      %v798 = vpop.permute.xlu0 %797
      %799 = vrot.lane.b32.xlu0 %v576, 56
      %v800 = vpop.permute.xlu0 %799
      %817 = vrot.lane.b32.xlu0 %v577, 64
      %v818 = vpop.permute.xlu0 %817
      %819 = vrot.lane.b32.xlu0 %v578, 64
      %v820 = vpop.permute.xlu0 %819
      %821 = vrot.lane.b32.xlu0 %v579, 64
      %v822 = vpop.permute.xlu0 %821
      %823 = vrot.lane.b32.xlu0 %v580, 64
      %v824 = vpop.permute.xlu0 %823
      %825 = vrot.lane.b32.xlu0 %v581, 64
      %v826 = vpop.permute.xlu0 %825
      %827 = vrot.lane.b32.xlu0 %v582, 64
      %v828 = vpop.permute.xlu0 %827
      %829 = vrot.lane.b32.xlu0 %v583, 64
      %v830 = vpop.permute.xlu0 %829
      %831 = vrot.lane.b32.xlu0 %v584, 64
      %v832 = vpop.permute.xlu0 %831
      %v841 = vsel %vm477, %v512, %v594
      %v842 = vsel %vm477, %v513, %v596
      %v843 = vsel %vm477, %v514, %v598
      %v844 = vsel %vm477, %v515, %v600
      %v845 = vsel %vm477, %v516, %v602
      %v846 = vsel %vm477, %v517, %v604
      %v847 = vsel %vm477, %v518, %v606
      %v848 = vsel %vm477, %v519, %v608
      %vm849 = vcmask 130048
      %v850 = vsel %vm849, %v841, %v626
      %v851 = vsel %vm849, %v842, %v628
      %v852 = vsel %vm849, %v843, %v630
      %v853 = vsel %vm849, %v844, %v632
      %v854 = vsel %vm849, %v845, %v634
      %v855 = vsel %vm849, %v846, %v636
      %v856 = vsel %vm849, %v847, %v638
      %v857 = vsel %vm849, %v848, %v640
      %vm858 = vcmask 195584
      %v859 = vsel %vm858, %v850, %v658
      %v860 = vsel %vm858, %v851, %v660
      %v861 = vsel %vm858, %v852, %v662
      %v862 = vsel %vm858, %v853, %v664
      %v863 = vsel %vm858, %v854, %v666
      %v864 = vsel %vm858, %v855, %v668
      %v865 = vsel %vm858, %v856, %v670
      %v866 = vsel %vm858, %v857, %v672
      %vm867 = vcmask 261120
      %v868 = vsel %vm867, %v859, %v690
      %v869 = vsel %vm867, %v860, %v692
      %v870 = vsel %vm867, %v861, %v694
      %v871 = vsel %vm867, %v862, %v696
      %v872 = vsel %vm867, %v863, %v698
      %v873 = vsel %vm867, %v864, %v700
      %v874 = vsel %vm867, %v865, %v702
      %v875 = vsel %vm867, %v866, %v704
      %vm876 = vcmask 326656
      %v877 = vsel %vm876, %v868, %v722
      %v878 = vsel %vm876, %v869, %v724
      %v879 = vsel %vm876, %v870, %v726
      %v880 = vsel %vm876, %v871, %v728
      %v881 = vsel %vm876, %v872, %v730
      %v882 = vsel %vm876, %v873, %v732
      %v883 = vsel %vm876, %v874, %v734
      %v884 = vsel %vm876, %v875, %v736
      %vm885 = vcmask 392192
      %v886 = vsel %vm885, %v877, %v754
      %v887 = vsel %vm885, %v878, %v756
      %v888 = vsel %vm885, %v879, %v758
      %v889 = vsel %vm885, %v880, %v760
      %v890 = vsel %vm885, %v881, %v762
      %v891 = vsel %vm885, %v882, %v764
      %v892 = vsel %vm885, %v883, %v766
      %v893 = vsel %vm885, %v884, %v768
      %vm894 = vcmask 457728
      %v895 = vsel %vm894, %v886, %v786
      %v896 = vsel %vm894, %v887, %v788
      %v897 = vsel %vm894, %v888, %v790
      %v898 = vsel %vm894, %v889, %v792
      %v899 = vsel %vm894, %v890, %v794
      %v900 = vsel %vm894, %v891, %v796
      %v901 = vsel %vm894, %v892, %v798
      %v902 = vsel %vm894, %v893, %v800
      %vm903 = vcmask 523264
      %v904 = vsel %vm903, %v895, %v818
      %v905 = vsel %vm903, %v896, %v820
      %v906 = vsel %vm903, %v897, %v822
      %v907 = vsel %vm903, %v898, %v824
      %v908 = vsel %vm903, %v899, %v826
      %v909 = vsel %vm903, %v900, %v828
      %v910 = vsel %vm903, %v901, %v830
      %v911 = vsel %vm903, %v902, %v832
      %v912 = vpack.c.bf16 %v905, %v904
      %v913 = vpack.c.bf16 %v907, %v906
      %v914 = vpack.c.bf16 %v909, %v908
      %v915 = vpack.c.bf16 %v911, %v910
      %v916 = vld [vmem:[%s1] sm:$0xf]
      %v917 = vld [vmem:[%s1 + $0x4] sm:$0xf]
      %v918 = vld [vmem:[%s1 + $0x8] sm:$0xf]
      %v919 = vld [vmem:[%s1 + $0xc] sm:$0xf]
      %v920 = vld [vmem:[%s1 + $0x10] sm:$0xf]
      %v921 = vld [vmem:[%s1 + $0x14] sm:$0xf]
      %v922 = vld [vmem:[%s1 + $0x18] sm:$0xf]
      %v923 = vld [vmem:[%s1 + $0x1c] sm:$0xf]
      %v924 = vld [vmem:[%s1 + $0x20] sm:$0xf]
      %v934 = vunpack.c.l.b16 %v916
      %v935 = vunpack.c.l.b16 %v917
      %v936 = vunpack.c.l.b16 %v918
      %v937 = vunpack.c.l.b16 %v919
      %v938 = vunpack.c.l.b16 %v920
      %v939 = vunpack.c.l.b16 %v921
      %v940 = vunpack.c.l.b16 %v922
      %v941 = vunpack.c.l.b16 %v923
      %v942 = vunpack.c.l.b16 %v924
      %v943 = vpack.c.b16 %v935, %v934
      %v944 = vpack.c.b16 %v937, %v936
      %v945 = vpack.c.b16 %v939, %v938
      %v946 = vpack.c.b16 %v941, %v940
      %v947 = vpack.c.b16 %v942, %v942
      %vm952 = vcmask 588800
      %v954 = vsel %vm952, %v912, 0
      %v957 = vsel %vm952, %v913, 0
      %v960 = vsel %vm952, %v914, 0
      %v963 = vsel %vm952, %v915, 0
      %vm965 = vcmask 1043456
      %v967 = vsel %vm965, %v947, 0
      %969 = vmatprep.subr.bf16.mxu0 0
      %970 = vmatpush1.bf16.msra.mxu0 0
      %971 = vmatprep.subr.bf16.mxu0 0
      %972 = vmatpush1.bf16.msra.mxu0 0
      %973 = vmatprep.subr.bf16.mxu0 0
      %974 = vmatpush1.bf16.msra.mxu0 0
      %975 = vmatprep.subr.bf16.mxu0 0
      %976 = vmatpush1.bf16.msra.mxu0 %v967
      %977 = vmatprep.subr.bf16.mxu0 0
      %978 = vmatpush1.bf16.msra.mxu0 %v946
      %979 = vmatprep.subr.bf16.mxu0 0
      %980 = vmatpush1.bf16.msra.mxu0 %v945
      %981 = vmatprep.subr.bf16.mxu0 0
      %982 = vmatpush1.bf16.msra.mxu0 %v944
      %983 = vmatprep.subr.bf16.mxu0 0
      %984 = vmatpush1.bf16.msra.mxu0 %v943
      %985 = vmatprep.subr.bf16.mxu0 0
      %986 = vmatpush2.bf16.msra.mxu0 0
      %987 = vmatprep.subr.bf16.mxu0 0
      %988 = vmatpush2.bf16.msra.mxu0 0
      %989 = vmatprep.subr.bf16.mxu0 0
      %990 = vmatpush2.bf16.msra.mxu0 0
      %991 = vmatprep.subr.bf16.mxu0 0
      %992 = vmatpush2.bf16.msra.mxu0 0
      %993 = vmatprep.subr.bf16.mxu0 0
      %994 = vmatpush2.bf16.msra.mxu0 0
      %995 = vmatprep.subr.bf16.mxu0 0
      %996 = vmatpush2.bf16.msra.mxu0 0
      %997 = vmatprep.subr.bf16.mxu0 0
      %998 = vmatpush2.bf16.msra.mxu0 0
      %999 = vmatprep.subr.bf16.mxu0 0
      %1000 = vmatpush2.bf16.msra.mxu0 0
      %1001 = vmatprep.mubr.bf16.mxu0 0
      %1002 = vmatmul.mubr.bf16.gmra.mxu0 %v954
      %v1003 = vpop.f32.mrf.mxu0
      %v1004 = vadd.f32 0.0, %v1003
      %v1005 = vpop.f32.mrf.mxu0
      %v1006 = vpop.f32.mrf.mxu0
      %v1007 = vadd.f32 0.0, %v1006
      %v1008 = vpop.f32.mrf.mxu0
      %1009 = vmatprep.mubr.bf16.mxu0 0
      %1010 = vmatmul.mubr.bf16.gmra.mxu0 %v957
      %v1011 = vpop.f32.mrf.mxu0
      %v1012 = vadd.f32 0.0, %v1011
      %v1013 = vpop.f32.mrf.mxu0
      %v1014 = vpop.f32.mrf.mxu0
      %v1015 = vadd.f32 0.0, %v1014
      %v1016 = vpop.f32.mrf.mxu0
      %1017 = vmatprep.mubr.bf16.mxu0 0
      %1018 = vmatmul.mubr.bf16.gmra.mxu0 %v960
      %v1019 = vpop.f32.mrf.mxu0
      %v1020 = vadd.f32 0.0, %v1019
      %v1021 = vpop.f32.mrf.mxu0
      %v1022 = vpop.f32.mrf.mxu0
      %v1023 = vadd.f32 0.0, %v1022
      %v1024 = vpop.f32.mrf.mxu0
      %1025 = vmatprep.mubr.bf16.mxu0 0
      %1026 = vmatmul.mubr.bf16.gmra.mxu0 %v963
      %v1027 = vpop.f32.mrf.mxu0
      %v1028 = vadd.f32 0.0, %v1027
      %v1029 = vpop.f32.mrf.mxu0
      %v1030 = vpop.f32.mrf.mxu0
      %v1031 = vadd.f32 0.0, %v1030
      %v1032 = vpop.f32.mrf.mxu0
      %1033 = vdwg.mxu0
      %v1034 = vld [vmem:[%s2] sm:$0x1]
      %v1035 = vlaneseq
      %v1036 = vshrl.u32 %v1035, 7
      %v1037 = vsub.s32 0, %v1036
      %v1038 = vrot.slane %v1034, %v1037
      %v1039 = vmul.f32 %v1004, %v1038
      %v1040 = vmul.f32 %v1007, %v1038
      %v1041 = vmul.f32 %v1012, %v1038
      %v1042 = vmul.f32 %v1015, %v1038
      %v1043 = vmul.f32 %v1020, %v1038
      %v1044 = vmul.f32 %v1023, %v1038
      %v1045 = vmul.f32 %v1028, %v1038
      %v1046 = vmul.f32 %v1031, %v1038
      %v1047 = vld [vmem:[%s2 + $0x1] sm:$0x1]
      %v1048 = vlaneseq
      %v1049 = vshrl.u32 %v1048, 7
      %v1050 = vsub.s32 0, %v1049
      %v1051 = vrot.slane %v1047, %v1050
      %v1052 = vadd.f32 %v1039, %v1051
      %v1053 = vadd.f32 %v1040, %v1051
      %v1054 = vadd.f32 %v1041, %v1051
      %v1055 = vadd.f32 %v1042, %v1051
      %v1056 = vadd.f32 %v1043, %v1051
      %v1057 = vadd.f32 %v1044, %v1051
      %v1058 = vadd.f32 %v1045, %v1051
      %v1059 = vadd.f32 %v1046, %v1051
      %v1060 = vtanh.pop %v1052
      %v1061 = vtanh.pop %v1053
      %v1062 = vtanh.pop %v1054
      %v1063 = vtanh.pop %v1055
      %v1064 = vtanh.pop %v1056
      %v1065 = vtanh.pop %v1057
      %v1066 = vtanh.pop %v1058
      %v1067 = vtanh.pop %v1059
      %v1068 = vmax.f32 %v1052, 0.0
      %v1069 = vmax.f32 %v1053, 0.0
      %v1070 = vmax.f32 %v1054, 0.0
      %v1071 = vmax.f32 %v1055, 0.0
      %v1072 = vmax.f32 %v1056, 0.0
      %v1073 = vmax.f32 %v1057, 0.0
      %v1074 = vmax.f32 %v1058, 0.0
      %v1075 = vmax.f32 %v1059, 0.0
      %s1076 = scalar_lea.vmem [#allocation2], 16
      %v1077 = vld [vmem:[%s1076 + $0x1] sm:$0xff]
      %v1078 = vld [vmem:[%s1076 + $0x11] sm:$0xff]
      %v1079 = vld [vmem:[%s1076 + $0x21] sm:$0xff]
      %v1080 = vld [vmem:[%s1076 + $0x31] sm:$0xff]
      %v1081 = vld [vmem:[%s1076 + $0x41] sm:$0xff]
      %v1082 = vld [vmem:[%s1076 + $0x51] sm:$0xff]
      %v1083 = vld [vmem:[%s1076 + $0x61] sm:$0xff]
      %v1084 = vld [vmem:[%s1076 + $0x71] sm:$0xff]
      %v1085 = vld [vmem:[%s1076 + $0x2] sm:$0xff]
      %v1086 = vld [vmem:[%s1076 + $0x12] sm:$0xff]
      %v1087 = vld [vmem:[%s1076 + $0x22] sm:$0xff]
      %v1088 = vld [vmem:[%s1076 + $0x32] sm:$0xff]
      %v1089 = vld [vmem:[%s1076 + $0x42] sm:$0xff]
      %v1090 = vld [vmem:[%s1076 + $0x52] sm:$0xff]
      %v1091 = vld [vmem:[%s1076 + $0x62] sm:$0xff]
      %v1092 = vld [vmem:[%s1076 + $0x72] sm:$0xff]
      %v1093 = vld [vmem:[%s1076 + $0x3] sm:$0xff]
      %v1094 = vld [vmem:[%s1076 + $0x13] sm:$0xff]
      %v1095 = vld [vmem:[%s1076 + $0x23] sm:$0xff]
      %v1096 = vld [vmem:[%s1076 + $0x33] sm:$0xff]
      %v1097 = vld [vmem:[%s1076 + $0x43] sm:$0xff]
      %v1098 = vld [vmem:[%s1076 + $0x53] sm:$0xff]
      %v1099 = vld [vmem:[%s1076 + $0x63] sm:$0xff]
      %v1100 = vld [vmem:[%s1076 + $0x73] sm:$0xff]
      %v1101 = vld [vmem:[%s503 + $0x1] sm:$0xff]
      %v1102 = vld [vmem:[%s503 + $0x11] sm:$0xff]
      %v1103 = vld [vmem:[%s503 + $0x21] sm:$0xff]
      %v1104 = vld [vmem:[%s503 + $0x31] sm:$0xff]
      %v1105 = vld [vmem:[%s503 + $0x41] sm:$0xff]
      %v1106 = vld [vmem:[%s503 + $0x51] sm:$0xff]
      %v1107 = vld [vmem:[%s503 + $0x61] sm:$0xff]
      %v1108 = vld [vmem:[%s503 + $0x71] sm:$0xff]
      %v1109 = vld [vmem:[%s503 + $0x3] sm:$0xff]
      %v1110 = vld [vmem:[%s503 + $0x13] sm:$0xff]
      %v1111 = vld [vmem:[%s503 + $0x23] sm:$0xff]
      %v1112 = vld [vmem:[%s503 + $0x33] sm:$0xff]
      %v1113 = vld [vmem:[%s503 + $0x43] sm:$0xff]
      %v1114 = vld [vmem:[%s503 + $0x53] sm:$0xff]
      %v1115 = vld [vmem:[%s503 + $0x63] sm:$0xff]
      %v1116 = vld [vmem:[%s503 + $0x73] sm:$0xff]
      %s1117 = scalar_lea.vmem [#allocation2], 48
      %v1118 = vld [vmem:[%s1117 + $0x1] sm:$0xff]
      %v1119 = vld [vmem:[%s1117 + $0x11] sm:$0xff]
      %v1120 = vld [vmem:[%s1117 + $0x21] sm:$0xff]
      %v1121 = vld [vmem:[%s1117 + $0x31] sm:$0xff]
      %v1122 = vld [vmem:[%s1117 + $0x41] sm:$0xff]
      %v1123 = vld [vmem:[%s1117 + $0x51] sm:$0xff]
      %v1124 = vld [vmem:[%s1117 + $0x61] sm:$0xff]
      %v1125 = vld [vmem:[%s1117 + $0x71] sm:$0xff]
      %v1126 = vld [vmem:[%s1117 + $0x2] sm:$0xff]
      %v1127 = vld [vmem:[%s1117 + $0x12] sm:$0xff]
      %v1128 = vld [vmem:[%s1117 + $0x22] sm:$0xff]
      %v1129 = vld [vmem:[%s1117 + $0x32] sm:$0xff]
      %v1130 = vld [vmem:[%s1117 + $0x42] sm:$0xff]
      %v1131 = vld [vmem:[%s1117 + $0x52] sm:$0xff]
      %v1132 = vld [vmem:[%s1117 + $0x62] sm:$0xff]
      %v1133 = vld [vmem:[%s1117 + $0x72] sm:$0xff]
      %v1134 = vld [vmem:[%s1117 + $0x3] sm:$0xff]
      %v1135 = vld [vmem:[%s1117 + $0x13] sm:$0xff]
      %v1136 = vld [vmem:[%s1117 + $0x23] sm:$0xff]
      %v1137 = vld [vmem:[%s1117 + $0x33] sm:$0xff]
      %v1138 = vld [vmem:[%s1117 + $0x43] sm:$0xff]
      %v1139 = vld [vmem:[%s1117 + $0x53] sm:$0xff]
      %v1140 = vld [vmem:[%s1117 + $0x63] sm:$0xff]
      %v1141 = vld [vmem:[%s1117 + $0x73] sm:$0xff]
      %1150 = vrot.lane.b32.xlu0 %v1085, 8
      %v1151 = vpop.permute.xlu0 %1150
      %1152 = vrot.lane.b32.xlu0 %v1086, 8
      %v1153 = vpop.permute.xlu0 %1152
      %1154 = vrot.lane.b32.xlu0 %v1087, 8
      %v1155 = vpop.permute.xlu0 %1154
      %1156 = vrot.lane.b32.xlu0 %v1088, 8
      %v1157 = vpop.permute.xlu0 %1156
      %1158 = vrot.lane.b32.xlu0 %v1089, 8
      %v1159 = vpop.permute.xlu0 %1158
      %1160 = vrot.lane.b32.xlu0 %v1090, 8
      %v1161 = vpop.permute.xlu0 %1160
      %1162 = vrot.lane.b32.xlu0 %v1091, 8
      %v1163 = vpop.permute.xlu0 %1162
      %1164 = vrot.lane.b32.xlu0 %v1092, 8
      %v1165 = vpop.permute.xlu0 %1164
      %1182 = vrot.lane.b32.xlu0 %v1093, 16
      %v1183 = vpop.permute.xlu0 %1182
      %1184 = vrot.lane.b32.xlu0 %v1094, 16
      %v1185 = vpop.permute.xlu0 %1184
      %1186 = vrot.lane.b32.xlu0 %v1095, 16
      %v1187 = vpop.permute.xlu0 %1186
      %1188 = vrot.lane.b32.xlu0 %v1096, 16
      %v1189 = vpop.permute.xlu0 %1188
      %1190 = vrot.lane.b32.xlu0 %v1097, 16
      %v1191 = vpop.permute.xlu0 %1190
      %1192 = vrot.lane.b32.xlu0 %v1098, 16
      %v1193 = vpop.permute.xlu0 %1192
      %1194 = vrot.lane.b32.xlu0 %v1099, 16
      %v1195 = vpop.permute.xlu0 %1194
      %1196 = vrot.lane.b32.xlu0 %v1100, 16
      %v1197 = vpop.permute.xlu0 %1196
      %1214 = vrot.lane.b32.xlu0 %v1101, 24
      %v1215 = vpop.permute.xlu0 %1214
      %1216 = vrot.lane.b32.xlu0 %v1102, 24
      %v1217 = vpop.permute.xlu0 %1216
      %1218 = vrot.lane.b32.xlu0 %v1103, 24
      %v1219 = vpop.permute.xlu0 %1218
      %1220 = vrot.lane.b32.xlu0 %v1104, 24
      %v1221 = vpop.permute.xlu0 %1220
      %1222 = vrot.lane.b32.xlu0 %v1105, 24
      %v1223 = vpop.permute.xlu0 %1222
      %1224 = vrot.lane.b32.xlu0 %v1106, 24
      %v1225 = vpop.permute.xlu0 %1224
      %1226 = vrot.lane.b32.xlu0 %v1107, 24
      %v1227 = vpop.permute.xlu0 %1226
      %1228 = vrot.lane.b32.xlu0 %v1108, 24
      %v1229 = vpop.permute.xlu0 %1228
      %1246 = vrot.lane.b32.xlu0 %v1109, 40
      %v1247 = vpop.permute.xlu0 %1246
      %1248 = vrot.lane.b32.xlu0 %v1110, 40
      %v1249 = vpop.permute.xlu0 %1248
      %1250 = vrot.lane.b32.xlu0 %v1111, 40
      %v1251 = vpop.permute.xlu0 %1250
      %1252 = vrot.lane.b32.xlu0 %v1112, 40
      %v1253 = vpop.permute.xlu0 %1252
      %1254 = vrot.lane.b32.xlu0 %v1113, 40
      %v1255 = vpop.permute.xlu0 %1254
      %1256 = vrot.lane.b32.xlu0 %v1114, 40
      %v1257 = vpop.permute.xlu0 %1256
      %1258 = vrot.lane.b32.xlu0 %v1115, 40
      %v1259 = vpop.permute.xlu0 %1258
      %1260 = vrot.lane.b32.xlu0 %v1116, 40
      %v1261 = vpop.permute.xlu0 %1260
      %1278 = vrot.lane.b32.xlu0 %v1118, 48
      %v1279 = vpop.permute.xlu0 %1278
      %1280 = vrot.lane.b32.xlu0 %v1119, 48
      %v1281 = vpop.permute.xlu0 %1280
      %1282 = vrot.lane.b32.xlu0 %v1120, 48
      %v1283 = vpop.permute.xlu0 %1282
      %1284 = vrot.lane.b32.xlu0 %v1121, 48
      %v1285 = vpop.permute.xlu0 %1284
      %1286 = vrot.lane.b32.xlu0 %v1122, 48
      %v1287 = vpop.permute.xlu0 %1286
      %1288 = vrot.lane.b32.xlu0 %v1123, 48
      %v1289 = vpop.permute.xlu0 %1288
      %1290 = vrot.lane.b32.xlu0 %v1124, 48
      %v1291 = vpop.permute.xlu0 %1290
      %1292 = vrot.lane.b32.xlu0 %v1125, 48
      %v1293 = vpop.permute.xlu0 %1292
      %1310 = vrot.lane.b32.xlu0 %v1126, 56
      %v1311 = vpop.permute.xlu0 %1310
      %1312 = vrot.lane.b32.xlu0 %v1127, 56
      %v1313 = vpop.permute.xlu0 %1312
      %1314 = vrot.lane.b32.xlu0 %v1128, 56
      %v1315 = vpop.permute.xlu0 %1314
      %1316 = vrot.lane.b32.xlu0 %v1129, 56
      %v1317 = vpop.permute.xlu0 %1316
      %1318 = vrot.lane.b32.xlu0 %v1130, 56
      %v1319 = vpop.permute.xlu0 %1318
      %1320 = vrot.lane.b32.xlu0 %v1131, 56
      %v1321 = vpop.permute.xlu0 %1320
      %1322 = vrot.lane.b32.xlu0 %v1132, 56
      %v1323 = vpop.permute.xlu0 %1322
      %1324 = vrot.lane.b32.xlu0 %v1133, 56
      %v1325 = vpop.permute.xlu0 %1324
      %1342 = vrot.lane.b32.xlu0 %v1134, 64
      %v1343 = vpop.permute.xlu0 %1342
      %1344 = vrot.lane.b32.xlu0 %v1135, 64
      %v1345 = vpop.permute.xlu0 %1344
      %1346 = vrot.lane.b32.xlu0 %v1136, 64
      %v1347 = vpop.permute.xlu0 %1346
      %1348 = vrot.lane.b32.xlu0 %v1137, 64
      %v1349 = vpop.permute.xlu0 %1348
      %1350 = vrot.lane.b32.xlu0 %v1138, 64
      %v1351 = vpop.permute.xlu0 %1350
      %1352 = vrot.lane.b32.xlu0 %v1139, 64
      %v1353 = vpop.permute.xlu0 %1352
      %1354 = vrot.lane.b32.xlu0 %v1140, 64
      %v1355 = vpop.permute.xlu0 %1354
      %1356 = vrot.lane.b32.xlu0 %v1141, 64
      %v1357 = vpop.permute.xlu0 %1356
      %v1366 = vsel %vm477, %v1077, %v1151
      %v1367 = vsel %vm477, %v1078, %v1153
      %v1368 = vsel %vm477, %v1079, %v1155
      %v1369 = vsel %vm477, %v1080, %v1157
      %v1370 = vsel %vm477, %v1081, %v1159
      %v1371 = vsel %vm477, %v1082, %v1161
      %v1372 = vsel %vm477, %v1083, %v1163
      %v1373 = vsel %vm477, %v1084, %v1165
      %v1374 = vsel %vm849, %v1366, %v1183
      %v1375 = vsel %vm849, %v1367, %v1185
      %v1376 = vsel %vm849, %v1368, %v1187
      %v1377 = vsel %vm849, %v1369, %v1189
      %v1378 = vsel %vm849, %v1370, %v1191
      %v1379 = vsel %vm849, %v1371, %v1193
      %v1380 = vsel %vm849, %v1372, %v1195
      %v1381 = vsel %vm849, %v1373, %v1197
      %v1382 = vsel %vm858, %v1374, %v1215
      %v1383 = vsel %vm858, %v1375, %v1217
      %v1384 = vsel %vm858, %v1376, %v1219
      %v1385 = vsel %vm858, %v1377, %v1221
      %v1386 = vsel %vm858, %v1378, %v1223
      %v1387 = vsel %vm858, %v1379, %v1225
      %v1388 = vsel %vm858, %v1380, %v1227
      %v1389 = vsel %vm858, %v1381, %v1229
      %v1390 = vsel %vm867, %v1382, %v690
      %v1391 = vsel %vm867, %v1383, %v692
      %v1392 = vsel %vm867, %v1384, %v694
      %v1393 = vsel %vm867, %v1385, %v696
      %v1394 = vsel %vm867, %v1386, %v698
      %v1395 = vsel %vm867, %v1387, %v700
      %v1396 = vsel %vm867, %v1388, %v702
      %v1397 = vsel %vm867, %v1389, %v704
      %v1398 = vsel %vm876, %v1390, %v1247
      %v1399 = vsel %vm876, %v1391, %v1249
      %v1400 = vsel %vm876, %v1392, %v1251
      %v1401 = vsel %vm876, %v1393, %v1253
      %v1402 = vsel %vm876, %v1394, %v1255
      %v1403 = vsel %vm876, %v1395, %v1257
      %v1404 = vsel %vm876, %v1396, %v1259
      %v1405 = vsel %vm876, %v1397, %v1261
      %v1406 = vsel %vm885, %v1398, %v1279
      %v1407 = vsel %vm885, %v1399, %v1281
      %v1408 = vsel %vm885, %v1400, %v1283
      %v1409 = vsel %vm885, %v1401, %v1285
      %v1410 = vsel %vm885, %v1402, %v1287
      %v1411 = vsel %vm885, %v1403, %v1289
      %v1412 = vsel %vm885, %v1404, %v1291
      %v1413 = vsel %vm885, %v1405, %v1293
      %v1414 = vsel %vm894, %v1406, %v1311
      %v1415 = vsel %vm894, %v1407, %v1313
      %v1416 = vsel %vm894, %v1408, %v1315
      %v1417 = vsel %vm894, %v1409, %v1317
      %v1418 = vsel %vm894, %v1410, %v1319
      %v1419 = vsel %vm894, %v1411, %v1321
      %v1420 = vsel %vm894, %v1412, %v1323
      %v1421 = vsel %vm894, %v1413, %v1325
      %v1422 = vsel %vm903, %v1414, %v1343
      %v1423 = vsel %vm903, %v1415, %v1345
      %v1424 = vsel %vm903, %v1416, %v1347
      %v1425 = vsel %vm903, %v1417, %v1349
      %v1426 = vsel %vm903, %v1418, %v1351
      %v1427 = vsel %vm903, %v1419, %v1353
      %v1428 = vsel %vm903, %v1420, %v1355
      %v1429 = vsel %vm903, %v1421, %v1357
      %v1430 = vpack.c.bf16 %v1423, %v1422
      %v1431 = vpack.c.bf16 %v1425, %v1424
      %v1432 = vpack.c.bf16 %v1427, %v1426
      %v1433 = vpack.c.bf16 %v1429, %v1428
      %v1434 = vld [vmem:[%s3] sm:$0xf]
      %v1435 = vld [vmem:[%s3 + $0x4] sm:$0xf]
      %v1436 = vld [vmem:[%s3 + $0x8] sm:$0xf]
      %v1437 = vld [vmem:[%s3 + $0xc] sm:$0xf]
      %v1438 = vld [vmem:[%s3 + $0x10] sm:$0xf]
      %v1439 = vld [vmem:[%s3 + $0x14] sm:$0xf]
      %v1440 = vld [vmem:[%s3 + $0x18] sm:$0xf]
      %v1441 = vld [vmem:[%s3 + $0x1c] sm:$0xf]
      %v1442 = vld [vmem:[%s3 + $0x20] sm:$0xf]
      %v1452 = vunpack.c.l.b16 %v1434
      %v1453 = vunpack.c.l.b16 %v1435
      %v1454 = vunpack.c.l.b16 %v1436
      %v1455 = vunpack.c.l.b16 %v1437
      %v1456 = vunpack.c.l.b16 %v1438
      %v1457 = vunpack.c.l.b16 %v1439
      %v1458 = vunpack.c.l.b16 %v1440
      %v1459 = vunpack.c.l.b16 %v1441
      %v1460 = vunpack.c.l.b16 %v1442
      %v1461 = vpack.c.b16 %v1453, %v1452
      %v1462 = vpack.c.b16 %v1455, %v1454
      %v1463 = vpack.c.b16 %v1457, %v1456
      %v1464 = vpack.c.b16 %v1459, %v1458
      %v1465 = vpack.c.b16 %v1460, %v1460
      %v1471 = vsel %vm952, %v1430, 0
      %v1474 = vsel %vm952, %v1431, 0
      %v1477 = vsel %vm952, %v1432, 0
      %v1480 = vsel %vm952, %v1433, 0
      %v1483 = vsel %vm965, %v1465, 0
      %1485 = vmatprep.subr.bf16.mxu0 0
      %1486 = vmatpush1.bf16.msra.mxu0 0
      %1487 = vmatprep.subr.bf16.mxu0 0
      %1488 = vmatpush1.bf16.msra.mxu0 0
      %1489 = vmatprep.subr.bf16.mxu0 0
      %1490 = vmatpush1.bf16.msra.mxu0 0
      %1491 = vmatprep.subr.bf16.mxu0 0
      %1492 = vmatpush1.bf16.msra.mxu0 %v1483
      %1493 = vmatprep.subr.bf16.mxu0 0
      %1494 = vmatpush1.bf16.msra.mxu0 %v1464
      %1495 = vmatprep.subr.bf16.mxu0 0
      %1496 = vmatpush1.bf16.msra.mxu0 %v1463
      %1497 = vmatprep.subr.bf16.mxu0 0
      %1498 = vmatpush1.bf16.msra.mxu0 %v1462
      %1499 = vmatprep.subr.bf16.mxu0 0
      %1500 = vmatpush1.bf16.msra.mxu0 %v1461
      %1501 = vmatprep.subr.bf16.mxu0 0
      %1502 = vmatpush2.bf16.msra.mxu0 0
      %1503 = vmatprep.subr.bf16.mxu0 0
      %1504 = vmatpush2.bf16.msra.mxu0 0
      %1505 = vmatprep.subr.bf16.mxu0 0
      %1506 = vmatpush2.bf16.msra.mxu0 0
      %1507 = vmatprep.subr.bf16.mxu0 0
      %1508 = vmatpush2.bf16.msra.mxu0 0
      %1509 = vmatprep.subr.bf16.mxu0 0
      %1510 = vmatpush2.bf16.msra.mxu0 0
      %1511 = vmatprep.subr.bf16.mxu0 0
      %1512 = vmatpush2.bf16.msra.mxu0 0
      %1513 = vmatprep.subr.bf16.mxu0 0
      %1514 = vmatpush2.bf16.msra.mxu0 0
      %1515 = vmatprep.subr.bf16.mxu0 0
      %1516 = vmatpush2.bf16.msra.mxu0 0
      %1517 = vmatprep.mubr.bf16.mxu0 0
      %1518 = vmatmul.mubr.bf16.gmra.mxu0 %v1471
      %v1519 = vpop.f32.mrf.mxu0
      %v1520 = vadd.f32 0.0, %v1519
      %v1521 = vpop.f32.mrf.mxu0
      %v1522 = vpop.f32.mrf.mxu0
      %v1523 = vadd.f32 0.0, %v1522
      %v1524 = vpop.f32.mrf.mxu0
      %1525 = vmatprep.mubr.bf16.mxu0 0
      %1526 = vmatmul.mubr.bf16.gmra.mxu0 %v1474
      %v1527 = vpop.f32.mrf.mxu0
      %v1528 = vadd.f32 0.0, %v1527
      %v1529 = vpop.f32.mrf.mxu0
      %v1530 = vpop.f32.mrf.mxu0
      %v1531 = vadd.f32 0.0, %v1530
      %v1532 = vpop.f32.mrf.mxu0
      %1533 = vmatprep.mubr.bf16.mxu0 0
      %1534 = vmatmul.mubr.bf16.gmra.mxu0 %v1477
      %v1535 = vpop.f32.mrf.mxu0
      %v1536 = vadd.f32 0.0, %v1535
      %v1537 = vpop.f32.mrf.mxu0
      %v1538 = vpop.f32.mrf.mxu0
      %v1539 = vadd.f32 0.0, %v1538
      %v1540 = vpop.f32.mrf.mxu0
      %1541 = vmatprep.mubr.bf16.mxu0 0
      %1542 = vmatmul.mubr.bf16.gmra.mxu0 %v1480
      %v1543 = vpop.f32.mrf.mxu0
      %v1544 = vadd.f32 0.0, %v1543
      %v1545 = vpop.f32.mrf.mxu0
      %v1546 = vpop.f32.mrf.mxu0
      %v1547 = vadd.f32 0.0, %v1546
      %v1548 = vpop.f32.mrf.mxu0
      %1549 = vdwg.mxu0
      %v1550 = vld [vmem:[%s4] sm:$0x1]
      %v1551 = vlaneseq
      %v1552 = vshrl.u32 %v1551, 7
      %v1553 = vsub.s32 0, %v1552
      %v1554 = vrot.slane %v1550, %v1553
      %v1555 = vmul.f32 %v1520, %v1554
      %v1556 = vmul.f32 %v1523, %v1554
      %v1557 = vmul.f32 %v1528, %v1554
      %v1558 = vmul.f32 %v1531, %v1554
      %v1559 = vmul.f32 %v1536, %v1554
      %v1560 = vmul.f32 %v1539, %v1554
      %v1561 = vmul.f32 %v1544, %v1554
      %v1562 = vmul.f32 %v1547, %v1554
      %v1563 = vld [vmem:[%s4 + $0x1] sm:$0x1]
      %v1564 = vlaneseq
      %v1565 = vshrl.u32 %v1564, 7
      %v1566 = vsub.s32 0, %v1565
      %v1567 = vrot.slane %v1563, %v1566
      %v1568 = vadd.f32 %v1555, %v1567
      %v1569 = vadd.f32 %v1556, %v1567
      %v1570 = vadd.f32 %v1557, %v1567
      %v1571 = vadd.f32 %v1558, %v1567
      %v1572 = vadd.f32 %v1559, %v1567
      %v1573 = vadd.f32 %v1560, %v1567
      %v1574 = vadd.f32 %v1561, %v1567
      %v1575 = vadd.f32 %v1562, %v1567
      %v1576 = vmax.f32 %v1568, 0.0
      %v1577 = vmax.f32 %v1569, 0.0
      %v1578 = vmax.f32 %v1570, 0.0
      %v1579 = vmax.f32 %v1571, 0.0
      %v1580 = vmax.f32 %v1572, 0.0
      %v1581 = vmax.f32 %v1573, 0.0
      %v1582 = vmax.f32 %v1574, 0.0
      %v1583 = vmax.f32 %v1575, 0.0
      %1584 = vst.msk [vmem:[#allocation3] sm:$0xff] %vm477, 0.0
      %vm1585 = vcmask 58368
      %1586 = vst.msk [vmem:[#allocation3 + $0x8] sm:$0x3] %vm1585, 0.0
      %1587 = vst.msk [vmem:[#allocation3 + $0x10] sm:$0xff] %vm477, 0.0
      %1588 = vst.msk [vmem:[#allocation3 + $0x18] sm:$0x3] %vm1585, 0.0
      %1589 = vst.msk [vmem:[#allocation3 + $0x20] sm:$0xff] %vm477, 0.0
      %1590 = vst.msk [vmem:[#allocation3 + $0x28] sm:$0x3] %vm1585, 0.0
      %1591 = vst.msk [vmem:[#allocation3 + $0x30] sm:$0xff] %vm477, 0.0
      %1592 = vst.msk [vmem:[#allocation3 + $0x38] sm:$0x3] %vm1585, 0.0
      %1593 = vst.msk [vmem:[#allocation3 + $0x40] sm:$0xff] %vm477, 0.0
      %1594 = vst.msk [vmem:[#allocation3 + $0x48] sm:$0x3] %vm1585, 0.0
      %1595 = vst.msk [vmem:[#allocation3 + $0x50] sm:$0xff] %vm477, 0.0
      %1596 = vst.msk [vmem:[#allocation3 + $0x58] sm:$0x3] %vm1585, 0.0
      %1597 = vst.msk [vmem:[#allocation3 + $0x60] sm:$0xff] %vm477, 0.0
      %1598 = vst.msk [vmem:[#allocation3 + $0x68] sm:$0x3] %vm1585, 0.0
      %1599 = vst.msk [vmem:[#allocation3 + $0x70] sm:$0xff] %vm477, 0.0
      %1600 = vst.msk [vmem:[#allocation3 + $0x78] sm:$0x3] %vm1585, 0.0
      %1601 = vst.msk [vmem:[#allocation3 + $0x80] sm:$0xff] %vm477, 0.0
      %1602 = vst.msk [vmem:[#allocation3 + $0x88] sm:$0x3] %vm1585, 0.0
      %1603 = vst.msk [vmem:[#allocation3 + $0x90] sm:$0xff] %vm477, 0.0
      %1604 = vst.msk [vmem:[#allocation3 + $0x98] sm:$0x3] %vm1585, 0.0
      %1613 = vrot.lane.b32.xlu0 %v1068, 112
      %v1614 = vpop.permute.xlu0 %1613
      %1615 = vrot.lane.b32.xlu0 %v1069, 112
      %v1616 = vpop.permute.xlu0 %1615
      %1617 = vrot.lane.b32.xlu0 %v1070, 112
      %v1618 = vpop.permute.xlu0 %1617
      %1619 = vrot.lane.b32.xlu0 %v1071, 112
      %v1620 = vpop.permute.xlu0 %1619
      %1621 = vrot.lane.b32.xlu0 %v1072, 112
      %v1622 = vpop.permute.xlu0 %1621
      %1623 = vrot.lane.b32.xlu0 %v1073, 112
      %v1624 = vpop.permute.xlu0 %1623
      %1625 = vrot.lane.b32.xlu0 %v1074, 112
      %v1626 = vpop.permute.xlu0 %1625
      %1627 = vrot.lane.b32.xlu0 %v1075, 112
      %v1628 = vpop.permute.xlu0 %1627
      %s1637 = scalar_lea.vmem [#allocation3], 16
      %1638 = vst.msk [vmem:[%s1637 + $0x1] sm:$0xff] %vm477, %v1614
      %1639 = vst.msk [vmem:[%s1637 + $0x11] sm:$0xff] %vm477, %v1616
      %1640 = vst.msk [vmem:[%s1637 + $0x21] sm:$0xff] %vm477, %v1618
      %1641 = vst.msk [vmem:[%s1637 + $0x31] sm:$0xff] %vm477, %v1620
      %1642 = vst.msk [vmem:[%s1637 + $0x41] sm:$0xff] %vm477, %v1622
      %1643 = vst.msk [vmem:[%s1637 + $0x51] sm:$0xff] %vm477, %v1624
      %1644 = vst.msk [vmem:[%s1637 + $0x61] sm:$0xff] %vm477, %v1626
      %1645 = vst.msk [vmem:[%s1637 + $0x71] sm:$0xff] %vm477, %v1628
      %v1646 = vld [vmem:[#allocation3] sm:$0xff]
      %v1647 = vld [vmem:[#allocation3 + $0x10] sm:$0xff]
      %v1648 = vld [vmem:[#allocation3 + $0x20] sm:$0xff]
      %v1649 = vld [vmem:[#allocation3 + $0x30] sm:$0xff]
      %v1650 = vld [vmem:[#allocation3 + $0x40] sm:$0xff]
      %v1651 = vld [vmem:[#allocation3 + $0x50] sm:$0xff]
      %v1652 = vld [vmem:[#allocation3 + $0x60] sm:$0xff]
      %v1653 = vld [vmem:[#allocation3 + $0x70] sm:$0xff]
      %v1654 = vld [vmem:[#allocation3 + $0x1] sm:$0xff]
      %v1655 = vld [vmem:[#allocation3 + $0x11] sm:$0xff]
      %v1656 = vld [vmem:[#allocation3 + $0x21] sm:$0xff]
      %v1657 = vld [vmem:[#allocation3 + $0x31] sm:$0xff]
      %v1658 = vld [vmem:[#allocation3 + $0x41] sm:$0xff]
      %v1659 = vld [vmem:[#allocation3 + $0x51] sm:$0xff]
      %v1660 = vld [vmem:[#allocation3 + $0x61] sm:$0xff]
      %v1661 = vld [vmem:[#allocation3 + $0x71] sm:$0xff]
      %v1662 = vld [vmem:[#allocation3 + $0x2] sm:$0xff]
      %v1663 = vld [vmem:[#allocation3 + $0x12] sm:$0xff]
      %v1664 = vld [vmem:[#allocation3 + $0x22] sm:$0xff]
      %v1665 = vld [vmem:[#allocation3 + $0x32] sm:$0xff]
      %v1666 = vld [vmem:[#allocation3 + $0x42] sm:$0xff]
      %v1667 = vld [vmem:[#allocation3 + $0x52] sm:$0xff]
      %v1668 = vld [vmem:[#allocation3 + $0x62] sm:$0xff]
      %v1669 = vld [vmem:[#allocation3 + $0x72] sm:$0xff]
      %v1670 = vld [vmem:[%s1637] sm:$0xff]
      %v1671 = vld [vmem:[%s1637 + $0x10] sm:$0xff]
      %v1672 = vld [vmem:[%s1637 + $0x20] sm:$0xff]
      %v1673 = vld [vmem:[%s1637 + $0x30] sm:$0xff]
      %v1674 = vld [vmem:[%s1637 + $0x40] sm:$0xff]
      %v1675 = vld [vmem:[%s1637 + $0x50] sm:$0xff]
      %v1676 = vld [vmem:[%s1637 + $0x60] sm:$0xff]
      %v1677 = vld [vmem:[%s1637 + $0x70] sm:$0xff]
      %v1678 = vld [vmem:[%s1637 + $0x1] sm:$0xff]
      %v1679 = vld [vmem:[%s1637 + $0x11] sm:$0xff]
      %v1680 = vld [vmem:[%s1637 + $0x21] sm:$0xff]
      %v1681 = vld [vmem:[%s1637 + $0x31] sm:$0xff]
      %v1682 = vld [vmem:[%s1637 + $0x41] sm:$0xff]
      %v1683 = vld [vmem:[%s1637 + $0x51] sm:$0xff]
      %v1684 = vld [vmem:[%s1637 + $0x61] sm:$0xff]
      %v1685 = vld [vmem:[%s1637 + $0x71] sm:$0xff]
      %v1686 = vld [vmem:[%s1637 + $0x2] sm:$0xff]
      %v1687 = vld [vmem:[%s1637 + $0x12] sm:$0xff]
      %v1688 = vld [vmem:[%s1637 + $0x22] sm:$0xff]
      %v1689 = vld [vmem:[%s1637 + $0x32] sm:$0xff]
      %v1690 = vld [vmem:[%s1637 + $0x42] sm:$0xff]
      %v1691 = vld [vmem:[%s1637 + $0x52] sm:$0xff]
      %v1692 = vld [vmem:[%s1637 + $0x62] sm:$0xff]
      %v1693 = vld [vmem:[%s1637 + $0x72] sm:$0xff]
      %s1694 = scalar_lea.vmem [#allocation3], 32
      %v1695 = vld [vmem:[%s1694] sm:$0xff]
      %v1696 = vld [vmem:[%s1694 + $0x10] sm:$0xff]
      %v1697 = vld [vmem:[%s1694 + $0x20] sm:$0xff]
      %v1698 = vld [vmem:[%s1694 + $0x30] sm:$0xff]
      %v1699 = vld [vmem:[%s1694 + $0x40] sm:$0xff]
      %v1700 = vld [vmem:[%s1694 + $0x50] sm:$0xff]
      %v1701 = vld [vmem:[%s1694 + $0x60] sm:$0xff]
      %v1702 = vld [vmem:[%s1694 + $0x70] sm:$0xff]
      %v1703 = vld [vmem:[%s1694 + $0x1] sm:$0xff]
      %v1704 = vld [vmem:[%s1694 + $0x11] sm:$0xff]
      %v1705 = vld [vmem:[%s1694 + $0x21] sm:$0xff]
      %v1706 = vld [vmem:[%s1694 + $0x31] sm:$0xff]
      %v1707 = vld [vmem:[%s1694 + $0x41] sm:$0xff]
      %v1708 = vld [vmem:[%s1694 + $0x51] sm:$0xff]
      %v1709 = vld [vmem:[%s1694 + $0x61] sm:$0xff]
      %v1710 = vld [vmem:[%s1694 + $0x71] sm:$0xff]
      %v1711 = vld [vmem:[%s1694 + $0x2] sm:$0xff]
      %v1712 = vld [vmem:[%s1694 + $0x12] sm:$0xff]
      %v1713 = vld [vmem:[%s1694 + $0x22] sm:$0xff]
      %v1714 = vld [vmem:[%s1694 + $0x32] sm:$0xff]
      %v1715 = vld [vmem:[%s1694 + $0x42] sm:$0xff]
      %v1716 = vld [vmem:[%s1694 + $0x52] sm:$0xff]
      %v1717 = vld [vmem:[%s1694 + $0x62] sm:$0xff]
      %v1718 = vld [vmem:[%s1694 + $0x72] sm:$0xff]
      %1727 = vrot.lane.b32.xlu0 %v1654, 8
      %v1728 = vpop.permute.xlu0 %1727
      %1729 = vrot.lane.b32.xlu0 %v1655, 8
      %v1730 = vpop.permute.xlu0 %1729
      %1731 = vrot.lane.b32.xlu0 %v1656, 8
      %v1732 = vpop.permute.xlu0 %1731
      %1733 = vrot.lane.b32.xlu0 %v1657, 8
      %v1734 = vpop.permute.xlu0 %1733
      %1735 = vrot.lane.b32.xlu0 %v1658, 8
      %v1736 = vpop.permute.xlu0 %1735
      %1737 = vrot.lane.b32.xlu0 %v1659, 8
      %v1738 = vpop.permute.xlu0 %1737
      %1739 = vrot.lane.b32.xlu0 %v1660, 8
      %v1740 = vpop.permute.xlu0 %1739
      %1741 = vrot.lane.b32.xlu0 %v1661, 8
      %v1742 = vpop.permute.xlu0 %1741
      %1759 = vrot.lane.b32.xlu0 %v1662, 16
      %v1760 = vpop.permute.xlu0 %1759
      %1761 = vrot.lane.b32.xlu0 %v1663, 16
      %v1762 = vpop.permute.xlu0 %1761
      %1763 = vrot.lane.b32.xlu0 %v1664, 16
      %v1764 = vpop.permute.xlu0 %1763
      %1765 = vrot.lane.b32.xlu0 %v1665, 16
      %v1766 = vpop.permute.xlu0 %1765
      %1767 = vrot.lane.b32.xlu0 %v1666, 16
      %v1768 = vpop.permute.xlu0 %1767
      %1769 = vrot.lane.b32.xlu0 %v1667, 16
      %v1770 = vpop.permute.xlu0 %1769
      %1771 = vrot.lane.b32.xlu0 %v1668, 16
      %v1772 = vpop.permute.xlu0 %1771
      %1773 = vrot.lane.b32.xlu0 %v1669, 16
      %v1774 = vpop.permute.xlu0 %1773
      %1791 = vrot.lane.b32.xlu0 %v1670, 24
      %v1792 = vpop.permute.xlu0 %1791
      %1793 = vrot.lane.b32.xlu0 %v1671, 24
      %v1794 = vpop.permute.xlu0 %1793
      %1795 = vrot.lane.b32.xlu0 %v1672, 24
      %v1796 = vpop.permute.xlu0 %1795
      %1797 = vrot.lane.b32.xlu0 %v1673, 24
      %v1798 = vpop.permute.xlu0 %1797
      %1799 = vrot.lane.b32.xlu0 %v1674, 24
      %v1800 = vpop.permute.xlu0 %1799
      %1801 = vrot.lane.b32.xlu0 %v1675, 24
      %v1802 = vpop.permute.xlu0 %1801
      %1803 = vrot.lane.b32.xlu0 %v1676, 24
      %v1804 = vpop.permute.xlu0 %1803
      %1805 = vrot.lane.b32.xlu0 %v1677, 24
      %v1806 = vpop.permute.xlu0 %1805
      %1823 = vrot.lane.b32.xlu0 %v1678, 32
      %v1824 = vpop.permute.xlu0 %1823
      %1825 = vrot.lane.b32.xlu0 %v1679, 32
      %v1826 = vpop.permute.xlu0 %1825
      %1827 = vrot.lane.b32.xlu0 %v1680, 32
      %v1828 = vpop.permute.xlu0 %1827
      %1829 = vrot.lane.b32.xlu0 %v1681, 32
      %v1830 = vpop.permute.xlu0 %1829
      %1831 = vrot.lane.b32.xlu0 %v1682, 32
      %v1832 = vpop.permute.xlu0 %1831
      %1833 = vrot.lane.b32.xlu0 %v1683, 32
      %v1834 = vpop.permute.xlu0 %1833
      %1835 = vrot.lane.b32.xlu0 %v1684, 32
      %v1836 = vpop.permute.xlu0 %1835
      %1837 = vrot.lane.b32.xlu0 %v1685, 32
      %v1838 = vpop.permute.xlu0 %1837
      %1855 = vrot.lane.b32.xlu0 %v1686, 40
      %v1856 = vpop.permute.xlu0 %1855
      %1857 = vrot.lane.b32.xlu0 %v1687, 40
      %v1858 = vpop.permute.xlu0 %1857
      %1859 = vrot.lane.b32.xlu0 %v1688, 40
      %v1860 = vpop.permute.xlu0 %1859
      %1861 = vrot.lane.b32.xlu0 %v1689, 40
      %v1862 = vpop.permute.xlu0 %1861
      %1863 = vrot.lane.b32.xlu0 %v1690, 40
      %v1864 = vpop.permute.xlu0 %1863
      %1865 = vrot.lane.b32.xlu0 %v1691, 40
      %v1866 = vpop.permute.xlu0 %1865
      %1867 = vrot.lane.b32.xlu0 %v1692, 40
      %v1868 = vpop.permute.xlu0 %1867
      %1869 = vrot.lane.b32.xlu0 %v1693, 40
      %v1870 = vpop.permute.xlu0 %1869
      %1887 = vrot.lane.b32.xlu0 %v1695, 48
      %v1888 = vpop.permute.xlu0 %1887
      %1889 = vrot.lane.b32.xlu0 %v1696, 48
      %v1890 = vpop.permute.xlu0 %1889
      %1891 = vrot.lane.b32.xlu0 %v1697, 48
      %v1892 = vpop.permute.xlu0 %1891
      %1893 = vrot.lane.b32.xlu0 %v1698, 48
      %v1894 = vpop.permute.xlu0 %1893
      %1895 = vrot.lane.b32.xlu0 %v1699, 48
      %v1896 = vpop.permute.xlu0 %1895
      %1897 = vrot.lane.b32.xlu0 %v1700, 48
      %v1898 = vpop.permute.xlu0 %1897
      %1899 = vrot.lane.b32.xlu0 %v1701, 48
      %v1900 = vpop.permute.xlu0 %1899
      %1901 = vrot.lane.b32.xlu0 %v1702, 48
      %v1902 = vpop.permute.xlu0 %1901
      %1919 = vrot.lane.b32.xlu0 %v1703, 56
      %v1920 = vpop.permute.xlu0 %1919
      %1921 = vrot.lane.b32.xlu0 %v1704, 56
      %v1922 = vpop.permute.xlu0 %1921
      %1923 = vrot.lane.b32.xlu0 %v1705, 56
      %v1924 = vpop.permute.xlu0 %1923
      %1925 = vrot.lane.b32.xlu0 %v1706, 56
      %v1926 = vpop.permute.xlu0 %1925
      %1927 = vrot.lane.b32.xlu0 %v1707, 56
      %v1928 = vpop.permute.xlu0 %1927
      %1929 = vrot.lane.b32.xlu0 %v1708, 56
      %v1930 = vpop.permute.xlu0 %1929
      %1931 = vrot.lane.b32.xlu0 %v1709, 56
      %v1932 = vpop.permute.xlu0 %1931
      %1933 = vrot.lane.b32.xlu0 %v1710, 56
      %v1934 = vpop.permute.xlu0 %1933
      %1951 = vrot.lane.b32.xlu0 %v1711, 64
      %v1952 = vpop.permute.xlu0 %1951
      %1953 = vrot.lane.b32.xlu0 %v1712, 64
      %v1954 = vpop.permute.xlu0 %1953
      %1955 = vrot.lane.b32.xlu0 %v1713, 64
      %v1956 = vpop.permute.xlu0 %1955
      %1957 = vrot.lane.b32.xlu0 %v1714, 64
      %v1958 = vpop.permute.xlu0 %1957
      %1959 = vrot.lane.b32.xlu0 %v1715, 64
      %v1960 = vpop.permute.xlu0 %1959
      %1961 = vrot.lane.b32.xlu0 %v1716, 64
      %v1962 = vpop.permute.xlu0 %1961
      %1963 = vrot.lane.b32.xlu0 %v1717, 64
      %v1964 = vpop.permute.xlu0 %1963
      %1965 = vrot.lane.b32.xlu0 %v1718, 64
      %v1966 = vpop.permute.xlu0 %1965
      %v1975 = vsel %vm477, %v1646, %v1728
      %v1976 = vsel %vm477, %v1647, %v1730
      %v1977 = vsel %vm477, %v1648, %v1732
      %v1978 = vsel %vm477, %v1649, %v1734
      %v1979 = vsel %vm477, %v1650, %v1736
      %v1980 = vsel %vm477, %v1651, %v1738
      %v1981 = vsel %vm477, %v1652, %v1740
      %v1982 = vsel %vm477, %v1653, %v1742
      %v1983 = vsel %vm849, %v1975, %v1760
      %v1984 = vsel %vm849, %v1976, %v1762
      %v1985 = vsel %vm849, %v1977, %v1764
      %v1986 = vsel %vm849, %v1978, %v1766
      %v1987 = vsel %vm849, %v1979, %v1768
      %v1988 = vsel %vm849, %v1980, %v1770
      %v1989 = vsel %vm849, %v1981, %v1772
      %v1990 = vsel %vm849, %v1982, %v1774
      %v1991 = vsel %vm858, %v1983, %v1792
      %v1992 = vsel %vm858, %v1984, %v1794
      %v1993 = vsel %vm858, %v1985, %v1796
      %v1994 = vsel %vm858, %v1986, %v1798
      %v1995 = vsel %vm858, %v1987, %v1800
      %v1996 = vsel %vm858, %v1988, %v1802
      %v1997 = vsel %vm858, %v1989, %v1804
      %v1998 = vsel %vm858, %v1990, %v1806
      %v1999 = vsel %vm867, %v1991, %v1824
      %v2000 = vsel %vm867, %v1992, %v1826
      %v2001 = vsel %vm867, %v1993, %v1828
      %v2002 = vsel %vm867, %v1994, %v1830
      %v2003 = vsel %vm867, %v1995, %v1832
      %v2004 = vsel %vm867, %v1996, %v1834
      %v2005 = vsel %vm867, %v1997, %v1836
      %v2006 = vsel %vm867, %v1998, %v1838
      %v2007 = vsel %vm876, %v1999, %v1856
      %v2008 = vsel %vm876, %v2000, %v1858
      %v2009 = vsel %vm876, %v2001, %v1860
      %v2010 = vsel %vm876, %v2002, %v1862
      %v2011 = vsel %vm876, %v2003, %v1864
      %v2012 = vsel %vm876, %v2004, %v1866
      %v2013 = vsel %vm876, %v2005, %v1868
      %v2014 = vsel %vm876, %v2006, %v1870
      %v2015 = vsel %vm885, %v2007, %v1888
      %v2016 = vsel %vm885, %v2008, %v1890
      %v2017 = vsel %vm885, %v2009, %v1892
      %v2018 = vsel %vm885, %v2010, %v1894
      %v2019 = vsel %vm885, %v2011, %v1896
      %v2020 = vsel %vm885, %v2012, %v1898
      %v2021 = vsel %vm885, %v2013, %v1900
      %v2022 = vsel %vm885, %v2014, %v1902
      %v2023 = vsel %vm894, %v2015, %v1920
      %v2024 = vsel %vm894, %v2016, %v1922
      %v2025 = vsel %vm894, %v2017, %v1924
      %v2026 = vsel %vm894, %v2018, %v1926
      %v2027 = vsel %vm894, %v2019, %v1928
      %v2028 = vsel %vm894, %v2020, %v1930
      %v2029 = vsel %vm894, %v2021, %v1932
      %v2030 = vsel %vm894, %v2022, %v1934
      %v2031 = vsel %vm903, %v2023, %v1952
      %v2032 = vsel %vm903, %v2024, %v1954
      %v2033 = vsel %vm903, %v2025, %v1956
      %v2034 = vsel %vm903, %v2026, %v1958
      %v2035 = vsel %vm903, %v2027, %v1960
      %v2036 = vsel %vm903, %v2028, %v1962
      %v2037 = vsel %vm903, %v2029, %v1964
      %v2038 = vsel %vm903, %v2030, %v1966
      %v2039 = vpack.c.bf16 %v2032, %v2031
      %v2040 = vpack.c.bf16 %v2034, %v2033
      %v2041 = vpack.c.bf16 %v2036, %v2035
      %v2042 = vpack.c.bf16 %v2038, %v2037
      %v2043 = vld [vmem:[%s5] sm:$0xf]
      %v2044 = vld [vmem:[%s5 + $0x4] sm:$0xf]
      %v2045 = vld [vmem:[%s5 + $0x8] sm:$0xf]
      %v2046 = vld [vmem:[%s5 + $0xc] sm:$0xf]
      %v2047 = vld [vmem:[%s5 + $0x10] sm:$0xf]
      %v2048 = vld [vmem:[%s5 + $0x14] sm:$0xf]
      %v2049 = vld [vmem:[%s5 + $0x18] sm:$0xf]
      %v2050 = vld [vmem:[%s5 + $0x1c] sm:$0xf]
      %v2051 = vld [vmem:[%s5 + $0x20] sm:$0xf]
      %v2061 = vunpack.c.l.b16 %v2043
      %v2062 = vunpack.c.l.b16 %v2044
      %v2063 = vunpack.c.l.b16 %v2045
      %v2064 = vunpack.c.l.b16 %v2046
      %v2065 = vunpack.c.l.b16 %v2047
      %v2066 = vunpack.c.l.b16 %v2048
      %v2067 = vunpack.c.l.b16 %v2049
      %v2068 = vunpack.c.l.b16 %v2050
      %v2069 = vunpack.c.l.b16 %v2051
      %v2070 = vpack.c.b16 %v2062, %v2061
      %v2071 = vpack.c.b16 %v2064, %v2063
      %v2072 = vpack.c.b16 %v2066, %v2065
      %v2073 = vpack.c.b16 %v2068, %v2067
      %v2074 = vpack.c.b16 %v2069, %v2069
      %v2080 = vsel %vm952, %v2039, 0
      %v2083 = vsel %vm952, %v2040, 0
      %v2086 = vsel %vm952, %v2041, 0
      %v2089 = vsel %vm952, %v2042, 0
      %v2092 = vsel %vm965, %v2074, 0
      %2094 = vmatprep.subr.bf16.mxu0 0
      %2095 = vmatpush1.bf16.msra.mxu0 0
      %2096 = vmatprep.subr.bf16.mxu0 0
      %2097 = vmatpush1.bf16.msra.mxu0 0
      %2098 = vmatprep.subr.bf16.mxu0 0
      %2099 = vmatpush1.bf16.msra.mxu0 0
      %2100 = vmatprep.subr.bf16.mxu0 0
      %2101 = vmatpush1.bf16.msra.mxu0 %v2092
      %2102 = vmatprep.subr.bf16.mxu0 0
      %2103 = vmatpush1.bf16.msra.mxu0 %v2073
      %2104 = vmatprep.subr.bf16.mxu0 0
      %2105 = vmatpush1.bf16.msra.mxu0 %v2072
      %2106 = vmatprep.subr.bf16.mxu0 0
      %2107 = vmatpush1.bf16.msra.mxu0 %v2071
      %2108 = vmatprep.subr.bf16.mxu0 0
      %2109 = vmatpush1.bf16.msra.mxu0 %v2070
      %2110 = vmatprep.subr.bf16.mxu0 0
      %2111 = vmatpush2.bf16.msra.mxu0 0
      %2112 = vmatprep.subr.bf16.mxu0 0
      %2113 = vmatpush2.bf16.msra.mxu0 0
      %2114 = vmatprep.subr.bf16.mxu0 0
      %2115 = vmatpush2.bf16.msra.mxu0 0
      %2116 = vmatprep.subr.bf16.mxu0 0
      %2117 = vmatpush2.bf16.msra.mxu0 0
      %2118 = vmatprep.subr.bf16.mxu0 0
      %2119 = vmatpush2.bf16.msra.mxu0 0
      %2120 = vmatprep.subr.bf16.mxu0 0
      %2121 = vmatpush2.bf16.msra.mxu0 0
      %2122 = vmatprep.subr.bf16.mxu0 0
      %2123 = vmatpush2.bf16.msra.mxu0 0
      %2124 = vmatprep.subr.bf16.mxu0 0
      %2125 = vmatpush2.bf16.msra.mxu0 0
      %2126 = vmatprep.mubr.bf16.mxu0 0
      %2127 = vmatmul.mubr.bf16.gmra.mxu0 %v2080
      %v2128 = vpop.f32.mrf.mxu0
      %v2129 = vadd.f32 0.0, %v2128
      %v2130 = vpop.f32.mrf.mxu0
      %v2131 = vpop.f32.mrf.mxu0
      %v2132 = vadd.f32 0.0, %v2131
      %v2133 = vpop.f32.mrf.mxu0
      %2134 = vmatprep.mubr.bf16.mxu0 0
      %2135 = vmatmul.mubr.bf16.gmra.mxu0 %v2083
      %v2136 = vpop.f32.mrf.mxu0
      %v2137 = vadd.f32 0.0, %v2136
      %v2138 = vpop.f32.mrf.mxu0
      %v2139 = vpop.f32.mrf.mxu0
      %v2140 = vadd.f32 0.0, %v2139
      %v2141 = vpop.f32.mrf.mxu0
      %2142 = vmatprep.mubr.bf16.mxu0 0
      %2143 = vmatmul.mubr.bf16.gmra.mxu0 %v2086
      %v2144 = vpop.f32.mrf.mxu0
      %v2145 = vadd.f32 0.0, %v2144
      %v2146 = vpop.f32.mrf.mxu0
      %v2147 = vpop.f32.mrf.mxu0
      %v2148 = vadd.f32 0.0, %v2147
      %v2149 = vpop.f32.mrf.mxu0
      %2150 = vmatprep.mubr.bf16.mxu0 0
      %2151 = vmatmul.mubr.bf16.gmra.mxu0 %v2089
      %v2152 = vpop.f32.mrf.mxu0
      %v2153 = vadd.f32 0.0, %v2152
      %v2154 = vpop.f32.mrf.mxu0
      %v2155 = vpop.f32.mrf.mxu0
      %v2156 = vadd.f32 0.0, %v2155
      %v2157 = vpop.f32.mrf.mxu0
      %2158 = vdwg.mxu0
      %v2159 = vld [vmem:[%s6] sm:$0x1]
      %v2160 = vlaneseq
      %v2161 = vshrl.u32 %v2160, 7
      %v2162 = vsub.s32 0, %v2161
      %v2163 = vrot.slane %v2159, %v2162
      %v2164 = vmul.f32 %v2129, %v2163
      %v2165 = vmul.f32 %v2132, %v2163
      %v2166 = vmul.f32 %v2137, %v2163
      %v2167 = vmul.f32 %v2140, %v2163
      %v2168 = vmul.f32 %v2145, %v2163
      %v2169 = vmul.f32 %v2148, %v2163
      %v2170 = vmul.f32 %v2153, %v2163
      %v2171 = vmul.f32 %v2156, %v2163
      %v2172 = vld [vmem:[%s6 + $0x1] sm:$0x1]
      %v2173 = vlaneseq
      %v2174 = vshrl.u32 %v2173, 7
      %v2175 = vsub.s32 0, %v2174
      %v2176 = vrot.slane %v2172, %v2175
      %v2177 = vadd.f32 %v2164, %v2176
      %v2178 = vadd.f32 %v2165, %v2176
      %v2179 = vadd.f32 %v2166, %v2176
      %v2180 = vadd.f32 %v2167, %v2176
      %v2181 = vadd.f32 %v2168, %v2176
      %v2182 = vadd.f32 %v2169, %v2176
      %v2183 = vadd.f32 %v2170, %v2176
      %v2184 = vadd.f32 %v2171, %v2176
      %v2185 = vmax.f32 %v2177, 0.0
      %v2186 = vmax.f32 %v2178, 0.0
      %v2187 = vmax.f32 %v2179, 0.0
      %v2188 = vmax.f32 %v2180, 0.0
      %v2189 = vmax.f32 %v2181, 0.0
      %v2190 = vmax.f32 %v2182, 0.0
      %v2191 = vmax.f32 %v2183, 0.0
      %v2192 = vmax.f32 %v2184, 0.0
      %v2193 = vpack.c.bf16 %v2186, %v2185
      %v2194 = vpack.c.bf16 %v2188, %v2187
      %v2195 = vpack.c.bf16 %v2190, %v2189
      %v2196 = vpack.c.bf16 %v2192, %v2191
      %v2197 = vld [vmem:[%s7] sm:$0xf]
      %v2199 = vsel %vm477, %v2193, 0
      %v2202 = vsel %vm477, %v2194, 0
      %v2205 = vsel %vm477, %v2195, 0
      %v2208 = vsel %vm477, %v2196, 0
      %v2211 = vsel %vm965, %v2197, 0
      %2213 = vmatprep.subr.bf16.mxu0 0
      %2214 = vmatpush1.bf16.msra.mxu0 0
      %2215 = vmatprep.subr.bf16.mxu0 0
      %2216 = vmatpush1.bf16.msra.mxu0 0
      %2217 = vmatprep.subr.bf16.mxu0 0
      %2218 = vmatpush1.bf16.msra.mxu0 0
      %2219 = vmatprep.subr.bf16.mxu0 0
      %2220 = vmatpush1.bf16.msra.mxu0 0
      %2221 = vmatprep.subr.bf16.mxu0 0
      %2222 = vmatpush1.bf16.msra.mxu0 0
      %2223 = vmatprep.subr.bf16.mxu0 0
      %2224 = vmatpush1.bf16.msra.mxu0 0
      %2225 = vmatprep.subr.bf16.mxu0 0
      %2226 = vmatpush1.bf16.msra.mxu0 0
      %2227 = vmatprep.subr.bf16.mxu0 0
      %2228 = vmatpush1.bf16.msra.mxu0 %v2211
      %2229 = vmatprep.subr.bf16.mxu0 0
      %2230 = vmatpush2.bf16.msra.mxu0 0
      %2231 = vmatprep.subr.bf16.mxu0 0
      %2232 = vmatpush2.bf16.msra.mxu0 0
      %2233 = vmatprep.subr.bf16.mxu0 0
      %2234 = vmatpush2.bf16.msra.mxu0 0
      %2235 = vmatprep.subr.bf16.mxu0 0
      %2236 = vmatpush2.bf16.msra.mxu0 0
      %2237 = vmatprep.subr.bf16.mxu0 0
      %2238 = vmatpush2.bf16.msra.mxu0 0
      %2239 = vmatprep.subr.bf16.mxu0 0
      %2240 = vmatpush2.bf16.msra.mxu0 0
      %2241 = vmatprep.subr.bf16.mxu0 0
      %2242 = vmatpush2.bf16.msra.mxu0 0
      %2243 = vmatprep.subr.bf16.mxu0 0
      %2244 = vmatpush2.bf16.msra.mxu0 0
      %2245 = vmatprep.mubr.bf16.mxu0 0
      %2246 = vmatmul.mubr.bf16.gmra.mxu0 %v2199
      %v2247 = vpop.f32.mrf.mxu0
      %v2248 = vadd.f32 0.0, %v2247
      %v2249 = vpop.f32.mrf.mxu0
      %v2250 = vpop.f32.mrf.mxu0
      %v2251 = vadd.f32 0.0, %v2250
      %v2252 = vpop.f32.mrf.mxu0
      %2253 = vmatprep.mubr.bf16.mxu0 0
      %2254 = vmatmul.mubr.bf16.gmra.mxu0 %v2202
      %v2255 = vpop.f32.mrf.mxu0
      %v2256 = vadd.f32 0.0, %v2255
      %v2257 = vpop.f32.mrf.mxu0
      %v2258 = vpop.f32.mrf.mxu0
      %v2259 = vadd.f32 0.0, %v2258
      %v2260 = vpop.f32.mrf.mxu0
      %2261 = vmatprep.mubr.bf16.mxu0 0
      %2262 = vmatmul.mubr.bf16.gmra.mxu0 %v2205
      %v2263 = vpop.f32.mrf.mxu0
      %v2264 = vadd.f32 0.0, %v2263
      %v2265 = vpop.f32.mrf.mxu0
      %v2266 = vpop.f32.mrf.mxu0
      %v2267 = vadd.f32 0.0, %v2266
      %v2268 = vpop.f32.mrf.mxu0
      %2269 = vmatprep.mubr.bf16.mxu0 0
      %2270 = vmatmul.mubr.bf16.gmra.mxu0 %v2208
      %v2271 = vpop.f32.mrf.mxu0
      %v2272 = vadd.f32 0.0, %v2271
      %v2273 = vpop.f32.mrf.mxu0
      %v2274 = vpop.f32.mrf.mxu0
      %v2275 = vadd.f32 0.0, %v2274
      %v2276 = vpop.f32.mrf.mxu0
      %2277 = vdwg.mxu0
      %v2278 = vpack.c.bf16 %v1061, %v1060
      %v2279 = vpack.c.bf16 %v1063, %v1062
      %v2280 = vpack.c.bf16 %v1065, %v1064
      %v2281 = vpack.c.bf16 %v1067, %v1066
      %2286 = vrot.lane.b32.xlu0 %v2278, 120
      %v2287 = vpop.permute.xlu0 %2286
      %2288 = vrot.lane.b32.xlu0 %v2279, 120
      %v2289 = vpop.permute.xlu0 %2288
      %2290 = vrot.lane.b32.xlu0 %v2280, 120
      %v2291 = vpop.permute.xlu0 %2290
      %2292 = vrot.lane.b32.xlu0 %v2281, 120
      %v2293 = vpop.permute.xlu0 %2292
      %v2295 = vsel %vm477, %v2278, 0
      %v2298 = vsel %vm477, %v2279, 0
      %v2301 = vsel %vm477, %v2280, 0
      %v2304 = vsel %vm477, %v2281, 0
      %v2307 = vsel %vm477, %v2287, 0
      %v2310 = vsel %vm477, %v2289, 0
      %v2313 = vsel %vm477, %v2291, 0
      %v2316 = vsel %vm477, %v2293, 0
      %2318 = vmatprep.subr.bf16.mxu0 0
      %2319 = vmatpush1.bf16.xpose.msra.mxu0 0
      %2320 = vmatprep.subr.bf16.mxu0 0
      %2321 = vmatpush1.bf16.xpose.msra.mxu0 0
      %2322 = vmatprep.subr.bf16.mxu0 0
      %2323 = vmatpush1.bf16.xpose.msra.mxu0 0
      %2324 = vmatprep.subr.bf16.mxu0 0
      %2325 = vmatpush1.bf16.xpose.msra.mxu0 0
      %2326 = vmatprep.subr.bf16.mxu0 0
      %2327 = vmatpush1.bf16.xpose.msra.mxu0 %v2316
      %2328 = vmatprep.subr.bf16.mxu0 0
      %2329 = vmatpush1.bf16.xpose.msra.mxu0 %v2313
      %2330 = vmatprep.subr.bf16.mxu0 0
      %2331 = vmatpush1.bf16.xpose.msra.mxu0 %v2310
      %2332 = vmatprep.subr.bf16.mxu0 0
      %2333 = vmatpush1.bf16.xpose.msra.mxu0 %v2307
      %2334 = vmatprep.subr.bf16.mxu0 0
      %2335 = vmatpush2.bf16.xpose.msra.mxu0 0
      %2336 = vmatprep.subr.bf16.mxu0 0
      %2337 = vmatpush2.bf16.xpose.msra.mxu0 0
      %2338 = vmatprep.subr.bf16.mxu0 0
      %2339 = vmatpush2.bf16.xpose.msra.mxu0 0
      %2340 = vmatprep.subr.bf16.mxu0 0
      %2341 = vmatpush2.bf16.xpose.msra.mxu0 0
      %2342 = vmatprep.subr.bf16.mxu0 0
      %2343 = vmatpush2.bf16.xpose.msra.mxu0 0
      %2344 = vmatprep.subr.bf16.mxu0 0
      %2345 = vmatpush2.bf16.xpose.msra.mxu0 0
      %2346 = vmatprep.subr.bf16.mxu0 0
      %2347 = vmatpush2.bf16.xpose.msra.mxu0 0
      %2348 = vmatprep.subr.bf16.mxu0 0
      %2349 = vmatpush2.bf16.xpose.msra.mxu0 0
      %2350 = vmatprep.mubr.bf16.mxu0 0
      %2351 = vmatmul.mubr.bf16.gmra.mxu0 %v2295
      %v2352 = vpop.f32.mrf.mxu0
      %v2353 = vadd.f32 0.0, %v2352
      %v2354 = vpop.f32.mrf.mxu0
      %v2355 = vpop.f32.mrf.mxu0
      %v2356 = vadd.f32 0.0, %v2355
      %v2357 = vpop.f32.mrf.mxu0
      %2358 = vmatprep.mubr.bf16.mxu0 0
      %2359 = vmatmul.mubr.bf16.gmra.mxu0 %v2298
      %v2360 = vpop.f32.mrf.mxu0
      %v2361 = vadd.f32 0.0, %v2360
      %v2362 = vpop.f32.mrf.mxu0
      %v2363 = vpop.f32.mrf.mxu0
      %v2364 = vadd.f32 0.0, %v2363
      %v2365 = vpop.f32.mrf.mxu0
      %2366 = vmatprep.mubr.bf16.mxu0 0
      %2367 = vmatmul.mubr.bf16.gmra.mxu0 %v2301
      %v2368 = vpop.f32.mrf.mxu0
      %v2369 = vadd.f32 0.0, %v2368
      %v2370 = vpop.f32.mrf.mxu0
      %v2371 = vpop.f32.mrf.mxu0
      %v2372 = vadd.f32 0.0, %v2371
      %v2373 = vpop.f32.mrf.mxu0
      %2374 = vmatprep.mubr.bf16.mxu0 0
      %2375 = vmatmul.mubr.bf16.gmra.mxu0 %v2304
      %v2376 = vpop.f32.mrf.mxu0
      %v2377 = vadd.f32 0.0, %v2376
      %v2378 = vpop.f32.mrf.mxu0
      %v2379 = vpop.f32.mrf.mxu0
      %v2380 = vadd.f32 0.0, %v2379
      %v2381 = vpop.f32.mrf.mxu0
      %2382 = vdwg.mxu0
      %v2383 = vsel %vm903, %v2353, -inf
      %v2384 = vsel %vm903, %v2356, -inf
      %v2385 = vsel %vm903, %v2361, -inf
      %v2386 = vsel %vm903, %v2364, -inf
      %v2387 = vsel %vm903, %v2369, -inf
      %v2388 = vmax.f32 %v2383, %v2387
      %v2389 = vsel %vm903, %v2372, -inf
      %v2390 = vmax.f32 %v2384, %v2389
      %v2391 = vsel %vm903, %v2377, -inf
      %v2392 = vmax.f32 %v2385, %v2391
      %v2393 = vsel %vm903, %v2380, -inf
      %v2394 = vmax.f32 %v2386, %v2393
      %v2395 = vmax.f32 %v2388, %v2390
      %v2396 = vmax.f32 %v2392, %v2394
      %v2397 = vmax.f32 %v2395, %v2396
      %v2398 = vrot.slane %v2397, 4
      %v2399 = vmax.f32 %v2397, %v2398
      %v2400 = vrot.slane %v2399, 2
      %v2401 = vmax.f32 %v2399, %v2400
      %v2402 = vrot.slane %v2401, 1
      %v2403 = vmax.f32 %v2401, %v2402
      %v2404 = vsub.f32 %v2353, %v2403
      %v2405 = vsub.f32 %v2356, %v2403
      %v2406 = vsub.f32 %v2361, %v2403
      %v2407 = vsub.f32 %v2364, %v2403
      %v2408 = vsub.f32 %v2369, %v2403
      %v2409 = vsub.f32 %v2372, %v2403
      %v2410 = vsub.f32 %v2377, %v2403
      %v2411 = vsub.f32 %v2380, %v2403
      %v2412 = vmul.f32 %v2404, 1.442695
      %v2413 = vpow.pop %v2412
      %v2414 = vmul.f32 %v2405, 1.442695
      %v2415 = vpow.pop %v2414
      %v2416 = vmul.f32 %v2406, 1.442695
      %v2417 = vpow.pop %v2416
      %v2418 = vmul.f32 %v2407, 1.442695
      %v2419 = vpow.pop %v2418
      %v2420 = vmul.f32 %v2408, 1.442695
      %v2421 = vpow.pop %v2420
      %v2422 = vmul.f32 %v2409, 1.442695
      %v2423 = vpow.pop %v2422
      %v2424 = vmul.f32 %v2410, 1.442695
      %v2425 = vpow.pop %v2424
      %v2426 = vmul.f32 %v2411, 1.442695
      %v2427 = vpow.pop %v2426
      %v2428 = vsel %vm903, %v2413, 0.0
      %v2429 = vsel %vm903, %v2415, 0.0
      %v2430 = vadd.f32 %v2428, %v2429
      %v2431 = vsel %vm903, %v2417, 0.0
      %v2432 = vadd.f32 %v2430, %v2431
      %v2433 = vsel %vm903, %v2419, 0.0
      %v2434 = vadd.f32 %v2432, %v2433
      %v2435 = vsel %vm903, %v2421, 0.0
      %v2436 = vadd.f32 %v2434, %v2435
      %v2437 = vsel %vm903, %v2423, 0.0
      %v2438 = vadd.f32 %v2436, %v2437
      %v2439 = vsel %vm903, %v2425, 0.0
      %v2440 = vadd.f32 %v2438, %v2439
      %v2441 = vsel %vm903, %v2427, 0.0
      %v2442 = vadd.f32 %v2440, %v2441
      %v2443 = vrot.slane %v2442, 4
      %v2444 = vadd.f32 %v2442, %v2443
      %v2445 = vrot.slane %v2444, 2
      %v2446 = vadd.f32 %v2444, %v2445
      %v2447 = vrot.slane %v2446, 1
      %v2448 = vadd.f32 %v2446, %v2447
      %v2449 = vrcp.pop %v2448
      %v2450 = vmul.f32 %v2413, %v2449
      %v2451 = vmul.f32 %v2415, %v2449
      %v2452 = vmul.f32 %v2417, %v2449
      %v2453 = vmul.f32 %v2419, %v2449
      %v2454 = vmul.f32 %v2421, %v2449
      %v2455 = vmul.f32 %v2423, %v2449
      %v2456 = vmul.f32 %v2425, %v2449
      %v2457 = vmul.f32 %v2427, %v2449
      %v2458 = vpack.c.bf16 %v2451, %v2450
      %v2459 = vpack.c.bf16 %v2453, %v2452
      %v2460 = vpack.c.bf16 %v2455, %v2454
      %v2461 = vpack.c.bf16 %v2457, %v2456
      %v2462 = vpack.c.bf16 %v2251, %v2248
      %v2463 = vpack.c.bf16 %v2259, %v2256
      %v2464 = vpack.c.bf16 %v2267, %v2264
      %v2465 = vpack.c.bf16 %v2275, %v2272
      %v2466 = vpack.c.bf16 %v1577, %v1576
      %v2467 = vpack.c.bf16 %v1579, %v1578
      %v2468 = vpack.c.bf16 %v1581, %v1580
      %v2469 = vpack.c.bf16 %v1583, %v1582
      %v2470 = vld [vmem:[%s8] sm:$0xf]
      %v2472 = vsel %vm477, %v2466, 0
      %v2475 = vsel %vm477, %v2467, 0
      %v2478 = vsel %vm477, %v2468, 0
      %v2481 = vsel %vm477, %v2469, 0
      %v2484 = vsel %vm965, %v2470, 0
      %2486 = vmatprep.subr.bf16.mxu0 0
      %2487 = vmatpush1.bf16.msra.mxu0 0
      %2488 = vmatprep.subr.bf16.mxu0 0
      %2489 = vmatpush1.bf16.msra.mxu0 0
      %2490 = vmatprep.subr.bf16.mxu0 0
      %2491 = vmatpush1.bf16.msra.mxu0 0
      %2492 = vmatprep.subr.bf16.mxu0 0
      %2493 = vmatpush1.bf16.msra.mxu0 0
      %2494 = vmatprep.subr.bf16.mxu0 0
      %2495 = vmatpush1.bf16.msra.mxu0 0
      %2496 = vmatprep.subr.bf16.mxu0 0
      %2497 = vmatpush1.bf16.msra.mxu0 0
      %2498 = vmatprep.subr.bf16.mxu0 0
      %2499 = vmatpush1.bf16.msra.mxu0 0
      %2500 = vmatprep.subr.bf16.mxu0 0
      %2501 = vmatpush1.bf16.msra.mxu0 %v2484
      %2502 = vmatprep.subr.bf16.mxu0 0
      %2503 = vmatpush2.bf16.msra.mxu0 0
      %2504 = vmatprep.subr.bf16.mxu0 0
      %2505 = vmatpush2.bf16.msra.mxu0 0
      %2506 = vmatprep.subr.bf16.mxu0 0
      %2507 = vmatpush2.bf16.msra.mxu0 0
      %2508 = vmatprep.subr.bf16.mxu0 0
      %2509 = vmatpush2.bf16.msra.mxu0 0
      %2510 = vmatprep.subr.bf16.mxu0 0
      %2511 = vmatpush2.bf16.msra.mxu0 0
      %2512 = vmatprep.subr.bf16.mxu0 0
      %2513 = vmatpush2.bf16.msra.mxu0 0
      %2514 = vmatprep.subr.bf16.mxu0 0
      %2515 = vmatpush2.bf16.msra.mxu0 0
      %2516 = vmatprep.subr.bf16.mxu0 0
      %2517 = vmatpush2.bf16.msra.mxu0 0
      %2518 = vmatprep.mubr.bf16.mxu0 0
      %2519 = vmatmul.mubr.bf16.gmra.mxu0 %v2472
      %v2520 = vpop.f32.mrf.mxu0
      %v2521 = vadd.f32 0.0, %v2520
      %v2522 = vpop.f32.mrf.mxu0
      %v2523 = vpop.f32.mrf.mxu0
      %v2524 = vadd.f32 0.0, %v2523
      %v2525 = vpop.f32.mrf.mxu0
      %2526 = vmatprep.mubr.bf16.mxu0 0
      %2527 = vmatmul.mubr.bf16.gmra.mxu0 %v2475
      %v2528 = vpop.f32.mrf.mxu0
      %v2529 = vadd.f32 0.0, %v2528
      %v2530 = vpop.f32.mrf.mxu0
      %v2531 = vpop.f32.mrf.mxu0
      %v2532 = vadd.f32 0.0, %v2531
      %v2533 = vpop.f32.mrf.mxu0
      %2534 = vmatprep.mubr.bf16.mxu0 0
      %2535 = vmatmul.mubr.bf16.gmra.mxu0 %v2478
      %v2536 = vpop.f32.mrf.mxu0
      %v2537 = vadd.f32 0.0, %v2536
      %v2538 = vpop.f32.mrf.mxu0
      %v2539 = vpop.f32.mrf.mxu0
      %v2540 = vadd.f32 0.0, %v2539
      %v2541 = vpop.f32.mrf.mxu0
      %2542 = vmatprep.mubr.bf16.mxu0 0
      %2543 = vmatmul.mubr.bf16.gmra.mxu0 %v2481
      %v2544 = vpop.f32.mrf.mxu0
      %v2545 = vadd.f32 0.0, %v2544
      %v2546 = vpop.f32.mrf.mxu0
      %v2547 = vpop.f32.mrf.mxu0
      %v2548 = vadd.f32 0.0, %v2547
      %v2549 = vpop.f32.mrf.mxu0
      %2550 = vdwg.mxu0
      %v2552 = vsel %vm903, %v2458, 0
      %v2555 = vsel %vm903, %v2459, 0
      %v2558 = vsel %vm903, %v2460, 0
      %v2561 = vsel %vm903, %v2461, 0
      %2563 = vmatprep.subr.bf16.mxu0 0
      %2564 = vmatpush1.bf16.msra.mxu0 0
      %2565 = vmatprep.subr.bf16.mxu0 0
      %2566 = vmatpush1.bf16.msra.mxu0 0
      %2567 = vmatprep.subr.bf16.mxu0 0
      %2568 = vmatpush1.bf16.msra.mxu0 0
      %2569 = vmatprep.subr.bf16.mxu0 0
      %2570 = vmatpush1.bf16.msra.mxu0 0
      %2571 = vmatprep.subr.bf16.mxu0 0
      %2572 = vmatpush1.bf16.msra.mxu0 %v2465
      %2573 = vmatprep.subr.bf16.mxu0 0
      %2574 = vmatpush1.bf16.msra.mxu0 %v2464
      %2575 = vmatprep.subr.bf16.mxu0 0
      %2576 = vmatpush1.bf16.msra.mxu0 %v2463
      %2577 = vmatprep.subr.bf16.mxu0 0
      %2578 = vmatpush1.bf16.msra.mxu0 %v2462
      %2579 = vmatprep.subr.bf16.mxu0 0
      %2580 = vmatpush2.bf16.msra.mxu0 0
      %2581 = vmatprep.subr.bf16.mxu0 0
      %2582 = vmatpush2.bf16.msra.mxu0 0
      %2583 = vmatprep.subr.bf16.mxu0 0
      %2584 = vmatpush2.bf16.msra.mxu0 0
      %2585 = vmatprep.subr.bf16.mxu0 0
      %2586 = vmatpush2.bf16.msra.mxu0 0
      %2587 = vmatprep.subr.bf16.mxu0 0
      %2588 = vmatpush2.bf16.msra.mxu0 0
      %2589 = vmatprep.subr.bf16.mxu0 0
      %2590 = vmatpush2.bf16.msra.mxu0 0
      %2591 = vmatprep.subr.bf16.mxu0 0
      %2592 = vmatpush2.bf16.msra.mxu0 0
      %2593 = vmatprep.subr.bf16.mxu0 0
      %2594 = vmatpush2.bf16.msra.mxu0 0
      %2595 = vmatprep.mubr.bf16.mxu0 0
      %2596 = vmatmul.mubr.bf16.gmra.mxu0 %v2552
      %v2597 = vpop.f32.mrf.mxu0
      %v2598 = vadd.f32 %v2521, %v2597
      %v2599 = vpop.f32.mrf.mxu0
      %v2600 = vpop.f32.mrf.mxu0
      %v2601 = vadd.f32 %v2524, %v2600
      %v2602 = vpop.f32.mrf.mxu0
      %2603 = vmatprep.mubr.bf16.mxu0 0
      %2604 = vmatmul.mubr.bf16.gmra.mxu0 %v2555
      %v2605 = vpop.f32.mrf.mxu0
      %v2606 = vadd.f32 %v2529, %v2605
      %v2607 = vpop.f32.mrf.mxu0
      %v2608 = vpop.f32.mrf.mxu0
      %v2609 = vadd.f32 %v2532, %v2608
      %v2610 = vpop.f32.mrf.mxu0
      %2611 = vmatprep.mubr.bf16.mxu0 0
      %2612 = vmatmul.mubr.bf16.gmra.mxu0 %v2558
      %v2613 = vpop.f32.mrf.mxu0
      %v2614 = vadd.f32 %v2537, %v2613
      %v2615 = vpop.f32.mrf.mxu0
      %v2616 = vpop.f32.mrf.mxu0
      %v2617 = vadd.f32 %v2540, %v2616
      %v2618 = vpop.f32.mrf.mxu0
      %2619 = vmatprep.mubr.bf16.mxu0 0
      %2620 = vmatmul.mubr.bf16.gmra.mxu0 %v2561
      %v2621 = vpop.f32.mrf.mxu0
      %v2622 = vadd.f32 %v2545, %v2621
      %v2623 = vpop.f32.mrf.mxu0
      %v2624 = vpop.f32.mrf.mxu0
      %v2625 = vadd.f32 %v2548, %v2624
      %v2626 = vpop.f32.mrf.mxu0
      %2627 = vdwg.mxu0
      %v2628 = vld [vmem:[%s9] sm:$0x1]
      %v2629 = vlaneseq
      %v2630 = vshrl.u32 %v2629, 7
      %v2631 = vsub.s32 0, %v2630
      %v2632 = vrot.slane %v2628, %v2631
      %v2633 = vmul.f32 %v2598, %v2632
      %v2634 = vmul.f32 %v2601, %v2632
      %v2635 = vmul.f32 %v2606, %v2632
      %v2636 = vmul.f32 %v2609, %v2632
      %v2637 = vmul.f32 %v2614, %v2632
      %v2638 = vmul.f32 %v2617, %v2632
      %v2639 = vmul.f32 %v2622, %v2632
      %v2640 = vmul.f32 %v2625, %v2632
      %v2641 = vld [vmem:[%s9 + $0x1] sm:$0x1]
      %v2642 = vlaneseq
      %v2643 = vshrl.u32 %v2642, 7
      %v2644 = vsub.s32 0, %v2643
      %v2645 = vrot.slane %v2641, %v2644
      %v2646 = vadd.f32 %v2633, %v2645
      %v2647 = vadd.f32 %v2634, %v2645
      %v2648 = vadd.f32 %v2635, %v2645
      %v2649 = vadd.f32 %v2636, %v2645
      %v2650 = vadd.f32 %v2637, %v2645
      %v2651 = vadd.f32 %v2638, %v2645
      %v2652 = vadd.f32 %v2639, %v2645
      %v2653 = vadd.f32 %v2640, %v2645
      %v2654 = vtanh.pop %v2646
      %v2655 = vtanh.pop %v2647
      %v2656 = vtanh.pop %v2648
      %v2657 = vtanh.pop %v2649
      %v2658 = vtanh.pop %v2650
      %v2659 = vtanh.pop %v2651
      %v2660 = vtanh.pop %v2652
      %v2661 = vtanh.pop %v2653
      %2662 = vst.msk [vmem:[#allocation4] sm:$0xff] %vm477, 0.0
      %2663 = vst.msk [vmem:[#allocation4 + $0x8] sm:$0x3] %vm1585, 0.0
      %2664 = vst.msk [vmem:[#allocation4 + $0x10] sm:$0xff] %vm477, 0.0
      %2665 = vst.msk [vmem:[#allocation4 + $0x18] sm:$0x3] %vm1585, 0.0
      %2666 = vst.msk [vmem:[#allocation4 + $0x20] sm:$0xff] %vm477, 0.0
      %2667 = vst.msk [vmem:[#allocation4 + $0x28] sm:$0x3] %vm1585, 0.0
      %2668 = vst.msk [vmem:[#allocation4 + $0x30] sm:$0xff] %vm477, 0.0
      %2669 = vst.msk [vmem:[#allocation4 + $0x38] sm:$0x3] %vm1585, 0.0
      %2670 = vst.msk [vmem:[#allocation4 + $0x40] sm:$0xff] %vm477, 0.0
      %2671 = vst.msk [vmem:[#allocation4 + $0x48] sm:$0x3] %vm1585, 0.0
      %2672 = vst.msk [vmem:[#allocation4 + $0x50] sm:$0xff] %vm477, 0.0
      %2673 = vst.msk [vmem:[#allocation4 + $0x58] sm:$0x3] %vm1585, 0.0
      %2674 = vst.msk [vmem:[#allocation4 + $0x60] sm:$0xff] %vm477, 0.0
      %2675 = vst.msk [vmem:[#allocation4 + $0x68] sm:$0x3] %vm1585, 0.0
      %2676 = vst.msk [vmem:[#allocation4 + $0x70] sm:$0xff] %vm477, 0.0
      %2677 = vst.msk [vmem:[#allocation4 + $0x78] sm:$0x3] %vm1585, 0.0
      %2678 = vst.msk [vmem:[#allocation4 + $0x80] sm:$0xff] %vm477, 0.0
      %2679 = vst.msk [vmem:[#allocation4 + $0x88] sm:$0x3] %vm1585, 0.0
      %2680 = vst.msk [vmem:[#allocation4 + $0x90] sm:$0xff] %vm477, 0.0
      %2681 = vst.msk [vmem:[#allocation4 + $0x98] sm:$0x3] %vm1585, 0.0
      %s2682 = scalar_lea.vmem [#allocation4], 16
      %2683 = vst.msk [vmem:[%s2682 + $0x1] sm:$0xff] %vm477, %v2654
      %2684 = vst.msk [vmem:[%s2682 + $0x11] sm:$0xff] %vm477, %v2655
      %2685 = vst.msk [vmem:[%s2682 + $0x21] sm:$0xff] %vm477, %v2656
      %2686 = vst.msk [vmem:[%s2682 + $0x31] sm:$0xff] %vm477, %v2657
      %2687 = vst.msk [vmem:[%s2682 + $0x41] sm:$0xff] %vm477, %v2658
      %2688 = vst.msk [vmem:[%s2682 + $0x51] sm:$0xff] %vm477, %v2659
      %2689 = vst.msk [vmem:[%s2682 + $0x61] sm:$0xff] %vm477, %v2660
      %2690 = vst.msk [vmem:[%s2682 + $0x71] sm:$0xff] %vm477, %v2661
      %v2691 = vld [vmem:[#allocation4] sm:$0xff]
      %v2692 = vld [vmem:[#allocation4 + $0x10] sm:$0xff]
      %v2693 = vld [vmem:[#allocation4 + $0x20] sm:$0xff]
      %v2694 = vld [vmem:[#allocation4 + $0x30] sm:$0xff]
      %v2695 = vld [vmem:[#allocation4 + $0x40] sm:$0xff]
      %v2696 = vld [vmem:[#allocation4 + $0x50] sm:$0xff]
      %v2697 = vld [vmem:[#allocation4 + $0x60] sm:$0xff]
      %v2698 = vld [vmem:[#allocation4 + $0x70] sm:$0xff]
      %v2699 = vld [vmem:[#allocation4 + $0x1] sm:$0xff]
      %v2700 = vld [vmem:[#allocation4 + $0x11] sm:$0xff]
      %v2701 = vld [vmem:[#allocation4 + $0x21] sm:$0xff]
      %v2702 = vld [vmem:[#allocation4 + $0x31] sm:$0xff]
      %v2703 = vld [vmem:[#allocation4 + $0x41] sm:$0xff]
      %v2704 = vld [vmem:[#allocation4 + $0x51] sm:$0xff]
      %v2705 = vld [vmem:[#allocation4 + $0x61] sm:$0xff]
      %v2706 = vld [vmem:[#allocation4 + $0x71] sm:$0xff]
      %v2707 = vld [vmem:[#allocation4 + $0x2] sm:$0xff]
      %v2708 = vld [vmem:[#allocation4 + $0x12] sm:$0xff]
      %v2709 = vld [vmem:[#allocation4 + $0x22] sm:$0xff]
      %v2710 = vld [vmem:[#allocation4 + $0x32] sm:$0xff]
      %v2711 = vld [vmem:[#allocation4 + $0x42] sm:$0xff]
      %v2712 = vld [vmem:[#allocation4 + $0x52] sm:$0xff]
      %v2713 = vld [vmem:[#allocation4 + $0x62] sm:$0xff]
      %v2714 = vld [vmem:[#allocation4 + $0x72] sm:$0xff]
      %v2715 = vld [vmem:[%s2682] sm:$0xff]
      %v2716 = vld [vmem:[%s2682 + $0x10] sm:$0xff]
      %v2717 = vld [vmem:[%s2682 + $0x20] sm:$0xff]
      %v2718 = vld [vmem:[%s2682 + $0x30] sm:$0xff]
      %v2719 = vld [vmem:[%s2682 + $0x40] sm:$0xff]
      %v2720 = vld [vmem:[%s2682 + $0x50] sm:$0xff]
      %v2721 = vld [vmem:[%s2682 + $0x60] sm:$0xff]
      %v2722 = vld [vmem:[%s2682 + $0x70] sm:$0xff]
      %v2723 = vld [vmem:[%s2682 + $0x1] sm:$0xff]
      %v2724 = vld [vmem:[%s2682 + $0x11] sm:$0xff]
      %v2725 = vld [vmem:[%s2682 + $0x21] sm:$0xff]
      %v2726 = vld [vmem:[%s2682 + $0x31] sm:$0xff]
      %v2727 = vld [vmem:[%s2682 + $0x41] sm:$0xff]
      %v2728 = vld [vmem:[%s2682 + $0x51] sm:$0xff]
      %v2729 = vld [vmem:[%s2682 + $0x61] sm:$0xff]
      %v2730 = vld [vmem:[%s2682 + $0x71] sm:$0xff]
      %v2731 = vld [vmem:[%s2682 + $0x2] sm:$0xff]
      %v2732 = vld [vmem:[%s2682 + $0x12] sm:$0xff]
      %v2733 = vld [vmem:[%s2682 + $0x22] sm:$0xff]
      %v2734 = vld [vmem:[%s2682 + $0x32] sm:$0xff]
      %v2735 = vld [vmem:[%s2682 + $0x42] sm:$0xff]
      %v2736 = vld [vmem:[%s2682 + $0x52] sm:$0xff]
      %v2737 = vld [vmem:[%s2682 + $0x62] sm:$0xff]
      %v2738 = vld [vmem:[%s2682 + $0x72] sm:$0xff]
      %s2739 = scalar_lea.vmem [#allocation4], 32
      %v2740 = vld [vmem:[%s2739] sm:$0xff]
      %v2741 = vld [vmem:[%s2739 + $0x10] sm:$0xff]
      %v2742 = vld [vmem:[%s2739 + $0x20] sm:$0xff]
      %v2743 = vld [vmem:[%s2739 + $0x30] sm:$0xff]
      %v2744 = vld [vmem:[%s2739 + $0x40] sm:$0xff]
      %v2745 = vld [vmem:[%s2739 + $0x50] sm:$0xff]
      %v2746 = vld [vmem:[%s2739 + $0x60] sm:$0xff]
      %v2747 = vld [vmem:[%s2739 + $0x70] sm:$0xff]
      %v2748 = vld [vmem:[%s2739 + $0x1] sm:$0xff]
      %v2749 = vld [vmem:[%s2739 + $0x11] sm:$0xff]
      %v2750 = vld [vmem:[%s2739 + $0x21] sm:$0xff]
      %v2751 = vld [vmem:[%s2739 + $0x31] sm:$0xff]
      %v2752 = vld [vmem:[%s2739 + $0x41] sm:$0xff]
      %v2753 = vld [vmem:[%s2739 + $0x51] sm:$0xff]
      %v2754 = vld [vmem:[%s2739 + $0x61] sm:$0xff]
      %v2755 = vld [vmem:[%s2739 + $0x71] sm:$0xff]
      %v2756 = vld [vmem:[%s2739 + $0x2] sm:$0xff]
      %v2757 = vld [vmem:[%s2739 + $0x12] sm:$0xff]
      %v2758 = vld [vmem:[%s2739 + $0x22] sm:$0xff]
      %v2759 = vld [vmem:[%s2739 + $0x32] sm:$0xff]
      %v2760 = vld [vmem:[%s2739 + $0x42] sm:$0xff]
      %v2761 = vld [vmem:[%s2739 + $0x52] sm:$0xff]
      %v2762 = vld [vmem:[%s2739 + $0x62] sm:$0xff]
      %v2763 = vld [vmem:[%s2739 + $0x72] sm:$0xff]
      %2772 = vrot.lane.b32.xlu0 %v2699, 8
      %v2773 = vpop.permute.xlu0 %2772
      %2774 = vrot.lane.b32.xlu0 %v2700, 8
      %v2775 = vpop.permute.xlu0 %2774
      %2776 = vrot.lane.b32.xlu0 %v2701, 8
      %v2777 = vpop.permute.xlu0 %2776
      %2778 = vrot.lane.b32.xlu0 %v2702, 8
      %v2779 = vpop.permute.xlu0 %2778
      %2780 = vrot.lane.b32.xlu0 %v2703, 8
      %v2781 = vpop.permute.xlu0 %2780
      %2782 = vrot.lane.b32.xlu0 %v2704, 8
      %v2783 = vpop.permute.xlu0 %2782
      %2784 = vrot.lane.b32.xlu0 %v2705, 8
      %v2785 = vpop.permute.xlu0 %2784
      %2786 = vrot.lane.b32.xlu0 %v2706, 8
      %v2787 = vpop.permute.xlu0 %2786
      %2804 = vrot.lane.b32.xlu0 %v2707, 16
      %v2805 = vpop.permute.xlu0 %2804
      %2806 = vrot.lane.b32.xlu0 %v2708, 16
      %v2807 = vpop.permute.xlu0 %2806
      %2808 = vrot.lane.b32.xlu0 %v2709, 16
      %v2809 = vpop.permute.xlu0 %2808
      %2810 = vrot.lane.b32.xlu0 %v2710, 16
      %v2811 = vpop.permute.xlu0 %2810
      %2812 = vrot.lane.b32.xlu0 %v2711, 16
      %v2813 = vpop.permute.xlu0 %2812
      %2814 = vrot.lane.b32.xlu0 %v2712, 16
      %v2815 = vpop.permute.xlu0 %2814
      %2816 = vrot.lane.b32.xlu0 %v2713, 16
      %v2817 = vpop.permute.xlu0 %2816
      %2818 = vrot.lane.b32.xlu0 %v2714, 16
      %v2819 = vpop.permute.xlu0 %2818
      %2836 = vrot.lane.b32.xlu0 %v2715, 24
      %v2837 = vpop.permute.xlu0 %2836
      %2838 = vrot.lane.b32.xlu0 %v2716, 24
      %v2839 = vpop.permute.xlu0 %2838
      %2840 = vrot.lane.b32.xlu0 %v2717, 24
      %v2841 = vpop.permute.xlu0 %2840
      %2842 = vrot.lane.b32.xlu0 %v2718, 24
      %v2843 = vpop.permute.xlu0 %2842
      %2844 = vrot.lane.b32.xlu0 %v2719, 24
      %v2845 = vpop.permute.xlu0 %2844
      %2846 = vrot.lane.b32.xlu0 %v2720, 24
      %v2847 = vpop.permute.xlu0 %2846
      %2848 = vrot.lane.b32.xlu0 %v2721, 24
      %v2849 = vpop.permute.xlu0 %2848
      %2850 = vrot.lane.b32.xlu0 %v2722, 24
      %v2851 = vpop.permute.xlu0 %2850
      %2868 = vrot.lane.b32.xlu0 %v2723, 32
      %v2869 = vpop.permute.xlu0 %2868
      %2870 = vrot.lane.b32.xlu0 %v2724, 32
      %v2871 = vpop.permute.xlu0 %2870
      %2872 = vrot.lane.b32.xlu0 %v2725, 32
      %v2873 = vpop.permute.xlu0 %2872
      %2874 = vrot.lane.b32.xlu0 %v2726, 32
      %v2875 = vpop.permute.xlu0 %2874
      %2876 = vrot.lane.b32.xlu0 %v2727, 32
      %v2877 = vpop.permute.xlu0 %2876
      %2878 = vrot.lane.b32.xlu0 %v2728, 32
      %v2879 = vpop.permute.xlu0 %2878
      %2880 = vrot.lane.b32.xlu0 %v2729, 32
      %v2881 = vpop.permute.xlu0 %2880
      %2882 = vrot.lane.b32.xlu0 %v2730, 32
      %v2883 = vpop.permute.xlu0 %2882
      %2900 = vrot.lane.b32.xlu0 %v2731, 40
      %v2901 = vpop.permute.xlu0 %2900
      %2902 = vrot.lane.b32.xlu0 %v2732, 40
      %v2903 = vpop.permute.xlu0 %2902
      %2904 = vrot.lane.b32.xlu0 %v2733, 40
      %v2905 = vpop.permute.xlu0 %2904
      %2906 = vrot.lane.b32.xlu0 %v2734, 40
      %v2907 = vpop.permute.xlu0 %2906
      %2908 = vrot.lane.b32.xlu0 %v2735, 40
      %v2909 = vpop.permute.xlu0 %2908
      %2910 = vrot.lane.b32.xlu0 %v2736, 40
      %v2911 = vpop.permute.xlu0 %2910
      %2912 = vrot.lane.b32.xlu0 %v2737, 40
      %v2913 = vpop.permute.xlu0 %2912
      %2914 = vrot.lane.b32.xlu0 %v2738, 40
      %v2915 = vpop.permute.xlu0 %2914
      %2932 = vrot.lane.b32.xlu0 %v2740, 48
      %v2933 = vpop.permute.xlu0 %2932
      %2934 = vrot.lane.b32.xlu0 %v2741, 48
      %v2935 = vpop.permute.xlu0 %2934
      %2936 = vrot.lane.b32.xlu0 %v2742, 48
      %v2937 = vpop.permute.xlu0 %2936
      %2938 = vrot.lane.b32.xlu0 %v2743, 48
      %v2939 = vpop.permute.xlu0 %2938
      %2940 = vrot.lane.b32.xlu0 %v2744, 48
      %v2941 = vpop.permute.xlu0 %2940
      %2942 = vrot.lane.b32.xlu0 %v2745, 48
      %v2943 = vpop.permute.xlu0 %2942
      %2944 = vrot.lane.b32.xlu0 %v2746, 48
      %v2945 = vpop.permute.xlu0 %2944
      %2946 = vrot.lane.b32.xlu0 %v2747, 48
      %v2947 = vpop.permute.xlu0 %2946
      %2964 = vrot.lane.b32.xlu0 %v2748, 56
      %v2965 = vpop.permute.xlu0 %2964
      %2966 = vrot.lane.b32.xlu0 %v2749, 56
      %v2967 = vpop.permute.xlu0 %2966
      %2968 = vrot.lane.b32.xlu0 %v2750, 56
      %v2969 = vpop.permute.xlu0 %2968
      %2970 = vrot.lane.b32.xlu0 %v2751, 56
      %v2971 = vpop.permute.xlu0 %2970
      %2972 = vrot.lane.b32.xlu0 %v2752, 56
      %v2973 = vpop.permute.xlu0 %2972
      %2974 = vrot.lane.b32.xlu0 %v2753, 56
      %v2975 = vpop.permute.xlu0 %2974
      %2976 = vrot.lane.b32.xlu0 %v2754, 56
      %v2977 = vpop.permute.xlu0 %2976
      %2978 = vrot.lane.b32.xlu0 %v2755, 56
      %v2979 = vpop.permute.xlu0 %2978
      %2996 = vrot.lane.b32.xlu0 %v2756, 64
      %v2997 = vpop.permute.xlu0 %2996
      %2998 = vrot.lane.b32.xlu0 %v2757, 64
      %v2999 = vpop.permute.xlu0 %2998
      %3000 = vrot.lane.b32.xlu0 %v2758, 64
      %v3001 = vpop.permute.xlu0 %3000
      %3002 = vrot.lane.b32.xlu0 %v2759, 64
      %v3003 = vpop.permute.xlu0 %3002
      %3004 = vrot.lane.b32.xlu0 %v2760, 64
      %v3005 = vpop.permute.xlu0 %3004
      %3006 = vrot.lane.b32.xlu0 %v2761, 64
      %v3007 = vpop.permute.xlu0 %3006
      %3008 = vrot.lane.b32.xlu0 %v2762, 64
      %v3009 = vpop.permute.xlu0 %3008
      %3010 = vrot.lane.b32.xlu0 %v2763, 64
      %v3011 = vpop.permute.xlu0 %3010
      %v3020 = vsel %vm477, %v2691, %v2773
      %v3021 = vsel %vm477, %v2692, %v2775
      %v3022 = vsel %vm477, %v2693, %v2777
      %v3023 = vsel %vm477, %v2694, %v2779
      %v3024 = vsel %vm477, %v2695, %v2781
      %v3025 = vsel %vm477, %v2696, %v2783
      %v3026 = vsel %vm477, %v2697, %v2785
      %v3027 = vsel %vm477, %v2698, %v2787
      %v3028 = vsel %vm849, %v3020, %v2805
      %v3029 = vsel %vm849, %v3021, %v2807
      %v3030 = vsel %vm849, %v3022, %v2809
      %v3031 = vsel %vm849, %v3023, %v2811
      %v3032 = vsel %vm849, %v3024, %v2813
      %v3033 = vsel %vm849, %v3025, %v2815
      %v3034 = vsel %vm849, %v3026, %v2817
      %v3035 = vsel %vm849, %v3027, %v2819
      %v3036 = vsel %vm858, %v3028, %v2837
      %v3037 = vsel %vm858, %v3029, %v2839
      %v3038 = vsel %vm858, %v3030, %v2841
      %v3039 = vsel %vm858, %v3031, %v2843
      %v3040 = vsel %vm858, %v3032, %v2845
      %v3041 = vsel %vm858, %v3033, %v2847
      %v3042 = vsel %vm858, %v3034, %v2849
      %v3043 = vsel %vm858, %v3035, %v2851
      %v3044 = vsel %vm867, %v3036, %v2869
      %v3045 = vsel %vm867, %v3037, %v2871
      %v3046 = vsel %vm867, %v3038, %v2873
      %v3047 = vsel %vm867, %v3039, %v2875
      %v3048 = vsel %vm867, %v3040, %v2877
      %v3049 = vsel %vm867, %v3041, %v2879
      %v3050 = vsel %vm867, %v3042, %v2881
      %v3051 = vsel %vm867, %v3043, %v2883
      %v3052 = vsel %vm876, %v3044, %v2901
      %v3053 = vsel %vm876, %v3045, %v2903
      %v3054 = vsel %vm876, %v3046, %v2905
      %v3055 = vsel %vm876, %v3047, %v2907
      %v3056 = vsel %vm876, %v3048, %v2909
      %v3057 = vsel %vm876, %v3049, %v2911
      %v3058 = vsel %vm876, %v3050, %v2913
      %v3059 = vsel %vm876, %v3051, %v2915
      %v3060 = vsel %vm885, %v3052, %v2933
      %v3061 = vsel %vm885, %v3053, %v2935
      %v3062 = vsel %vm885, %v3054, %v2937
      %v3063 = vsel %vm885, %v3055, %v2939
      %v3064 = vsel %vm885, %v3056, %v2941
      %v3065 = vsel %vm885, %v3057, %v2943
      %v3066 = vsel %vm885, %v3058, %v2945
      %v3067 = vsel %vm885, %v3059, %v2947
      %v3068 = vsel %vm894, %v3060, %v2965
      %v3069 = vsel %vm894, %v3061, %v2967
      %v3070 = vsel %vm894, %v3062, %v2969
      %v3071 = vsel %vm894, %v3063, %v2971
      %v3072 = vsel %vm894, %v3064, %v2973
      %v3073 = vsel %vm894, %v3065, %v2975
      %v3074 = vsel %vm894, %v3066, %v2977
      %v3075 = vsel %vm894, %v3067, %v2979
      %v3076 = vsel %vm903, %v3068, %v2997
      %v3077 = vsel %vm903, %v3069, %v2999
      %v3078 = vsel %vm903, %v3070, %v3001
      %v3079 = vsel %vm903, %v3071, %v3003
      %v3080 = vsel %vm903, %v3072, %v3005
      %v3081 = vsel %vm903, %v3073, %v3007
      %v3082 = vsel %vm903, %v3074, %v3009
      %v3083 = vsel %vm903, %v3075, %v3011
      %v3084 = vpack.c.bf16 %v3077, %v3076
      %v3085 = vpack.c.bf16 %v3079, %v3078
      %v3086 = vpack.c.bf16 %v3081, %v3080
      %v3087 = vpack.c.bf16 %v3083, %v3082
      %v3088 = vld [vmem:[%s10] sm:$0xf]
      %v3089 = vld [vmem:[%s10 + $0x4] sm:$0xf]
      %v3090 = vld [vmem:[%s10 + $0x8] sm:$0xf]
      %v3091 = vld [vmem:[%s10 + $0xc] sm:$0xf]
      %v3092 = vld [vmem:[%s10 + $0x10] sm:$0xf]
      %v3093 = vld [vmem:[%s10 + $0x14] sm:$0xf]
      %v3094 = vld [vmem:[%s10 + $0x18] sm:$0xf]
      %v3095 = vld [vmem:[%s10 + $0x1c] sm:$0xf]
      %v3096 = vld [vmem:[%s10 + $0x20] sm:$0xf]
      %v3106 = vunpack.c.l.b16 %v3088
      %v3107 = vunpack.c.l.b16 %v3089
      %v3108 = vunpack.c.l.b16 %v3090
      %v3109 = vunpack.c.l.b16 %v3091
      %v3110 = vunpack.c.l.b16 %v3092
      %v3111 = vunpack.c.l.b16 %v3093
      %v3112 = vunpack.c.l.b16 %v3094
      %v3113 = vunpack.c.l.b16 %v3095
      %v3114 = vunpack.c.l.b16 %v3096
      %v3115 = vpack.c.b16 %v3107, %v3106
      %v3116 = vpack.c.b16 %v3109, %v3108
      %v3117 = vpack.c.b16 %v3111, %v3110
      %v3118 = vpack.c.b16 %v3113, %v3112
      %v3119 = vpack.c.b16 %v3114, %v3114
      %v3125 = vsel %vm952, %v3084, 0
      %v3128 = vsel %vm952, %v3085, 0
      %v3131 = vsel %vm952, %v3086, 0
      %v3134 = vsel %vm952, %v3087, 0
      %v3137 = vsel %vm965, %v3119, 0
      %3139 = vmatprep.subr.bf16.mxu0 0
      %3140 = vmatpush1.bf16.msra.mxu0 0
      %3141 = vmatprep.subr.bf16.mxu0 0
      %3142 = vmatpush1.bf16.msra.mxu0 0
      %3143 = vmatprep.subr.bf16.mxu0 0
      %3144 = vmatpush1.bf16.msra.mxu0 0
      %3145 = vmatprep.subr.bf16.mxu0 0
      %3146 = vmatpush1.bf16.msra.mxu0 %v3137
      %3147 = vmatprep.subr.bf16.mxu0 0
      %3148 = vmatpush1.bf16.msra.mxu0 %v3118
      %3149 = vmatprep.subr.bf16.mxu0 0
      %3150 = vmatpush1.bf16.msra.mxu0 %v3117
      %3151 = vmatprep.subr.bf16.mxu0 0
      %3152 = vmatpush1.bf16.msra.mxu0 %v3116
      %3153 = vmatprep.subr.bf16.mxu0 0
      %3154 = vmatpush1.bf16.msra.mxu0 %v3115
      %3155 = vmatprep.subr.bf16.mxu0 0
      %3156 = vmatpush2.bf16.msra.mxu0 0
      %3157 = vmatprep.subr.bf16.mxu0 0
      %3158 = vmatpush2.bf16.msra.mxu0 0
      %3159 = vmatprep.subr.bf16.mxu0 0
      %3160 = vmatpush2.bf16.msra.mxu0 0
      %3161 = vmatprep.subr.bf16.mxu0 0
      %3162 = vmatpush2.bf16.msra.mxu0 0
      %3163 = vmatprep.subr.bf16.mxu0 0
      %3164 = vmatpush2.bf16.msra.mxu0 0
      %3165 = vmatprep.subr.bf16.mxu0 0
      %3166 = vmatpush2.bf16.msra.mxu0 0
      %3167 = vmatprep.subr.bf16.mxu0 0
      %3168 = vmatpush2.bf16.msra.mxu0 0
      %3169 = vmatprep.subr.bf16.mxu0 0
      %3170 = vmatpush2.bf16.msra.mxu0 0
      %3171 = vmatprep.mubr.bf16.mxu0 0
      %3172 = vmatmul.mubr.bf16.gmra.mxu0 %v3125
      %v3173 = vpop.f32.mrf.mxu0
      %v3174 = vadd.f32 0.0, %v3173
      %v3175 = vpop.f32.mrf.mxu0
      %v3176 = vpop.f32.mrf.mxu0
      %v3177 = vadd.f32 0.0, %v3176
      %v3178 = vpop.f32.mrf.mxu0
      %3179 = vmatprep.mubr.bf16.mxu0 0
      %3180 = vmatmul.mubr.bf16.gmra.mxu0 %v3128
      %v3181 = vpop.f32.mrf.mxu0
      %v3182 = vadd.f32 0.0, %v3181
      %v3183 = vpop.f32.mrf.mxu0
      %v3184 = vpop.f32.mrf.mxu0
      %v3185 = vadd.f32 0.0, %v3184
      %v3186 = vpop.f32.mrf.mxu0
      %3187 = vmatprep.mubr.bf16.mxu0 0
      %3188 = vmatmul.mubr.bf16.gmra.mxu0 %v3131
      %v3189 = vpop.f32.mrf.mxu0
      %v3190 = vadd.f32 0.0, %v3189
      %v3191 = vpop.f32.mrf.mxu0
      %v3192 = vpop.f32.mrf.mxu0
      %v3193 = vadd.f32 0.0, %v3192
      %v3194 = vpop.f32.mrf.mxu0
      %3195 = vmatprep.mubr.bf16.mxu0 0
      %3196 = vmatmul.mubr.bf16.gmra.mxu0 %v3134
      %v3197 = vpop.f32.mrf.mxu0
      %v3198 = vadd.f32 0.0, %v3197
      %v3199 = vpop.f32.mrf.mxu0
      %v3200 = vpop.f32.mrf.mxu0
      %v3201 = vadd.f32 0.0, %v3200
      %v3202 = vpop.f32.mrf.mxu0
      %3203 = vdwg.mxu0
      %v3204 = vld [vmem:[%s11] sm:$0x1]
      %v3205 = vlaneseq
      %v3206 = vshrl.u32 %v3205, 7
      %v3207 = vsub.s32 0, %v3206
      %v3208 = vrot.slane %v3204, %v3207
      %v3209 = vmul.f32 %v3174, %v3208
      %v3210 = vmul.f32 %v3177, %v3208
      %v3211 = vmul.f32 %v3182, %v3208
      %v3212 = vmul.f32 %v3185, %v3208
      %v3213 = vmul.f32 %v3190, %v3208
      %v3214 = vmul.f32 %v3193, %v3208
      %v3215 = vmul.f32 %v3198, %v3208
      %v3216 = vmul.f32 %v3201, %v3208
      %v3217 = vld [vmem:[%s11 + $0x1] sm:$0x1]
      %v3218 = vlaneseq
      %v3219 = vshrl.u32 %v3218, 7
      %v3220 = vsub.s32 0, %v3219
      %v3221 = vrot.slane %v3217, %v3220
      %v3222 = vadd.f32 %v3209, %v3221
      %v3223 = vadd.f32 %v3210, %v3221
      %v3224 = vadd.f32 %v3211, %v3221
      %v3225 = vadd.f32 %v3212, %v3221
      %v3226 = vadd.f32 %v3213, %v3221
      %v3227 = vadd.f32 %v3214, %v3221
      %v3228 = vadd.f32 %v3215, %v3221
      %v3229 = vadd.f32 %v3216, %v3221
      %v3230 = vmax.f32 %v3222, 0.0
      %v3231 = vmax.f32 %v3223, 0.0
      %v3232 = vmax.f32 %v3224, 0.0
      %v3233 = vmax.f32 %v3225, 0.0
      %v3234 = vmax.f32 %v3226, 0.0
      %v3235 = vmax.f32 %v3227, 0.0
      %v3236 = vmax.f32 %v3228, 0.0
      %v3237 = vmax.f32 %v3229, 0.0
      %v3238 = vpack.c.bf16 %v3231, %v3230
      %v3239 = vpack.c.bf16 %v3233, %v3232
      %v3240 = vpack.c.bf16 %v3235, %v3234
      %v3241 = vpack.c.bf16 %v3237, %v3236
      %v3242 = vld [vmem:[%s12] sm:$0xf]
      %v3244 = vsel %vm477, %v3238, 0
      %v3247 = vsel %vm477, %v3239, 0
      %v3250 = vsel %vm477, %v3240, 0
      %v3253 = vsel %vm477, %v3241, 0
      %v3256 = vsel %vm965, %v3242, 0
      %3258 = vmatprep.subr.bf16.mxu0 0
      %3259 = vmatpush1.bf16.msra.mxu0 0
      %3260 = vmatprep.subr.bf16.mxu0 0
      %3261 = vmatpush1.bf16.msra.mxu0 0
      %3262 = vmatprep.subr.bf16.mxu0 0
      %3263 = vmatpush1.bf16.msra.mxu0 0
      %3264 = vmatprep.subr.bf16.mxu0 0
      %3265 = vmatpush1.bf16.msra.mxu0 0
      %3266 = vmatprep.subr.bf16.mxu0 0
      %3267 = vmatpush1.bf16.msra.mxu0 0
      %3268 = vmatprep.subr.bf16.mxu0 0
      %3269 = vmatpush1.bf16.msra.mxu0 0
      %3270 = vmatprep.subr.bf16.mxu0 0
      %3271 = vmatpush1.bf16.msra.mxu0 0
      %3272 = vmatprep.subr.bf16.mxu0 0
      %3273 = vmatpush1.bf16.msra.mxu0 %v3256
      %3274 = vmatprep.subr.bf16.mxu0 0
      %3275 = vmatpush2.bf16.msra.mxu0 0
      %3276 = vmatprep.subr.bf16.mxu0 0
      %3277 = vmatpush2.bf16.msra.mxu0 0
      %3278 = vmatprep.subr.bf16.mxu0 0
      %3279 = vmatpush2.bf16.msra.mxu0 0
      %3280 = vmatprep.subr.bf16.mxu0 0
      %3281 = vmatpush2.bf16.msra.mxu0 0
      %3282 = vmatprep.subr.bf16.mxu0 0
      %3283 = vmatpush2.bf16.msra.mxu0 0
      %3284 = vmatprep.subr.bf16.mxu0 0
      %3285 = vmatpush2.bf16.msra.mxu0 0
      %3286 = vmatprep.subr.bf16.mxu0 0
      %3287 = vmatpush2.bf16.msra.mxu0 0
      %3288 = vmatprep.subr.bf16.mxu0 0
      %3289 = vmatpush2.bf16.msra.mxu0 0
      %3290 = vmatprep.mubr.bf16.mxu0 0
      %3291 = vmatmul.mubr.bf16.gmra.mxu0 %v3244
      %v3292 = vpop.f32.mrf.mxu0
      %v3293 = vadd.f32 %v2654, %v3292
      %v3294 = vpop.f32.mrf.mxu0
      %v3295 = vpop.f32.mrf.mxu0
      %v3296 = vadd.f32 %v2655, %v3295
      %v3297 = vpop.f32.mrf.mxu0
      %3298 = vmatprep.mubr.bf16.mxu0 0
      %3299 = vmatmul.mubr.bf16.gmra.mxu0 %v3247
      %v3300 = vpop.f32.mrf.mxu0
      %v3301 = vadd.f32 %v2656, %v3300
      %v3302 = vpop.f32.mrf.mxu0
      %v3303 = vpop.f32.mrf.mxu0
      %v3304 = vadd.f32 %v2657, %v3303
      %v3305 = vpop.f32.mrf.mxu0
      %3306 = vmatprep.mubr.bf16.mxu0 0
      %3307 = vmatmul.mubr.bf16.gmra.mxu0 %v3250
      %v3308 = vpop.f32.mrf.mxu0
      %v3309 = vadd.f32 %v2658, %v3308
      %v3310 = vpop.f32.mrf.mxu0
      %v3311 = vpop.f32.mrf.mxu0
      %v3312 = vadd.f32 %v2659, %v3311
      %v3313 = vpop.f32.mrf.mxu0
      %3314 = vmatprep.mubr.bf16.mxu0 0
      %3315 = vmatmul.mubr.bf16.gmra.mxu0 %v3253
      %v3316 = vpop.f32.mrf.mxu0
      %v3317 = vadd.f32 %v2660, %v3316
      %v3318 = vpop.f32.mrf.mxu0
      %v3319 = vpop.f32.mrf.mxu0
      %v3320 = vadd.f32 %v2661, %v3319
      %v3321 = vpop.f32.mrf.mxu0
      %3322 = vdwg.mxu0
      %v3323 = vld [vmem:[%s13] sm:$0x1]
      %v3324 = vlaneseq
      %v3325 = vshrl.u32 %v3324, 7
      %v3326 = vsub.s32 0, %v3325
      %v3327 = vrot.slane %v3323, %v3326
      %v3328 = vmul.f32 %v3293, %v3327
      %v3329 = vmul.f32 %v3296, %v3327
      %v3330 = vmul.f32 %v3301, %v3327
      %v3331 = vmul.f32 %v3304, %v3327
      %v3332 = vmul.f32 %v3309, %v3327
      %v3333 = vmul.f32 %v3312, %v3327
      %v3334 = vmul.f32 %v3317, %v3327
      %v3335 = vmul.f32 %v3320, %v3327
      %v3336 = vld [vmem:[%s13 + $0x1] sm:$0x1]
      %v3337 = vlaneseq
      %v3338 = vshrl.u32 %v3337, 7
      %v3339 = vsub.s32 0, %v3338
      %v3340 = vrot.slane %v3336, %v3339
      %v3341 = vadd.f32 %v3328, %v3340
      %v3342 = vadd.f32 %v3329, %v3340
      %v3343 = vadd.f32 %v3330, %v3340
      %v3344 = vadd.f32 %v3331, %v3340
      %v3345 = vadd.f32 %v3332, %v3340
      %v3346 = vadd.f32 %v3333, %v3340
      %v3347 = vadd.f32 %v3334, %v3340
      %v3348 = vadd.f32 %v3335, %v3340
      %v3349 = vtanh.pop %v3341
      %v3350 = vtanh.pop %v3342
      %v3351 = vtanh.pop %v3343
      %v3352 = vtanh.pop %v3344
      %v3353 = vtanh.pop %v3345
      %v3354 = vtanh.pop %v3346
      %v3355 = vtanh.pop %v3347
      %v3356 = vtanh.pop %v3348
      %3357 = vst.msk [vmem:[%s467] sm:$0xff] %vm477, %v3349
      %3358 = vst.msk [vmem:[%s467 + $0x8] sm:$0xff] %vm477, %v3350
      %3359 = vst.msk [vmem:[%s467 + $0x10] sm:$0xff] %vm477, %v3351
      %3360 = vst.msk [vmem:[%s467 + $0x18] sm:$0xff] %vm477, %v3352
      %3361 = vst.msk [vmem:[%s467 + $0x20] sm:$0xff] %vm477, %v3353
      %3362 = vst.msk [vmem:[%s467 + $0x28] sm:$0xff] %vm477, %v3354
      %3363 = vst.msk [vmem:[%s467 + $0x30] sm:$0xff] %vm477, %v3355
      %3364 = vst.msk [vmem:[%s467 + $0x38] sm:$0xff] %vm477, %v3356
      %p3365 = scmp.lt.s32.totalorder %s25, 1
      %s3366 = scalar_select %p3365, %s25, 1
      %s3367 = smul.addr %s3366, 8
      %s3368 = smul.addr %s3367, 8
      %s3369 = scalar_lea.vmem %s14, %s3368
      // Predicated region
      $region77: #{attention_block_forward.3} parent=75 // pred_check
        %p3370 = pneg %p342
      $region78: #{attention_block_forward.3} parent=75 // pred_check_branch
        %3372 = sbr.rel (%p3370) target = $region80
      $region79: #{attention_block_forward.3} parent=75 // pred_region
        _
      $region80: #{attention_block_forward.3} parent=75 // pred_fallthru
        _
    $region76: #{attention_block_forward.3} parent=5 // pred_fallthru
      _
    %p3373 = scmp.le.s32.totalorder 2, %s20
    // Predicated region
    $region81: #{attention_block_forward.3} parent=5 // pred_check
      %p3374 = pneg %p3373
    $region82: #{attention_block_forward.3} parent=5 // pred_check_branch
      %3376 = sbr.rel (%p3374) target = $region84
    $region83: #{attention_block_forward.3} parent=5 // pred_region
      %s3377 = ssub.s32 %s20, 2
      // Predicated region
      $region85: #{attention_block_forward.3} parent=83 // pred_check
        %p3378 = pneg %p348
      $region86: #{attention_block_forward.3} parent=83 // pred_check_branch
        %3380 = sbr.rel (%p3378) target = $region88
      $region87: #{attention_block_forward.3} parent=83 // pred_region
        %p3381 = scmp.lt.s32.totalorder %s26, 1
        %s3382 = scalar_select %p3381, %s26, 1
        %s3383 = smul.addr %s3382, 8
        %s3384 = smul.addr %s3383, 8
        %s3385 = scalar_lea.vmem %s14, %s3384
      $region88: #{attention_block_forward.3} parent=83 // pred_fallthru
        _
    $region84: #{attention_block_forward.3} parent=5 // pred_fallthru
      _
  $region6: #{attention_block_forward.3} parent=0 // loop_footer
    %s24 = sadd.s32 1, %s20
  $region7: #{attention_block_forward.3} parent=0 // loop_footer_branch
    %19 = sbr.rel target = $region3
  $region8: #{attention_block_forward.3} parent=0 // loop_exit
    _

// kernel: attention_block_forward.2
$region0: #{attention_block_forward.2}
  #allocation0 [shape = 'u32[]', space=smem, size = 0x4, offset = 0x4, fixed_abs, tag = 'smem constant byte address 0x4 - core index']
  #allocation1 [shape = 'u32[144,128]{1,0:T(1,128)}', space=vmem, size = 0x12000, scoped, tag = 'internal scratch']
  #allocation2 [shape = 'f32[12,12,4]{2,1,0:T(8,128)}', space=vmem, size = 0x18000, scoped, tag = 'scratch operand']
  #allocation3 [shape = 'f32[12,12,4]{2,1,0:T(8,128)}', space=vmem, size = 0x18000, scoped, tag = 'scratch operand']
  #allocation4 [shape = 'f32[10,10,8]{2,1,0:T(8,128)}', space=vmem, size = 0x14000, scoped, tag = 'scratch operand']
  #allocation5 [shape = 'f32[10,10,8]{2,1,0:T(8,128)}', space=vmem, size = 0x14000, scoped, tag = 'scratch operand']
  %s0 = inlined_call_operand.vmem [shape: f32[2,8,8,4], index: 0, kind: input, shape index: {}]
  %s1 = inlined_call_operand.vmem [shape: f32[2,8,8,4], index: 1, kind: input, shape index: {}]
  %s2 = inlined_call_operand.vmem [shape: bf16[36,8], index: 2, kind: input, shape index: {}]
  %s3 = inlined_call_operand.vmem [shape: f32[2,8], index: 3, kind: input, shape index: {}]
  %s4 = inlined_call_operand.vmem [shape: bf16[36,16], index: 4, kind: input, shape index: {}]
  %s5 = inlined_call_operand.vmem [shape: f32[2,16], index: 5, kind: input, shape index: {}]
  %s6 = inlined_call_operand.vmem [shape: bf16[36,8], index: 6, kind: input, shape index: {}]
  %s7 = inlined_call_operand.vmem [shape: f32[2,8], index: 7, kind: input, shape index: {}]
  %s8 = inlined_call_operand.vmem [shape: bf16[72,8], index: 8, kind: input, shape index: {}]
  %s9 = inlined_call_operand.vmem [shape: f32[2,8], index: 9, kind: input, shape index: {}]
  %s10 = inlined_call_operand.vmem [shape: bf16[8,8], index: 10, kind: input, shape index: {}]
  %s11 = inlined_call_operand.vmem [shape: bf16[8,8], index: 11, kind: input, shape index: {}]
  %s12 = inlined_call_operand.vmem [shape: f32[2,8], index: 12, kind: input, shape index: {}]
  %s13 = inlined_call_operand.vmem [shape: bf16[72,8], index: 13, kind: input, shape index: {}]
  %s14 = inlined_call_operand.vmem [shape: f32[2,8], index: 14, kind: input, shape index: {}]
  %s15 = inlined_call_operand.vmem [shape: bf16[8,8], index: 15, kind: input, shape index: {}]
  %s16 = inlined_call_operand.vmem [shape: f32[2,8], index: 16, kind: input, shape index: {}]
  %s17 = inlined_call_operand.vmem [shape: f32[2,64,8], index: 17, kind: output, shape index: {}]
  %s18 = sld [smem:[#allocation0]]
  $region101: #{attention_block_forward.2} parent=0
    _
  %s20 = ssub.s32 1, %s18
  %s21 = scalar_select 0, %s20, %s18
  loop: start=0, step=1, limit=4
  $region2: #{attention_block_forward.2} parent=0 // loop_pre_header
    _
  $region3: #{attention_block_forward.2} parent=0 // loop_header
    %s23 = sphi 0, %s27
    %p24 = scmp.ge.s32.totalorder %s23, 4
    %s33 = sphi 0, %s35
    %s36 = sphi 0, %s33
    %s37 = sphi 0, %s36
    %s53 = sphi 0, %s37
    %s59 = sphi 0, %s61
    %s62 = sphi 0, %s59
    %s63 = sphi 0, %s62
    %s79 = sphi 0, %s63
    %s83 = sphi 0, %s83
    %s85 = sphi 0, %s83
    %s86 = sphi 0, %s85
    %s100 = sphi 0, %s86
    %s104 = sphi 0, %s104
    %s106 = sphi 0, %s104
    %s107 = sphi 0, %s106
    %s121 = sphi 0, %s107
    %s125 = sphi 0, %s125
    %s127 = sphi 0, %s125
    %s128 = sphi 0, %s127
    %s142 = sphi 0, %s128
    %s146 = sphi 0, %s146
    %s148 = sphi 0, %s146
    %s149 = sphi 0, %s148
    %s163 = sphi 0, %s149
    %s167 = sphi 0, %s167
    %s169 = sphi 0, %s167
    %s170 = sphi 0, %s169
    %s184 = sphi 0, %s170
    %s188 = sphi 0, %s188
    %s190 = sphi 0, %s188
    %s191 = sphi 0, %s190
    %s205 = sphi 0, %s191
    %s209 = sphi 0, %s209
    %s211 = sphi 0, %s209
    %s212 = sphi 0, %s211
    %s226 = sphi 0, %s212
    %s230 = sphi 0, %s230
    %s232 = sphi 0, %s230
    %s233 = sphi 0, %s232
    %s247 = sphi 0, %s233
    %s251 = sphi 0, %s251
    %s253 = sphi 0, %s251
    %s254 = sphi 0, %s253
    %s268 = sphi 0, %s254
    %s272 = sphi 0, %s272
    %s274 = sphi 0, %s272
    %s275 = sphi 0, %s274
    %s289 = sphi 0, %s275
    %s293 = sphi 0, %s293
    %s295 = sphi 0, %s293
    %s296 = sphi 0, %s295
    %s310 = sphi 0, %s296
    %s314 = sphi 0, %s314
    %s316 = sphi 0, %s314
    %s317 = sphi 0, %s316
    %s331 = sphi 0, %s317
    %s335 = sphi 0, %s335
    %s337 = sphi 0, %s335
    %s338 = sphi 0, %s337
    %s352 = sphi 0, %s338
    %s356 = sphi 0, %s356
    %s358 = sphi 0, %s356
    %s359 = sphi 0, %s358
    %s373 = sphi 0, %s359
    %s377 = sphi 0, %s377
    %s379 = sphi 0, %s377
    %s380 = sphi 0, %s379
    %s394 = sphi 0, %s380
    %s400 = sphi 0, %s402
    %s403 = sphi 0, %s400
    %s404 = sphi 0, %s403
    %s420 = sphi 0, %s404
  $region4: #{attention_block_forward.2} parent=0 // loop_header_branch
    %26 = sbr.rel (%p24) target = $region8
  $region5: #{attention_block_forward.2} parent=0 // loop_body
    %s28 = ssub.s32 %s23, 1
    %s29 = ssub.s32 %s23, 2
    %s30 = sadd.s32 %s23, 1
    %s31 = ssub.s32 %s23, %s30
    %p32 = scmp.eq.s32.totalorder %s31, 0
    %s34 = sadd.s32 %s33, 1
    %s35 = scalar_select %p32, %s33, %s34
    %p38 = pneg %p32
    %p39 = scmp.eq.s32.totalorder %s23, 1
    %p40 = por %p38, %p39
    %p41 = scmp.ne.s32.totalorder %s33, %s36
    %p42 = scmp.eq.s32.totalorder %s23, 0
    %p43 = por %p41, %p42
    %p44 = scmp.ne.s32.totalorder %s33, %s36
    %p45 = scmp.eq.s32.totalorder %s28, 1
    %p46 = por %p44, %p45
    %p47 = scmp.ne.s32.totalorder %s36, %s37
    %p48 = scmp.eq.s32.totalorder %s28, 0
    %p49 = por %p47, %p48
    %p50 = scmp.ne.s32.totalorder %s36, %s37
    %p51 = scmp.eq.s32.totalorder %s29, 1
    %p52 = por %p50, %p51
    %p54 = scmp.ne.s32.totalorder %s37, %s53
    %p55 = scmp.eq.s32.totalorder %s29, 0
    %p56 = por %p54, %p55
    %s57 = ssub.s32 %s23, %s30
    %p58 = scmp.eq.s32.totalorder %s57, 0
    %s60 = sadd.s32 %s59, 1
    %s61 = scalar_select %p58, %s59, %s60
    %p64 = pneg %p58
    %p65 = scmp.eq.s32.totalorder %s23, 1
    %p66 = por %p64, %p65
    %p67 = scmp.ne.s32.totalorder %s59, %s62
    %p68 = scmp.eq.s32.totalorder %s23, 0
    %p69 = por %p67, %p68
    %p70 = scmp.ne.s32.totalorder %s59, %s62
    %p71 = scmp.eq.s32.totalorder %s28, 1
    %p72 = por %p70, %p71
    %p73 = scmp.ne.s32.totalorder %s62, %s63
    %p74 = scmp.eq.s32.totalorder %s28, 0
    %p75 = por %p73, %p74
    %p76 = scmp.ne.s32.totalorder %s62, %s63
    %p77 = scmp.eq.s32.totalorder %s29, 1
    %p78 = por %p76, %p77
    %p80 = scmp.ne.s32.totalorder %s63, %s79
    %p81 = scmp.eq.s32.totalorder %s29, 0
    %p82 = por %p80, %p81
    %s84 = sadd.s32 %s83, 1
    %p87 = scmp.eq.s32.totalorder %s23, 1
    %p88 = scmp.ne.s32.totalorder %s83, %s85
    %p89 = scmp.eq.s32.totalorder %s23, 0
    %p90 = por %p88, %p89
    %p91 = scmp.ne.s32.totalorder %s83, %s85
    %p92 = scmp.eq.s32.totalorder %s28, 1
    %p93 = por %p91, %p92
    %p94 = scmp.ne.s32.totalorder %s85, %s86
    %p95 = scmp.eq.s32.totalorder %s28, 0
    %p96 = por %p94, %p95
    %p97 = scmp.ne.s32.totalorder %s85, %s86
    %p98 = scmp.eq.s32.totalorder %s29, 1
    %p99 = por %p97, %p98
    %p101 = scmp.ne.s32.totalorder %s86, %s100
    %p102 = scmp.eq.s32.totalorder %s29, 0
    %p103 = por %p101, %p102
    %s105 = sadd.s32 %s104, 1
    %p108 = scmp.eq.s32.totalorder %s23, 1
    %p109 = scmp.ne.s32.totalorder %s104, %s106
    %p110 = scmp.eq.s32.totalorder %s23, 0
    %p111 = por %p109, %p110
    %p112 = scmp.ne.s32.totalorder %s104, %s106
    %p113 = scmp.eq.s32.totalorder %s28, 1
    %p114 = por %p112, %p113
    %p115 = scmp.ne.s32.totalorder %s106, %s107
    %p116 = scmp.eq.s32.totalorder %s28, 0
    %p117 = por %p115, %p116
    %p118 = scmp.ne.s32.totalorder %s106, %s107
    %p119 = scmp.eq.s32.totalorder %s29, 1
    %p120 = por %p118, %p119
    %p122 = scmp.ne.s32.totalorder %s107, %s121
    %p123 = scmp.eq.s32.totalorder %s29, 0
    %p124 = por %p122, %p123
    %s126 = sadd.s32 %s125, 1
    %p129 = scmp.eq.s32.totalorder %s23, 1
    %p130 = scmp.ne.s32.totalorder %s125, %s127
    %p131 = scmp.eq.s32.totalorder %s23, 0
    %p132 = por %p130, %p131
    %p133 = scmp.ne.s32.totalorder %s125, %s127
    %p134 = scmp.eq.s32.totalorder %s28, 1
    %p135 = por %p133, %p134
    %p136 = scmp.ne.s32.totalorder %s127, %s128
    %p137 = scmp.eq.s32.totalorder %s28, 0
    %p138 = por %p136, %p137
    %p139 = scmp.ne.s32.totalorder %s127, %s128
    %p140 = scmp.eq.s32.totalorder %s29, 1
    %p141 = por %p139, %p140
    %p143 = scmp.ne.s32.totalorder %s128, %s142
    %p144 = scmp.eq.s32.totalorder %s29, 0
    %p145 = por %p143, %p144
    %s147 = sadd.s32 %s146, 1
    %p150 = scmp.eq.s32.totalorder %s23, 1
    %p151 = scmp.ne.s32.totalorder %s146, %s148
    %p152 = scmp.eq.s32.totalorder %s23, 0
    %p153 = por %p151, %p152
    %p154 = scmp.ne.s32.totalorder %s146, %s148
    %p155 = scmp.eq.s32.totalorder %s28, 1
    %p156 = por %p154, %p155
    %p157 = scmp.ne.s32.totalorder %s148, %s149
    %p158 = scmp.eq.s32.totalorder %s28, 0
    %p159 = por %p157, %p158
    %p160 = scmp.ne.s32.totalorder %s148, %s149
    %p161 = scmp.eq.s32.totalorder %s29, 1
    %p162 = por %p160, %p161
    %p164 = scmp.ne.s32.totalorder %s149, %s163
    %p165 = scmp.eq.s32.totalorder %s29, 0
    %p166 = por %p164, %p165
    %s168 = sadd.s32 %s167, 1
    %p171 = scmp.eq.s32.totalorder %s23, 1
    %p172 = scmp.ne.s32.totalorder %s167, %s169
    %p173 = scmp.eq.s32.totalorder %s23, 0
    %p174 = por %p172, %p173
    %p175 = scmp.ne.s32.totalorder %s167, %s169
    %p176 = scmp.eq.s32.totalorder %s28, 1
    %p177 = por %p175, %p176
    %p178 = scmp.ne.s32.totalorder %s169, %s170
    %p179 = scmp.eq.s32.totalorder %s28, 0
    %p180 = por %p178, %p179
    %p181 = scmp.ne.s32.totalorder %s169, %s170
    %p182 = scmp.eq.s32.totalorder %s29, 1
    %p183 = por %p181, %p182
    %p185 = scmp.ne.s32.totalorder %s170, %s184
    %p186 = scmp.eq.s32.totalorder %s29, 0
    %p187 = por %p185, %p186
    %s189 = sadd.s32 %s188, 1
    %p192 = scmp.eq.s32.totalorder %s23, 1
    %p193 = scmp.ne.s32.totalorder %s188, %s190
    %p194 = scmp.eq.s32.totalorder %s23, 0
    %p195 = por %p193, %p194
    %p196 = scmp.ne.s32.totalorder %s188, %s190
    %p197 = scmp.eq.s32.totalorder %s28, 1
    %p198 = por %p196, %p197
    %p199 = scmp.ne.s32.totalorder %s190, %s191
    %p200 = scmp.eq.s32.totalorder %s28, 0
    %p201 = por %p199, %p200
    %p202 = scmp.ne.s32.totalorder %s190, %s191
    %p203 = scmp.eq.s32.totalorder %s29, 1
    %p204 = por %p202, %p203
    %p206 = scmp.ne.s32.totalorder %s191, %s205
    %p207 = scmp.eq.s32.totalorder %s29, 0
    %p208 = por %p206, %p207
    %s210 = sadd.s32 %s209, 1
    %p213 = scmp.eq.s32.totalorder %s23, 1
    %p214 = scmp.ne.s32.totalorder %s209, %s211
    %p215 = scmp.eq.s32.totalorder %s23, 0
    %p216 = por %p214, %p215
    %p217 = scmp.ne.s32.totalorder %s209, %s211
    %p218 = scmp.eq.s32.totalorder %s28, 1
    %p219 = por %p217, %p218
    %p220 = scmp.ne.s32.totalorder %s211, %s212
    %p221 = scmp.eq.s32.totalorder %s28, 0
    %p222 = por %p220, %p221
    %p223 = scmp.ne.s32.totalorder %s211, %s212
    %p224 = scmp.eq.s32.totalorder %s29, 1
    %p225 = por %p223, %p224
    %p227 = scmp.ne.s32.totalorder %s212, %s226
    %p228 = scmp.eq.s32.totalorder %s29, 0
    %p229 = por %p227, %p228
    %s231 = sadd.s32 %s230, 1
    %p234 = scmp.eq.s32.totalorder %s23, 1
    %p235 = scmp.ne.s32.totalorder %s230, %s232
    %p236 = scmp.eq.s32.totalorder %s23, 0
    %p237 = por %p235, %p236
    %p238 = scmp.ne.s32.totalorder %s230, %s232
    %p239 = scmp.eq.s32.totalorder %s28, 1
    %p240 = por %p238, %p239
    %p241 = scmp.ne.s32.totalorder %s232, %s233
    %p242 = scmp.eq.s32.totalorder %s28, 0
    %p243 = por %p241, %p242
    %p244 = scmp.ne.s32.totalorder %s232, %s233
    %p245 = scmp.eq.s32.totalorder %s29, 1
    %p246 = por %p244, %p245
    %p248 = scmp.ne.s32.totalorder %s233, %s247
    %p249 = scmp.eq.s32.totalorder %s29, 0
    %p250 = por %p248, %p249
    %s252 = sadd.s32 %s251, 1
    %p255 = scmp.eq.s32.totalorder %s23, 1
    %p256 = scmp.ne.s32.totalorder %s251, %s253
    %p257 = scmp.eq.s32.totalorder %s23, 0
    %p258 = por %p256, %p257
    %p259 = scmp.ne.s32.totalorder %s251, %s253
    %p260 = scmp.eq.s32.totalorder %s28, 1
    %p261 = por %p259, %p260
    %p262 = scmp.ne.s32.totalorder %s253, %s254
    %p263 = scmp.eq.s32.totalorder %s28, 0
    %p264 = por %p262, %p263
    %p265 = scmp.ne.s32.totalorder %s253, %s254
    %p266 = scmp.eq.s32.totalorder %s29, 1
    %p267 = por %p265, %p266
    %p269 = scmp.ne.s32.totalorder %s254, %s268
    %p270 = scmp.eq.s32.totalorder %s29, 0
    %p271 = por %p269, %p270
    %s273 = sadd.s32 %s272, 1
    %p276 = scmp.eq.s32.totalorder %s23, 1
    %p277 = scmp.ne.s32.totalorder %s272, %s274
    %p278 = scmp.eq.s32.totalorder %s23, 0
    %p279 = por %p277, %p278
    %p280 = scmp.ne.s32.totalorder %s272, %s274
    %p281 = scmp.eq.s32.totalorder %s28, 1
    %p282 = por %p280, %p281
    %p283 = scmp.ne.s32.totalorder %s274, %s275
    %p284 = scmp.eq.s32.totalorder %s28, 0
    %p285 = por %p283, %p284
    %p286 = scmp.ne.s32.totalorder %s274, %s275
    %p287 = scmp.eq.s32.totalorder %s29, 1
    %p288 = por %p286, %p287
    %p290 = scmp.ne.s32.totalorder %s275, %s289
    %p291 = scmp.eq.s32.totalorder %s29, 0
    %p292 = por %p290, %p291
    %s294 = sadd.s32 %s293, 1
    %p297 = scmp.eq.s32.totalorder %s23, 1
    %p298 = scmp.ne.s32.totalorder %s293, %s295
    %p299 = scmp.eq.s32.totalorder %s23, 0
    %p300 = por %p298, %p299
    %p301 = scmp.ne.s32.totalorder %s293, %s295
    %p302 = scmp.eq.s32.totalorder %s28, 1
    %p303 = por %p301, %p302
    %p304 = scmp.ne.s32.totalorder %s295, %s296
    %p305 = scmp.eq.s32.totalorder %s28, 0
    %p306 = por %p304, %p305
    %p307 = scmp.ne.s32.totalorder %s295, %s296
    %p308 = scmp.eq.s32.totalorder %s29, 1
    %p309 = por %p307, %p308
    %p311 = scmp.ne.s32.totalorder %s296, %s310
    %p312 = scmp.eq.s32.totalorder %s29, 0
    %p313 = por %p311, %p312
    %s315 = sadd.s32 %s314, 1
    %p318 = scmp.eq.s32.totalorder %s23, 1
    %p319 = scmp.ne.s32.totalorder %s314, %s316
    %p320 = scmp.eq.s32.totalorder %s23, 0
    %p321 = por %p319, %p320
    %p322 = scmp.ne.s32.totalorder %s314, %s316
    %p323 = scmp.eq.s32.totalorder %s28, 1
    %p324 = por %p322, %p323
    %p325 = scmp.ne.s32.totalorder %s316, %s317
    %p326 = scmp.eq.s32.totalorder %s28, 0
    %p327 = por %p325, %p326
    %p328 = scmp.ne.s32.totalorder %s316, %s317
    %p329 = scmp.eq.s32.totalorder %s29, 1
    %p330 = por %p328, %p329
    %p332 = scmp.ne.s32.totalorder %s317, %s331
    %p333 = scmp.eq.s32.totalorder %s29, 0
    %p334 = por %p332, %p333
    %s336 = sadd.s32 %s335, 1
    %p339 = scmp.eq.s32.totalorder %s23, 1
    %p340 = scmp.ne.s32.totalorder %s335, %s337
    %p341 = scmp.eq.s32.totalorder %s23, 0
    %p342 = por %p340, %p341
    %p343 = scmp.ne.s32.totalorder %s335, %s337
    %p344 = scmp.eq.s32.totalorder %s28, 1
    %p345 = por %p343, %p344
    %p346 = scmp.ne.s32.totalorder %s337, %s338
    %p347 = scmp.eq.s32.totalorder %s28, 0
    %p348 = por %p346, %p347
    %p349 = scmp.ne.s32.totalorder %s337, %s338
    %p350 = scmp.eq.s32.totalorder %s29, 1
    %p351 = por %p349, %p350
    %p353 = scmp.ne.s32.totalorder %s338, %s352
    %p354 = scmp.eq.s32.totalorder %s29, 0
    %p355 = por %p353, %p354
    %s357 = sadd.s32 %s356, 1
    %p360 = scmp.eq.s32.totalorder %s23, 1
    %p361 = scmp.ne.s32.totalorder %s356, %s358
    %p362 = scmp.eq.s32.totalorder %s23, 0
    %p363 = por %p361, %p362
    %p364 = scmp.ne.s32.totalorder %s356, %s358
    %p365 = scmp.eq.s32.totalorder %s28, 1
    %p366 = por %p364, %p365
    %p367 = scmp.ne.s32.totalorder %s358, %s359
    %p368 = scmp.eq.s32.totalorder %s28, 0
    %p369 = por %p367, %p368
    %p370 = scmp.ne.s32.totalorder %s358, %s359
    %p371 = scmp.eq.s32.totalorder %s29, 1
    %p372 = por %p370, %p371
    %p374 = scmp.ne.s32.totalorder %s359, %s373
    %p375 = scmp.eq.s32.totalorder %s29, 0
    %p376 = por %p374, %p375
    %s378 = sadd.s32 %s377, 1
    %p381 = scmp.eq.s32.totalorder %s23, 1
    %p382 = scmp.ne.s32.totalorder %s377, %s379
    %p383 = scmp.eq.s32.totalorder %s23, 0
    %p384 = por %p382, %p383
    %p385 = scmp.ne.s32.totalorder %s377, %s379
    %p386 = scmp.eq.s32.totalorder %s28, 1
    %p387 = por %p385, %p386
    %p388 = scmp.ne.s32.totalorder %s379, %s380
    %p389 = scmp.eq.s32.totalorder %s28, 0
    %p390 = por %p388, %p389
    %p391 = scmp.ne.s32.totalorder %s379, %s380
    %p392 = scmp.eq.s32.totalorder %s29, 1
    %p393 = por %p391, %p392
    %p395 = scmp.ne.s32.totalorder %s380, %s394
    %p396 = scmp.eq.s32.totalorder %s29, 0
    %p397 = por %p395, %p396
    %s398 = ssub.s32 %s23, %s30
    %p399 = scmp.eq.s32.totalorder %s398, 0
    %s401 = sadd.s32 %s400, 1
    %s402 = scalar_select %p399, %s400, %s401
    %p405 = pneg %p399
    %p406 = scmp.eq.s32.totalorder %s23, 1
    %p407 = por %p405, %p406
    %p408 = scmp.ne.s32.totalorder %s400, %s403
    %p409 = scmp.eq.s32.totalorder %s23, 0
    %p410 = por %p408, %p409
    %p411 = scmp.ne.s32.totalorder %s400, %s403
    %p412 = scmp.eq.s32.totalorder %s28, 1
    %p413 = por %p411, %p412
    %p414 = scmp.ne.s32.totalorder %s403, %s404
    %p415 = scmp.eq.s32.totalorder %s28, 0
    %p416 = por %p414, %p415
    %p417 = scmp.ne.s32.totalorder %s403, %s404
    %p418 = scmp.eq.s32.totalorder %s29, 1
    %p419 = por %p417, %p418
    %p421 = scmp.ne.s32.totalorder %s404, %s420
    %p422 = scmp.eq.s32.totalorder %s29, 0
    %p423 = por %p421, %p422
    %p424 = scmp.le.s32.totalorder 1, %s23
    %p425 = scmp.lt.s32.totalorder %s23, 3
    %p426 = pnand %p424, %p425
    %p427 = pneg %p426
    // Predicated region
    $region9: #{attention_block_forward.2} parent=5 // pred_check
      _
    $region10: #{attention_block_forward.2} parent=5 // pred_check_branch
      %429 = sbr.rel (%p426) target = $region12
    $region11: #{attention_block_forward.2} parent=5 // pred_region
      %s430 = ssub.s32 %s23, 1
      // Predicated region
      $region13: #{attention_block_forward.2} parent=11 // pred_check
        %p431 = pneg %p96
      $region14: #{attention_block_forward.2} parent=11 // pred_check_branch
        %433 = sbr.rel (%p431) target = $region16
      $region15: #{attention_block_forward.2} parent=11 // pred_region
        _
      $region16: #{attention_block_forward.2} parent=11 // pred_fallthru
        _
      // Predicated region
      $region17: #{attention_block_forward.2} parent=11 // pred_check
        %p434 = pneg %p117
      $region18: #{attention_block_forward.2} parent=11 // pred_check_branch
        %436 = sbr.rel (%p434) target = $region20
      $region19: #{attention_block_forward.2} parent=11 // pred_region
        _
      $region20: #{attention_block_forward.2} parent=11 // pred_fallthru
        _
      // Predicated region
      $region21: #{attention_block_forward.2} parent=11 // pred_check
        %p437 = pneg %p138
      $region22: #{attention_block_forward.2} parent=11 // pred_check_branch
        %439 = sbr.rel (%p437) target = $region24
      $region23: #{attention_block_forward.2} parent=11 // pred_region
        _
      $region24: #{attention_block_forward.2} parent=11 // pred_fallthru
        _
      // Predicated region
      $region25: #{attention_block_forward.2} parent=11 // pred_check
        %p440 = pneg %p159
      $region26: #{attention_block_forward.2} parent=11 // pred_check_branch
        %442 = sbr.rel (%p440) target = $region28
      $region27: #{attention_block_forward.2} parent=11 // pred_region
        _
      $region28: #{attention_block_forward.2} parent=11 // pred_fallthru
        _
      // Predicated region
      $region29: #{attention_block_forward.2} parent=11 // pred_check
        %p443 = pneg %p180
      $region30: #{attention_block_forward.2} parent=11 // pred_check_branch
        %445 = sbr.rel (%p443) target = $region32
      $region31: #{attention_block_forward.2} parent=11 // pred_region
        _
      $region32: #{attention_block_forward.2} parent=11 // pred_fallthru
        _
      // Predicated region
      $region33: #{attention_block_forward.2} parent=11 // pred_check
        %p446 = pneg %p201
      $region34: #{attention_block_forward.2} parent=11 // pred_check_branch
        %448 = sbr.rel (%p446) target = $region36
      $region35: #{attention_block_forward.2} parent=11 // pred_region
        _
      $region36: #{attention_block_forward.2} parent=11 // pred_fallthru
        _
      // Predicated region
      $region37: #{attention_block_forward.2} parent=11 // pred_check
        %p449 = pneg %p222
      $region38: #{attention_block_forward.2} parent=11 // pred_check_branch
        %451 = sbr.rel (%p449) target = $region40
      $region39: #{attention_block_forward.2} parent=11 // pred_region
        _
      $region40: #{attention_block_forward.2} parent=11 // pred_fallthru
        _
      // Predicated region
      $region41: #{attention_block_forward.2} parent=11 // pred_check
        %p452 = pneg %p243
      $region42: #{attention_block_forward.2} parent=11 // pred_check_branch
        %454 = sbr.rel (%p452) target = $region44
      $region43: #{attention_block_forward.2} parent=11 // pred_region
        _
      $region44: #{attention_block_forward.2} parent=11 // pred_fallthru
        _
      // Predicated region
      $region45: #{attention_block_forward.2} parent=11 // pred_check
        %p455 = pneg %p264
      $region46: #{attention_block_forward.2} parent=11 // pred_check_branch
        %457 = sbr.rel (%p455) target = $region48
      $region47: #{attention_block_forward.2} parent=11 // pred_region
        _
      $region48: #{attention_block_forward.2} parent=11 // pred_fallthru
        _
      // Predicated region
      $region49: #{attention_block_forward.2} parent=11 // pred_check
        %p458 = pneg %p285
      $region50: #{attention_block_forward.2} parent=11 // pred_check_branch
        %460 = sbr.rel (%p458) target = $region52
      $region51: #{attention_block_forward.2} parent=11 // pred_region
        _
      $region52: #{attention_block_forward.2} parent=11 // pred_fallthru
        _
      // Predicated region
      $region53: #{attention_block_forward.2} parent=11 // pred_check
        %p461 = pneg %p306
      $region54: #{attention_block_forward.2} parent=11 // pred_check_branch
        %463 = sbr.rel (%p461) target = $region56
      $region55: #{attention_block_forward.2} parent=11 // pred_region
        _
      $region56: #{attention_block_forward.2} parent=11 // pred_fallthru
        _
      // Predicated region
      $region57: #{attention_block_forward.2} parent=11 // pred_check
        %p464 = pneg %p327
      $region58: #{attention_block_forward.2} parent=11 // pred_check_branch
        %466 = sbr.rel (%p464) target = $region60
      $region59: #{attention_block_forward.2} parent=11 // pred_region
        _
      $region60: #{attention_block_forward.2} parent=11 // pred_fallthru
        _
      // Predicated region
      $region61: #{attention_block_forward.2} parent=11 // pred_check
        %p467 = pneg %p348
      $region62: #{attention_block_forward.2} parent=11 // pred_check_branch
        %469 = sbr.rel (%p467) target = $region64
      $region63: #{attention_block_forward.2} parent=11 // pred_region
        _
      $region64: #{attention_block_forward.2} parent=11 // pred_fallthru
        _
      // Predicated region
      $region65: #{attention_block_forward.2} parent=11 // pred_check
        %p470 = pneg %p369
      $region66: #{attention_block_forward.2} parent=11 // pred_check_branch
        %472 = sbr.rel (%p470) target = $region68
      $region67: #{attention_block_forward.2} parent=11 // pred_region
        _
      $region68: #{attention_block_forward.2} parent=11 // pred_fallthru
        _
      // Predicated region
      $region69: #{attention_block_forward.2} parent=11 // pred_check
        %p473 = pneg %p390
      $region70: #{attention_block_forward.2} parent=11 // pred_check_branch
        %475 = sbr.rel (%p473) target = $region72
      $region71: #{attention_block_forward.2} parent=11 // pred_region
        _
      $region72: #{attention_block_forward.2} parent=11 // pred_fallthru
        _
    $region12: #{attention_block_forward.2} parent=5 // pred_fallthru
      _
    %p476 = scmp.lt.s32.totalorder %s23, 2
    // Predicated region
    $region73: #{attention_block_forward.2} parent=5 // pred_check
      %p477 = pneg %p476
    $region74: #{attention_block_forward.2} parent=5 // pred_check_branch
      %479 = sbr.rel (%p477) target = $region76
    $region75: #{attention_block_forward.2} parent=5 // pred_region
      // Predicated region
      $region77: #{attention_block_forward.2} parent=75 // pred_check
        %p480 = pneg %p43
      $region78: #{attention_block_forward.2} parent=75 // pred_check_branch
        %482 = sbr.rel (%p480) target = $region80
      $region79: #{attention_block_forward.2} parent=75 // pred_region
        %p483 = scmp.lt.s32.totalorder %s23, 1
        %s484 = scalar_select %p483, %s23, 1
        %s485 = smul.addr %s484, 8
        %s486 = smul.addr %s485, 8
        %s487 = scalar_lea.vmem %s0, %s486
      $region80: #{attention_block_forward.2} parent=75 // pred_fallthru
        _
      // Predicated region
      $region81: #{attention_block_forward.2} parent=75 // pred_check
        %p488 = pneg %p69
      $region82: #{attention_block_forward.2} parent=75 // pred_check_branch
        %490 = sbr.rel (%p488) target = $region84
      $region83: #{attention_block_forward.2} parent=75 // pred_region
        %p491 = scmp.lt.s32.totalorder %s23, 1
        %s492 = scalar_select %p491, %s23, 1
        %s493 = smul.addr %s492, 8
        %s494 = smul.addr %s493, 8
        %s495 = scalar_lea.vmem %s1, %s494
      $region84: #{attention_block_forward.2} parent=75 // pred_fallthru
        _
    $region76: #{attention_block_forward.2} parent=5 // pred_fallthru
      _
    %p496 = scmp.le.s32.totalorder 1, %s23
    %p497 = scmp.lt.s32.totalorder %s23, 3
    %p498 = pnand %p496, %p497
    %p499 = pneg %p498
    // Predicated region
    $region85: #{attention_block_forward.2} parent=5 // pred_check
      _
    $region86: #{attention_block_forward.2} parent=5 // pred_check_branch
      %501 = sbr.rel (%p498) target = $region88
    $region87: #{attention_block_forward.2} parent=5 // pred_region
      %s502 = ssub.s32 %s23, 1
      %p503 = scmp.lt.s32.totalorder %s28, 1
      %s504 = scalar_select %p503, %s28, 1
      %s505 = smul.addr %s504, 8
      %s506 = smul.addr %s505, 8
      %s507 = scalar_lea.vmem %s0, %s506
      %p508 = pneg %p49
      %p509 = pneg %p46
      %p510 = scmp.lt.s32.totalorder %s28, 1
      %s511 = scalar_select %p510, %s28, 1
      %s512 = smul.addr %s511, 8
      %s513 = smul.addr %s512, 8
      %s514 = scalar_lea.vmem %s1, %s513
      %p515 = pneg %p75
      %p516 = pneg %p72
      %p517 = pneg %p96
      %p518 = pneg %p93
      %p519 = pneg %p117
      %p520 = pneg %p114
      %p521 = pneg %p138
      %p522 = pneg %p135
      %p523 = pneg %p159
      %p524 = pneg %p156
      %p525 = pneg %p180
      %p526 = pneg %p177
      %p527 = pneg %p201
      %p528 = pneg %p198
      %p529 = pneg %p222
      %p530 = pneg %p219
      %p531 = pneg %p243
      %p532 = pneg %p240
      %p533 = pneg %p264
      %p534 = pneg %p261
      %p535 = pneg %p285
      %p536 = pneg %p282
      %p537 = pneg %p306
      %p538 = pneg %p303
      %p539 = pneg %p327
      %p540 = pneg %p324
      %p541 = pneg %p348
      %p542 = pneg %p345
      %p543 = pneg %p369
      %p544 = pneg %p366
      %p545 = pneg %p390
      %p546 = pneg %p387
      %p547 = pneg %p416
      %p548 = pneg %p413
      %p549 = scmp.lt.s32.totalorder %s28, 1
      %s550 = scalar_select %p549, %s28, 1
      %s551 = smul.addr %s550, 8
      %s552 = smul.addr %s551, 8
      %s553 = scalar_lea.vmem %s17, %s552
      %p554 = scmp.lt.s32.totalorder %s28, 1
      %s555 = scalar_select %p554, %s28, 1
      %s556 = smul.addr %s555, 8
      %s557 = smul.addr %s556, 8
      %s558 = scalar_lea.vmem %s0, %s557
      %p559 = scmp.lt.s32.totalorder %s28, 1
      %s560 = scalar_select %p559, %s28, 1
      %s561 = smul.addr %s560, 8
      %s562 = smul.addr %s561, 8
      %s563 = scalar_lea.vmem %s1, %s562
      %p564 = scmp.lt.s32.totalorder %s28, 1
      %s565 = scalar_select %p564, %s28, 1
      %s566 = smul.addr %s565, 8
      %s567 = smul.addr %s566, 8
      %s568 = scalar_lea.vmem %s17, %s567
      %v570 = vld [vmem:[%s558] sm:$0xff]
      %v571 = vld [vmem:[%s558 + $0x8] sm:$0xff]
      %v572 = vld [vmem:[%s558 + $0x10] sm:$0xff]
      %v573 = vld [vmem:[%s558 + $0x18] sm:$0xff]
      %v574 = vld [vmem:[%s558 + $0x20] sm:$0xff]
      %v575 = vld [vmem:[%s558 + $0x28] sm:$0xff]
      %v576 = vld [vmem:[%s558 + $0x30] sm:$0xff]
      %v577 = vld [vmem:[%s558 + $0x38] sm:$0xff]
      %vm578 = vcmask 31744
      %579 = vst.msk [vmem:[#allocation2] sm:$0xff] %vm578, 0.0
      %vm580 = vcmask 27648
      %581 = vst.msk [vmem:[#allocation2 + $0x8] sm:$0xf] %vm580, 0.0
      %582 = vst.msk [vmem:[#allocation2 + $0x10] sm:$0xff] %vm578, 0.0
      %583 = vst.msk [vmem:[#allocation2 + $0x18] sm:$0xf] %vm580, 0.0
      %584 = vst.msk [vmem:[#allocation2 + $0x20] sm:$0xff] %vm578, 0.0
      %585 = vst.msk [vmem:[#allocation2 + $0x28] sm:$0xf] %vm580, 0.0
      %586 = vst.msk [vmem:[#allocation2 + $0x30] sm:$0xff] %vm578, 0.0
      %587 = vst.msk [vmem:[#allocation2 + $0x38] sm:$0xf] %vm580, 0.0
      %588 = vst.msk [vmem:[#allocation2 + $0x40] sm:$0xff] %vm578, 0.0
      %589 = vst.msk [vmem:[#allocation2 + $0x48] sm:$0xf] %vm580, 0.0
      %590 = vst.msk [vmem:[#allocation2 + $0x50] sm:$0xff] %vm578, 0.0
      %591 = vst.msk [vmem:[#allocation2 + $0x58] sm:$0xf] %vm580, 0.0
      %592 = vst.msk [vmem:[#allocation2 + $0x60] sm:$0xff] %vm578, 0.0
      %593 = vst.msk [vmem:[#allocation2 + $0x68] sm:$0xf] %vm580, 0.0
      %594 = vst.msk [vmem:[#allocation2 + $0x70] sm:$0xff] %vm578, 0.0
      %595 = vst.msk [vmem:[#allocation2 + $0x78] sm:$0xf] %vm580, 0.0
      %596 = vst.msk [vmem:[#allocation2 + $0x80] sm:$0xff] %vm578, 0.0
      %597 = vst.msk [vmem:[#allocation2 + $0x88] sm:$0xf] %vm580, 0.0
      %598 = vst.msk [vmem:[#allocation2 + $0x90] sm:$0xff] %vm578, 0.0
      %599 = vst.msk [vmem:[#allocation2 + $0x98] sm:$0xf] %vm580, 0.0
      %600 = vst.msk [vmem:[#allocation2 + $0xa0] sm:$0xff] %vm578, 0.0
      %601 = vst.msk [vmem:[#allocation2 + $0xa8] sm:$0xf] %vm580, 0.0
      %602 = vst.msk [vmem:[#allocation2 + $0xb0] sm:$0xff] %vm578, 0.0
      %603 = vst.msk [vmem:[#allocation2 + $0xb8] sm:$0xf] %vm580, 0.0
      %s604 = scalar_lea.vmem [#allocation2], 32
      %605 = vst.msk [vmem:[%s604 + $0x2] sm:$0xff] %vm578, %v570
      %606 = vst.msk [vmem:[%s604 + $0x12] sm:$0xff] %vm578, %v571
      %607 = vst.msk [vmem:[%s604 + $0x22] sm:$0xff] %vm578, %v572
      %608 = vst.msk [vmem:[%s604 + $0x32] sm:$0xff] %vm578, %v573
      %609 = vst.msk [vmem:[%s604 + $0x42] sm:$0xff] %vm578, %v574
      %610 = vst.msk [vmem:[%s604 + $0x52] sm:$0xff] %vm578, %v575
      %611 = vst.msk [vmem:[%s604 + $0x62] sm:$0xff] %vm578, %v576
      %612 = vst.msk [vmem:[%s604 + $0x72] sm:$0xff] %vm578, %v577
      %v613 = vld [vmem:[%s563] sm:$0xff]
      %v614 = vld [vmem:[%s563 + $0x8] sm:$0xff]
      %v615 = vld [vmem:[%s563 + $0x10] sm:$0xff]
      %v616 = vld [vmem:[%s563 + $0x18] sm:$0xff]
      %v617 = vld [vmem:[%s563 + $0x20] sm:$0xff]
      %v618 = vld [vmem:[%s563 + $0x28] sm:$0xff]
      %v619 = vld [vmem:[%s563 + $0x30] sm:$0xff]
      %v620 = vld [vmem:[%s563 + $0x38] sm:$0xff]
      %621 = vst.msk [vmem:[#allocation3] sm:$0xff] %vm578, 0.0
      %622 = vst.msk [vmem:[#allocation3 + $0x8] sm:$0xf] %vm580, 0.0
      %623 = vst.msk [vmem:[#allocation3 + $0x10] sm:$0xff] %vm578, 0.0
      %624 = vst.msk [vmem:[#allocation3 + $0x18] sm:$0xf] %vm580, 0.0
      %625 = vst.msk [vmem:[#allocation3 + $0x20] sm:$0xff] %vm578, 0.0
      %626 = vst.msk [vmem:[#allocation3 + $0x28] sm:$0xf] %vm580, 0.0
      %627 = vst.msk [vmem:[#allocation3 + $0x30] sm:$0xff] %vm578, 0.0
      %628 = vst.msk [vmem:[#allocation3 + $0x38] sm:$0xf] %vm580, 0.0
      %629 = vst.msk [vmem:[#allocation3 + $0x40] sm:$0xff] %vm578, 0.0
      %630 = vst.msk [vmem:[#allocation3 + $0x48] sm:$0xf] %vm580, 0.0
      %631 = vst.msk [vmem:[#allocation3 + $0x50] sm:$0xff] %vm578, 0.0
      %632 = vst.msk [vmem:[#allocation3 + $0x58] sm:$0xf] %vm580, 0.0
      %633 = vst.msk [vmem:[#allocation3 + $0x60] sm:$0xff] %vm578, 0.0
      %634 = vst.msk [vmem:[#allocation3 + $0x68] sm:$0xf] %vm580, 0.0
      %635 = vst.msk [vmem:[#allocation3 + $0x70] sm:$0xff] %vm578, 0.0
      %636 = vst.msk [vmem:[#allocation3 + $0x78] sm:$0xf] %vm580, 0.0
      %637 = vst.msk [vmem:[#allocation3 + $0x80] sm:$0xff] %vm578, 0.0
      %638 = vst.msk [vmem:[#allocation3 + $0x88] sm:$0xf] %vm580, 0.0
      %639 = vst.msk [vmem:[#allocation3 + $0x90] sm:$0xff] %vm578, 0.0
      %640 = vst.msk [vmem:[#allocation3 + $0x98] sm:$0xf] %vm580, 0.0
      %641 = vst.msk [vmem:[#allocation3 + $0xa0] sm:$0xff] %vm578, 0.0
      %642 = vst.msk [vmem:[#allocation3 + $0xa8] sm:$0xf] %vm580, 0.0
      %643 = vst.msk [vmem:[#allocation3 + $0xb0] sm:$0xff] %vm578, 0.0
      %644 = vst.msk [vmem:[#allocation3 + $0xb8] sm:$0xf] %vm580, 0.0
      %s645 = scalar_lea.vmem [#allocation3], 32
      %646 = vst.msk [vmem:[%s645 + $0x2] sm:$0xff] %vm578, %v613
      %647 = vst.msk [vmem:[%s645 + $0x12] sm:$0xff] %vm578, %v614
      %648 = vst.msk [vmem:[%s645 + $0x22] sm:$0xff] %vm578, %v615
      %649 = vst.msk [vmem:[%s645 + $0x32] sm:$0xff] %vm578, %v616
      %650 = vst.msk [vmem:[%s645 + $0x42] sm:$0xff] %vm578, %v617
      %651 = vst.msk [vmem:[%s645 + $0x52] sm:$0xff] %vm578, %v618
      %652 = vst.msk [vmem:[%s645 + $0x62] sm:$0xff] %vm578, %v619
      %653 = vst.msk [vmem:[%s645 + $0x72] sm:$0xff] %vm578, %v620
      %v654 = vld [vmem:[#allocation3] sm:$0xff]
      %v655 = vld [vmem:[#allocation3 + $0x10] sm:$0xff]
      %v656 = vld [vmem:[#allocation3 + $0x20] sm:$0xff]
      %v657 = vld [vmem:[#allocation3 + $0x30] sm:$0xff]
      %v658 = vld [vmem:[#allocation3 + $0x40] sm:$0xff]
      %v659 = vld [vmem:[#allocation3 + $0x50] sm:$0xff]
      %v660 = vld [vmem:[#allocation3 + $0x60] sm:$0xff]
      %v661 = vld [vmem:[#allocation3 + $0x70] sm:$0xff]
      %v662 = vld [vmem:[#allocation3 + $0x2] sm:$0xff]
      %v663 = vld [vmem:[#allocation3 + $0x12] sm:$0xff]
      %v664 = vld [vmem:[#allocation3 + $0x22] sm:$0xff]
      %v665 = vld [vmem:[#allocation3 + $0x32] sm:$0xff]
      %v666 = vld [vmem:[#allocation3 + $0x42] sm:$0xff]
      %v667 = vld [vmem:[#allocation3 + $0x52] sm:$0xff]
      %v668 = vld [vmem:[#allocation3 + $0x62] sm:$0xff]
      %v669 = vld [vmem:[#allocation3 + $0x72] sm:$0xff]
      %v670 = vld [vmem:[#allocation3 + $0x4] sm:$0xff]
      %v671 = vld [vmem:[#allocation3 + $0x14] sm:$0xff]
      %v672 = vld [vmem:[#allocation3 + $0x24] sm:$0xff]
      %v673 = vld [vmem:[#allocation3 + $0x34] sm:$0xff]
      %v674 = vld [vmem:[#allocation3 + $0x44] sm:$0xff]
      %v675 = vld [vmem:[#allocation3 + $0x54] sm:$0xff]
      %v676 = vld [vmem:[#allocation3 + $0x64] sm:$0xff]
      %v677 = vld [vmem:[#allocation3 + $0x74] sm:$0xff]
      %v678 = vld [vmem:[%s645] sm:$0xff]
      %v679 = vld [vmem:[%s645 + $0x10] sm:$0xff]
      %v680 = vld [vmem:[%s645 + $0x20] sm:$0xff]
      %v681 = vld [vmem:[%s645 + $0x30] sm:$0xff]
      %v682 = vld [vmem:[%s645 + $0x40] sm:$0xff]
      %v683 = vld [vmem:[%s645 + $0x50] sm:$0xff]
      %v684 = vld [vmem:[%s645 + $0x60] sm:$0xff]
      %v685 = vld [vmem:[%s645 + $0x70] sm:$0xff]
      %v686 = vld [vmem:[%s645 + $0x2] sm:$0xff]
      %v687 = vld [vmem:[%s645 + $0x12] sm:$0xff]
      %v688 = vld [vmem:[%s645 + $0x22] sm:$0xff]
      %v689 = vld [vmem:[%s645 + $0x32] sm:$0xff]
      %v690 = vld [vmem:[%s645 + $0x42] sm:$0xff]
      %v691 = vld [vmem:[%s645 + $0x52] sm:$0xff]
      %v692 = vld [vmem:[%s645 + $0x62] sm:$0xff]
      %v693 = vld [vmem:[%s645 + $0x72] sm:$0xff]
      %v694 = vld [vmem:[%s645 + $0x4] sm:$0xff]
      %v695 = vld [vmem:[%s645 + $0x14] sm:$0xff]
      %v696 = vld [vmem:[%s645 + $0x24] sm:$0xff]
      %v697 = vld [vmem:[%s645 + $0x34] sm:$0xff]
      %v698 = vld [vmem:[%s645 + $0x44] sm:$0xff]
      %v699 = vld [vmem:[%s645 + $0x54] sm:$0xff]
      %v700 = vld [vmem:[%s645 + $0x64] sm:$0xff]
      %v701 = vld [vmem:[%s645 + $0x74] sm:$0xff]
      %s702 = scalar_lea.vmem [#allocation3], 64
      %v703 = vld [vmem:[%s702] sm:$0xff]
      %v704 = vld [vmem:[%s702 + $0x10] sm:$0xff]
      %v705 = vld [vmem:[%s702 + $0x20] sm:$0xff]
      %v706 = vld [vmem:[%s702 + $0x30] sm:$0xff]
      %v707 = vld [vmem:[%s702 + $0x40] sm:$0xff]
      %v708 = vld [vmem:[%s702 + $0x50] sm:$0xff]
      %v709 = vld [vmem:[%s702 + $0x60] sm:$0xff]
      %v710 = vld [vmem:[%s702 + $0x70] sm:$0xff]
      %v711 = vld [vmem:[%s702 + $0x2] sm:$0xff]
      %v712 = vld [vmem:[%s702 + $0x12] sm:$0xff]
      %v713 = vld [vmem:[%s702 + $0x22] sm:$0xff]
      %v714 = vld [vmem:[%s702 + $0x32] sm:$0xff]
      %v715 = vld [vmem:[%s702 + $0x42] sm:$0xff]
      %v716 = vld [vmem:[%s702 + $0x52] sm:$0xff]
      %v717 = vld [vmem:[%s702 + $0x62] sm:$0xff]
      %v718 = vld [vmem:[%s702 + $0x72] sm:$0xff]
      %v719 = vld [vmem:[%s702 + $0x4] sm:$0xff]
      %v720 = vld [vmem:[%s702 + $0x14] sm:$0xff]
      %v721 = vld [vmem:[%s702 + $0x24] sm:$0xff]
      %v722 = vld [vmem:[%s702 + $0x34] sm:$0xff]
      %v723 = vld [vmem:[%s702 + $0x44] sm:$0xff]
      %v724 = vld [vmem:[%s702 + $0x54] sm:$0xff]
      %v725 = vld [vmem:[%s702 + $0x64] sm:$0xff]
      %v726 = vld [vmem:[%s702 + $0x74] sm:$0xff]
      %735 = vrot.lane.b32.xlu0 %v662, 4
      %v736 = vpop.permute.xlu0 %735
      %737 = vrot.lane.b32.xlu0 %v663, 4
      %v738 = vpop.permute.xlu0 %737
      %739 = vrot.lane.b32.xlu0 %v664, 4
      %v740 = vpop.permute.xlu0 %739
      %741 = vrot.lane.b32.xlu0 %v665, 4
      %v742 = vpop.permute.xlu0 %741
      %743 = vrot.lane.b32.xlu0 %v666, 4
      %v744 = vpop.permute.xlu0 %743
      %745 = vrot.lane.b32.xlu0 %v667, 4
      %v746 = vpop.permute.xlu0 %745
      %747 = vrot.lane.b32.xlu0 %v668, 4
      %v748 = vpop.permute.xlu0 %747
      %749 = vrot.lane.b32.xlu0 %v669, 4
      %v750 = vpop.permute.xlu0 %749
      %767 = vrot.lane.b32.xlu0 %v670, 8
      %v768 = vpop.permute.xlu0 %767
      %769 = vrot.lane.b32.xlu0 %v671, 8
      %v770 = vpop.permute.xlu0 %769
      %771 = vrot.lane.b32.xlu0 %v672, 8
      %v772 = vpop.permute.xlu0 %771
      %773 = vrot.lane.b32.xlu0 %v673, 8
      %v774 = vpop.permute.xlu0 %773
      %775 = vrot.lane.b32.xlu0 %v674, 8
      %v776 = vpop.permute.xlu0 %775
      %777 = vrot.lane.b32.xlu0 %v675, 8
      %v778 = vpop.permute.xlu0 %777
      %779 = vrot.lane.b32.xlu0 %v676, 8
      %v780 = vpop.permute.xlu0 %779
      %781 = vrot.lane.b32.xlu0 %v677, 8
      %v782 = vpop.permute.xlu0 %781
      %799 = vrot.lane.b32.xlu0 %v678, 12
      %v800 = vpop.permute.xlu0 %799
      %801 = vrot.lane.b32.xlu0 %v679, 12
      %v802 = vpop.permute.xlu0 %801
      %803 = vrot.lane.b32.xlu0 %v680, 12
      %v804 = vpop.permute.xlu0 %803
      %805 = vrot.lane.b32.xlu0 %v681, 12
      %v806 = vpop.permute.xlu0 %805
      %807 = vrot.lane.b32.xlu0 %v682, 12
      %v808 = vpop.permute.xlu0 %807
      %809 = vrot.lane.b32.xlu0 %v683, 12
      %v810 = vpop.permute.xlu0 %809
      %811 = vrot.lane.b32.xlu0 %v684, 12
      %v812 = vpop.permute.xlu0 %811
      %813 = vrot.lane.b32.xlu0 %v685, 12
      %v814 = vpop.permute.xlu0 %813
      %831 = vrot.lane.b32.xlu0 %v686, 16
      %v832 = vpop.permute.xlu0 %831
      %833 = vrot.lane.b32.xlu0 %v687, 16
      %v834 = vpop.permute.xlu0 %833
      %835 = vrot.lane.b32.xlu0 %v688, 16
      %v836 = vpop.permute.xlu0 %835
      %837 = vrot.lane.b32.xlu0 %v689, 16
      %v838 = vpop.permute.xlu0 %837
      %839 = vrot.lane.b32.xlu0 %v690, 16
      %v840 = vpop.permute.xlu0 %839
      %841 = vrot.lane.b32.xlu0 %v691, 16
      %v842 = vpop.permute.xlu0 %841
      %843 = vrot.lane.b32.xlu0 %v692, 16
      %v844 = vpop.permute.xlu0 %843
      %845 = vrot.lane.b32.xlu0 %v693, 16
      %v846 = vpop.permute.xlu0 %845
      %863 = vrot.lane.b32.xlu0 %v694, 20
      %v864 = vpop.permute.xlu0 %863
      %865 = vrot.lane.b32.xlu0 %v695, 20
      %v866 = vpop.permute.xlu0 %865
      %867 = vrot.lane.b32.xlu0 %v696, 20
      %v868 = vpop.permute.xlu0 %867
      %869 = vrot.lane.b32.xlu0 %v697, 20
      %v870 = vpop.permute.xlu0 %869
      %871 = vrot.lane.b32.xlu0 %v698, 20
      %v872 = vpop.permute.xlu0 %871
      %873 = vrot.lane.b32.xlu0 %v699, 20
      %v874 = vpop.permute.xlu0 %873
      %875 = vrot.lane.b32.xlu0 %v700, 20
      %v876 = vpop.permute.xlu0 %875
      %877 = vrot.lane.b32.xlu0 %v701, 20
      %v878 = vpop.permute.xlu0 %877
      %895 = vrot.lane.b32.xlu0 %v703, 24
      %v896 = vpop.permute.xlu0 %895
      %897 = vrot.lane.b32.xlu0 %v704, 24
      %v898 = vpop.permute.xlu0 %897
      %899 = vrot.lane.b32.xlu0 %v705, 24
      %v900 = vpop.permute.xlu0 %899
      %901 = vrot.lane.b32.xlu0 %v706, 24
      %v902 = vpop.permute.xlu0 %901
      %903 = vrot.lane.b32.xlu0 %v707, 24
      %v904 = vpop.permute.xlu0 %903
      %905 = vrot.lane.b32.xlu0 %v708, 24
      %v906 = vpop.permute.xlu0 %905
      %907 = vrot.lane.b32.xlu0 %v709, 24
      %v908 = vpop.permute.xlu0 %907
      %909 = vrot.lane.b32.xlu0 %v710, 24
      %v910 = vpop.permute.xlu0 %909
      %927 = vrot.lane.b32.xlu0 %v711, 28
      %v928 = vpop.permute.xlu0 %927
      %929 = vrot.lane.b32.xlu0 %v712, 28
      %v930 = vpop.permute.xlu0 %929
      %931 = vrot.lane.b32.xlu0 %v713, 28
      %v932 = vpop.permute.xlu0 %931
      %933 = vrot.lane.b32.xlu0 %v714, 28
      %v934 = vpop.permute.xlu0 %933
      %935 = vrot.lane.b32.xlu0 %v715, 28
      %v936 = vpop.permute.xlu0 %935
      %937 = vrot.lane.b32.xlu0 %v716, 28
      %v938 = vpop.permute.xlu0 %937
      %939 = vrot.lane.b32.xlu0 %v717, 28
      %v940 = vpop.permute.xlu0 %939
      %941 = vrot.lane.b32.xlu0 %v718, 28
      %v942 = vpop.permute.xlu0 %941
      %959 = vrot.lane.b32.xlu0 %v719, 32
      %v960 = vpop.permute.xlu0 %959
      %961 = vrot.lane.b32.xlu0 %v720, 32
      %v962 = vpop.permute.xlu0 %961
      %963 = vrot.lane.b32.xlu0 %v721, 32
      %v964 = vpop.permute.xlu0 %963
      %965 = vrot.lane.b32.xlu0 %v722, 32
      %v966 = vpop.permute.xlu0 %965
      %967 = vrot.lane.b32.xlu0 %v723, 32
      %v968 = vpop.permute.xlu0 %967
      %969 = vrot.lane.b32.xlu0 %v724, 32
      %v970 = vpop.permute.xlu0 %969
      %971 = vrot.lane.b32.xlu0 %v725, 32
      %v972 = vpop.permute.xlu0 %971
      %973 = vrot.lane.b32.xlu0 %v726, 32
      %v974 = vpop.permute.xlu0 %973
      %v983 = vsel %vm578, %v654, %v736
      %v984 = vsel %vm578, %v655, %v738
      %v985 = vsel %vm578, %v656, %v740
      %v986 = vsel %vm578, %v657, %v742
      %v987 = vsel %vm578, %v658, %v744
      %v988 = vsel %vm578, %v659, %v746
      %v989 = vsel %vm578, %v660, %v748
      %v990 = vsel %vm578, %v661, %v750
      %vm991 = vcmask 64512
      %v992 = vsel %vm991, %v983, %v768
      %v993 = vsel %vm991, %v984, %v770
      %v994 = vsel %vm991, %v985, %v772
      %v995 = vsel %vm991, %v986, %v774
      %v996 = vsel %vm991, %v987, %v776
      %v997 = vsel %vm991, %v988, %v778
      %v998 = vsel %vm991, %v989, %v780
      %v999 = vsel %vm991, %v990, %v782
      %vm1000 = vcmask 97280
      %v1001 = vsel %vm1000, %v992, %v800
      %v1002 = vsel %vm1000, %v993, %v802
      %v1003 = vsel %vm1000, %v994, %v804
      %v1004 = vsel %vm1000, %v995, %v806
      %v1005 = vsel %vm1000, %v996, %v808
      %v1006 = vsel %vm1000, %v997, %v810
      %v1007 = vsel %vm1000, %v998, %v812
      %v1008 = vsel %vm1000, %v999, %v814
      %vm1009 = vcmask 130048
      %v1010 = vsel %vm1009, %v1001, %v832
      %v1011 = vsel %vm1009, %v1002, %v834
      %v1012 = vsel %vm1009, %v1003, %v836
      %v1013 = vsel %vm1009, %v1004, %v838
      %v1014 = vsel %vm1009, %v1005, %v840
      %v1015 = vsel %vm1009, %v1006, %v842
      %v1016 = vsel %vm1009, %v1007, %v844
      %v1017 = vsel %vm1009, %v1008, %v846
      %vm1018 = vcmask 162816
      %v1019 = vsel %vm1018, %v1010, %v864
      %v1020 = vsel %vm1018, %v1011, %v866
      %v1021 = vsel %vm1018, %v1012, %v868
      %v1022 = vsel %vm1018, %v1013, %v870
      %v1023 = vsel %vm1018, %v1014, %v872
      %v1024 = vsel %vm1018, %v1015, %v874
      %v1025 = vsel %vm1018, %v1016, %v876
      %v1026 = vsel %vm1018, %v1017, %v878
      %vm1027 = vcmask 195584
      %v1028 = vsel %vm1027, %v1019, %v896
      %v1029 = vsel %vm1027, %v1020, %v898
      %v1030 = vsel %vm1027, %v1021, %v900
      %v1031 = vsel %vm1027, %v1022, %v902
      %v1032 = vsel %vm1027, %v1023, %v904
      %v1033 = vsel %vm1027, %v1024, %v906
      %v1034 = vsel %vm1027, %v1025, %v908
      %v1035 = vsel %vm1027, %v1026, %v910
      %vm1036 = vcmask 228352
      %v1037 = vsel %vm1036, %v1028, %v928
      %v1038 = vsel %vm1036, %v1029, %v930
      %v1039 = vsel %vm1036, %v1030, %v932
      %v1040 = vsel %vm1036, %v1031, %v934
      %v1041 = vsel %vm1036, %v1032, %v936
      %v1042 = vsel %vm1036, %v1033, %v938
      %v1043 = vsel %vm1036, %v1034, %v940
      %v1044 = vsel %vm1036, %v1035, %v942
      %vm1045 = vcmask 261120
      %v1046 = vsel %vm1045, %v1037, %v960
      %v1047 = vsel %vm1045, %v1038, %v962
      %v1048 = vsel %vm1045, %v1039, %v964
      %v1049 = vsel %vm1045, %v1040, %v966
      %v1050 = vsel %vm1045, %v1041, %v968
      %v1051 = vsel %vm1045, %v1042, %v970
      %v1052 = vsel %vm1045, %v1043, %v972
      %v1053 = vsel %vm1045, %v1044, %v974
      %v1054 = vpack.c.bf16 %v1047, %v1046
      %v1055 = vpack.c.bf16 %v1049, %v1048
      %v1056 = vpack.c.bf16 %v1051, %v1050
      %v1057 = vpack.c.bf16 %v1053, %v1052
      %v1058 = vld [vmem:[%s2] sm:$0xf]
      %v1059 = vld [vmem:[%s2 + $0x4] sm:$0xf]
      %v1060 = vld [vmem:[%s2 + $0x8] sm:$0xf]
      %v1061 = vld [vmem:[%s2 + $0xc] sm:$0xf]
      %v1062 = vld [vmem:[%s2 + $0x10] sm:$0x3]
      %v1068 = vunpack.c.l.b16 %v1058
      %v1069 = vunpack.c.l.b16 %v1059
      %v1070 = vunpack.c.l.b16 %v1060
      %v1071 = vunpack.c.l.b16 %v1061
      %v1072 = vunpack.c.l.b16 %v1062
      %v1073 = vpack.c.b16 %v1069, %v1068
      %v1074 = vpack.c.b16 %v1071, %v1070
      %v1075 = vpack.c.b16 %v1072, %v1072
      %vm1078 = vcmask 293888
      %v1080 = vsel %vm1078, %v1054, 0
      %v1083 = vsel %vm1078, %v1055, 0
      %v1086 = vsel %vm1078, %v1056, 0
      %v1089 = vsel %vm1078, %v1057, 0
      %vm1091 = vcmask 1041408
      %v1093 = vsel %vm1091, %v1075, 0
      %1095 = vmatprep.subr.bf16.mxu0 0
      %1096 = vmatpush1.bf16.msra.mxu0 0
      %1097 = vmatprep.subr.bf16.mxu0 0
      %1098 = vmatpush1.bf16.msra.mxu0 0
      %1099 = vmatprep.subr.bf16.mxu0 0
      %1100 = vmatpush1.bf16.msra.mxu0 0
      %1101 = vmatprep.subr.bf16.mxu0 0
      %1102 = vmatpush1.bf16.msra.mxu0 0
      %1103 = vmatprep.subr.bf16.mxu0 0
      %1104 = vmatpush1.bf16.msra.mxu0 0
      %1105 = vmatprep.subr.bf16.mxu0 0
      %1106 = vmatpush1.bf16.msra.mxu0 %v1093
      %1107 = vmatprep.subr.bf16.mxu0 0
      %1108 = vmatpush1.bf16.msra.mxu0 %v1074
      %1109 = vmatprep.subr.bf16.mxu0 0
      %1110 = vmatpush1.bf16.msra.mxu0 %v1073
      %1111 = vmatprep.subr.bf16.mxu0 0
      %1112 = vmatpush2.bf16.msra.mxu0 0
      %1113 = vmatprep.subr.bf16.mxu0 0
      %1114 = vmatpush2.bf16.msra.mxu0 0
      %1115 = vmatprep.subr.bf16.mxu0 0
      %1116 = vmatpush2.bf16.msra.mxu0 0
      %1117 = vmatprep.subr.bf16.mxu0 0
      %1118 = vmatpush2.bf16.msra.mxu0 0
      %1119 = vmatprep.subr.bf16.mxu0 0
      %1120 = vmatpush2.bf16.msra.mxu0 0
      %1121 = vmatprep.subr.bf16.mxu0 0
      %1122 = vmatpush2.bf16.msra.mxu0 0
      %1123 = vmatprep.subr.bf16.mxu0 0
      %1124 = vmatpush2.bf16.msra.mxu0 0
      %1125 = vmatprep.subr.bf16.mxu0 0
      %1126 = vmatpush2.bf16.msra.mxu0 0
      %1127 = vmatprep.mubr.bf16.mxu0 0
      %1128 = vmatmul.mubr.bf16.gmra.mxu0 %v1080
      %v1129 = vpop.f32.mrf.mxu0
      %v1130 = vadd.f32 0.0, %v1129
      %v1131 = vpop.f32.mrf.mxu0
      %v1132 = vpop.f32.mrf.mxu0
      %v1133 = vadd.f32 0.0, %v1132
      %v1134 = vpop.f32.mrf.mxu0
      %1135 = vmatprep.mubr.bf16.mxu0 0
      %1136 = vmatmul.mubr.bf16.gmra.mxu0 %v1083
      %v1137 = vpop.f32.mrf.mxu0
      %v1138 = vadd.f32 0.0, %v1137
      %v1139 = vpop.f32.mrf.mxu0
      %v1140 = vpop.f32.mrf.mxu0
      %v1141 = vadd.f32 0.0, %v1140
      %v1142 = vpop.f32.mrf.mxu0
      %1143 = vmatprep.mubr.bf16.mxu0 0
      %1144 = vmatmul.mubr.bf16.gmra.mxu0 %v1086
      %v1145 = vpop.f32.mrf.mxu0
      %v1146 = vadd.f32 0.0, %v1145
      %v1147 = vpop.f32.mrf.mxu0
      %v1148 = vpop.f32.mrf.mxu0
      %v1149 = vadd.f32 0.0, %v1148
      %v1150 = vpop.f32.mrf.mxu0
      %1151 = vmatprep.mubr.bf16.mxu0 0
      %1152 = vmatmul.mubr.bf16.gmra.mxu0 %v1089
      %v1153 = vpop.f32.mrf.mxu0
      %v1154 = vadd.f32 0.0, %v1153
      %v1155 = vpop.f32.mrf.mxu0
      %v1156 = vpop.f32.mrf.mxu0
      %v1157 = vadd.f32 0.0, %v1156
      %v1158 = vpop.f32.mrf.mxu0
      %1159 = vdwg.mxu0
      %v1160 = vld [vmem:[%s3] sm:$0x1]
      %v1161 = vlaneseq
      %v1162 = vshrl.u32 %v1161, 7
      %v1163 = vsub.s32 0, %v1162
      %v1164 = vrot.slane %v1160, %v1163
      %v1165 = vmul.f32 %v1130, %v1164
      %v1166 = vmul.f32 %v1133, %v1164
      %v1167 = vmul.f32 %v1138, %v1164
      %v1168 = vmul.f32 %v1141, %v1164
      %v1169 = vmul.f32 %v1146, %v1164
      %v1170 = vmul.f32 %v1149, %v1164
      %v1171 = vmul.f32 %v1154, %v1164
      %v1172 = vmul.f32 %v1157, %v1164
      %v1173 = vld [vmem:[%s3 + $0x1] sm:$0x1]
      %v1174 = vlaneseq
      %v1175 = vshrl.u32 %v1174, 7
      %v1176 = vsub.s32 0, %v1175
      %v1177 = vrot.slane %v1173, %v1176
      %v1178 = vadd.f32 %v1165, %v1177
      %v1179 = vadd.f32 %v1166, %v1177
      %v1180 = vadd.f32 %v1167, %v1177
      %v1181 = vadd.f32 %v1168, %v1177
      %v1182 = vadd.f32 %v1169, %v1177
      %v1183 = vadd.f32 %v1170, %v1177
      %v1184 = vadd.f32 %v1171, %v1177
      %v1185 = vadd.f32 %v1172, %v1177
      %v1186 = vtanh.pop %v1178
      %v1187 = vtanh.pop %v1179
      %v1188 = vtanh.pop %v1180
      %v1189 = vtanh.pop %v1181
      %v1190 = vtanh.pop %v1182
      %v1191 = vtanh.pop %v1183
      %v1192 = vtanh.pop %v1184
      %v1193 = vtanh.pop %v1185
      %v1194 = vld [vmem:[#allocation2] sm:$0xff]
      %v1195 = vld [vmem:[#allocation2 + $0x10] sm:$0xff]
      %v1196 = vld [vmem:[#allocation2 + $0x20] sm:$0xff]
      %v1197 = vld [vmem:[#allocation2 + $0x30] sm:$0xff]
      %v1198 = vld [vmem:[#allocation2 + $0x40] sm:$0xff]
      %v1199 = vld [vmem:[#allocation2 + $0x50] sm:$0xff]
      %v1200 = vld [vmem:[#allocation2 + $0x60] sm:$0xff]
      %v1201 = vld [vmem:[#allocation2 + $0x70] sm:$0xff]
      %v1202 = vld [vmem:[#allocation2 + $0x2] sm:$0xff]
      %v1203 = vld [vmem:[#allocation2 + $0x12] sm:$0xff]
      %v1204 = vld [vmem:[#allocation2 + $0x22] sm:$0xff]
      %v1205 = vld [vmem:[#allocation2 + $0x32] sm:$0xff]
      %v1206 = vld [vmem:[#allocation2 + $0x42] sm:$0xff]
      %v1207 = vld [vmem:[#allocation2 + $0x52] sm:$0xff]
      %v1208 = vld [vmem:[#allocation2 + $0x62] sm:$0xff]
      %v1209 = vld [vmem:[#allocation2 + $0x72] sm:$0xff]
      %v1210 = vld [vmem:[#allocation2 + $0x4] sm:$0xff]
      %v1211 = vld [vmem:[#allocation2 + $0x14] sm:$0xff]
      %v1212 = vld [vmem:[#allocation2 + $0x24] sm:$0xff]
      %v1213 = vld [vmem:[#allocation2 + $0x34] sm:$0xff]
      %v1214 = vld [vmem:[#allocation2 + $0x44] sm:$0xff]
      %v1215 = vld [vmem:[#allocation2 + $0x54] sm:$0xff]
      %v1216 = vld [vmem:[#allocation2 + $0x64] sm:$0xff]
      %v1217 = vld [vmem:[#allocation2 + $0x74] sm:$0xff]
      %v1218 = vld [vmem:[%s604] sm:$0xff]
      %v1219 = vld [vmem:[%s604 + $0x10] sm:$0xff]
      %v1220 = vld [vmem:[%s604 + $0x20] sm:$0xff]
      %v1221 = vld [vmem:[%s604 + $0x30] sm:$0xff]
      %v1222 = vld [vmem:[%s604 + $0x40] sm:$0xff]
      %v1223 = vld [vmem:[%s604 + $0x50] sm:$0xff]
      %v1224 = vld [vmem:[%s604 + $0x60] sm:$0xff]
      %v1225 = vld [vmem:[%s604 + $0x70] sm:$0xff]
      %v1226 = vld [vmem:[%s604 + $0x2] sm:$0xff]
      %v1227 = vld [vmem:[%s604 + $0x12] sm:$0xff]
      %v1228 = vld [vmem:[%s604 + $0x22] sm:$0xff]
      %v1229 = vld [vmem:[%s604 + $0x32] sm:$0xff]
      %v1230 = vld [vmem:[%s604 + $0x42] sm:$0xff]
      %v1231 = vld [vmem:[%s604 + $0x52] sm:$0xff]
      %v1232 = vld [vmem:[%s604 + $0x62] sm:$0xff]
      %v1233 = vld [vmem:[%s604 + $0x72] sm:$0xff]
      %v1234 = vld [vmem:[%s604 + $0x4] sm:$0xff]
      %v1235 = vld [vmem:[%s604 + $0x14] sm:$0xff]
      %v1236 = vld [vmem:[%s604 + $0x24] sm:$0xff]
      %v1237 = vld [vmem:[%s604 + $0x34] sm:$0xff]
      %v1238 = vld [vmem:[%s604 + $0x44] sm:$0xff]
      %v1239 = vld [vmem:[%s604 + $0x54] sm:$0xff]
      %v1240 = vld [vmem:[%s604 + $0x64] sm:$0xff]
      %v1241 = vld [vmem:[%s604 + $0x74] sm:$0xff]
      %s1242 = scalar_lea.vmem [#allocation2], 64
      %v1243 = vld [vmem:[%s1242] sm:$0xff]
      %v1244 = vld [vmem:[%s1242 + $0x10] sm:$0xff]
      %v1245 = vld [vmem:[%s1242 + $0x20] sm:$0xff]
      %v1246 = vld [vmem:[%s1242 + $0x30] sm:$0xff]
      %v1247 = vld [vmem:[%s1242 + $0x40] sm:$0xff]
      %v1248 = vld [vmem:[%s1242 + $0x50] sm:$0xff]
      %v1249 = vld [vmem:[%s1242 + $0x60] sm:$0xff]
      %v1250 = vld [vmem:[%s1242 + $0x70] sm:$0xff]
      %v1251 = vld [vmem:[%s1242 + $0x2] sm:$0xff]
      %v1252 = vld [vmem:[%s1242 + $0x12] sm:$0xff]
      %v1253 = vld [vmem:[%s1242 + $0x22] sm:$0xff]
      %v1254 = vld [vmem:[%s1242 + $0x32] sm:$0xff]
      %v1255 = vld [vmem:[%s1242 + $0x42] sm:$0xff]
      %v1256 = vld [vmem:[%s1242 + $0x52] sm:$0xff]
      %v1257 = vld [vmem:[%s1242 + $0x62] sm:$0xff]
      %v1258 = vld [vmem:[%s1242 + $0x72] sm:$0xff]
      %v1259 = vld [vmem:[%s1242 + $0x4] sm:$0xff]
      %v1260 = vld [vmem:[%s1242 + $0x14] sm:$0xff]
      %v1261 = vld [vmem:[%s1242 + $0x24] sm:$0xff]
      %v1262 = vld [vmem:[%s1242 + $0x34] sm:$0xff]
      %v1263 = vld [vmem:[%s1242 + $0x44] sm:$0xff]
      %v1264 = vld [vmem:[%s1242 + $0x54] sm:$0xff]
      %v1265 = vld [vmem:[%s1242 + $0x64] sm:$0xff]
      %v1266 = vld [vmem:[%s1242 + $0x74] sm:$0xff]
      %1275 = vrot.lane.b32.xlu0 %v1202, 4
      %v1276 = vpop.permute.xlu0 %1275
      %1277 = vrot.lane.b32.xlu0 %v1203, 4
      %v1278 = vpop.permute.xlu0 %1277
      %1279 = vrot.lane.b32.xlu0 %v1204, 4
      %v1280 = vpop.permute.xlu0 %1279
      %1281 = vrot.lane.b32.xlu0 %v1205, 4
      %v1282 = vpop.permute.xlu0 %1281
      %1283 = vrot.lane.b32.xlu0 %v1206, 4
      %v1284 = vpop.permute.xlu0 %1283
      %1285 = vrot.lane.b32.xlu0 %v1207, 4
      %v1286 = vpop.permute.xlu0 %1285
      %1287 = vrot.lane.b32.xlu0 %v1208, 4
      %v1288 = vpop.permute.xlu0 %1287
      %1289 = vrot.lane.b32.xlu0 %v1209, 4
      %v1290 = vpop.permute.xlu0 %1289
      %1307 = vrot.lane.b32.xlu0 %v1210, 8
      %v1308 = vpop.permute.xlu0 %1307
      %1309 = vrot.lane.b32.xlu0 %v1211, 8
      %v1310 = vpop.permute.xlu0 %1309
      %1311 = vrot.lane.b32.xlu0 %v1212, 8
      %v1312 = vpop.permute.xlu0 %1311
      %1313 = vrot.lane.b32.xlu0 %v1213, 8
      %v1314 = vpop.permute.xlu0 %1313
      %1315 = vrot.lane.b32.xlu0 %v1214, 8
      %v1316 = vpop.permute.xlu0 %1315
      %1317 = vrot.lane.b32.xlu0 %v1215, 8
      %v1318 = vpop.permute.xlu0 %1317
      %1319 = vrot.lane.b32.xlu0 %v1216, 8
      %v1320 = vpop.permute.xlu0 %1319
      %1321 = vrot.lane.b32.xlu0 %v1217, 8
      %v1322 = vpop.permute.xlu0 %1321
      %1339 = vrot.lane.b32.xlu0 %v1218, 12
      %v1340 = vpop.permute.xlu0 %1339
      %1341 = vrot.lane.b32.xlu0 %v1219, 12
      %v1342 = vpop.permute.xlu0 %1341
      %1343 = vrot.lane.b32.xlu0 %v1220, 12
      %v1344 = vpop.permute.xlu0 %1343
      %1345 = vrot.lane.b32.xlu0 %v1221, 12
      %v1346 = vpop.permute.xlu0 %1345
      %1347 = vrot.lane.b32.xlu0 %v1222, 12
      %v1348 = vpop.permute.xlu0 %1347
      %1349 = vrot.lane.b32.xlu0 %v1223, 12
      %v1350 = vpop.permute.xlu0 %1349
      %1351 = vrot.lane.b32.xlu0 %v1224, 12
      %v1352 = vpop.permute.xlu0 %1351
      %1353 = vrot.lane.b32.xlu0 %v1225, 12
      %v1354 = vpop.permute.xlu0 %1353
      %1371 = vrot.lane.b32.xlu0 %v1226, 16
      %v1372 = vpop.permute.xlu0 %1371
      %1373 = vrot.lane.b32.xlu0 %v1227, 16
      %v1374 = vpop.permute.xlu0 %1373
      %1375 = vrot.lane.b32.xlu0 %v1228, 16
      %v1376 = vpop.permute.xlu0 %1375
      %1377 = vrot.lane.b32.xlu0 %v1229, 16
      %v1378 = vpop.permute.xlu0 %1377
      %1379 = vrot.lane.b32.xlu0 %v1230, 16
      %v1380 = vpop.permute.xlu0 %1379
      %1381 = vrot.lane.b32.xlu0 %v1231, 16
      %v1382 = vpop.permute.xlu0 %1381
      %1383 = vrot.lane.b32.xlu0 %v1232, 16
      %v1384 = vpop.permute.xlu0 %1383
      %1385 = vrot.lane.b32.xlu0 %v1233, 16
      %v1386 = vpop.permute.xlu0 %1385
      %1403 = vrot.lane.b32.xlu0 %v1234, 20
      %v1404 = vpop.permute.xlu0 %1403
      %1405 = vrot.lane.b32.xlu0 %v1235, 20
      %v1406 = vpop.permute.xlu0 %1405
      %1407 = vrot.lane.b32.xlu0 %v1236, 20
      %v1408 = vpop.permute.xlu0 %1407
      %1409 = vrot.lane.b32.xlu0 %v1237, 20
      %v1410 = vpop.permute.xlu0 %1409
      %1411 = vrot.lane.b32.xlu0 %v1238, 20
      %v1412 = vpop.permute.xlu0 %1411
      %1413 = vrot.lane.b32.xlu0 %v1239, 20
      %v1414 = vpop.permute.xlu0 %1413
      %1415 = vrot.lane.b32.xlu0 %v1240, 20
      %v1416 = vpop.permute.xlu0 %1415
      %1417 = vrot.lane.b32.xlu0 %v1241, 20
      %v1418 = vpop.permute.xlu0 %1417
      %1435 = vrot.lane.b32.xlu0 %v1243, 24
      %v1436 = vpop.permute.xlu0 %1435
      %1437 = vrot.lane.b32.xlu0 %v1244, 24
      %v1438 = vpop.permute.xlu0 %1437
      %1439 = vrot.lane.b32.xlu0 %v1245, 24
      %v1440 = vpop.permute.xlu0 %1439
      %1441 = vrot.lane.b32.xlu0 %v1246, 24
      %v1442 = vpop.permute.xlu0 %1441
      %1443 = vrot.lane.b32.xlu0 %v1247, 24
      %v1444 = vpop.permute.xlu0 %1443
      %1445 = vrot.lane.b32.xlu0 %v1248, 24
      %v1446 = vpop.permute.xlu0 %1445
      %1447 = vrot.lane.b32.xlu0 %v1249, 24
      %v1448 = vpop.permute.xlu0 %1447
      %1449 = vrot.lane.b32.xlu0 %v1250, 24
      %v1450 = vpop.permute.xlu0 %1449
      %1467 = vrot.lane.b32.xlu0 %v1251, 28
      %v1468 = vpop.permute.xlu0 %1467
      %1469 = vrot.lane.b32.xlu0 %v1252, 28
      %v1470 = vpop.permute.xlu0 %1469
      %1471 = vrot.lane.b32.xlu0 %v1253, 28
      %v1472 = vpop.permute.xlu0 %1471
      %1473 = vrot.lane.b32.xlu0 %v1254, 28
      %v1474 = vpop.permute.xlu0 %1473
      %1475 = vrot.lane.b32.xlu0 %v1255, 28
      %v1476 = vpop.permute.xlu0 %1475
      %1477 = vrot.lane.b32.xlu0 %v1256, 28
      %v1478 = vpop.permute.xlu0 %1477
      %1479 = vrot.lane.b32.xlu0 %v1257, 28
      %v1480 = vpop.permute.xlu0 %1479
      %1481 = vrot.lane.b32.xlu0 %v1258, 28
      %v1482 = vpop.permute.xlu0 %1481
      %1499 = vrot.lane.b32.xlu0 %v1259, 32
      %v1500 = vpop.permute.xlu0 %1499
      %1501 = vrot.lane.b32.xlu0 %v1260, 32
      %v1502 = vpop.permute.xlu0 %1501
      %1503 = vrot.lane.b32.xlu0 %v1261, 32
      %v1504 = vpop.permute.xlu0 %1503
      %1505 = vrot.lane.b32.xlu0 %v1262, 32
      %v1506 = vpop.permute.xlu0 %1505
      %1507 = vrot.lane.b32.xlu0 %v1263, 32
      %v1508 = vpop.permute.xlu0 %1507
      %1509 = vrot.lane.b32.xlu0 %v1264, 32
      %v1510 = vpop.permute.xlu0 %1509
      %1511 = vrot.lane.b32.xlu0 %v1265, 32
      %v1512 = vpop.permute.xlu0 %1511
      %1513 = vrot.lane.b32.xlu0 %v1266, 32
      %v1514 = vpop.permute.xlu0 %1513
      %v1523 = vsel %vm578, %v1194, %v1276
      %v1524 = vsel %vm578, %v1195, %v1278
      %v1525 = vsel %vm578, %v1196, %v1280
      %v1526 = vsel %vm578, %v1197, %v1282
      %v1527 = vsel %vm578, %v1198, %v1284
      %v1528 = vsel %vm578, %v1199, %v1286
      %v1529 = vsel %vm578, %v1200, %v1288
      %v1530 = vsel %vm578, %v1201, %v1290
      %v1531 = vsel %vm991, %v1523, %v1308
      %v1532 = vsel %vm991, %v1524, %v1310
      %v1533 = vsel %vm991, %v1525, %v1312
      %v1534 = vsel %vm991, %v1526, %v1314
      %v1535 = vsel %vm991, %v1527, %v1316
      %v1536 = vsel %vm991, %v1528, %v1318
      %v1537 = vsel %vm991, %v1529, %v1320
      %v1538 = vsel %vm991, %v1530, %v1322
      %v1539 = vsel %vm1000, %v1531, %v1340
      %v1540 = vsel %vm1000, %v1532, %v1342
      %v1541 = vsel %vm1000, %v1533, %v1344
      %v1542 = vsel %vm1000, %v1534, %v1346
      %v1543 = vsel %vm1000, %v1535, %v1348
      %v1544 = vsel %vm1000, %v1536, %v1350
      %v1545 = vsel %vm1000, %v1537, %v1352
      %v1546 = vsel %vm1000, %v1538, %v1354
      %v1547 = vsel %vm1009, %v1539, %v1372
      %v1548 = vsel %vm1009, %v1540, %v1374
      %v1549 = vsel %vm1009, %v1541, %v1376
      %v1550 = vsel %vm1009, %v1542, %v1378
      %v1551 = vsel %vm1009, %v1543, %v1380
      %v1552 = vsel %vm1009, %v1544, %v1382
      %v1553 = vsel %vm1009, %v1545, %v1384
      %v1554 = vsel %vm1009, %v1546, %v1386
      %v1555 = vsel %vm1018, %v1547, %v1404
      %v1556 = vsel %vm1018, %v1548, %v1406
      %v1557 = vsel %vm1018, %v1549, %v1408
      %v1558 = vsel %vm1018, %v1550, %v1410
      %v1559 = vsel %vm1018, %v1551, %v1412
      %v1560 = vsel %vm1018, %v1552, %v1414
      %v1561 = vsel %vm1018, %v1553, %v1416
      %v1562 = vsel %vm1018, %v1554, %v1418
      %v1563 = vsel %vm1027, %v1555, %v1436
      %v1564 = vsel %vm1027, %v1556, %v1438
      %v1565 = vsel %vm1027, %v1557, %v1440
      %v1566 = vsel %vm1027, %v1558, %v1442
      %v1567 = vsel %vm1027, %v1559, %v1444
      %v1568 = vsel %vm1027, %v1560, %v1446
      %v1569 = vsel %vm1027, %v1561, %v1448
      %v1570 = vsel %vm1027, %v1562, %v1450
      %v1571 = vsel %vm1036, %v1563, %v1468
      %v1572 = vsel %vm1036, %v1564, %v1470
      %v1573 = vsel %vm1036, %v1565, %v1472
      %v1574 = vsel %vm1036, %v1566, %v1474
      %v1575 = vsel %vm1036, %v1567, %v1476
      %v1576 = vsel %vm1036, %v1568, %v1478
      %v1577 = vsel %vm1036, %v1569, %v1480
      %v1578 = vsel %vm1036, %v1570, %v1482
      %v1579 = vsel %vm1045, %v1571, %v1500
      %v1580 = vsel %vm1045, %v1572, %v1502
      %v1581 = vsel %vm1045, %v1573, %v1504
      %v1582 = vsel %vm1045, %v1574, %v1506
      %v1583 = vsel %vm1045, %v1575, %v1508
      %v1584 = vsel %vm1045, %v1576, %v1510
      %v1585 = vsel %vm1045, %v1577, %v1512
      %v1586 = vsel %vm1045, %v1578, %v1514
      %v1587 = vpack.c.bf16 %v1580, %v1579
      %v1588 = vpack.c.bf16 %v1582, %v1581
      %v1589 = vpack.c.bf16 %v1584, %v1583
      %v1590 = vpack.c.bf16 %v1586, %v1585
      %v1591 = vld [vmem:[%s4] sm:$0xf]
      %v1592 = vld [vmem:[%s4 + $0x4] sm:$0xf]
      %v1593 = vld [vmem:[%s4 + $0x8] sm:$0xf]
      %v1594 = vld [vmem:[%s4 + $0xc] sm:$0xf]
      %v1595 = vld [vmem:[%s4 + $0x10] sm:$0x3]
      %v1601 = vunpack.c.l.b16 %v1591
      %v1602 = vunpack.c.l.b16 %v1592
      %v1603 = vunpack.c.l.b16 %v1593
      %v1604 = vunpack.c.l.b16 %v1594
      %v1605 = vunpack.c.l.b16 %v1595
      %v1606 = vpack.c.b16 %v1602, %v1601
      %v1607 = vpack.c.b16 %v1604, %v1603
      %v1608 = vpack.c.b16 %v1605, %v1605
      %v1612 = vsel %vm1078, %v1587, 0
      %v1615 = vsel %vm1078, %v1588, 0
      %v1618 = vsel %vm1078, %v1589, 0
      %v1621 = vsel %vm1078, %v1590, 0
      %v1624 = vsel %vm1091, %v1608, 0
      %1626 = vmatprep.subr.bf16.mxu0 0
      %1627 = vmatpush1.bf16.msra.mxu0 0
      %1628 = vmatprep.subr.bf16.mxu0 0
      %1629 = vmatpush1.bf16.msra.mxu0 0
      %1630 = vmatprep.subr.bf16.mxu0 0
      %1631 = vmatpush1.bf16.msra.mxu0 0
      %1632 = vmatprep.subr.bf16.mxu0 0
      %1633 = vmatpush1.bf16.msra.mxu0 0
      %1634 = vmatprep.subr.bf16.mxu0 0
      %1635 = vmatpush1.bf16.msra.mxu0 0
      %1636 = vmatprep.subr.bf16.mxu0 0
      %1637 = vmatpush1.bf16.msra.mxu0 %v1624
      %1638 = vmatprep.subr.bf16.mxu0 0
      %1639 = vmatpush1.bf16.msra.mxu0 %v1607
      %1640 = vmatprep.subr.bf16.mxu0 0
      %1641 = vmatpush1.bf16.msra.mxu0 %v1606
      %1642 = vmatprep.subr.bf16.mxu0 0
      %1643 = vmatpush2.bf16.msra.mxu0 0
      %1644 = vmatprep.subr.bf16.mxu0 0
      %1645 = vmatpush2.bf16.msra.mxu0 0
      %1646 = vmatprep.subr.bf16.mxu0 0
      %1647 = vmatpush2.bf16.msra.mxu0 0
      %1648 = vmatprep.subr.bf16.mxu0 0
      %1649 = vmatpush2.bf16.msra.mxu0 0
      %1650 = vmatprep.subr.bf16.mxu0 0
      %1651 = vmatpush2.bf16.msra.mxu0 0
      %1652 = vmatprep.subr.bf16.mxu0 0
      %1653 = vmatpush2.bf16.msra.mxu0 0
      %1654 = vmatprep.subr.bf16.mxu0 0
      %1655 = vmatpush2.bf16.msra.mxu0 0
      %1656 = vmatprep.subr.bf16.mxu0 0
      %1657 = vmatpush2.bf16.msra.mxu0 0
      %1658 = vmatprep.mubr.bf16.mxu0 0
      %1659 = vmatmul.mubr.bf16.gmra.mxu0 %v1612
      %v1660 = vpop.f32.mrf.mxu0
      %v1661 = vadd.f32 0.0, %v1660
      %v1662 = vpop.f32.mrf.mxu0
      %v1663 = vpop.f32.mrf.mxu0
      %v1664 = vadd.f32 0.0, %v1663
      %v1665 = vpop.f32.mrf.mxu0
      %1666 = vmatprep.mubr.bf16.mxu0 0
      %1667 = vmatmul.mubr.bf16.gmra.mxu0 %v1615
      %v1668 = vpop.f32.mrf.mxu0
      %v1669 = vadd.f32 0.0, %v1668
      %v1670 = vpop.f32.mrf.mxu0
      %v1671 = vpop.f32.mrf.mxu0
      %v1672 = vadd.f32 0.0, %v1671
      %v1673 = vpop.f32.mrf.mxu0
      %1674 = vmatprep.mubr.bf16.mxu0 0
      %1675 = vmatmul.mubr.bf16.gmra.mxu0 %v1618
      %v1676 = vpop.f32.mrf.mxu0
      %v1677 = vadd.f32 0.0, %v1676
      %v1678 = vpop.f32.mrf.mxu0
      %v1679 = vpop.f32.mrf.mxu0
      %v1680 = vadd.f32 0.0, %v1679
      %v1681 = vpop.f32.mrf.mxu0
      %1682 = vmatprep.mubr.bf16.mxu0 0
      %1683 = vmatmul.mubr.bf16.gmra.mxu0 %v1621
      %v1684 = vpop.f32.mrf.mxu0
      %v1685 = vadd.f32 0.0, %v1684
      %v1686 = vpop.f32.mrf.mxu0
      %v1687 = vpop.f32.mrf.mxu0
      %v1688 = vadd.f32 0.0, %v1687
      %v1689 = vpop.f32.mrf.mxu0
      %1690 = vdwg.mxu0
      %v1691 = vld [vmem:[%s5] sm:$0x1]
      %v1692 = vlaneseq
      %v1693 = vshrl.u32 %v1692, 7
      %v1694 = vsub.s32 0, %v1693
      %v1695 = vrot.slane %v1691, %v1694
      %v1696 = vmul.f32 %v1661, %v1695
      %v1697 = vmul.f32 %v1664, %v1695
      %v1698 = vmul.f32 %v1669, %v1695
      %v1699 = vmul.f32 %v1672, %v1695
      %v1700 = vmul.f32 %v1677, %v1695
      %v1701 = vmul.f32 %v1680, %v1695
      %v1702 = vmul.f32 %v1685, %v1695
      %v1703 = vmul.f32 %v1688, %v1695
      %v1704 = vld [vmem:[%s5 + $0x1] sm:$0x1]
      %v1705 = vlaneseq
      %v1706 = vshrl.u32 %v1705, 7
      %v1707 = vsub.s32 0, %v1706
      %v1708 = vrot.slane %v1704, %v1707
      %v1709 = vadd.f32 %v1696, %v1708
      %v1710 = vadd.f32 %v1697, %v1708
      %v1711 = vadd.f32 %v1698, %v1708
      %v1712 = vadd.f32 %v1699, %v1708
      %v1713 = vadd.f32 %v1700, %v1708
      %v1714 = vadd.f32 %v1701, %v1708
      %v1715 = vadd.f32 %v1702, %v1708
      %v1716 = vadd.f32 %v1703, %v1708
      %v1717 = vtanh.pop %v1709
      %v1718 = vtanh.pop %v1710
      %v1719 = vtanh.pop %v1711
      %v1720 = vtanh.pop %v1712
      %v1721 = vtanh.pop %v1713
      %v1722 = vtanh.pop %v1714
      %v1723 = vtanh.pop %v1715
      %v1724 = vtanh.pop %v1716
      %v1725 = vmax.f32 %v1709, 0.0
      %v1726 = vmax.f32 %v1710, 0.0
      %v1727 = vmax.f32 %v1711, 0.0
      %v1728 = vmax.f32 %v1712, 0.0
      %v1729 = vmax.f32 %v1713, 0.0
      %v1730 = vmax.f32 %v1714, 0.0
      %v1731 = vmax.f32 %v1715, 0.0
      %v1732 = vmax.f32 %v1716, 0.0
      %s1733 = scalar_lea.vmem [#allocation2], 16
      %v1734 = vld [vmem:[%s1733 + $0x1] sm:$0xff]
      %v1735 = vld [vmem:[%s1733 + $0x11] sm:$0xff]
      %v1736 = vld [vmem:[%s1733 + $0x21] sm:$0xff]
      %v1737 = vld [vmem:[%s1733 + $0x31] sm:$0xff]
      %v1738 = vld [vmem:[%s1733 + $0x41] sm:$0xff]
      %v1739 = vld [vmem:[%s1733 + $0x51] sm:$0xff]
      %v1740 = vld [vmem:[%s1733 + $0x61] sm:$0xff]
      %v1741 = vld [vmem:[%s1733 + $0x71] sm:$0xff]
      %v1742 = vld [vmem:[%s1733 + $0x2] sm:$0xff]
      %v1743 = vld [vmem:[%s1733 + $0x12] sm:$0xff]
      %v1744 = vld [vmem:[%s1733 + $0x22] sm:$0xff]
      %v1745 = vld [vmem:[%s1733 + $0x32] sm:$0xff]
      %v1746 = vld [vmem:[%s1733 + $0x42] sm:$0xff]
      %v1747 = vld [vmem:[%s1733 + $0x52] sm:$0xff]
      %v1748 = vld [vmem:[%s1733 + $0x62] sm:$0xff]
      %v1749 = vld [vmem:[%s1733 + $0x72] sm:$0xff]
      %v1750 = vld [vmem:[%s1733 + $0x3] sm:$0xff]
      %v1751 = vld [vmem:[%s1733 + $0x13] sm:$0xff]
      %v1752 = vld [vmem:[%s1733 + $0x23] sm:$0xff]
      %v1753 = vld [vmem:[%s1733 + $0x33] sm:$0xff]
      %v1754 = vld [vmem:[%s1733 + $0x43] sm:$0xff]
      %v1755 = vld [vmem:[%s1733 + $0x53] sm:$0xff]
      %v1756 = vld [vmem:[%s1733 + $0x63] sm:$0xff]
      %v1757 = vld [vmem:[%s1733 + $0x73] sm:$0xff]
      %v1758 = vld [vmem:[%s604 + $0x1] sm:$0xff]
      %v1759 = vld [vmem:[%s604 + $0x11] sm:$0xff]
      %v1760 = vld [vmem:[%s604 + $0x21] sm:$0xff]
      %v1761 = vld [vmem:[%s604 + $0x31] sm:$0xff]
      %v1762 = vld [vmem:[%s604 + $0x41] sm:$0xff]
      %v1763 = vld [vmem:[%s604 + $0x51] sm:$0xff]
      %v1764 = vld [vmem:[%s604 + $0x61] sm:$0xff]
      %v1765 = vld [vmem:[%s604 + $0x71] sm:$0xff]
      %v1766 = vld [vmem:[%s604 + $0x3] sm:$0xff]
      %v1767 = vld [vmem:[%s604 + $0x13] sm:$0xff]
      %v1768 = vld [vmem:[%s604 + $0x23] sm:$0xff]
      %v1769 = vld [vmem:[%s604 + $0x33] sm:$0xff]
      %v1770 = vld [vmem:[%s604 + $0x43] sm:$0xff]
      %v1771 = vld [vmem:[%s604 + $0x53] sm:$0xff]
      %v1772 = vld [vmem:[%s604 + $0x63] sm:$0xff]
      %v1773 = vld [vmem:[%s604 + $0x73] sm:$0xff]
      %s1774 = scalar_lea.vmem [#allocation2], 48
      %v1775 = vld [vmem:[%s1774 + $0x1] sm:$0xff]
      %v1776 = vld [vmem:[%s1774 + $0x11] sm:$0xff]
      %v1777 = vld [vmem:[%s1774 + $0x21] sm:$0xff]
      %v1778 = vld [vmem:[%s1774 + $0x31] sm:$0xff]
      %v1779 = vld [vmem:[%s1774 + $0x41] sm:$0xff]
      %v1780 = vld [vmem:[%s1774 + $0x51] sm:$0xff]
      %v1781 = vld [vmem:[%s1774 + $0x61] sm:$0xff]
      %v1782 = vld [vmem:[%s1774 + $0x71] sm:$0xff]
      %v1783 = vld [vmem:[%s1774 + $0x2] sm:$0xff]
      %v1784 = vld [vmem:[%s1774 + $0x12] sm:$0xff]
      %v1785 = vld [vmem:[%s1774 + $0x22] sm:$0xff]
      %v1786 = vld [vmem:[%s1774 + $0x32] sm:$0xff]
      %v1787 = vld [vmem:[%s1774 + $0x42] sm:$0xff]
      %v1788 = vld [vmem:[%s1774 + $0x52] sm:$0xff]
      %v1789 = vld [vmem:[%s1774 + $0x62] sm:$0xff]
      %v1790 = vld [vmem:[%s1774 + $0x72] sm:$0xff]
      %v1791 = vld [vmem:[%s1774 + $0x3] sm:$0xff]
      %v1792 = vld [vmem:[%s1774 + $0x13] sm:$0xff]
      %v1793 = vld [vmem:[%s1774 + $0x23] sm:$0xff]
      %v1794 = vld [vmem:[%s1774 + $0x33] sm:$0xff]
      %v1795 = vld [vmem:[%s1774 + $0x43] sm:$0xff]
      %v1796 = vld [vmem:[%s1774 + $0x53] sm:$0xff]
      %v1797 = vld [vmem:[%s1774 + $0x63] sm:$0xff]
      %v1798 = vld [vmem:[%s1774 + $0x73] sm:$0xff]
      %1807 = vrot.lane.b32.xlu0 %v1742, 4
      %v1808 = vpop.permute.xlu0 %1807
      %1809 = vrot.lane.b32.xlu0 %v1743, 4
      %v1810 = vpop.permute.xlu0 %1809
      %1811 = vrot.lane.b32.xlu0 %v1744, 4
      %v1812 = vpop.permute.xlu0 %1811
      %1813 = vrot.lane.b32.xlu0 %v1745, 4
      %v1814 = vpop.permute.xlu0 %1813
      %1815 = vrot.lane.b32.xlu0 %v1746, 4
      %v1816 = vpop.permute.xlu0 %1815
      %1817 = vrot.lane.b32.xlu0 %v1747, 4
      %v1818 = vpop.permute.xlu0 %1817
      %1819 = vrot.lane.b32.xlu0 %v1748, 4
      %v1820 = vpop.permute.xlu0 %1819
      %1821 = vrot.lane.b32.xlu0 %v1749, 4
      %v1822 = vpop.permute.xlu0 %1821
      %1839 = vrot.lane.b32.xlu0 %v1750, 8
      %v1840 = vpop.permute.xlu0 %1839
      %1841 = vrot.lane.b32.xlu0 %v1751, 8
      %v1842 = vpop.permute.xlu0 %1841
      %1843 = vrot.lane.b32.xlu0 %v1752, 8
      %v1844 = vpop.permute.xlu0 %1843
      %1845 = vrot.lane.b32.xlu0 %v1753, 8
      %v1846 = vpop.permute.xlu0 %1845
      %1847 = vrot.lane.b32.xlu0 %v1754, 8
      %v1848 = vpop.permute.xlu0 %1847
      %1849 = vrot.lane.b32.xlu0 %v1755, 8
      %v1850 = vpop.permute.xlu0 %1849
      %1851 = vrot.lane.b32.xlu0 %v1756, 8
      %v1852 = vpop.permute.xlu0 %1851
      %1853 = vrot.lane.b32.xlu0 %v1757, 8
      %v1854 = vpop.permute.xlu0 %1853
      %1871 = vrot.lane.b32.xlu0 %v1758, 12
      %v1872 = vpop.permute.xlu0 %1871
      %1873 = vrot.lane.b32.xlu0 %v1759, 12
      %v1874 = vpop.permute.xlu0 %1873
      %1875 = vrot.lane.b32.xlu0 %v1760, 12
      %v1876 = vpop.permute.xlu0 %1875
      %1877 = vrot.lane.b32.xlu0 %v1761, 12
      %v1878 = vpop.permute.xlu0 %1877
      %1879 = vrot.lane.b32.xlu0 %v1762, 12
      %v1880 = vpop.permute.xlu0 %1879
      %1881 = vrot.lane.b32.xlu0 %v1763, 12
      %v1882 = vpop.permute.xlu0 %1881
      %1883 = vrot.lane.b32.xlu0 %v1764, 12
      %v1884 = vpop.permute.xlu0 %1883
      %1885 = vrot.lane.b32.xlu0 %v1765, 12
      %v1886 = vpop.permute.xlu0 %1885
      %1903 = vrot.lane.b32.xlu0 %v1766, 20
      %v1904 = vpop.permute.xlu0 %1903
      %1905 = vrot.lane.b32.xlu0 %v1767, 20
      %v1906 = vpop.permute.xlu0 %1905
      %1907 = vrot.lane.b32.xlu0 %v1768, 20
      %v1908 = vpop.permute.xlu0 %1907
      %1909 = vrot.lane.b32.xlu0 %v1769, 20
      %v1910 = vpop.permute.xlu0 %1909
      %1911 = vrot.lane.b32.xlu0 %v1770, 20
      %v1912 = vpop.permute.xlu0 %1911
      %1913 = vrot.lane.b32.xlu0 %v1771, 20
      %v1914 = vpop.permute.xlu0 %1913
      %1915 = vrot.lane.b32.xlu0 %v1772, 20
      %v1916 = vpop.permute.xlu0 %1915
      %1917 = vrot.lane.b32.xlu0 %v1773, 20
      %v1918 = vpop.permute.xlu0 %1917
      %1935 = vrot.lane.b32.xlu0 %v1775, 24
      %v1936 = vpop.permute.xlu0 %1935
      %1937 = vrot.lane.b32.xlu0 %v1776, 24
      %v1938 = vpop.permute.xlu0 %1937
      %1939 = vrot.lane.b32.xlu0 %v1777, 24
      %v1940 = vpop.permute.xlu0 %1939
      %1941 = vrot.lane.b32.xlu0 %v1778, 24
      %v1942 = vpop.permute.xlu0 %1941
      %1943 = vrot.lane.b32.xlu0 %v1779, 24
      %v1944 = vpop.permute.xlu0 %1943
      %1945 = vrot.lane.b32.xlu0 %v1780, 24
      %v1946 = vpop.permute.xlu0 %1945
      %1947 = vrot.lane.b32.xlu0 %v1781, 24
      %v1948 = vpop.permute.xlu0 %1947
      %1949 = vrot.lane.b32.xlu0 %v1782, 24
      %v1950 = vpop.permute.xlu0 %1949
      %1967 = vrot.lane.b32.xlu0 %v1783, 28
      %v1968 = vpop.permute.xlu0 %1967
      %1969 = vrot.lane.b32.xlu0 %v1784, 28
      %v1970 = vpop.permute.xlu0 %1969
      %1971 = vrot.lane.b32.xlu0 %v1785, 28
      %v1972 = vpop.permute.xlu0 %1971
      %1973 = vrot.lane.b32.xlu0 %v1786, 28
      %v1974 = vpop.permute.xlu0 %1973
      %1975 = vrot.lane.b32.xlu0 %v1787, 28
      %v1976 = vpop.permute.xlu0 %1975
      %1977 = vrot.lane.b32.xlu0 %v1788, 28
      %v1978 = vpop.permute.xlu0 %1977
      %1979 = vrot.lane.b32.xlu0 %v1789, 28
      %v1980 = vpop.permute.xlu0 %1979
      %1981 = vrot.lane.b32.xlu0 %v1790, 28
      %v1982 = vpop.permute.xlu0 %1981
      %1999 = vrot.lane.b32.xlu0 %v1791, 32
      %v2000 = vpop.permute.xlu0 %1999
      %2001 = vrot.lane.b32.xlu0 %v1792, 32
      %v2002 = vpop.permute.xlu0 %2001
      %2003 = vrot.lane.b32.xlu0 %v1793, 32
      %v2004 = vpop.permute.xlu0 %2003
      %2005 = vrot.lane.b32.xlu0 %v1794, 32
      %v2006 = vpop.permute.xlu0 %2005
      %2007 = vrot.lane.b32.xlu0 %v1795, 32
      %v2008 = vpop.permute.xlu0 %2007
      %2009 = vrot.lane.b32.xlu0 %v1796, 32
      %v2010 = vpop.permute.xlu0 %2009
      %2011 = vrot.lane.b32.xlu0 %v1797, 32
      %v2012 = vpop.permute.xlu0 %2011
      %2013 = vrot.lane.b32.xlu0 %v1798, 32
      %v2014 = vpop.permute.xlu0 %2013
      %v2023 = vsel %vm578, %v1734, %v1808
      %v2024 = vsel %vm578, %v1735, %v1810
      %v2025 = vsel %vm578, %v1736, %v1812
      %v2026 = vsel %vm578, %v1737, %v1814
      %v2027 = vsel %vm578, %v1738, %v1816
      %v2028 = vsel %vm578, %v1739, %v1818
      %v2029 = vsel %vm578, %v1740, %v1820
      %v2030 = vsel %vm578, %v1741, %v1822
      %v2031 = vsel %vm991, %v2023, %v1840
      %v2032 = vsel %vm991, %v2024, %v1842
      %v2033 = vsel %vm991, %v2025, %v1844
      %v2034 = vsel %vm991, %v2026, %v1846
      %v2035 = vsel %vm991, %v2027, %v1848
      %v2036 = vsel %vm991, %v2028, %v1850
      %v2037 = vsel %vm991, %v2029, %v1852
      %v2038 = vsel %vm991, %v2030, %v1854
      %v2039 = vsel %vm1000, %v2031, %v1872
      %v2040 = vsel %vm1000, %v2032, %v1874
      %v2041 = vsel %vm1000, %v2033, %v1876
      %v2042 = vsel %vm1000, %v2034, %v1878
      %v2043 = vsel %vm1000, %v2035, %v1880
      %v2044 = vsel %vm1000, %v2036, %v1882
      %v2045 = vsel %vm1000, %v2037, %v1884
      %v2046 = vsel %vm1000, %v2038, %v1886
      %v2047 = vsel %vm1009, %v2039, %v1372
      %v2048 = vsel %vm1009, %v2040, %v1374
      %v2049 = vsel %vm1009, %v2041, %v1376
      %v2050 = vsel %vm1009, %v2042, %v1378
      %v2051 = vsel %vm1009, %v2043, %v1380
      %v2052 = vsel %vm1009, %v2044, %v1382
      %v2053 = vsel %vm1009, %v2045, %v1384
      %v2054 = vsel %vm1009, %v2046, %v1386
      %v2055 = vsel %vm1018, %v2047, %v1904
      %v2056 = vsel %vm1018, %v2048, %v1906
      %v2057 = vsel %vm1018, %v2049, %v1908
      %v2058 = vsel %vm1018, %v2050, %v1910
      %v2059 = vsel %vm1018, %v2051, %v1912
      %v2060 = vsel %vm1018, %v2052, %v1914
      %v2061 = vsel %vm1018, %v2053, %v1916
      %v2062 = vsel %vm1018, %v2054, %v1918
      %v2063 = vsel %vm1027, %v2055, %v1936
      %v2064 = vsel %vm1027, %v2056, %v1938
      %v2065 = vsel %vm1027, %v2057, %v1940
      %v2066 = vsel %vm1027, %v2058, %v1942
      %v2067 = vsel %vm1027, %v2059, %v1944
      %v2068 = vsel %vm1027, %v2060, %v1946
      %v2069 = vsel %vm1027, %v2061, %v1948
      %v2070 = vsel %vm1027, %v2062, %v1950
      %v2071 = vsel %vm1036, %v2063, %v1968
      %v2072 = vsel %vm1036, %v2064, %v1970
      %v2073 = vsel %vm1036, %v2065, %v1972
      %v2074 = vsel %vm1036, %v2066, %v1974
      %v2075 = vsel %vm1036, %v2067, %v1976
      %v2076 = vsel %vm1036, %v2068, %v1978
      %v2077 = vsel %vm1036, %v2069, %v1980
      %v2078 = vsel %vm1036, %v2070, %v1982
      %v2079 = vsel %vm1045, %v2071, %v2000
      %v2080 = vsel %vm1045, %v2072, %v2002
      %v2081 = vsel %vm1045, %v2073, %v2004
      %v2082 = vsel %vm1045, %v2074, %v2006
      %v2083 = vsel %vm1045, %v2075, %v2008
      %v2084 = vsel %vm1045, %v2076, %v2010
      %v2085 = vsel %vm1045, %v2077, %v2012
      %v2086 = vsel %vm1045, %v2078, %v2014
      %v2087 = vpack.c.bf16 %v2080, %v2079
      %v2088 = vpack.c.bf16 %v2082, %v2081
      %v2089 = vpack.c.bf16 %v2084, %v2083
      %v2090 = vpack.c.bf16 %v2086, %v2085
      %v2091 = vld [vmem:[%s6] sm:$0xf]
      %v2092 = vld [vmem:[%s6 + $0x4] sm:$0xf]
      %v2093 = vld [vmem:[%s6 + $0x8] sm:$0xf]
      %v2094 = vld [vmem:[%s6 + $0xc] sm:$0xf]
      %v2095 = vld [vmem:[%s6 + $0x10] sm:$0x3]
      %v2101 = vunpack.c.l.b16 %v2091
      %v2102 = vunpack.c.l.b16 %v2092
      %v2103 = vunpack.c.l.b16 %v2093
      %v2104 = vunpack.c.l.b16 %v2094
      %v2105 = vunpack.c.l.b16 %v2095
      %v2106 = vpack.c.b16 %v2102, %v2101
      %v2107 = vpack.c.b16 %v2104, %v2103
      %v2108 = vpack.c.b16 %v2105, %v2105
      %v2112 = vsel %vm1078, %v2087, 0
      %v2115 = vsel %vm1078, %v2088, 0
      %v2118 = vsel %vm1078, %v2089, 0
      %v2121 = vsel %vm1078, %v2090, 0
      %v2124 = vsel %vm1091, %v2108, 0
      %2126 = vmatprep.subr.bf16.mxu0 0
      %2127 = vmatpush1.bf16.msra.mxu0 0
      %2128 = vmatprep.subr.bf16.mxu0 0
      %2129 = vmatpush1.bf16.msra.mxu0 0
      %2130 = vmatprep.subr.bf16.mxu0 0
      %2131 = vmatpush1.bf16.msra.mxu0 0
      %2132 = vmatprep.subr.bf16.mxu0 0
      %2133 = vmatpush1.bf16.msra.mxu0 0
      %2134 = vmatprep.subr.bf16.mxu0 0
      %2135 = vmatpush1.bf16.msra.mxu0 0
      %2136 = vmatprep.subr.bf16.mxu0 0
      %2137 = vmatpush1.bf16.msra.mxu0 %v2124
      %2138 = vmatprep.subr.bf16.mxu0 0
      %2139 = vmatpush1.bf16.msra.mxu0 %v2107
      %2140 = vmatprep.subr.bf16.mxu0 0
      %2141 = vmatpush1.bf16.msra.mxu0 %v2106
      %2142 = vmatprep.subr.bf16.mxu0 0
      %2143 = vmatpush2.bf16.msra.mxu0 0
      %2144 = vmatprep.subr.bf16.mxu0 0
      %2145 = vmatpush2.bf16.msra.mxu0 0
      %2146 = vmatprep.subr.bf16.mxu0 0
      %2147 = vmatpush2.bf16.msra.mxu0 0
      %2148 = vmatprep.subr.bf16.mxu0 0
      %2149 = vmatpush2.bf16.msra.mxu0 0
      %2150 = vmatprep.subr.bf16.mxu0 0
      %2151 = vmatpush2.bf16.msra.mxu0 0
      %2152 = vmatprep.subr.bf16.mxu0 0
      %2153 = vmatpush2.bf16.msra.mxu0 0
      %2154 = vmatprep.subr.bf16.mxu0 0
      %2155 = vmatpush2.bf16.msra.mxu0 0
      %2156 = vmatprep.subr.bf16.mxu0 0
      %2157 = vmatpush2.bf16.msra.mxu0 0
      %2158 = vmatprep.mubr.bf16.mxu0 0
      %2159 = vmatmul.mubr.bf16.gmra.mxu0 %v2112
      %v2160 = vpop.f32.mrf.mxu0
      %v2161 = vadd.f32 0.0, %v2160
      %v2162 = vpop.f32.mrf.mxu0
      %v2163 = vpop.f32.mrf.mxu0
      %v2164 = vadd.f32 0.0, %v2163
      %v2165 = vpop.f32.mrf.mxu0
      %2166 = vmatprep.mubr.bf16.mxu0 0
      %2167 = vmatmul.mubr.bf16.gmra.mxu0 %v2115
      %v2168 = vpop.f32.mrf.mxu0
      %v2169 = vadd.f32 0.0, %v2168
      %v2170 = vpop.f32.mrf.mxu0
      %v2171 = vpop.f32.mrf.mxu0
      %v2172 = vadd.f32 0.0, %v2171
      %v2173 = vpop.f32.mrf.mxu0
      %2174 = vmatprep.mubr.bf16.mxu0 0
      %2175 = vmatmul.mubr.bf16.gmra.mxu0 %v2118
      %v2176 = vpop.f32.mrf.mxu0
      %v2177 = vadd.f32 0.0, %v2176
      %v2178 = vpop.f32.mrf.mxu0
      %v2179 = vpop.f32.mrf.mxu0
      %v2180 = vadd.f32 0.0, %v2179
      %v2181 = vpop.f32.mrf.mxu0
      %2182 = vmatprep.mubr.bf16.mxu0 0
      %2183 = vmatmul.mubr.bf16.gmra.mxu0 %v2121
      %v2184 = vpop.f32.mrf.mxu0
      %v2185 = vadd.f32 0.0, %v2184
      %v2186 = vpop.f32.mrf.mxu0
      %v2187 = vpop.f32.mrf.mxu0
      %v2188 = vadd.f32 0.0, %v2187
      %v2189 = vpop.f32.mrf.mxu0
      %2190 = vdwg.mxu0
      %v2191 = vld [vmem:[%s7] sm:$0x1]
      %v2192 = vlaneseq
      %v2193 = vshrl.u32 %v2192, 7
      %v2194 = vsub.s32 0, %v2193
      %v2195 = vrot.slane %v2191, %v2194
      %v2196 = vmul.f32 %v2161, %v2195
      %v2197 = vmul.f32 %v2164, %v2195
      %v2198 = vmul.f32 %v2169, %v2195
      %v2199 = vmul.f32 %v2172, %v2195
      %v2200 = vmul.f32 %v2177, %v2195
      %v2201 = vmul.f32 %v2180, %v2195
      %v2202 = vmul.f32 %v2185, %v2195
      %v2203 = vmul.f32 %v2188, %v2195
      %v2204 = vld [vmem:[%s7 + $0x1] sm:$0x1]
      %v2205 = vlaneseq
      %v2206 = vshrl.u32 %v2205, 7
      %v2207 = vsub.s32 0, %v2206
      %v2208 = vrot.slane %v2204, %v2207
      %v2209 = vadd.f32 %v2196, %v2208
      %v2210 = vadd.f32 %v2197, %v2208
      %v2211 = vadd.f32 %v2198, %v2208
      %v2212 = vadd.f32 %v2199, %v2208
      %v2213 = vadd.f32 %v2200, %v2208
      %v2214 = vadd.f32 %v2201, %v2208
      %v2215 = vadd.f32 %v2202, %v2208
      %v2216 = vadd.f32 %v2203, %v2208
      %v2217 = vmax.f32 %v2209, 0.0
      %v2218 = vmax.f32 %v2210, 0.0
      %v2219 = vmax.f32 %v2211, 0.0
      %v2220 = vmax.f32 %v2212, 0.0
      %v2221 = vmax.f32 %v2213, 0.0
      %v2222 = vmax.f32 %v2214, 0.0
      %v2223 = vmax.f32 %v2215, 0.0
      %v2224 = vmax.f32 %v2216, 0.0
      %2225 = vst.msk [vmem:[#allocation4] sm:$0xff] %vm991, 0.0
      %vm2226 = vcmask 58368
      %2227 = vst.msk [vmem:[#allocation4 + $0x8] sm:$0x3] %vm2226, 0.0
      %2228 = vst.msk [vmem:[#allocation4 + $0x10] sm:$0xff] %vm991, 0.0
      %2229 = vst.msk [vmem:[#allocation4 + $0x18] sm:$0x3] %vm2226, 0.0
      %2230 = vst.msk [vmem:[#allocation4 + $0x20] sm:$0xff] %vm991, 0.0
      %2231 = vst.msk [vmem:[#allocation4 + $0x28] sm:$0x3] %vm2226, 0.0
      %2232 = vst.msk [vmem:[#allocation4 + $0x30] sm:$0xff] %vm991, 0.0
      %2233 = vst.msk [vmem:[#allocation4 + $0x38] sm:$0x3] %vm2226, 0.0
      %2234 = vst.msk [vmem:[#allocation4 + $0x40] sm:$0xff] %vm991, 0.0
      %2235 = vst.msk [vmem:[#allocation4 + $0x48] sm:$0x3] %vm2226, 0.0
      %2236 = vst.msk [vmem:[#allocation4 + $0x50] sm:$0xff] %vm991, 0.0
      %2237 = vst.msk [vmem:[#allocation4 + $0x58] sm:$0x3] %vm2226, 0.0
      %2238 = vst.msk [vmem:[#allocation4 + $0x60] sm:$0xff] %vm991, 0.0
      %2239 = vst.msk [vmem:[#allocation4 + $0x68] sm:$0x3] %vm2226, 0.0
      %2240 = vst.msk [vmem:[#allocation4 + $0x70] sm:$0xff] %vm991, 0.0
      %2241 = vst.msk [vmem:[#allocation4 + $0x78] sm:$0x3] %vm2226, 0.0
      %2242 = vst.msk [vmem:[#allocation4 + $0x80] sm:$0xff] %vm991, 0.0
      %2243 = vst.msk [vmem:[#allocation4 + $0x88] sm:$0x3] %vm2226, 0.0
      %2244 = vst.msk [vmem:[#allocation4 + $0x90] sm:$0xff] %vm991, 0.0
      %2245 = vst.msk [vmem:[#allocation4 + $0x98] sm:$0x3] %vm2226, 0.0
      %2254 = vrot.lane.b32.xlu0 %v1725, 120
      %v2255 = vpop.permute.xlu0 %2254
      %2256 = vrot.lane.b32.xlu0 %v1726, 120
      %v2257 = vpop.permute.xlu0 %2256
      %2258 = vrot.lane.b32.xlu0 %v1727, 120
      %v2259 = vpop.permute.xlu0 %2258
      %2260 = vrot.lane.b32.xlu0 %v1728, 120
      %v2261 = vpop.permute.xlu0 %2260
      %2262 = vrot.lane.b32.xlu0 %v1729, 120
      %v2263 = vpop.permute.xlu0 %2262
      %2264 = vrot.lane.b32.xlu0 %v1730, 120
      %v2265 = vpop.permute.xlu0 %2264
      %2266 = vrot.lane.b32.xlu0 %v1731, 120
      %v2267 = vpop.permute.xlu0 %2266
      %2268 = vrot.lane.b32.xlu0 %v1732, 120
      %v2269 = vpop.permute.xlu0 %2268
      %s2278 = scalar_lea.vmem [#allocation4], 16
      %2279 = vst.msk [vmem:[%s2278 + $0x1] sm:$0xff] %vm991, %v2255
      %2280 = vst.msk [vmem:[%s2278 + $0x11] sm:$0xff] %vm991, %v2257
      %2281 = vst.msk [vmem:[%s2278 + $0x21] sm:$0xff] %vm991, %v2259
      %2282 = vst.msk [vmem:[%s2278 + $0x31] sm:$0xff] %vm991, %v2261
      %2283 = vst.msk [vmem:[%s2278 + $0x41] sm:$0xff] %vm991, %v2263
      %2284 = vst.msk [vmem:[%s2278 + $0x51] sm:$0xff] %vm991, %v2265
      %2285 = vst.msk [vmem:[%s2278 + $0x61] sm:$0xff] %vm991, %v2267
      %2286 = vst.msk [vmem:[%s2278 + $0x71] sm:$0xff] %vm991, %v2269
      %v2287 = vld [vmem:[#allocation4] sm:$0xff]
      %v2288 = vld [vmem:[#allocation4 + $0x10] sm:$0xff]
      %v2289 = vld [vmem:[#allocation4 + $0x20] sm:$0xff]
      %v2290 = vld [vmem:[#allocation4 + $0x30] sm:$0xff]
      %v2291 = vld [vmem:[#allocation4 + $0x40] sm:$0xff]
      %v2292 = vld [vmem:[#allocation4 + $0x50] sm:$0xff]
      %v2293 = vld [vmem:[#allocation4 + $0x60] sm:$0xff]
      %v2294 = vld [vmem:[#allocation4 + $0x70] sm:$0xff]
      %v2295 = vld [vmem:[#allocation4 + $0x1] sm:$0xff]
      %v2296 = vld [vmem:[#allocation4 + $0x11] sm:$0xff]
      %v2297 = vld [vmem:[#allocation4 + $0x21] sm:$0xff]
      %v2298 = vld [vmem:[#allocation4 + $0x31] sm:$0xff]
      %v2299 = vld [vmem:[#allocation4 + $0x41] sm:$0xff]
      %v2300 = vld [vmem:[#allocation4 + $0x51] sm:$0xff]
      %v2301 = vld [vmem:[#allocation4 + $0x61] sm:$0xff]
      %v2302 = vld [vmem:[#allocation4 + $0x71] sm:$0xff]
      %v2303 = vld [vmem:[#allocation4 + $0x2] sm:$0xff]
      %v2304 = vld [vmem:[#allocation4 + $0x12] sm:$0xff]
      %v2305 = vld [vmem:[#allocation4 + $0x22] sm:$0xff]
      %v2306 = vld [vmem:[#allocation4 + $0x32] sm:$0xff]
      %v2307 = vld [vmem:[#allocation4 + $0x42] sm:$0xff]
      %v2308 = vld [vmem:[#allocation4 + $0x52] sm:$0xff]
      %v2309 = vld [vmem:[#allocation4 + $0x62] sm:$0xff]
      %v2310 = vld [vmem:[#allocation4 + $0x72] sm:$0xff]
      %v2311 = vld [vmem:[%s2278] sm:$0xff]
      %v2312 = vld [vmem:[%s2278 + $0x10] sm:$0xff]
      %v2313 = vld [vmem:[%s2278 + $0x20] sm:$0xff]
      %v2314 = vld [vmem:[%s2278 + $0x30] sm:$0xff]
      %v2315 = vld [vmem:[%s2278 + $0x40] sm:$0xff]
      %v2316 = vld [vmem:[%s2278 + $0x50] sm:$0xff]
      %v2317 = vld [vmem:[%s2278 + $0x60] sm:$0xff]
      %v2318 = vld [vmem:[%s2278 + $0x70] sm:$0xff]
      %v2319 = vld [vmem:[%s2278 + $0x1] sm:$0xff]
      %v2320 = vld [vmem:[%s2278 + $0x11] sm:$0xff]
      %v2321 = vld [vmem:[%s2278 + $0x21] sm:$0xff]
      %v2322 = vld [vmem:[%s2278 + $0x31] sm:$0xff]
      %v2323 = vld [vmem:[%s2278 + $0x41] sm:$0xff]
      %v2324 = vld [vmem:[%s2278 + $0x51] sm:$0xff]
      %v2325 = vld [vmem:[%s2278 + $0x61] sm:$0xff]
      %v2326 = vld [vmem:[%s2278 + $0x71] sm:$0xff]
      %v2327 = vld [vmem:[%s2278 + $0x2] sm:$0xff]
      %v2328 = vld [vmem:[%s2278 + $0x12] sm:$0xff]
      %v2329 = vld [vmem:[%s2278 + $0x22] sm:$0xff]
      %v2330 = vld [vmem:[%s2278 + $0x32] sm:$0xff]
      %v2331 = vld [vmem:[%s2278 + $0x42] sm:$0xff]
      %v2332 = vld [vmem:[%s2278 + $0x52] sm:$0xff]
      %v2333 = vld [vmem:[%s2278 + $0x62] sm:$0xff]
      %v2334 = vld [vmem:[%s2278 + $0x72] sm:$0xff]
      %s2335 = scalar_lea.vmem [#allocation4], 32
      %v2336 = vld [vmem:[%s2335] sm:$0xff]
      %v2337 = vld [vmem:[%s2335 + $0x10] sm:$0xff]
      %v2338 = vld [vmem:[%s2335 + $0x20] sm:$0xff]
      %v2339 = vld [vmem:[%s2335 + $0x30] sm:$0xff]
      %v2340 = vld [vmem:[%s2335 + $0x40] sm:$0xff]
      %v2341 = vld [vmem:[%s2335 + $0x50] sm:$0xff]
      %v2342 = vld [vmem:[%s2335 + $0x60] sm:$0xff]
      %v2343 = vld [vmem:[%s2335 + $0x70] sm:$0xff]
      %v2344 = vld [vmem:[%s2335 + $0x1] sm:$0xff]
      %v2345 = vld [vmem:[%s2335 + $0x11] sm:$0xff]
      %v2346 = vld [vmem:[%s2335 + $0x21] sm:$0xff]
      %v2347 = vld [vmem:[%s2335 + $0x31] sm:$0xff]
      %v2348 = vld [vmem:[%s2335 + $0x41] sm:$0xff]
      %v2349 = vld [vmem:[%s2335 + $0x51] sm:$0xff]
      %v2350 = vld [vmem:[%s2335 + $0x61] sm:$0xff]
      %v2351 = vld [vmem:[%s2335 + $0x71] sm:$0xff]
      %v2352 = vld [vmem:[%s2335 + $0x2] sm:$0xff]
      %v2353 = vld [vmem:[%s2335 + $0x12] sm:$0xff]
      %v2354 = vld [vmem:[%s2335 + $0x22] sm:$0xff]
      %v2355 = vld [vmem:[%s2335 + $0x32] sm:$0xff]
      %v2356 = vld [vmem:[%s2335 + $0x42] sm:$0xff]
      %v2357 = vld [vmem:[%s2335 + $0x52] sm:$0xff]
      %v2358 = vld [vmem:[%s2335 + $0x62] sm:$0xff]
      %v2359 = vld [vmem:[%s2335 + $0x72] sm:$0xff]
      %2368 = vrot.lane.b32.xlu0 %v2295, 8
      %v2369 = vpop.permute.xlu0 %2368
      %2370 = vrot.lane.b32.xlu0 %v2296, 8
      %v2371 = vpop.permute.xlu0 %2370
      %2372 = vrot.lane.b32.xlu0 %v2297, 8
      %v2373 = vpop.permute.xlu0 %2372
      %2374 = vrot.lane.b32.xlu0 %v2298, 8
      %v2375 = vpop.permute.xlu0 %2374
      %2376 = vrot.lane.b32.xlu0 %v2299, 8
      %v2377 = vpop.permute.xlu0 %2376
      %2378 = vrot.lane.b32.xlu0 %v2300, 8
      %v2379 = vpop.permute.xlu0 %2378
      %2380 = vrot.lane.b32.xlu0 %v2301, 8
      %v2381 = vpop.permute.xlu0 %2380
      %2382 = vrot.lane.b32.xlu0 %v2302, 8
      %v2383 = vpop.permute.xlu0 %2382
      %2400 = vrot.lane.b32.xlu0 %v2303, 16
      %v2401 = vpop.permute.xlu0 %2400
      %2402 = vrot.lane.b32.xlu0 %v2304, 16
      %v2403 = vpop.permute.xlu0 %2402
      %2404 = vrot.lane.b32.xlu0 %v2305, 16
      %v2405 = vpop.permute.xlu0 %2404
      %2406 = vrot.lane.b32.xlu0 %v2306, 16
      %v2407 = vpop.permute.xlu0 %2406
      %2408 = vrot.lane.b32.xlu0 %v2307, 16
      %v2409 = vpop.permute.xlu0 %2408
      %2410 = vrot.lane.b32.xlu0 %v2308, 16
      %v2411 = vpop.permute.xlu0 %2410
      %2412 = vrot.lane.b32.xlu0 %v2309, 16
      %v2413 = vpop.permute.xlu0 %2412
      %2414 = vrot.lane.b32.xlu0 %v2310, 16
      %v2415 = vpop.permute.xlu0 %2414
      %2432 = vrot.lane.b32.xlu0 %v2311, 24
      %v2433 = vpop.permute.xlu0 %2432
      %2434 = vrot.lane.b32.xlu0 %v2312, 24
      %v2435 = vpop.permute.xlu0 %2434
      %2436 = vrot.lane.b32.xlu0 %v2313, 24
      %v2437 = vpop.permute.xlu0 %2436
      %2438 = vrot.lane.b32.xlu0 %v2314, 24
      %v2439 = vpop.permute.xlu0 %2438
      %2440 = vrot.lane.b32.xlu0 %v2315, 24
      %v2441 = vpop.permute.xlu0 %2440
      %2442 = vrot.lane.b32.xlu0 %v2316, 24
      %v2443 = vpop.permute.xlu0 %2442
      %2444 = vrot.lane.b32.xlu0 %v2317, 24
      %v2445 = vpop.permute.xlu0 %2444
      %2446 = vrot.lane.b32.xlu0 %v2318, 24
      %v2447 = vpop.permute.xlu0 %2446
      %2464 = vrot.lane.b32.xlu0 %v2319, 32
      %v2465 = vpop.permute.xlu0 %2464
      %2466 = vrot.lane.b32.xlu0 %v2320, 32
      %v2467 = vpop.permute.xlu0 %2466
      %2468 = vrot.lane.b32.xlu0 %v2321, 32
      %v2469 = vpop.permute.xlu0 %2468
      %2470 = vrot.lane.b32.xlu0 %v2322, 32
      %v2471 = vpop.permute.xlu0 %2470
      %2472 = vrot.lane.b32.xlu0 %v2323, 32
      %v2473 = vpop.permute.xlu0 %2472
      %2474 = vrot.lane.b32.xlu0 %v2324, 32
      %v2475 = vpop.permute.xlu0 %2474
      %2476 = vrot.lane.b32.xlu0 %v2325, 32
      %v2477 = vpop.permute.xlu0 %2476
      %2478 = vrot.lane.b32.xlu0 %v2326, 32
      %v2479 = vpop.permute.xlu0 %2478
      %2496 = vrot.lane.b32.xlu0 %v2327, 40
      %v2497 = vpop.permute.xlu0 %2496
      %2498 = vrot.lane.b32.xlu0 %v2328, 40
      %v2499 = vpop.permute.xlu0 %2498
      %2500 = vrot.lane.b32.xlu0 %v2329, 40
      %v2501 = vpop.permute.xlu0 %2500
      %2502 = vrot.lane.b32.xlu0 %v2330, 40
      %v2503 = vpop.permute.xlu0 %2502
      %2504 = vrot.lane.b32.xlu0 %v2331, 40
      %v2505 = vpop.permute.xlu0 %2504
      %2506 = vrot.lane.b32.xlu0 %v2332, 40
      %v2507 = vpop.permute.xlu0 %2506
      %2508 = vrot.lane.b32.xlu0 %v2333, 40
      %v2509 = vpop.permute.xlu0 %2508
      %2510 = vrot.lane.b32.xlu0 %v2334, 40
      %v2511 = vpop.permute.xlu0 %2510
      %2528 = vrot.lane.b32.xlu0 %v2336, 48
      %v2529 = vpop.permute.xlu0 %2528
      %2530 = vrot.lane.b32.xlu0 %v2337, 48
      %v2531 = vpop.permute.xlu0 %2530
      %2532 = vrot.lane.b32.xlu0 %v2338, 48
      %v2533 = vpop.permute.xlu0 %2532
      %2534 = vrot.lane.b32.xlu0 %v2339, 48
      %v2535 = vpop.permute.xlu0 %2534
      %2536 = vrot.lane.b32.xlu0 %v2340, 48
      %v2537 = vpop.permute.xlu0 %2536
      %2538 = vrot.lane.b32.xlu0 %v2341, 48
      %v2539 = vpop.permute.xlu0 %2538
      %2540 = vrot.lane.b32.xlu0 %v2342, 48
      %v2541 = vpop.permute.xlu0 %2540
      %2542 = vrot.lane.b32.xlu0 %v2343, 48
      %v2543 = vpop.permute.xlu0 %2542
      %2560 = vrot.lane.b32.xlu0 %v2344, 56
      %v2561 = vpop.permute.xlu0 %2560
      %2562 = vrot.lane.b32.xlu0 %v2345, 56
      %v2563 = vpop.permute.xlu0 %2562
      %2564 = vrot.lane.b32.xlu0 %v2346, 56
      %v2565 = vpop.permute.xlu0 %2564
      %2566 = vrot.lane.b32.xlu0 %v2347, 56
      %v2567 = vpop.permute.xlu0 %2566
      %2568 = vrot.lane.b32.xlu0 %v2348, 56
      %v2569 = vpop.permute.xlu0 %2568
      %2570 = vrot.lane.b32.xlu0 %v2349, 56
      %v2571 = vpop.permute.xlu0 %2570
      %2572 = vrot.lane.b32.xlu0 %v2350, 56
      %v2573 = vpop.permute.xlu0 %2572
      %2574 = vrot.lane.b32.xlu0 %v2351, 56
      %v2575 = vpop.permute.xlu0 %2574
      %2592 = vrot.lane.b32.xlu0 %v2352, 64
      %v2593 = vpop.permute.xlu0 %2592
      %2594 = vrot.lane.b32.xlu0 %v2353, 64
      %v2595 = vpop.permute.xlu0 %2594
      %2596 = vrot.lane.b32.xlu0 %v2354, 64
      %v2597 = vpop.permute.xlu0 %2596
      %2598 = vrot.lane.b32.xlu0 %v2355, 64
      %v2599 = vpop.permute.xlu0 %2598
      %2600 = vrot.lane.b32.xlu0 %v2356, 64
      %v2601 = vpop.permute.xlu0 %2600
      %2602 = vrot.lane.b32.xlu0 %v2357, 64
      %v2603 = vpop.permute.xlu0 %2602
      %2604 = vrot.lane.b32.xlu0 %v2358, 64
      %v2605 = vpop.permute.xlu0 %2604
      %2606 = vrot.lane.b32.xlu0 %v2359, 64
      %v2607 = vpop.permute.xlu0 %2606
      %v2616 = vsel %vm991, %v2287, %v2369
      %v2617 = vsel %vm991, %v2288, %v2371
      %v2618 = vsel %vm991, %v2289, %v2373
      %v2619 = vsel %vm991, %v2290, %v2375
      %v2620 = vsel %vm991, %v2291, %v2377
      %v2621 = vsel %vm991, %v2292, %v2379
      %v2622 = vsel %vm991, %v2293, %v2381
      %v2623 = vsel %vm991, %v2294, %v2383
      %v2624 = vsel %vm1009, %v2616, %v2401
      %v2625 = vsel %vm1009, %v2617, %v2403
      %v2626 = vsel %vm1009, %v2618, %v2405
      %v2627 = vsel %vm1009, %v2619, %v2407
      %v2628 = vsel %vm1009, %v2620, %v2409
      %v2629 = vsel %vm1009, %v2621, %v2411
      %v2630 = vsel %vm1009, %v2622, %v2413
      %v2631 = vsel %vm1009, %v2623, %v2415
      %v2632 = vsel %vm1027, %v2624, %v2433
      %v2633 = vsel %vm1027, %v2625, %v2435
      %v2634 = vsel %vm1027, %v2626, %v2437
      %v2635 = vsel %vm1027, %v2627, %v2439
      %v2636 = vsel %vm1027, %v2628, %v2441
      %v2637 = vsel %vm1027, %v2629, %v2443
      %v2638 = vsel %vm1027, %v2630, %v2445
      %v2639 = vsel %vm1027, %v2631, %v2447
      %v2640 = vsel %vm1045, %v2632, %v2465
      %v2641 = vsel %vm1045, %v2633, %v2467
      %v2642 = vsel %vm1045, %v2634, %v2469
      %v2643 = vsel %vm1045, %v2635, %v2471
      %v2644 = vsel %vm1045, %v2636, %v2473
      %v2645 = vsel %vm1045, %v2637, %v2475
      %v2646 = vsel %vm1045, %v2638, %v2477
      %v2647 = vsel %vm1045, %v2639, %v2479
      %vm2648 = vcmask 326656
      %v2649 = vsel %vm2648, %v2640, %v2497
      %v2650 = vsel %vm2648, %v2641, %v2499
      %v2651 = vsel %vm2648, %v2642, %v2501
      %v2652 = vsel %vm2648, %v2643, %v2503
      %v2653 = vsel %vm2648, %v2644, %v2505
      %v2654 = vsel %vm2648, %v2645, %v2507
      %v2655 = vsel %vm2648, %v2646, %v2509
      %v2656 = vsel %vm2648, %v2647, %v2511
      %vm2657 = vcmask 392192
      %v2658 = vsel %vm2657, %v2649, %v2529
      %v2659 = vsel %vm2657, %v2650, %v2531
      %v2660 = vsel %vm2657, %v2651, %v2533
      %v2661 = vsel %vm2657, %v2652, %v2535
      %v2662 = vsel %vm2657, %v2653, %v2537
      %v2663 = vsel %vm2657, %v2654, %v2539
      %v2664 = vsel %vm2657, %v2655, %v2541
      %v2665 = vsel %vm2657, %v2656, %v2543
      %vm2666 = vcmask 457728
      %v2667 = vsel %vm2666, %v2658, %v2561
      %v2668 = vsel %vm2666, %v2659, %v2563
      %v2669 = vsel %vm2666, %v2660, %v2565
      %v2670 = vsel %vm2666, %v2661, %v2567
      %v2671 = vsel %vm2666, %v2662, %v2569
      %v2672 = vsel %vm2666, %v2663, %v2571
      %v2673 = vsel %vm2666, %v2664, %v2573
      %v2674 = vsel %vm2666, %v2665, %v2575
      %vm2675 = vcmask 523264
      %v2676 = vsel %vm2675, %v2667, %v2593
      %v2677 = vsel %vm2675, %v2668, %v2595
      %v2678 = vsel %vm2675, %v2669, %v2597
      %v2679 = vsel %vm2675, %v2670, %v2599
      %v2680 = vsel %vm2675, %v2671, %v2601
      %v2681 = vsel %vm2675, %v2672, %v2603
      %v2682 = vsel %vm2675, %v2673, %v2605
      %v2683 = vsel %vm2675, %v2674, %v2607
      %v2684 = vpack.c.bf16 %v2677, %v2676
      %v2685 = vpack.c.bf16 %v2679, %v2678
      %v2686 = vpack.c.bf16 %v2681, %v2680
      %v2687 = vpack.c.bf16 %v2683, %v2682
      %v2688 = vld [vmem:[%s8] sm:$0xf]
      %v2689 = vld [vmem:[%s8 + $0x4] sm:$0xf]
      %v2690 = vld [vmem:[%s8 + $0x8] sm:$0xf]
      %v2691 = vld [vmem:[%s8 + $0xc] sm:$0xf]
      %v2692 = vld [vmem:[%s8 + $0x10] sm:$0xf]
      %v2693 = vld [vmem:[%s8 + $0x14] sm:$0xf]
      %v2694 = vld [vmem:[%s8 + $0x18] sm:$0xf]
      %v2695 = vld [vmem:[%s8 + $0x1c] sm:$0xf]
      %v2696 = vld [vmem:[%s8 + $0x20] sm:$0xf]
      %v2706 = vunpack.c.l.b16 %v2688
      %v2707 = vunpack.c.l.b16 %v2689
      %v2708 = vunpack.c.l.b16 %v2690
      %v2709 = vunpack.c.l.b16 %v2691
      %v2710 = vunpack.c.l.b16 %v2692
      %v2711 = vunpack.c.l.b16 %v2693
      %v2712 = vunpack.c.l.b16 %v2694
      %v2713 = vunpack.c.l.b16 %v2695
      %v2714 = vunpack.c.l.b16 %v2696
      %v2715 = vpack.c.b16 %v2707, %v2706
      %v2716 = vpack.c.b16 %v2709, %v2708
      %v2717 = vpack.c.b16 %v2711, %v2710
      %v2718 = vpack.c.b16 %v2713, %v2712
      %v2719 = vpack.c.b16 %v2714, %v2714
      %vm2724 = vcmask 588800
      %v2726 = vsel %vm2724, %v2684, 0
      %v2729 = vsel %vm2724, %v2685, 0
      %v2732 = vsel %vm2724, %v2686, 0
      %v2735 = vsel %vm2724, %v2687, 0
      %vm2737 = vcmask 1043456
      %v2739 = vsel %vm2737, %v2719, 0
      %2741 = vmatprep.subr.bf16.mxu0 0
      %2742 = vmatpush1.bf16.msra.mxu0 0
      %2743 = vmatprep.subr.bf16.mxu0 0
      %2744 = vmatpush1.bf16.msra.mxu0 0
      %2745 = vmatprep.subr.bf16.mxu0 0
      %2746 = vmatpush1.bf16.msra.mxu0 0
      %2747 = vmatprep.subr.bf16.mxu0 0
      %2748 = vmatpush1.bf16.msra.mxu0 %v2739
      %2749 = vmatprep.subr.bf16.mxu0 0
      %2750 = vmatpush1.bf16.msra.mxu0 %v2718
      %2751 = vmatprep.subr.bf16.mxu0 0
      %2752 = vmatpush1.bf16.msra.mxu0 %v2717
      %2753 = vmatprep.subr.bf16.mxu0 0
      %2754 = vmatpush1.bf16.msra.mxu0 %v2716
      %2755 = vmatprep.subr.bf16.mxu0 0
      %2756 = vmatpush1.bf16.msra.mxu0 %v2715
      %2757 = vmatprep.subr.bf16.mxu0 0
      %2758 = vmatpush2.bf16.msra.mxu0 0
      %2759 = vmatprep.subr.bf16.mxu0 0
      %2760 = vmatpush2.bf16.msra.mxu0 0
      %2761 = vmatprep.subr.bf16.mxu0 0
      %2762 = vmatpush2.bf16.msra.mxu0 0
      %2763 = vmatprep.subr.bf16.mxu0 0
      %2764 = vmatpush2.bf16.msra.mxu0 0
      %2765 = vmatprep.subr.bf16.mxu0 0
      %2766 = vmatpush2.bf16.msra.mxu0 0
      %2767 = vmatprep.subr.bf16.mxu0 0
      %2768 = vmatpush2.bf16.msra.mxu0 0
      %2769 = vmatprep.subr.bf16.mxu0 0
      %2770 = vmatpush2.bf16.msra.mxu0 0
      %2771 = vmatprep.subr.bf16.mxu0 0
      %2772 = vmatpush2.bf16.msra.mxu0 0
      %2773 = vmatprep.mubr.bf16.mxu0 0
      %2774 = vmatmul.mubr.bf16.gmra.mxu0 %v2726
      %v2775 = vpop.f32.mrf.mxu0
      %v2776 = vadd.f32 0.0, %v2775
      %v2777 = vpop.f32.mrf.mxu0
      %v2778 = vpop.f32.mrf.mxu0
      %v2779 = vadd.f32 0.0, %v2778
      %v2780 = vpop.f32.mrf.mxu0
      %2781 = vmatprep.mubr.bf16.mxu0 0
      %2782 = vmatmul.mubr.bf16.gmra.mxu0 %v2729
      %v2783 = vpop.f32.mrf.mxu0
      %v2784 = vadd.f32 0.0, %v2783
      %v2785 = vpop.f32.mrf.mxu0
      %v2786 = vpop.f32.mrf.mxu0
      %v2787 = vadd.f32 0.0, %v2786
      %v2788 = vpop.f32.mrf.mxu0
      %2789 = vmatprep.mubr.bf16.mxu0 0
      %2790 = vmatmul.mubr.bf16.gmra.mxu0 %v2732
      %v2791 = vpop.f32.mrf.mxu0
      %v2792 = vadd.f32 0.0, %v2791
      %v2793 = vpop.f32.mrf.mxu0
      %v2794 = vpop.f32.mrf.mxu0
      %v2795 = vadd.f32 0.0, %v2794
      %v2796 = vpop.f32.mrf.mxu0
      %2797 = vmatprep.mubr.bf16.mxu0 0
      %2798 = vmatmul.mubr.bf16.gmra.mxu0 %v2735
      %v2799 = vpop.f32.mrf.mxu0
      %v2800 = vadd.f32 0.0, %v2799
      %v2801 = vpop.f32.mrf.mxu0
      %v2802 = vpop.f32.mrf.mxu0
      %v2803 = vadd.f32 0.0, %v2802
      %v2804 = vpop.f32.mrf.mxu0
      %2805 = vdwg.mxu0
      %v2806 = vld [vmem:[%s9] sm:$0x1]
      %v2807 = vlaneseq
      %v2808 = vshrl.u32 %v2807, 7
      %v2809 = vsub.s32 0, %v2808
      %v2810 = vrot.slane %v2806, %v2809
      %v2811 = vmul.f32 %v2776, %v2810
      %v2812 = vmul.f32 %v2779, %v2810
      %v2813 = vmul.f32 %v2784, %v2810
      %v2814 = vmul.f32 %v2787, %v2810
      %v2815 = vmul.f32 %v2792, %v2810
      %v2816 = vmul.f32 %v2795, %v2810
      %v2817 = vmul.f32 %v2800, %v2810
      %v2818 = vmul.f32 %v2803, %v2810
      %v2819 = vld [vmem:[%s9 + $0x1] sm:$0x1]
      %v2820 = vlaneseq
      %v2821 = vshrl.u32 %v2820, 7
      %v2822 = vsub.s32 0, %v2821
      %v2823 = vrot.slane %v2819, %v2822
      %v2824 = vadd.f32 %v2811, %v2823
      %v2825 = vadd.f32 %v2812, %v2823
      %v2826 = vadd.f32 %v2813, %v2823
      %v2827 = vadd.f32 %v2814, %v2823
      %v2828 = vadd.f32 %v2815, %v2823
      %v2829 = vadd.f32 %v2816, %v2823
      %v2830 = vadd.f32 %v2817, %v2823
      %v2831 = vadd.f32 %v2818, %v2823
      %v2832 = vmax.f32 %v2824, 0.0
      %v2833 = vmax.f32 %v2825, 0.0
      %v2834 = vmax.f32 %v2826, 0.0
      %v2835 = vmax.f32 %v2827, 0.0
      %v2836 = vmax.f32 %v2828, 0.0
      %v2837 = vmax.f32 %v2829, 0.0
      %v2838 = vmax.f32 %v2830, 0.0
      %v2839 = vmax.f32 %v2831, 0.0
      %v2840 = vpack.c.bf16 %v2833, %v2832
      %v2841 = vpack.c.bf16 %v2835, %v2834
      %v2842 = vpack.c.bf16 %v2837, %v2836
      %v2843 = vpack.c.bf16 %v2839, %v2838
      %v2844 = vld [vmem:[%s10] sm:$0xf]
      %v2846 = vsel %vm991, %v2840, 0
      %v2849 = vsel %vm991, %v2841, 0
      %v2852 = vsel %vm991, %v2842, 0
      %v2855 = vsel %vm991, %v2843, 0
      %v2858 = vsel %vm2737, %v2844, 0
      %2860 = vmatprep.subr.bf16.mxu0 0
      %2861 = vmatpush1.bf16.msra.mxu0 0
      %2862 = vmatprep.subr.bf16.mxu0 0
      %2863 = vmatpush1.bf16.msra.mxu0 0
      %2864 = vmatprep.subr.bf16.mxu0 0
      %2865 = vmatpush1.bf16.msra.mxu0 0
      %2866 = vmatprep.subr.bf16.mxu0 0
      %2867 = vmatpush1.bf16.msra.mxu0 0
      %2868 = vmatprep.subr.bf16.mxu0 0
      %2869 = vmatpush1.bf16.msra.mxu0 0
      %2870 = vmatprep.subr.bf16.mxu0 0
      %2871 = vmatpush1.bf16.msra.mxu0 0
      %2872 = vmatprep.subr.bf16.mxu0 0
      %2873 = vmatpush1.bf16.msra.mxu0 0
      %2874 = vmatprep.subr.bf16.mxu0 0
      %2875 = vmatpush1.bf16.msra.mxu0 %v2858
      %2876 = vmatprep.subr.bf16.mxu0 0
      %2877 = vmatpush2.bf16.msra.mxu0 0
      %2878 = vmatprep.subr.bf16.mxu0 0
      %2879 = vmatpush2.bf16.msra.mxu0 0
      %2880 = vmatprep.subr.bf16.mxu0 0
      %2881 = vmatpush2.bf16.msra.mxu0 0
      %2882 = vmatprep.subr.bf16.mxu0 0
      %2883 = vmatpush2.bf16.msra.mxu0 0
      %2884 = vmatprep.subr.bf16.mxu0 0
      %2885 = vmatpush2.bf16.msra.mxu0 0
      %2886 = vmatprep.subr.bf16.mxu0 0
      %2887 = vmatpush2.bf16.msra.mxu0 0
      %2888 = vmatprep.subr.bf16.mxu0 0
      %2889 = vmatpush2.bf16.msra.mxu0 0
      %2890 = vmatprep.subr.bf16.mxu0 0
      %2891 = vmatpush2.bf16.msra.mxu0 0
      %2892 = vmatprep.mubr.bf16.mxu0 0
      %2893 = vmatmul.mubr.bf16.gmra.mxu0 %v2846
      %v2894 = vpop.f32.mrf.mxu0
      %v2895 = vadd.f32 0.0, %v2894
      %v2896 = vpop.f32.mrf.mxu0
      %v2897 = vpop.f32.mrf.mxu0
      %v2898 = vadd.f32 0.0, %v2897
      %v2899 = vpop.f32.mrf.mxu0
      %2900 = vmatprep.mubr.bf16.mxu0 0
      %2901 = vmatmul.mubr.bf16.gmra.mxu0 %v2849
      %v2902 = vpop.f32.mrf.mxu0
      %v2903 = vadd.f32 0.0, %v2902
      %v2904 = vpop.f32.mrf.mxu0
      %v2905 = vpop.f32.mrf.mxu0
      %v2906 = vadd.f32 0.0, %v2905
      %v2907 = vpop.f32.mrf.mxu0
      %2908 = vmatprep.mubr.bf16.mxu0 0
      %2909 = vmatmul.mubr.bf16.gmra.mxu0 %v2852
      %v2910 = vpop.f32.mrf.mxu0
      %v2911 = vadd.f32 0.0, %v2910
      %v2912 = vpop.f32.mrf.mxu0
      %v2913 = vpop.f32.mrf.mxu0
      %v2914 = vadd.f32 0.0, %v2913
      %v2915 = vpop.f32.mrf.mxu0
      %2916 = vmatprep.mubr.bf16.mxu0 0
      %2917 = vmatmul.mubr.bf16.gmra.mxu0 %v2855
      %v2918 = vpop.f32.mrf.mxu0
      %v2919 = vadd.f32 0.0, %v2918
      %v2920 = vpop.f32.mrf.mxu0
      %v2921 = vpop.f32.mrf.mxu0
      %v2922 = vadd.f32 0.0, %v2921
      %v2923 = vpop.f32.mrf.mxu0
      %2924 = vdwg.mxu0
      %v2925 = vpack.c.bf16 %v1187, %v1186
      %v2926 = vpack.c.bf16 %v1189, %v1188
      %v2927 = vpack.c.bf16 %v1191, %v1190
      %v2928 = vpack.c.bf16 %v1193, %v1192
      %v2929 = vpack.c.bf16 %v1718, %v1717
      %v2930 = vpack.c.bf16 %v1720, %v1719
      %v2931 = vpack.c.bf16 %v1722, %v1721
      %v2932 = vpack.c.bf16 %v1724, %v1723
      %v2934 = vsel %vm991, %v2925, 0
      %v2937 = vsel %vm991, %v2926, 0
      %v2940 = vsel %vm991, %v2927, 0
      %v2943 = vsel %vm991, %v2928, 0
      %v2946 = vsel %vm991, %v2929, 0
      %v2949 = vsel %vm991, %v2930, 0
      %v2952 = vsel %vm991, %v2931, 0
      %v2955 = vsel %vm991, %v2932, 0
      %2957 = vmatprep.subr.bf16.mxu0 0
      %2958 = vmatpush1.bf16.xpose.msra.mxu0 0
      %2959 = vmatprep.subr.bf16.mxu0 0
      %2960 = vmatpush1.bf16.xpose.msra.mxu0 0
      %2961 = vmatprep.subr.bf16.mxu0 0
      %2962 = vmatpush1.bf16.xpose.msra.mxu0 0
      %2963 = vmatprep.subr.bf16.mxu0 0
      %2964 = vmatpush1.bf16.xpose.msra.mxu0 0
      %2965 = vmatprep.subr.bf16.mxu0 0
      %2966 = vmatpush1.bf16.xpose.msra.mxu0 %v2955
      %2967 = vmatprep.subr.bf16.mxu0 0
      %2968 = vmatpush1.bf16.xpose.msra.mxu0 %v2952
      %2969 = vmatprep.subr.bf16.mxu0 0
      %2970 = vmatpush1.bf16.xpose.msra.mxu0 %v2949
      %2971 = vmatprep.subr.bf16.mxu0 0
      %2972 = vmatpush1.bf16.xpose.msra.mxu0 %v2946
      %2973 = vmatprep.subr.bf16.mxu0 0
      %2974 = vmatpush2.bf16.xpose.msra.mxu0 0
      %2975 = vmatprep.subr.bf16.mxu0 0
      %2976 = vmatpush2.bf16.xpose.msra.mxu0 0
      %2977 = vmatprep.subr.bf16.mxu0 0
      %2978 = vmatpush2.bf16.xpose.msra.mxu0 0
      %2979 = vmatprep.subr.bf16.mxu0 0
      %2980 = vmatpush2.bf16.xpose.msra.mxu0 0
      %2981 = vmatprep.subr.bf16.mxu0 0
      %2982 = vmatpush2.bf16.xpose.msra.mxu0 0
      %2983 = vmatprep.subr.bf16.mxu0 0
      %2984 = vmatpush2.bf16.xpose.msra.mxu0 0
      %2985 = vmatprep.subr.bf16.mxu0 0
      %2986 = vmatpush2.bf16.xpose.msra.mxu0 0
      %2987 = vmatprep.subr.bf16.mxu0 0
      %2988 = vmatpush2.bf16.xpose.msra.mxu0 0
      %2989 = vmatprep.mubr.bf16.mxu0 0
      %2990 = vmatmul.mubr.bf16.gmra.mxu0 %v2934
      %v2991 = vpop.f32.mrf.mxu0
      %v2992 = vadd.f32 0.0, %v2991
      %v2993 = vpop.f32.mrf.mxu0
      %v2994 = vpop.f32.mrf.mxu0
      %v2995 = vadd.f32 0.0, %v2994
      %v2996 = vpop.f32.mrf.mxu0
      %2997 = vmatprep.mubr.bf16.mxu0 0
      %2998 = vmatmul.mubr.bf16.gmra.mxu0 %v2937
      %v2999 = vpop.f32.mrf.mxu0
      %v3000 = vadd.f32 0.0, %v2999
      %v3001 = vpop.f32.mrf.mxu0
      %v3002 = vpop.f32.mrf.mxu0
      %v3003 = vadd.f32 0.0, %v3002
      %v3004 = vpop.f32.mrf.mxu0
      %3005 = vmatprep.mubr.bf16.mxu0 0
      %3006 = vmatmul.mubr.bf16.gmra.mxu0 %v2940
      %v3007 = vpop.f32.mrf.mxu0
      %v3008 = vadd.f32 0.0, %v3007
      %v3009 = vpop.f32.mrf.mxu0
      %v3010 = vpop.f32.mrf.mxu0
      %v3011 = vadd.f32 0.0, %v3010
      %v3012 = vpop.f32.mrf.mxu0
      %3013 = vmatprep.mubr.bf16.mxu0 0
      %3014 = vmatmul.mubr.bf16.gmra.mxu0 %v2943
      %v3015 = vpop.f32.mrf.mxu0
      %v3016 = vadd.f32 0.0, %v3015
      %v3017 = vpop.f32.mrf.mxu0
      %v3018 = vpop.f32.mrf.mxu0
      %v3019 = vadd.f32 0.0, %v3018
      %v3020 = vpop.f32.mrf.mxu0
      %3021 = vdwg.mxu0
      %v3022 = vsel %vm2675, %v2992, -inf
      %v3023 = vsel %vm2675, %v2995, -inf
      %v3024 = vsel %vm2675, %v3000, -inf
      %v3025 = vsel %vm2675, %v3003, -inf
      %v3026 = vsel %vm2675, %v3008, -inf
      %v3027 = vmax.f32 %v3022, %v3026
      %v3028 = vsel %vm2675, %v3011, -inf
      %v3029 = vmax.f32 %v3023, %v3028
      %v3030 = vsel %vm2675, %v3016, -inf
      %v3031 = vmax.f32 %v3024, %v3030
      %v3032 = vsel %vm2675, %v3019, -inf
      %v3033 = vmax.f32 %v3025, %v3032
      %v3034 = vmax.f32 %v3027, %v3029
      %v3035 = vmax.f32 %v3031, %v3033
      %v3036 = vmax.f32 %v3034, %v3035
      %v3037 = vrot.slane %v3036, 4
      %v3038 = vmax.f32 %v3036, %v3037
      %v3039 = vrot.slane %v3038, 2
      %v3040 = vmax.f32 %v3038, %v3039
      %v3041 = vrot.slane %v3040, 1
      %v3042 = vmax.f32 %v3040, %v3041
      %v3043 = vsub.f32 %v2992, %v3042
      %v3044 = vsub.f32 %v2995, %v3042
      %v3045 = vsub.f32 %v3000, %v3042
      %v3046 = vsub.f32 %v3003, %v3042
      %v3047 = vsub.f32 %v3008, %v3042
      %v3048 = vsub.f32 %v3011, %v3042
      %v3049 = vsub.f32 %v3016, %v3042
      %v3050 = vsub.f32 %v3019, %v3042
      %v3051 = vmul.f32 %v3043, 1.442695
      %v3052 = vpow.pop %v3051
      %v3053 = vmul.f32 %v3044, 1.442695
      %v3054 = vpow.pop %v3053
      %v3055 = vmul.f32 %v3045, 1.442695
      %v3056 = vpow.pop %v3055
      %v3057 = vmul.f32 %v3046, 1.442695
      %v3058 = vpow.pop %v3057
      %v3059 = vmul.f32 %v3047, 1.442695
      %v3060 = vpow.pop %v3059
      %v3061 = vmul.f32 %v3048, 1.442695
      %v3062 = vpow.pop %v3061
      %v3063 = vmul.f32 %v3049, 1.442695
      %v3064 = vpow.pop %v3063
      %v3065 = vmul.f32 %v3050, 1.442695
      %v3066 = vpow.pop %v3065
      %v3067 = vsel %vm2675, %v3052, 0.0
      %v3068 = vsel %vm2675, %v3054, 0.0
      %v3069 = vadd.f32 %v3067, %v3068
      %v3070 = vsel %vm2675, %v3056, 0.0
      %v3071 = vadd.f32 %v3069, %v3070
      %v3072 = vsel %vm2675, %v3058, 0.0
      %v3073 = vadd.f32 %v3071, %v3072
      %v3074 = vsel %vm2675, %v3060, 0.0
      %v3075 = vadd.f32 %v3073, %v3074
      %v3076 = vsel %vm2675, %v3062, 0.0
      %v3077 = vadd.f32 %v3075, %v3076
      %v3078 = vsel %vm2675, %v3064, 0.0
      %v3079 = vadd.f32 %v3077, %v3078
      %v3080 = vsel %vm2675, %v3066, 0.0
      %v3081 = vadd.f32 %v3079, %v3080
      %v3082 = vrot.slane %v3081, 4
      %v3083 = vadd.f32 %v3081, %v3082
      %v3084 = vrot.slane %v3083, 2
      %v3085 = vadd.f32 %v3083, %v3084
      %v3086 = vrot.slane %v3085, 1
      %v3087 = vadd.f32 %v3085, %v3086
      %v3088 = vrcp.pop %v3087
      %v3089 = vmul.f32 %v3052, %v3088
      %v3090 = vmul.f32 %v3054, %v3088
      %v3091 = vmul.f32 %v3056, %v3088
      %v3092 = vmul.f32 %v3058, %v3088
      %v3093 = vmul.f32 %v3060, %v3088
      %v3094 = vmul.f32 %v3062, %v3088
      %v3095 = vmul.f32 %v3064, %v3088
      %v3096 = vmul.f32 %v3066, %v3088
      %v3097 = vpack.c.bf16 %v3090, %v3089
      %v3098 = vpack.c.bf16 %v3092, %v3091
      %v3099 = vpack.c.bf16 %v3094, %v3093
      %v3100 = vpack.c.bf16 %v3096, %v3095
      %v3101 = vpack.c.bf16 %v2898, %v2895
      %v3102 = vpack.c.bf16 %v2906, %v2903
      %v3103 = vpack.c.bf16 %v2914, %v2911
      %v3104 = vpack.c.bf16 %v2922, %v2919
      %v3105 = vpack.c.bf16 %v2218, %v2217
      %v3106 = vpack.c.bf16 %v2220, %v2219
      %v3107 = vpack.c.bf16 %v2222, %v2221
      %v3108 = vpack.c.bf16 %v2224, %v2223
      %v3109 = vld [vmem:[%s11] sm:$0xf]
      %v3111 = vsel %vm991, %v3105, 0
      %v3114 = vsel %vm991, %v3106, 0
      %v3117 = vsel %vm991, %v3107, 0
      %v3120 = vsel %vm991, %v3108, 0
      %v3123 = vsel %vm2737, %v3109, 0
      %3125 = vmatprep.subr.bf16.mxu0 0
      %3126 = vmatpush1.bf16.msra.mxu0 0
      %3127 = vmatprep.subr.bf16.mxu0 0
      %3128 = vmatpush1.bf16.msra.mxu0 0
      %3129 = vmatprep.subr.bf16.mxu0 0
      %3130 = vmatpush1.bf16.msra.mxu0 0
      %3131 = vmatprep.subr.bf16.mxu0 0
      %3132 = vmatpush1.bf16.msra.mxu0 0
      %3133 = vmatprep.subr.bf16.mxu0 0
      %3134 = vmatpush1.bf16.msra.mxu0 0
      %3135 = vmatprep.subr.bf16.mxu0 0
      %3136 = vmatpush1.bf16.msra.mxu0 0
      %3137 = vmatprep.subr.bf16.mxu0 0
      %3138 = vmatpush1.bf16.msra.mxu0 0
      %3139 = vmatprep.subr.bf16.mxu0 0
      %3140 = vmatpush1.bf16.msra.mxu0 %v3123
      %3141 = vmatprep.subr.bf16.mxu0 0
      %3142 = vmatpush2.bf16.msra.mxu0 0
      %3143 = vmatprep.subr.bf16.mxu0 0
      %3144 = vmatpush2.bf16.msra.mxu0 0
      %3145 = vmatprep.subr.bf16.mxu0 0
      %3146 = vmatpush2.bf16.msra.mxu0 0
      %3147 = vmatprep.subr.bf16.mxu0 0
      %3148 = vmatpush2.bf16.msra.mxu0 0
      %3149 = vmatprep.subr.bf16.mxu0 0
      %3150 = vmatpush2.bf16.msra.mxu0 0
      %3151 = vmatprep.subr.bf16.mxu0 0
      %3152 = vmatpush2.bf16.msra.mxu0 0
      %3153 = vmatprep.subr.bf16.mxu0 0
      %3154 = vmatpush2.bf16.msra.mxu0 0
      %3155 = vmatprep.subr.bf16.mxu0 0
      %3156 = vmatpush2.bf16.msra.mxu0 0
      %3157 = vmatprep.mubr.bf16.mxu0 0
      %3158 = vmatmul.mubr.bf16.gmra.mxu0 %v3111
      %v3159 = vpop.f32.mrf.mxu0
      %v3160 = vadd.f32 0.0, %v3159
      %v3161 = vpop.f32.mrf.mxu0
      %v3162 = vpop.f32.mrf.mxu0
      %v3163 = vadd.f32 0.0, %v3162
      %v3164 = vpop.f32.mrf.mxu0
      %3165 = vmatprep.mubr.bf16.mxu0 0
      %3166 = vmatmul.mubr.bf16.gmra.mxu0 %v3114
      %v3167 = vpop.f32.mrf.mxu0
      %v3168 = vadd.f32 0.0, %v3167
      %v3169 = vpop.f32.mrf.mxu0
      %v3170 = vpop.f32.mrf.mxu0
      %v3171 = vadd.f32 0.0, %v3170
      %v3172 = vpop.f32.mrf.mxu0
      %3173 = vmatprep.mubr.bf16.mxu0 0
      %3174 = vmatmul.mubr.bf16.gmra.mxu0 %v3117
      %v3175 = vpop.f32.mrf.mxu0
      %v3176 = vadd.f32 0.0, %v3175
      %v3177 = vpop.f32.mrf.mxu0
      %v3178 = vpop.f32.mrf.mxu0
      %v3179 = vadd.f32 0.0, %v3178
      %v3180 = vpop.f32.mrf.mxu0
      %3181 = vmatprep.mubr.bf16.mxu0 0
      %3182 = vmatmul.mubr.bf16.gmra.mxu0 %v3120
      %v3183 = vpop.f32.mrf.mxu0
      %v3184 = vadd.f32 0.0, %v3183
      %v3185 = vpop.f32.mrf.mxu0
      %v3186 = vpop.f32.mrf.mxu0
      %v3187 = vadd.f32 0.0, %v3186
      %v3188 = vpop.f32.mrf.mxu0
      %3189 = vdwg.mxu0
      %v3191 = vsel %vm2675, %v3097, 0
      %v3194 = vsel %vm2675, %v3098, 0
      %v3197 = vsel %vm2675, %v3099, 0
      %v3200 = vsel %vm2675, %v3100, 0
      %3202 = vmatprep.subr.bf16.mxu0 0
      %3203 = vmatpush1.bf16.msra.mxu0 0
      %3204 = vmatprep.subr.bf16.mxu0 0
      %3205 = vmatpush1.bf16.msra.mxu0 0
      %3206 = vmatprep.subr.bf16.mxu0 0
      %3207 = vmatpush1.bf16.msra.mxu0 0
      %3208 = vmatprep.subr.bf16.mxu0 0
      %3209 = vmatpush1.bf16.msra.mxu0 0
      %3210 = vmatprep.subr.bf16.mxu0 0
      %3211 = vmatpush1.bf16.msra.mxu0 %v3104
      %3212 = vmatprep.subr.bf16.mxu0 0
      %3213 = vmatpush1.bf16.msra.mxu0 %v3103
      %3214 = vmatprep.subr.bf16.mxu0 0
      %3215 = vmatpush1.bf16.msra.mxu0 %v3102
      %3216 = vmatprep.subr.bf16.mxu0 0
      %3217 = vmatpush1.bf16.msra.mxu0 %v3101
      %3218 = vmatprep.subr.bf16.mxu0 0
      %3219 = vmatpush2.bf16.msra.mxu0 0
      %3220 = vmatprep.subr.bf16.mxu0 0
      %3221 = vmatpush2.bf16.msra.mxu0 0
      %3222 = vmatprep.subr.bf16.mxu0 0
      %3223 = vmatpush2.bf16.msra.mxu0 0
      %3224 = vmatprep.subr.bf16.mxu0 0
      %3225 = vmatpush2.bf16.msra.mxu0 0
      %3226 = vmatprep.subr.bf16.mxu0 0
      %3227 = vmatpush2.bf16.msra.mxu0 0
      %3228 = vmatprep.subr.bf16.mxu0 0
      %3229 = vmatpush2.bf16.msra.mxu0 0
      %3230 = vmatprep.subr.bf16.mxu0 0
      %3231 = vmatpush2.bf16.msra.mxu0 0
      %3232 = vmatprep.subr.bf16.mxu0 0
      %3233 = vmatpush2.bf16.msra.mxu0 0
      %3234 = vmatprep.mubr.bf16.mxu0 0
      %3235 = vmatmul.mubr.bf16.gmra.mxu0 %v3191
      %v3236 = vpop.f32.mrf.mxu0
      %v3237 = vadd.f32 %v3160, %v3236
      %v3238 = vpop.f32.mrf.mxu0
      %v3239 = vpop.f32.mrf.mxu0
      %v3240 = vadd.f32 %v3163, %v3239
      %v3241 = vpop.f32.mrf.mxu0
      %3242 = vmatprep.mubr.bf16.mxu0 0
      %3243 = vmatmul.mubr.bf16.gmra.mxu0 %v3194
      %v3244 = vpop.f32.mrf.mxu0
      %v3245 = vadd.f32 %v3168, %v3244
      %v3246 = vpop.f32.mrf.mxu0
      %v3247 = vpop.f32.mrf.mxu0
      %v3248 = vadd.f32 %v3171, %v3247
      %v3249 = vpop.f32.mrf.mxu0
      %3250 = vmatprep.mubr.bf16.mxu0 0
      %3251 = vmatmul.mubr.bf16.gmra.mxu0 %v3197
      %v3252 = vpop.f32.mrf.mxu0
      %v3253 = vadd.f32 %v3176, %v3252
      %v3254 = vpop.f32.mrf.mxu0
      %v3255 = vpop.f32.mrf.mxu0
      %v3256 = vadd.f32 %v3179, %v3255
      %v3257 = vpop.f32.mrf.mxu0
      %3258 = vmatprep.mubr.bf16.mxu0 0
      %3259 = vmatmul.mubr.bf16.gmra.mxu0 %v3200
      %v3260 = vpop.f32.mrf.mxu0
      %v3261 = vadd.f32 %v3184, %v3260
      %v3262 = vpop.f32.mrf.mxu0
      %v3263 = vpop.f32.mrf.mxu0
      %v3264 = vadd.f32 %v3187, %v3263
      %v3265 = vpop.f32.mrf.mxu0
      %3266 = vdwg.mxu0
      %v3267 = vld [vmem:[%s12] sm:$0x1]
      %v3268 = vlaneseq
      %v3269 = vshrl.u32 %v3268, 7
      %v3270 = vsub.s32 0, %v3269
      %v3271 = vrot.slane %v3267, %v3270
      %v3272 = vmul.f32 %v3237, %v3271
      %v3273 = vmul.f32 %v3240, %v3271
      %v3274 = vmul.f32 %v3245, %v3271
      %v3275 = vmul.f32 %v3248, %v3271
      %v3276 = vmul.f32 %v3253, %v3271
      %v3277 = vmul.f32 %v3256, %v3271
      %v3278 = vmul.f32 %v3261, %v3271
      %v3279 = vmul.f32 %v3264, %v3271
      %v3280 = vld [vmem:[%s12 + $0x1] sm:$0x1]
      %v3281 = vlaneseq
      %v3282 = vshrl.u32 %v3281, 7
      %v3283 = vsub.s32 0, %v3282
      %v3284 = vrot.slane %v3280, %v3283
      %v3285 = vadd.f32 %v3272, %v3284
      %v3286 = vadd.f32 %v3273, %v3284
      %v3287 = vadd.f32 %v3274, %v3284
      %v3288 = vadd.f32 %v3275, %v3284
      %v3289 = vadd.f32 %v3276, %v3284
      %v3290 = vadd.f32 %v3277, %v3284
      %v3291 = vadd.f32 %v3278, %v3284
      %v3292 = vadd.f32 %v3279, %v3284
      %v3293 = vtanh.pop %v3285
      %v3294 = vtanh.pop %v3286
      %v3295 = vtanh.pop %v3287
      %v3296 = vtanh.pop %v3288
      %v3297 = vtanh.pop %v3289
      %v3298 = vtanh.pop %v3290
      %v3299 = vtanh.pop %v3291
      %v3300 = vtanh.pop %v3292
      %3301 = vst.msk [vmem:[#allocation5] sm:$0xff] %vm991, 0.0
      %3302 = vst.msk [vmem:[#allocation5 + $0x8] sm:$0x3] %vm2226, 0.0
      %3303 = vst.msk [vmem:[#allocation5 + $0x10] sm:$0xff] %vm991, 0.0
      %3304 = vst.msk [vmem:[#allocation5 + $0x18] sm:$0x3] %vm2226, 0.0
      %3305 = vst.msk [vmem:[#allocation5 + $0x20] sm:$0xff] %vm991, 0.0
      %3306 = vst.msk [vmem:[#allocation5 + $0x28] sm:$0x3] %vm2226, 0.0
      %3307 = vst.msk [vmem:[#allocation5 + $0x30] sm:$0xff] %vm991, 0.0
      %3308 = vst.msk [vmem:[#allocation5 + $0x38] sm:$0x3] %vm2226, 0.0
      %3309 = vst.msk [vmem:[#allocation5 + $0x40] sm:$0xff] %vm991, 0.0
      %3310 = vst.msk [vmem:[#allocation5 + $0x48] sm:$0x3] %vm2226, 0.0
      %3311 = vst.msk [vmem:[#allocation5 + $0x50] sm:$0xff] %vm991, 0.0
      %3312 = vst.msk [vmem:[#allocation5 + $0x58] sm:$0x3] %vm2226, 0.0
      %3313 = vst.msk [vmem:[#allocation5 + $0x60] sm:$0xff] %vm991, 0.0
      %3314 = vst.msk [vmem:[#allocation5 + $0x68] sm:$0x3] %vm2226, 0.0
      %3315 = vst.msk [vmem:[#allocation5 + $0x70] sm:$0xff] %vm991, 0.0
      %3316 = vst.msk [vmem:[#allocation5 + $0x78] sm:$0x3] %vm2226, 0.0
      %3317 = vst.msk [vmem:[#allocation5 + $0x80] sm:$0xff] %vm991, 0.0
      %3318 = vst.msk [vmem:[#allocation5 + $0x88] sm:$0x3] %vm2226, 0.0
      %3319 = vst.msk [vmem:[#allocation5 + $0x90] sm:$0xff] %vm991, 0.0
      %3320 = vst.msk [vmem:[#allocation5 + $0x98] sm:$0x3] %vm2226, 0.0
      %s3321 = scalar_lea.vmem [#allocation5], 16
      %3322 = vst.msk [vmem:[%s3321 + $0x1] sm:$0xff] %vm991, %v3293
      %3323 = vst.msk [vmem:[%s3321 + $0x11] sm:$0xff] %vm991, %v3294
      %3324 = vst.msk [vmem:[%s3321 + $0x21] sm:$0xff] %vm991, %v3295
      %3325 = vst.msk [vmem:[%s3321 + $0x31] sm:$0xff] %vm991, %v3296
      %3326 = vst.msk [vmem:[%s3321 + $0x41] sm:$0xff] %vm991, %v3297
      %3327 = vst.msk [vmem:[%s3321 + $0x51] sm:$0xff] %vm991, %v3298
      %3328 = vst.msk [vmem:[%s3321 + $0x61] sm:$0xff] %vm991, %v3299
      %3329 = vst.msk [vmem:[%s3321 + $0x71] sm:$0xff] %vm991, %v3300
      %v3330 = vld [vmem:[#allocation5] sm:$0xff]
      %v3331 = vld [vmem:[#allocation5 + $0x10] sm:$0xff]
      %v3332 = vld [vmem:[#allocation5 + $0x20] sm:$0xff]
      %v3333 = vld [vmem:[#allocation5 + $0x30] sm:$0xff]
      %v3334 = vld [vmem:[#allocation5 + $0x40] sm:$0xff]
      %v3335 = vld [vmem:[#allocation5 + $0x50] sm:$0xff]
      %v3336 = vld [vmem:[#allocation5 + $0x60] sm:$0xff]
      %v3337 = vld [vmem:[#allocation5 + $0x70] sm:$0xff]
      %v3338 = vld [vmem:[#allocation5 + $0x1] sm:$0xff]
      %v3339 = vld [vmem:[#allocation5 + $0x11] sm:$0xff]
      %v3340 = vld [vmem:[#allocation5 + $0x21] sm:$0xff]
      %v3341 = vld [vmem:[#allocation5 + $0x31] sm:$0xff]
      %v3342 = vld [vmem:[#allocation5 + $0x41] sm:$0xff]
      %v3343 = vld [vmem:[#allocation5 + $0x51] sm:$0xff]
      %v3344 = vld [vmem:[#allocation5 + $0x61] sm:$0xff]
      %v3345 = vld [vmem:[#allocation5 + $0x71] sm:$0xff]
      %v3346 = vld [vmem:[#allocation5 + $0x2] sm:$0xff]
      %v3347 = vld [vmem:[#allocation5 + $0x12] sm:$0xff]
      %v3348 = vld [vmem:[#allocation5 + $0x22] sm:$0xff]
      %v3349 = vld [vmem:[#allocation5 + $0x32] sm:$0xff]
      %v3350 = vld [vmem:[#allocation5 + $0x42] sm:$0xff]
      %v3351 = vld [vmem:[#allocation5 + $0x52] sm:$0xff]
      %v3352 = vld [vmem:[#allocation5 + $0x62] sm:$0xff]
      %v3353 = vld [vmem:[#allocation5 + $0x72] sm:$0xff]
      %v3354 = vld [vmem:[%s3321] sm:$0xff]
      %v3355 = vld [vmem:[%s3321 + $0x10] sm:$0xff]
      %v3356 = vld [vmem:[%s3321 + $0x20] sm:$0xff]
      %v3357 = vld [vmem:[%s3321 + $0x30] sm:$0xff]
      %v3358 = vld [vmem:[%s3321 + $0x40] sm:$0xff]
      %v3359 = vld [vmem:[%s3321 + $0x50] sm:$0xff]
      %v3360 = vld [vmem:[%s3321 + $0x60] sm:$0xff]
      %v3361 = vld [vmem:[%s3321 + $0x70] sm:$0xff]
      %v3362 = vld [vmem:[%s3321 + $0x1] sm:$0xff]
      %v3363 = vld [vmem:[%s3321 + $0x11] sm:$0xff]
      %v3364 = vld [vmem:[%s3321 + $0x21] sm:$0xff]
      %v3365 = vld [vmem:[%s3321 + $0x31] sm:$0xff]
      %v3366 = vld [vmem:[%s3321 + $0x41] sm:$0xff]
      %v3367 = vld [vmem:[%s3321 + $0x51] sm:$0xff]
      %v3368 = vld [vmem:[%s3321 + $0x61] sm:$0xff]
      %v3369 = vld [vmem:[%s3321 + $0x71] sm:$0xff]
      %v3370 = vld [vmem:[%s3321 + $0x2] sm:$0xff]
      %v3371 = vld [vmem:[%s3321 + $0x12] sm:$0xff]
      %v3372 = vld [vmem:[%s3321 + $0x22] sm:$0xff]
      %v3373 = vld [vmem:[%s3321 + $0x32] sm:$0xff]
      %v3374 = vld [vmem:[%s3321 + $0x42] sm:$0xff]
      %v3375 = vld [vmem:[%s3321 + $0x52] sm:$0xff]
      %v3376 = vld [vmem:[%s3321 + $0x62] sm:$0xff]
      %v3377 = vld [vmem:[%s3321 + $0x72] sm:$0xff]
      %s3378 = scalar_lea.vmem [#allocation5], 32
      %v3379 = vld [vmem:[%s3378] sm:$0xff]
      %v3380 = vld [vmem:[%s3378 + $0x10] sm:$0xff]
      %v3381 = vld [vmem:[%s3378 + $0x20] sm:$0xff]
      %v3382 = vld [vmem:[%s3378 + $0x30] sm:$0xff]
      %v3383 = vld [vmem:[%s3378 + $0x40] sm:$0xff]
      %v3384 = vld [vmem:[%s3378 + $0x50] sm:$0xff]
      %v3385 = vld [vmem:[%s3378 + $0x60] sm:$0xff]
      %v3386 = vld [vmem:[%s3378 + $0x70] sm:$0xff]
      %v3387 = vld [vmem:[%s3378 + $0x1] sm:$0xff]
      %v3388 = vld [vmem:[%s3378 + $0x11] sm:$0xff]
      %v3389 = vld [vmem:[%s3378 + $0x21] sm:$0xff]
      %v3390 = vld [vmem:[%s3378 + $0x31] sm:$0xff]
      %v3391 = vld [vmem:[%s3378 + $0x41] sm:$0xff]
      %v3392 = vld [vmem:[%s3378 + $0x51] sm:$0xff]
      %v3393 = vld [vmem:[%s3378 + $0x61] sm:$0xff]
      %v3394 = vld [vmem:[%s3378 + $0x71] sm:$0xff]
      %v3395 = vld [vmem:[%s3378 + $0x2] sm:$0xff]
      %v3396 = vld [vmem:[%s3378 + $0x12] sm:$0xff]
      %v3397 = vld [vmem:[%s3378 + $0x22] sm:$0xff]
      %v3398 = vld [vmem:[%s3378 + $0x32] sm:$0xff]
      %v3399 = vld [vmem:[%s3378 + $0x42] sm:$0xff]
      %v3400 = vld [vmem:[%s3378 + $0x52] sm:$0xff]
      %v3401 = vld [vmem:[%s3378 + $0x62] sm:$0xff]
      %v3402 = vld [vmem:[%s3378 + $0x72] sm:$0xff]
      %3411 = vrot.lane.b32.xlu0 %v3338, 8
      %v3412 = vpop.permute.xlu0 %3411
      %3413 = vrot.lane.b32.xlu0 %v3339, 8
      %v3414 = vpop.permute.xlu0 %3413
      %3415 = vrot.lane.b32.xlu0 %v3340, 8
      %v3416 = vpop.permute.xlu0 %3415
      %3417 = vrot.lane.b32.xlu0 %v3341, 8
      %v3418 = vpop.permute.xlu0 %3417
      %3419 = vrot.lane.b32.xlu0 %v3342, 8
      %v3420 = vpop.permute.xlu0 %3419
      %3421 = vrot.lane.b32.xlu0 %v3343, 8
      %v3422 = vpop.permute.xlu0 %3421
      %3423 = vrot.lane.b32.xlu0 %v3344, 8
      %v3424 = vpop.permute.xlu0 %3423
      %3425 = vrot.lane.b32.xlu0 %v3345, 8
      %v3426 = vpop.permute.xlu0 %3425
      %3443 = vrot.lane.b32.xlu0 %v3346, 16
      %v3444 = vpop.permute.xlu0 %3443
      %3445 = vrot.lane.b32.xlu0 %v3347, 16
      %v3446 = vpop.permute.xlu0 %3445
      %3447 = vrot.lane.b32.xlu0 %v3348, 16
      %v3448 = vpop.permute.xlu0 %3447
      %3449 = vrot.lane.b32.xlu0 %v3349, 16
      %v3450 = vpop.permute.xlu0 %3449
      %3451 = vrot.lane.b32.xlu0 %v3350, 16
      %v3452 = vpop.permute.xlu0 %3451
      %3453 = vrot.lane.b32.xlu0 %v3351, 16
      %v3454 = vpop.permute.xlu0 %3453
      %3455 = vrot.lane.b32.xlu0 %v3352, 16
      %v3456 = vpop.permute.xlu0 %3455
      %3457 = vrot.lane.b32.xlu0 %v3353, 16
      %v3458 = vpop.permute.xlu0 %3457
      %3475 = vrot.lane.b32.xlu0 %v3354, 24
      %v3476 = vpop.permute.xlu0 %3475
      %3477 = vrot.lane.b32.xlu0 %v3355, 24
      %v3478 = vpop.permute.xlu0 %3477
      %3479 = vrot.lane.b32.xlu0 %v3356, 24
      %v3480 = vpop.permute.xlu0 %3479
      %3481 = vrot.lane.b32.xlu0 %v3357, 24
      %v3482 = vpop.permute.xlu0 %3481
      %3483 = vrot.lane.b32.xlu0 %v3358, 24
      %v3484 = vpop.permute.xlu0 %3483
      %3485 = vrot.lane.b32.xlu0 %v3359, 24
      %v3486 = vpop.permute.xlu0 %3485
      %3487 = vrot.lane.b32.xlu0 %v3360, 24
      %v3488 = vpop.permute.xlu0 %3487
      %3489 = vrot.lane.b32.xlu0 %v3361, 24
      %v3490 = vpop.permute.xlu0 %3489
      %3507 = vrot.lane.b32.xlu0 %v3362, 32
      %v3508 = vpop.permute.xlu0 %3507
      %3509 = vrot.lane.b32.xlu0 %v3363, 32
      %v3510 = vpop.permute.xlu0 %3509
      %3511 = vrot.lane.b32.xlu0 %v3364, 32
      %v3512 = vpop.permute.xlu0 %3511
      %3513 = vrot.lane.b32.xlu0 %v3365, 32
      %v3514 = vpop.permute.xlu0 %3513
      %3515 = vrot.lane.b32.xlu0 %v3366, 32
      %v3516 = vpop.permute.xlu0 %3515
      %3517 = vrot.lane.b32.xlu0 %v3367, 32
      %v3518 = vpop.permute.xlu0 %3517
      %3519 = vrot.lane.b32.xlu0 %v3368, 32
      %v3520 = vpop.permute.xlu0 %3519
      %3521 = vrot.lane.b32.xlu0 %v3369, 32
      %v3522 = vpop.permute.xlu0 %3521
      %3539 = vrot.lane.b32.xlu0 %v3370, 40
      %v3540 = vpop.permute.xlu0 %3539
      %3541 = vrot.lane.b32.xlu0 %v3371, 40
      %v3542 = vpop.permute.xlu0 %3541
      %3543 = vrot.lane.b32.xlu0 %v3372, 40
      %v3544 = vpop.permute.xlu0 %3543
      %3545 = vrot.lane.b32.xlu0 %v3373, 40
      %v3546 = vpop.permute.xlu0 %3545
      %3547 = vrot.lane.b32.xlu0 %v3374, 40
      %v3548 = vpop.permute.xlu0 %3547
      %3549 = vrot.lane.b32.xlu0 %v3375, 40
      %v3550 = vpop.permute.xlu0 %3549
      %3551 = vrot.lane.b32.xlu0 %v3376, 40
      %v3552 = vpop.permute.xlu0 %3551
      %3553 = vrot.lane.b32.xlu0 %v3377, 40
      %v3554 = vpop.permute.xlu0 %3553
      %3571 = vrot.lane.b32.xlu0 %v3379, 48
      %v3572 = vpop.permute.xlu0 %3571
      %3573 = vrot.lane.b32.xlu0 %v3380, 48
      %v3574 = vpop.permute.xlu0 %3573
      %3575 = vrot.lane.b32.xlu0 %v3381, 48
      %v3576 = vpop.permute.xlu0 %3575
      %3577 = vrot.lane.b32.xlu0 %v3382, 48
      %v3578 = vpop.permute.xlu0 %3577
      %3579 = vrot.lane.b32.xlu0 %v3383, 48
      %v3580 = vpop.permute.xlu0 %3579
      %3581 = vrot.lane.b32.xlu0 %v3384, 48
      %v3582 = vpop.permute.xlu0 %3581
      %3583 = vrot.lane.b32.xlu0 %v3385, 48
      %v3584 = vpop.permute.xlu0 %3583
      %3585 = vrot.lane.b32.xlu0 %v3386, 48
      %v3586 = vpop.permute.xlu0 %3585
      %3603 = vrot.lane.b32.xlu0 %v3387, 56
      %v3604 = vpop.permute.xlu0 %3603
      %3605 = vrot.lane.b32.xlu0 %v3388, 56
      %v3606 = vpop.permute.xlu0 %3605
      %3607 = vrot.lane.b32.xlu0 %v3389, 56
      %v3608 = vpop.permute.xlu0 %3607
      %3609 = vrot.lane.b32.xlu0 %v3390, 56
      %v3610 = vpop.permute.xlu0 %3609
      %3611 = vrot.lane.b32.xlu0 %v3391, 56
      %v3612 = vpop.permute.xlu0 %3611
      %3613 = vrot.lane.b32.xlu0 %v3392, 56
      %v3614 = vpop.permute.xlu0 %3613
      %3615 = vrot.lane.b32.xlu0 %v3393, 56
      %v3616 = vpop.permute.xlu0 %3615
      %3617 = vrot.lane.b32.xlu0 %v3394, 56
      %v3618 = vpop.permute.xlu0 %3617
      %3635 = vrot.lane.b32.xlu0 %v3395, 64
      %v3636 = vpop.permute.xlu0 %3635
      %3637 = vrot.lane.b32.xlu0 %v3396, 64
      %v3638 = vpop.permute.xlu0 %3637
      %3639 = vrot.lane.b32.xlu0 %v3397, 64
      %v3640 = vpop.permute.xlu0 %3639
      %3641 = vrot.lane.b32.xlu0 %v3398, 64
      %v3642 = vpop.permute.xlu0 %3641
      %3643 = vrot.lane.b32.xlu0 %v3399, 64
      %v3644 = vpop.permute.xlu0 %3643
      %3645 = vrot.lane.b32.xlu0 %v3400, 64
      %v3646 = vpop.permute.xlu0 %3645
      %3647 = vrot.lane.b32.xlu0 %v3401, 64
      %v3648 = vpop.permute.xlu0 %3647
      %3649 = vrot.lane.b32.xlu0 %v3402, 64
      %v3650 = vpop.permute.xlu0 %3649
      %v3659 = vsel %vm991, %v3330, %v3412
      %v3660 = vsel %vm991, %v3331, %v3414
      %v3661 = vsel %vm991, %v3332, %v3416
      %v3662 = vsel %vm991, %v3333, %v3418
      %v3663 = vsel %vm991, %v3334, %v3420
      %v3664 = vsel %vm991, %v3335, %v3422
      %v3665 = vsel %vm991, %v3336, %v3424
      %v3666 = vsel %vm991, %v3337, %v3426
      %v3667 = vsel %vm1009, %v3659, %v3444
      %v3668 = vsel %vm1009, %v3660, %v3446
      %v3669 = vsel %vm1009, %v3661, %v3448
      %v3670 = vsel %vm1009, %v3662, %v3450
      %v3671 = vsel %vm1009, %v3663, %v3452
      %v3672 = vsel %vm1009, %v3664, %v3454
      %v3673 = vsel %vm1009, %v3665, %v3456
      %v3674 = vsel %vm1009, %v3666, %v3458
      %v3675 = vsel %vm1027, %v3667, %v3476
      %v3676 = vsel %vm1027, %v3668, %v3478
      %v3677 = vsel %vm1027, %v3669, %v3480
      %v3678 = vsel %vm1027, %v3670, %v3482
      %v3679 = vsel %vm1027, %v3671, %v3484
      %v3680 = vsel %vm1027, %v3672, %v3486
      %v3681 = vsel %vm1027, %v3673, %v3488
      %v3682 = vsel %vm1027, %v3674, %v3490
      %v3683 = vsel %vm1045, %v3675, %v3508
      %v3684 = vsel %vm1045, %v3676, %v3510
      %v3685 = vsel %vm1045, %v3677, %v3512
      %v3686 = vsel %vm1045, %v3678, %v3514
      %v3687 = vsel %vm1045, %v3679, %v3516
      %v3688 = vsel %vm1045, %v3680, %v3518
      %v3689 = vsel %vm1045, %v3681, %v3520
      %v3690 = vsel %vm1045, %v3682, %v3522
      %v3691 = vsel %vm2648, %v3683, %v3540
      %v3692 = vsel %vm2648, %v3684, %v3542
      %v3693 = vsel %vm2648, %v3685, %v3544
      %v3694 = vsel %vm2648, %v3686, %v3546
      %v3695 = vsel %vm2648, %v3687, %v3548
      %v3696 = vsel %vm2648, %v3688, %v3550
      %v3697 = vsel %vm2648, %v3689, %v3552
      %v3698 = vsel %vm2648, %v3690, %v3554
      %v3699 = vsel %vm2657, %v3691, %v3572
      %v3700 = vsel %vm2657, %v3692, %v3574
      %v3701 = vsel %vm2657, %v3693, %v3576
      %v3702 = vsel %vm2657, %v3694, %v3578
      %v3703 = vsel %vm2657, %v3695, %v3580
      %v3704 = vsel %vm2657, %v3696, %v3582
      %v3705 = vsel %vm2657, %v3697, %v3584
      %v3706 = vsel %vm2657, %v3698, %v3586
      %v3707 = vsel %vm2666, %v3699, %v3604
      %v3708 = vsel %vm2666, %v3700, %v3606
      %v3709 = vsel %vm2666, %v3701, %v3608
      %v3710 = vsel %vm2666, %v3702, %v3610
      %v3711 = vsel %vm2666, %v3703, %v3612
      %v3712 = vsel %vm2666, %v3704, %v3614
      %v3713 = vsel %vm2666, %v3705, %v3616
      %v3714 = vsel %vm2666, %v3706, %v3618
      %v3715 = vsel %vm2675, %v3707, %v3636
      %v3716 = vsel %vm2675, %v3708, %v3638
      %v3717 = vsel %vm2675, %v3709, %v3640
      %v3718 = vsel %vm2675, %v3710, %v3642
      %v3719 = vsel %vm2675, %v3711, %v3644
      %v3720 = vsel %vm2675, %v3712, %v3646
      %v3721 = vsel %vm2675, %v3713, %v3648
      %v3722 = vsel %vm2675, %v3714, %v3650
      %v3723 = vpack.c.bf16 %v3716, %v3715
      %v3724 = vpack.c.bf16 %v3718, %v3717
      %v3725 = vpack.c.bf16 %v3720, %v3719
      %v3726 = vpack.c.bf16 %v3722, %v3721
      %v3727 = vld [vmem:[%s13] sm:$0xf]
      %v3728 = vld [vmem:[%s13 + $0x4] sm:$0xf]
      %v3729 = vld [vmem:[%s13 + $0x8] sm:$0xf]
      %v3730 = vld [vmem:[%s13 + $0xc] sm:$0xf]
      %v3731 = vld [vmem:[%s13 + $0x10] sm:$0xf]
      %v3732 = vld [vmem:[%s13 + $0x14] sm:$0xf]
      %v3733 = vld [vmem:[%s13 + $0x18] sm:$0xf]
      %v3734 = vld [vmem:[%s13 + $0x1c] sm:$0xf]
      %v3735 = vld [vmem:[%s13 + $0x20] sm:$0xf]
      %v3745 = vunpack.c.l.b16 %v3727
      %v3746 = vunpack.c.l.b16 %v3728
      %v3747 = vunpack.c.l.b16 %v3729
      %v3748 = vunpack.c.l.b16 %v3730
      %v3749 = vunpack.c.l.b16 %v3731
      %v3750 = vunpack.c.l.b16 %v3732
      %v3751 = vunpack.c.l.b16 %v3733
      %v3752 = vunpack.c.l.b16 %v3734
      %v3753 = vunpack.c.l.b16 %v3735
      %v3754 = vpack.c.b16 %v3746, %v3745
      %v3755 = vpack.c.b16 %v3748, %v3747
      %v3756 = vpack.c.b16 %v3750, %v3749
      %v3757 = vpack.c.b16 %v3752, %v3751
      %v3758 = vpack.c.b16 %v3753, %v3753
      %v3764 = vsel %vm2724, %v3723, 0
      %v3767 = vsel %vm2724, %v3724, 0
      %v3770 = vsel %vm2724, %v3725, 0
      %v3773 = vsel %vm2724, %v3726, 0
      %v3776 = vsel %vm2737, %v3758, 0
      %3778 = vmatprep.subr.bf16.mxu0 0
      %3779 = vmatpush1.bf16.msra.mxu0 0
      %3780 = vmatprep.subr.bf16.mxu0 0
      %3781 = vmatpush1.bf16.msra.mxu0 0
      %3782 = vmatprep.subr.bf16.mxu0 0
      %3783 = vmatpush1.bf16.msra.mxu0 0
      %3784 = vmatprep.subr.bf16.mxu0 0
      %3785 = vmatpush1.bf16.msra.mxu0 %v3776
      %3786 = vmatprep.subr.bf16.mxu0 0
      %3787 = vmatpush1.bf16.msra.mxu0 %v3757
      %3788 = vmatprep.subr.bf16.mxu0 0
      %3789 = vmatpush1.bf16.msra.mxu0 %v3756
      %3790 = vmatprep.subr.bf16.mxu0 0
      %3791 = vmatpush1.bf16.msra.mxu0 %v3755
      %3792 = vmatprep.subr.bf16.mxu0 0
      %3793 = vmatpush1.bf16.msra.mxu0 %v3754
      %3794 = vmatprep.subr.bf16.mxu0 0
      %3795 = vmatpush2.bf16.msra.mxu0 0
      %3796 = vmatprep.subr.bf16.mxu0 0
      %3797 = vmatpush2.bf16.msra.mxu0 0
      %3798 = vmatprep.subr.bf16.mxu0 0
      %3799 = vmatpush2.bf16.msra.mxu0 0
      %3800 = vmatprep.subr.bf16.mxu0 0
      %3801 = vmatpush2.bf16.msra.mxu0 0
      %3802 = vmatprep.subr.bf16.mxu0 0
      %3803 = vmatpush2.bf16.msra.mxu0 0
      %3804 = vmatprep.subr.bf16.mxu0 0
      %3805 = vmatpush2.bf16.msra.mxu0 0
      %3806 = vmatprep.subr.bf16.mxu0 0
      %3807 = vmatpush2.bf16.msra.mxu0 0
      %3808 = vmatprep.subr.bf16.mxu0 0
      %3809 = vmatpush2.bf16.msra.mxu0 0
      %3810 = vmatprep.mubr.bf16.mxu0 0
      %3811 = vmatmul.mubr.bf16.gmra.mxu0 %v3764
      %v3812 = vpop.f32.mrf.mxu0
      %v3813 = vadd.f32 0.0, %v3812
      %v3814 = vpop.f32.mrf.mxu0
      %v3815 = vpop.f32.mrf.mxu0
      %v3816 = vadd.f32 0.0, %v3815
      %v3817 = vpop.f32.mrf.mxu0
      %3818 = vmatprep.mubr.bf16.mxu0 0
      %3819 = vmatmul.mubr.bf16.gmra.mxu0 %v3767
      %v3820 = vpop.f32.mrf.mxu0
      %v3821 = vadd.f32 0.0, %v3820
      %v3822 = vpop.f32.mrf.mxu0
      %v3823 = vpop.f32.mrf.mxu0
      %v3824 = vadd.f32 0.0, %v3823
      %v3825 = vpop.f32.mrf.mxu0
      %3826 = vmatprep.mubr.bf16.mxu0 0
      %3827 = vmatmul.mubr.bf16.gmra.mxu0 %v3770
      %v3828 = vpop.f32.mrf.mxu0
      %v3829 = vadd.f32 0.0, %v3828
      %v3830 = vpop.f32.mrf.mxu0
      %v3831 = vpop.f32.mrf.mxu0
      %v3832 = vadd.f32 0.0, %v3831
      %v3833 = vpop.f32.mrf.mxu0
      %3834 = vmatprep.mubr.bf16.mxu0 0
      %3835 = vmatmul.mubr.bf16.gmra.mxu0 %v3773
      %v3836 = vpop.f32.mrf.mxu0
      %v3837 = vadd.f32 0.0, %v3836
      %v3838 = vpop.f32.mrf.mxu0
      %v3839 = vpop.f32.mrf.mxu0
      %v3840 = vadd.f32 0.0, %v3839
      %v3841 = vpop.f32.mrf.mxu0
      %3842 = vdwg.mxu0
      %v3843 = vld [vmem:[%s14] sm:$0x1]
      %v3844 = vlaneseq
      %v3845 = vshrl.u32 %v3844, 7
      %v3846 = vsub.s32 0, %v3845
      %v3847 = vrot.slane %v3843, %v3846
      %v3848 = vmul.f32 %v3813, %v3847
      %v3849 = vmul.f32 %v3816, %v3847
      %v3850 = vmul.f32 %v3821, %v3847
      %v3851 = vmul.f32 %v3824, %v3847
      %v3852 = vmul.f32 %v3829, %v3847
      %v3853 = vmul.f32 %v3832, %v3847
      %v3854 = vmul.f32 %v3837, %v3847
      %v3855 = vmul.f32 %v3840, %v3847
      %v3856 = vld [vmem:[%s14 + $0x1] sm:$0x1]
      %v3857 = vlaneseq
      %v3858 = vshrl.u32 %v3857, 7
      %v3859 = vsub.s32 0, %v3858
      %v3860 = vrot.slane %v3856, %v3859
      %v3861 = vadd.f32 %v3848, %v3860
      %v3862 = vadd.f32 %v3849, %v3860
      %v3863 = vadd.f32 %v3850, %v3860
      %v3864 = vadd.f32 %v3851, %v3860
      %v3865 = vadd.f32 %v3852, %v3860
      %v3866 = vadd.f32 %v3853, %v3860
      %v3867 = vadd.f32 %v3854, %v3860
      %v3868 = vadd.f32 %v3855, %v3860
      %v3869 = vmax.f32 %v3861, 0.0
      %v3870 = vmax.f32 %v3862, 0.0
      %v3871 = vmax.f32 %v3863, 0.0
      %v3872 = vmax.f32 %v3864, 0.0
      %v3873 = vmax.f32 %v3865, 0.0
      %v3874 = vmax.f32 %v3866, 0.0
      %v3875 = vmax.f32 %v3867, 0.0
      %v3876 = vmax.f32 %v3868, 0.0
      %v3877 = vpack.c.bf16 %v3870, %v3869
      %v3878 = vpack.c.bf16 %v3872, %v3871
      %v3879 = vpack.c.bf16 %v3874, %v3873
      %v3880 = vpack.c.bf16 %v3876, %v3875
      %v3881 = vld [vmem:[%s15] sm:$0xf]
      %v3883 = vsel %vm991, %v3877, 0
      %v3886 = vsel %vm991, %v3878, 0
      %v3889 = vsel %vm991, %v3879, 0
      %v3892 = vsel %vm991, %v3880, 0
      %v3895 = vsel %vm2737, %v3881, 0
      %3897 = vmatprep.subr.bf16.mxu0 0
      %3898 = vmatpush1.bf16.msra.mxu0 0
      %3899 = vmatprep.subr.bf16.mxu0 0
      %3900 = vmatpush1.bf16.msra.mxu0 0
      %3901 = vmatprep.subr.bf16.mxu0 0
      %3902 = vmatpush1.bf16.msra.mxu0 0
      %3903 = vmatprep.subr.bf16.mxu0 0
      %3904 = vmatpush1.bf16.msra.mxu0 0
      %3905 = vmatprep.subr.bf16.mxu0 0
      %3906 = vmatpush1.bf16.msra.mxu0 0
      %3907 = vmatprep.subr.bf16.mxu0 0
      %3908 = vmatpush1.bf16.msra.mxu0 0
      %3909 = vmatprep.subr.bf16.mxu0 0
      %3910 = vmatpush1.bf16.msra.mxu0 0
      %3911 = vmatprep.subr.bf16.mxu0 0
      %3912 = vmatpush1.bf16.msra.mxu0 %v3895
      %3913 = vmatprep.subr.bf16.mxu0 0
      %3914 = vmatpush2.bf16.msra.mxu0 0
      %3915 = vmatprep.subr.bf16.mxu0 0
      %3916 = vmatpush2.bf16.msra.mxu0 0
      %3917 = vmatprep.subr.bf16.mxu0 0
      %3918 = vmatpush2.bf16.msra.mxu0 0
      %3919 = vmatprep.subr.bf16.mxu0 0
      %3920 = vmatpush2.bf16.msra.mxu0 0
      %3921 = vmatprep.subr.bf16.mxu0 0
      %3922 = vmatpush2.bf16.msra.mxu0 0
      %3923 = vmatprep.subr.bf16.mxu0 0
      %3924 = vmatpush2.bf16.msra.mxu0 0
      %3925 = vmatprep.subr.bf16.mxu0 0
      %3926 = vmatpush2.bf16.msra.mxu0 0
      %3927 = vmatprep.subr.bf16.mxu0 0
      %3928 = vmatpush2.bf16.msra.mxu0 0
      %3929 = vmatprep.mubr.bf16.mxu0 0
      %3930 = vmatmul.mubr.bf16.gmra.mxu0 %v3883
      %v3931 = vpop.f32.mrf.mxu0
      %v3932 = vadd.f32 %v3293, %v3931
      %v3933 = vpop.f32.mrf.mxu0
      %v3934 = vpop.f32.mrf.mxu0
      %v3935 = vadd.f32 %v3294, %v3934
      %v3936 = vpop.f32.mrf.mxu0
      %3937 = vmatprep.mubr.bf16.mxu0 0
      %3938 = vmatmul.mubr.bf16.gmra.mxu0 %v3886
      %v3939 = vpop.f32.mrf.mxu0
      %v3940 = vadd.f32 %v3295, %v3939
      %v3941 = vpop.f32.mrf.mxu0
      %v3942 = vpop.f32.mrf.mxu0
      %v3943 = vadd.f32 %v3296, %v3942
      %v3944 = vpop.f32.mrf.mxu0
      %3945 = vmatprep.mubr.bf16.mxu0 0
      %3946 = vmatmul.mubr.bf16.gmra.mxu0 %v3889
      %v3947 = vpop.f32.mrf.mxu0
      %v3948 = vadd.f32 %v3297, %v3947
      %v3949 = vpop.f32.mrf.mxu0
      %v3950 = vpop.f32.mrf.mxu0
      %v3951 = vadd.f32 %v3298, %v3950
      %v3952 = vpop.f32.mrf.mxu0
      %3953 = vmatprep.mubr.bf16.mxu0 0
      %3954 = vmatmul.mubr.bf16.gmra.mxu0 %v3892
      %v3955 = vpop.f32.mrf.mxu0
      %v3956 = vadd.f32 %v3299, %v3955
      %v3957 = vpop.f32.mrf.mxu0
      %v3958 = vpop.f32.mrf.mxu0
      %v3959 = vadd.f32 %v3300, %v3958
      %v3960 = vpop.f32.mrf.mxu0
      %3961 = vdwg.mxu0
      %v3962 = vld [vmem:[%s16] sm:$0x1]
      %v3963 = vlaneseq
      %v3964 = vshrl.u32 %v3963, 7
      %v3965 = vsub.s32 0, %v3964
      %v3966 = vrot.slane %v3962, %v3965
      %v3967 = vmul.f32 %v3932, %v3966
      %v3968 = vmul.f32 %v3935, %v3966
      %v3969 = vmul.f32 %v3940, %v3966
      %v3970 = vmul.f32 %v3943, %v3966
      %v3971 = vmul.f32 %v3948, %v3966
      %v3972 = vmul.f32 %v3951, %v3966
      %v3973 = vmul.f32 %v3956, %v3966
      %v3974 = vmul.f32 %v3959, %v3966
      %v3975 = vld [vmem:[%s16 + $0x1] sm:$0x1]
      %v3976 = vlaneseq
      %v3977 = vshrl.u32 %v3976, 7
      %v3978 = vsub.s32 0, %v3977
      %v3979 = vrot.slane %v3975, %v3978
      %v3980 = vadd.f32 %v3967, %v3979
      %v3981 = vadd.f32 %v3968, %v3979
      %v3982 = vadd.f32 %v3969, %v3979
      %v3983 = vadd.f32 %v3970, %v3979
      %v3984 = vadd.f32 %v3971, %v3979
      %v3985 = vadd.f32 %v3972, %v3979
      %v3986 = vadd.f32 %v3973, %v3979
      %v3987 = vadd.f32 %v3974, %v3979
      %v3988 = vtanh.pop %v3980
      %v3989 = vtanh.pop %v3981
      %v3990 = vtanh.pop %v3982
      %v3991 = vtanh.pop %v3983
      %v3992 = vtanh.pop %v3984
      %v3993 = vtanh.pop %v3985
      %v3994 = vtanh.pop %v3986
      %v3995 = vtanh.pop %v3987
      %3996 = vst.msk [vmem:[%s568] sm:$0xff] %vm991, %v3988
      %3997 = vst.msk [vmem:[%s568 + $0x8] sm:$0xff] %vm991, %v3989
      %3998 = vst.msk [vmem:[%s568 + $0x10] sm:$0xff] %vm991, %v3990
      %3999 = vst.msk [vmem:[%s568 + $0x18] sm:$0xff] %vm991, %v3991
      %4000 = vst.msk [vmem:[%s568 + $0x20] sm:$0xff] %vm991, %v3992
      %4001 = vst.msk [vmem:[%s568 + $0x28] sm:$0xff] %vm991, %v3993
      %4002 = vst.msk [vmem:[%s568 + $0x30] sm:$0xff] %vm991, %v3994
      %4003 = vst.msk [vmem:[%s568 + $0x38] sm:$0xff] %vm991, %v3995
      %p4004 = scmp.lt.s32.totalorder %s28, 1
      %s4005 = scalar_select %p4004, %s28, 1
      %s4006 = smul.addr %s4005, 8
      %s4007 = smul.addr %s4006, 8
      %s4008 = scalar_lea.vmem %s17, %s4007
      // Predicated region
      $region89: #{attention_block_forward.2} parent=87 // pred_check
        %p4009 = pneg %p413
      $region90: #{attention_block_forward.2} parent=87 // pred_check_branch
        %4011 = sbr.rel (%p4009) target = $region92
      $region91: #{attention_block_forward.2} parent=87 // pred_region
        _
      $region92: #{attention_block_forward.2} parent=87 // pred_fallthru
        _
    $region88: #{attention_block_forward.2} parent=5 // pred_fallthru
      _
    %p4012 = scmp.le.s32.totalorder 2, %s23
    // Predicated region
    $region93: #{attention_block_forward.2} parent=5 // pred_check
      %p4013 = pneg %p4012
    $region94: #{attention_block_forward.2} parent=5 // pred_check_branch
      %4015 = sbr.rel (%p4013) target = $region96
    $region95: #{attention_block_forward.2} parent=5 // pred_region
      %s4016 = ssub.s32 %s23, 2
      // Predicated region
      $region97: #{attention_block_forward.2} parent=95 // pred_check
        %p4017 = pneg %p419
      $region98: #{attention_block_forward.2} parent=95 // pred_check_branch
        %4019 = sbr.rel (%p4017) target = $region100
      $region99: #{attention_block_forward.2} parent=95 // pred_region
        %p4020 = scmp.lt.s32.totalorder %s29, 1
        %s4021 = scalar_select %p4020, %s29, 1
        %s4022 = smul.addr %s4021, 8
        %s4023 = smul.addr %s4022, 8
        %s4024 = scalar_lea.vmem %s17, %s4023
      $region100: #{attention_block_forward.2} parent=95 // pred_fallthru
        _
    $region96: #{attention_block_forward.2} parent=5 // pred_fallthru
      _
  $region6: #{attention_block_forward.2} parent=0 // loop_footer
    %s27 = sadd.s32 1, %s23
  $region7: #{attention_block_forward.2} parent=0 // loop_footer_branch
    %22 = sbr.rel target = $region3
  $region8: #{attention_block_forward.2} parent=0 // loop_exit
    _

</llo_original>
